<compile_context>
chip_gen: v7x
topology: tpu7x:2x2x1
jax: 0.10.0
libtpu: 0.0.40
codegen_flags: <defaults>
</compile_context>

<pallas_src>
import math

import jax
import jax.numpy as jnp
from jax.experimental import pallas as pl
from jax.experimental.pallas import tpu as pltpu

# ----------------------- small ViT config (scaled-down ViT-base) -------------
IMG = 32              # image size          (ViT-base: 224)
PATCH = 16            # patch size          (ViT-base: 16)
CIN = 3               # RGB channels
HID = 128             # hidden size         (ViT-base: 768)
HEADS = 4             # attention heads     (ViT-base: 12)
HEAD_DIM = HID // HEADS
INTER = 4 * HID       # MLP intermediate    (ViT-base: 3072)
LAYERS = 2            # encoder layers      (ViT-base: 12)
NPATCH = (IMG // PATCH) ** 2
SEQ = NPATCH + 1      # +CLS token
SEQ_PAD = ((SEQ + 7) // 8) * 8          # pad tokens per image to a sublane tile
K_PATCH = CIN * PATCH * PATCH           # flattened patch length (768)
NOUT = 7
NOUT_PAD = 128                          # lane-dense head output, slice to 7
EPS = 1e-12                             # HF ViT layer_norm_eps
SCALE = 1.0 / math.sqrt(HEAD_DIM)

B_TILE = 16                             # images per grid step
ROWS = B_TILE * SEQ_PAD                 # 128 token rows per grid step
MASK_VAL = -1e9


# ------------------------------- kernel --------------------------------------
def _layer_norm(z, g, b):
    mu = jnp.mean(z, axis=-1, keepdims=True)
    var = jnp.mean(jnp.square(z - mu), axis=-1, keepdims=True)
    return (z - mu) * jax.lax.rsqrt(var + EPS) * g + b


def _fused_forward_kernel(patches_ref, pw_ref, posbias_ref, amask_ref,
                          ln1g_ref, ln1b_ref, wqkv_ref, bqkv_ref,
                          wo_ref, bo_ref, ln2g_ref, ln2b_ref,
                          w1_ref, b1_ref, w2_ref, b2_ref,
                          lnfg_ref, lnfb_ref, fcw_ref, fcb_ref, out_ref):
    # ---- patch embedding over all ROWS token rows at once ----
    # patches rows: per image [zero CLS row, 4 patch rows, 3 zero pad rows];
    # posbias holds CLS+pos / pos+conv-bias per row, so no concatenate needed.
    tok = jnp.dot(patches_ref[...], pw_ref[...],
                  preferred_element_type=jnp.float32) + posbias_ref[...]     # (ROWS, H) f32

    amask = amask_ref[...]          # (ROWS, ROWS) additive block-diag/pad mask, hoisted

    for l in range(LAYERS):         # statically unrolled (LAYERS=2; use fori_loop if this grows)
        # ---- pre-LN multi-head self-attention ----
        h = _layer_norm(tok, ln1g_ref[l], ln1b_ref[l])
        qkv = (jnp.dot(h.astype(jnp.bfloat16), wqkv_ref[l],
                       preferred_element_type=jnp.float32)
               + bqkv_ref[l]).astype(jnp.bfloat16)                           # (ROWS, 3H)

        # Heads batched along a leading axis (lane-aligned slices + cheap stack).
        q3 = jnp.stack([qkv[:, 0 * HID + hh * HEAD_DIM: 0 * HID + (hh + 1) * HEAD_DIM]
                        for hh in range(HEADS)], axis=0)                     # (HEADS, ROWS, D)
        k3 = jnp.stack([qkv[:, 1 * HID + hh * HEAD_DIM: 1 * HID + (hh + 1) * HEAD_DIM]
                        for hh in range(HEADS)], axis=0)
        v3 = jnp.stack([qkv[:, 2 * HID + hh * HEAD_DIM: 2 * HID + (hh + 1) * HEAD_DIM]
                        for hh in range(HEADS)], axis=0)

        # One batched score matmul + one softmax over all heads.
        s = jnp.einsum('hqd,hkd->hqk', q3, k3,
                       preferred_element_type=jnp.float32)                   # (HEADS, ROWS, ROWS)
        s = s + amask[None]                       # block-diag per image + padded-key mask
        s = s - jnp.max(s, axis=-1, keepdims=True)
        p = jnp.exp(s)
        p = p * pl.reciprocal(jnp.sum(p, axis=-1, keepdims=True), approx=True)

        ctx3 = jnp.einsum('hqk,hkd->hqd', p.astype(jnp.bfloat16), v3,
                          preferred_element_type=jnp.float32)                # (HEADS, ROWS, D)
        ctx = jnp.concatenate([ctx3[hh] for hh in range(HEADS)], axis=-1)    # (ROWS, H) f32

        attn = jnp.dot(ctx.astype(jnp.bfloat16), wo_ref[l],
                       preferred_element_type=jnp.float32) + bo_ref[l]
        tok = tok + attn                                                     # residual 1

        # ---- pre-LN MLP ----
        h2 = _layer_norm(tok, ln2g_ref[l], ln2b_ref[l])
        m = jnp.dot(h2.astype(jnp.bfloat16), w1_ref[l],
                    preferred_element_type=jnp.float32) + b1_ref[l]
        # TODO(synk): HF ViT uses exact (erf) GELU; tanh approximation used here
        # for guaranteed Mosaic lowering.
        m = jax.nn.gelu(m, approximate=True)
        m = jnp.dot(m.astype(jnp.bfloat16), w2_ref[l],
                    preferred_element_type=jnp.float32) + b2_ref[l]
        tok = tok + m                                                        # residual 2

    # ---- final LN + fc head on all rows (dense 128x128 store); CLS rows are
    # picked out in the wrapper.
    z = _layer_norm(tok, lnfg_ref[...], lnfb_ref[...])
    logits = jnp.dot(z.astype(jnp.bfloat16), fcw_ref[...],
                     preferred_element_type=jnp.float32) + fcb_ref[...]      # (ROWS, 128)
    out_ref[...] = logits.astype(out_ref.dtype)


# ------------------------- parameters (deterministic) -------------------------
def init_params(key):
    def nrm(k, shape, scale=0.02):
        return scale * jax.random.normal(k, shape, dtype=jnp.float32)

    keys = jax.random.split(key, 8 + LAYERS)
    params = {
        "patch_w": nrm(keys[0], (K_PATCH, HID)),   # conv weight flattened (c, kh, kw)
        "patch_b": jnp.zeros((1, HID), jnp.float32),
        "cls":     nrm(keys[1], (1, 1, HID)),
        "pos":     nrm(keys[2], (1, SEQ, HID)),
        "ln_f_g":  jnp.ones((1, HID), jnp.float32),
        "ln_f_b":  jnp.zeros((1, HID), jnp.float32),
        "fc_w":    nrm(keys[3], (HID, NOUT)),      # Linear(768, 7) analogue
        "fc_b":    jnp.zeros((1, NOUT), jnp.float32),
        "layers":  [],
    }
    for l in range(LAYERS):
        lk = jax.random.split(keys[8 + l], 6)
        params["layers"].append(dict(
            ln1_g=jnp.ones((1, HID), jnp.float32), ln1_b=jnp.zeros((1, HID), jnp.float32),
            wq=nrm(lk[0], (HID, HID)), bq=jnp.zeros((1, HID), jnp.float32),
            wk=nrm(lk[1], (HID, HID)), bk=jnp.zeros((1, HID), jnp.float32),
            wv=nrm(lk[2], (HID, HID)), bv=jnp.zeros((1, HID), jnp.float32),
            wo=nrm(lk[3], (HID, HID)), bo=jnp.zeros((1, HID), jnp.float32),
            ln2_g=jnp.ones((1, HID), jnp.float32), ln2_b=jnp.zeros((1, HID), jnp.float32),
            w1=nrm(lk[4], (HID, INTER)), b1=jnp.zeros((1, INTER), jnp.float32),
            w2=nrm(lk[5], (INTER, HID)), b2=jnp.zeros((1, HID), jnp.float32)))
    return params


def prepare_kernel_params(p):
    """Pack module-style params into the fused-kernel layout: stacked per-layer
    weights, fused QKV with 1/sqrt(head_dim) folded into the q columns, bf16
    matmul operands, a per-row CLS+pos+conv-bias table tiled for B_TILE images,
    the block-diagonal additive attention mask, and a lane-padded fc head."""
    stack_f32 = lambda name: jnp.stack([lp[name] for lp in p["layers"]])
    stack_bf16 = lambda name: stack_f32(name).astype(jnp.bfloat16)

    wqkv = jnp.stack([jnp.concatenate([lp["wq"] * SCALE, lp["wk"], lp["wv"]], axis=1)
                      for lp in p["layers"]]).astype(jnp.bfloat16)           # (L, H, 3H)
    bqkv = jnp.stack([jnp.concatenate([lp["bq"] * SCALE, lp["bk"], lp["bv"]], axis=1)
                      for lp in p["layers"]])                                # (L, 1, 3H)

    # Per-image additive row table: row 0 = CLS + pos[0]; patch rows = pos + conv bias;
    # pad rows = 0.  (Patch rows of the patch matrix are zero for CLS/pad rows,
    # so the patch-embed matmul contributes nothing there.)
    posbias_img = jnp.zeros((SEQ_PAD, HID), jnp.float32)
    posbias_img = posbias_img.at[0].set(p["cls"][0, 0] + p["pos"][0, 0])
    posbias_img = posbias_img.at[1:SEQ].set(p["pos"][0, 1:] + p["patch_b"])
    posbias = jnp.tile(posbias_img, (B_TILE, 1))                             # (ROWS, H)

    # Block-diagonal (same-image) + valid-key additive attention mask.
    r = jnp.arange(ROWS)
    same_img = (r[:, None] // SEQ_PAD) == (r[None, :] // SEQ_PAD)
    key_valid = (r[None, :] % SEQ_PAD) < SEQ
    amask = jnp.where(same_img & key_valid, 0.0, MASK_VAL).astype(jnp.float32)

    return dict(
        patch_w=p["patch_w"].astype(jnp.bfloat16),
        posbias=posbias,
        amask=amask,
        ln1_g=stack_f32("ln1_g"), ln1_b=stack_f32("ln1_b"),
        wqkv=wqkv, bqkv=bqkv,
        wo=stack_bf16("wo"), bo=stack_f32("bo"),
        ln2_g=stack_f32("ln2_g"), ln2_b=stack_f32("ln2_b"),
        w1=stack_bf16("w1"), b1=stack_f32("b1"),
        w2=stack_bf16("w2"), b2=stack_f32("b2"),
        ln_f_g=p["ln_f_g"], ln_f_b=p["ln_f_b"],
        fc_w=jnp.pad(p["fc_w"], ((0, 0), (0, NOUT_PAD - NOUT))).astype(jnp.bfloat16),
        fc_b=jnp.pad(p["fc_b"], ((0, 0), (0, NOUT_PAD - NOUT))),
    )


# ------------------------------- forward --------------------------------------
def grasp_vit_forward(x, kp):
    """x: (B, CIN, IMG, IMG) float32 (NCHW, like the PyTorch module)."""
    B = x.shape[0]
    gp = IMG // PATCH

    # Patchify glue (plain JAX): flatten each patch in (c, kh, kw) order to
    # match the Conv2d(k=PATCH, stride=PATCH) weight layout, then pre-pad each
    # image to SEQ_PAD rows (zero CLS row + zero tail rows) so the patch-embed
    # matmul inside the kernel directly yields the token rows.
    patches = x.reshape(B, CIN, gp, PATCH, gp, PATCH).transpose(0, 2, 4, 1, 3, 5)
    patches = patches.reshape(B, NPATCH, K_PATCH)
    rows = jnp.zeros((B, SEQ_PAD, K_PATCH), jnp.float32)
    rows = rows.at[:, 1:1 + NPATCH].set(patches)

    # Fold the batch into the row dimension in tiles of B_TILE images (=128 rows).
    b_pad = ((B + B_TILE - 1) // B_TILE) * B_TILE
    rows = jnp.pad(rows, ((0, b_pad - B), (0, 0), (0, 0)))
    rows = rows.reshape(b_pad * SEQ_PAD, K_PATCH).astype(jnp.bfloat16)
    ntiles = b_pad // B_TILE

    def full(shape):
        nd = len(shape)
        return pl.BlockSpec(shape, lambda t, nd=nd: (0,) * nd)

    in_specs = [
        pl.BlockSpec((ROWS, K_PATCH), lambda t: (t, 0)),   # patch rows (per batch tile)
        full((K_PATCH, HID)),            # patch_w
        full((ROWS, HID)),               # posbias (CLS+pos / pos+conv-bias table)
        full((ROWS, ROWS)),              # additive attention mask
        full((LAYERS, 1, HID)),          # ln1_g
        full((LAYERS, 1, HID)),          # ln1_b
        full((LAYERS, HID, 3 * HID)),    # wqkv (q columns pre-scaled)
        full((LAYERS, 1, 3 * HID)),      # bqkv
        full((LAYERS, HID, HID)),        # wo
        full((LAYERS, 1, HID)),          # bo
        full((LAYERS, 1, HID)),          # ln2_g
        full((LAYERS, 1, HID)),          # ln2_b
        full((LAYERS, HID, INTER)),      # w1
        full((LAYERS, 1, INTER)),        # b1
        full((LAYERS, INTER, HID)),      # w2
        full((LAYERS, 1, HID)),          # b2
        full((1, HID)),                  # ln_f_g
        full((1, HID)),                  # ln_f_b
        full((HID, NOUT_PAD)),           # fc_w (lane-padded)
        full((1, NOUT_PAD)),             # fc_b (lane-padded)
    ]

    # Advisory cost estimate so XLA schedules the surrounding glue sensibly.
    per_layer_flops = (2 * ROWS * HID * 3 * HID
                       + HEADS * 2 * 2 * ROWS * ROWS * HEAD_DIM
                       + 2 * ROWS * HID * HID
                       + 2 * 2 * ROWS * HID * INTER)
    per_tile_flops = (2 * ROWS * K_PATCH * HID + LAYERS * per_layer_flops
                      + 2 * ROWS * HID * NOUT_PAD)
    per_tile_transc = LAYERS * (HEADS * ROWS * ROWS + ROWS * INTER)
    param_bytes = sum(int(v.size) * v.dtype.itemsize for v in kp.values())
    bytes_accessed = (param_bytes + int(rows.size) * rows.dtype.itemsize
                      + b_pad * SEQ_PAD * NOUT_PAD * 4)
    cost = pl.CostEstimate(flops=int(ntiles * per_tile_flops),
                           transcendentals=int(ntiles * per_tile_transc),
                           bytes_accessed=int(bytes_accessed))

    # With a single batch tile there is nothing to megacore-split (and splitting
    # would duplicate the weight DMA per core), so only mark >1 tiles parallel.
    semantics = ("parallel",) if ntiles > 1 else ("arbitrary",)

    out = pl.pallas_call(
        _fused_forward_kernel,
        out_shape=jax.ShapeDtypeStruct((b_pad * SEQ_PAD, NOUT_PAD), jnp.float32),
        grid=(ntiles,),
        in_specs=in_specs,
        out_specs=pl.BlockSpec((ROWS, NOUT_PAD), lambda t: (t, 0)),
        compiler_params=pltpu.CompilerParams(dimension_semantics=semantics),
        cost_estimate=cost,
    )(rows, kp["patch_w"], kp["posbias"], kp["amask"],
      kp["ln1_g"], kp["ln1_b"], kp["wqkv"], kp["bqkv"], kp["wo"], kp["bo"],
      kp["ln2_g"], kp["ln2_b"], kp["w1"], kp["b1"], kp["w2"], kp["b2"],
      kp["ln_f_g"], kp["ln_f_b"], kp["fc_w"], kp["fc_b"])

    # Pick the CLS row of each real image and the 7 real logits.
    out = out.reshape(b_pad, SEQ_PAD, NOUT_PAD)
    return out[:B, 0, :NOUT]                                                 # (B, 7)


# --------------------------------- main ----------------------------------------
if __name__ == "__main__":
    root = jax.random.PRNGKey(0)
    kx, kparam = jax.random.split(root)
    x = jax.random.normal(kx, (2, CIN, IMG, IMG), dtype=jnp.float32)
    params = init_params(kparam)
    kparams = prepare_kernel_params(params)

    fwd = jax.jit(grasp_vit_forward)
    out = jax.block_until_ready(fwd(x, kparams))
    assert out.shape == (2, NOUT) and out.dtype == jnp.float32
    assert bool(jnp.all(jnp.isfinite(out)))
    print("KERNEL_OK")
</pallas_src>

<mosaic_0001>
module attributes {stable_mosaic.version = 11 : i64} {
  func.func @_fused_forward_kernel(%arg0: i32, %arg1: memref<128x768xbf16, #tpu.memory_space<vmem>>, %arg2: memref<768x128xbf16, #tpu.memory_space<vmem>>, %arg3: memref<128x128xf32, #tpu.memory_space<vmem>>, %arg4: memref<128x128xf32, #tpu.memory_space<vmem>>, %arg5: memref<2x1x128xf32, #tpu.memory_space<vmem>>, %arg6: memref<2x1x128xf32, #tpu.memory_space<vmem>>, %arg7: memref<2x128x384xbf16, #tpu.memory_space<vmem>>, %arg8: memref<2x1x384xf32, #tpu.memory_space<vmem>>, %arg9: memref<2x128x128xbf16, #tpu.memory_space<vmem>>, %arg10: memref<2x1x128xf32, #tpu.memory_space<vmem>>, %arg11: memref<2x1x128xf32, #tpu.memory_space<vmem>>, %arg12: memref<2x1x128xf32, #tpu.memory_space<vmem>>, %arg13: memref<2x128x512xbf16, #tpu.memory_space<vmem>>, %arg14: memref<2x1x512xf32, #tpu.memory_space<vmem>>, %arg15: memref<2x512x128xbf16, #tpu.memory_space<vmem>>, %arg16: memref<2x1x128xf32, #tpu.memory_space<vmem>>, %arg17: memref<1x128xf32, #tpu.memory_space<vmem>>, %arg18: memref<1x128xf32, #tpu.memory_space<vmem>>, %arg19: memref<128x128xbf16, #tpu.memory_space<vmem>>, %arg20: memref<1x128xf32, #tpu.memory_space<vmem>>, %arg21: memref<128x128xf32, #tpu.memory_space<vmem>>) attributes {dimension_semantics = [#tpu.dimension_semantics<arbitrary>], iteration_bounds = array<i64: 1>, scalar_prefetch = 0 : i64, scratch_operands = 0 : i64, tpu.core_type = #tpu.core_type<tc>, window_params = [{transform_indices = @transform_0, window_bounds = array<i64: 128, 768>}, {pipeline_mode = #tpu.pipeline_mode<synchronous>, transform_indices = @transform_1, window_bounds = array<i64: 768, 128>}, {pipeline_mode = #tpu.pipeline_mode<synchronous>, transform_indices = @transform_2, window_bounds = array<i64: 128, 128>}, {pipeline_mode = #tpu.pipeline_mode<synchronous>, transform_indices = @transform_3, window_bounds = array<i64: 128, 128>}, {pipeline_mode = #tpu.pipeline_mode<synchronous>, transform_indices = @transform_4, window_bounds = array<i64: 2, 1, 128>}, {pipeline_mode = #tpu.pipeline_mode<synchronous>, transform_indices = @transform_5, window_bounds = array<i64: 2, 1, 128>}, {pipeline_mode = #tpu.pipeline_mode<synchronous>, transform_indices = @transform_6, window_bounds = array<i64: 2, 128, 384>}, {pipeline_mode = #tpu.pipeline_mode<synchronous>, transform_indices = @transform_7, window_bounds = array<i64: 2, 1, 384>}, {pipeline_mode = #tpu.pipeline_mode<synchronous>, transform_indices = @transform_8, window_bounds = array<i64: 2, 128, 128>}, {pipeline_mode = #tpu.pipeline_mode<synchronous>, transform_indices = @transform_9, window_bounds = array<i64: 2, 1, 128>}, {pipeline_mode = #tpu.pipeline_mode<synchronous>, transform_indices = @transform_10, window_bounds = array<i64: 2, 1, 128>}, {pipeline_mode = #tpu.pipeline_mode<synchronous>, transform_indices = @transform_11, window_bounds = array<i64: 2, 1, 128>}, {pipeline_mode = #tpu.pipeline_mode<synchronous>, transform_indices = @transform_12, window_bounds = array<i64: 2, 128, 512>}, {pipeline_mode = #tpu.pipeline_mode<synchronous>, transform_indices = @transform_13, window_bounds = array<i64: 2, 1, 512>}, {pipeline_mode = #tpu.pipeline_mode<synchronous>, transform_indices = @transform_14, window_bounds = array<i64: 2, 512, 128>}, {pipeline_mode = #tpu.pipeline_mode<synchronous>, transform_indices = @transform_15, window_bounds = array<i64: 2, 1, 128>}, {pipeline_mode = #tpu.pipeline_mode<synchronous>, transform_indices = @transform_16, window_bounds = array<i64: 1, 128>}, {pipeline_mode = #tpu.pipeline_mode<synchronous>, transform_indices = @transform_17, window_bounds = array<i64: 1, 128>}, {pipeline_mode = #tpu.pipeline_mode<synchronous>, transform_indices = @transform_18, window_bounds = array<i64: 128, 128>}, {pipeline_mode = #tpu.pipeline_mode<synchronous>, transform_indices = @transform_19, window_bounds = array<i64: 1, 128>}, {transform_indices = @transform_20, window_bounds = array<i64: 128, 128>}]} {
    %c0 = arith.constant 0 : index
    %c0_0 = arith.constant 0 : index
    %0 = vector.load %arg1[%c0, %c0_0] : memref<128x768xbf16, #tpu.memory_space<vmem>>, vector<128x768xbf16>
    %c0_1 = arith.constant 0 : index
    %c0_2 = arith.constant 0 : index
    %1 = vector.load %arg2[%c0_1, %c0_2] : memref<768x128xbf16, #tpu.memory_space<vmem>>, vector<768x128xbf16>
    %cst = arith.constant dense<0.000000e+00> : vector<128x128xf32>
    %2 = tpu.matmul %0, %1, %cst {dimension_numbers = #tpu.dot_dimension_numbers<[1], [0], [0], [1], [0, 0, 1, 1], [], []>} : vector<128x768xbf16>, vector<768x128xbf16>, vector<128x128xf32> -> vector<128x128xf32>
    %c0_3 = arith.constant 0 : index
    %c0_4 = arith.constant 0 : index
    %3 = vector.load %arg3[%c0_3, %c0_4] : memref<128x128xf32, #tpu.memory_space<vmem>>, vector<128x128xf32>
    %4 = arith.addf %2, %3 : vector<128x128xf32>
    %c0_5 = arith.constant 0 : index
    %c0_6 = arith.constant 0 : index
    %5 = vector.load %arg4[%c0_5, %c0_6] : memref<128x128xf32, #tpu.memory_space<vmem>>, vector<128x128xf32>
    %c0_7 = arith.constant 0 : index
    %c0_8 = arith.constant 0 : index
    %c0_9 = arith.constant 0 : index
    %6 = vector.load %arg5[%c0_7, %c0_8, %c0_9] : memref<2x1x128xf32, #tpu.memory_space<vmem>>, vector<1x1x128xf32>
    %7 = vector.shape_cast %6 : vector<1x1x128xf32> to vector<1x128xf32>
    %c0_10 = arith.constant 0 : index
    %c0_11 = arith.constant 0 : index
    %c0_12 = arith.constant 0 : index
    %8 = vector.load %arg6[%c0_10, %c0_11, %c0_12] : memref<2x1x128xf32, #tpu.memory_space<vmem>>, vector<1x1x128xf32>
    %9 = vector.shape_cast %8 : vector<1x1x128xf32> to vector<1x128xf32>
    %cst_13 = arith.constant dense<0.000000e+00> : vector<128xf32>
    %10 = vector.multi_reduction <add>, %4, %cst_13 [1] : vector<128x128xf32> to vector<128xf32>
    %11 = vector.shape_cast %10 : vector<128xf32> to vector<128x1xf32>
    %cst_14 = arith.constant 1.280000e+02 : f32
    %12 = vector.broadcast %cst_14 : f32 to vector<128x1xf32>
    %13 = arith.divf %11, %12 : vector<128x1xf32>
    %14 = vector.broadcast %13 : vector<128x1xf32> to vector<128x128xf32>
    %15 = arith.subf %4, %14 : vector<128x128xf32>
    %16 = arith.mulf %15, %15 : vector<128x128xf32>
    %cst_15 = arith.constant dense<0.000000e+00> : vector<128xf32>
    %17 = vector.multi_reduction <add>, %16, %cst_15 [1] : vector<128x128xf32> to vector<128xf32>
    %18 = vector.shape_cast %17 : vector<128xf32> to vector<128x1xf32>
    %cst_16 = arith.constant 1.280000e+02 : f32
    %19 = vector.broadcast %cst_16 : f32 to vector<128x1xf32>
    %20 = arith.divf %18, %19 : vector<128x1xf32>
    %21 = vector.broadcast %13 : vector<128x1xf32> to vector<128x128xf32>
    %22 = arith.subf %4, %21 : vector<128x128xf32>
    %cst_17 = arith.constant 9.99999996E-13 : f32
    %23 = vector.broadcast %cst_17 : f32 to vector<128x1xf32>
    %24 = arith.addf %20, %23 : vector<128x1xf32>
    %25 = math.rsqrt %24 : vector<128x1xf32>
    %26 = vector.broadcast %25 : vector<128x1xf32> to vector<128x128xf32>
    %27 = arith.mulf %22, %26 : vector<128x128xf32>
    %28 = vector.broadcast %7 : vector<1x128xf32> to vector<128x128xf32>
    %29 = arith.mulf %27, %28 : vector<128x128xf32>
    %30 = vector.broadcast %9 : vector<1x128xf32> to vector<128x128xf32>
    %31 = arith.addf %29, %30 : vector<128x128xf32>
    %32 = arith.truncf %31 : vector<128x128xf32> to vector<128x128xbf16>
    %c0_18 = arith.constant 0 : index
    %c0_19 = arith.constant 0 : index
    %c0_20 = arith.constant 0 : index
    %33 = vector.load %arg7[%c0_18, %c0_19, %c0_20] : memref<2x128x384xbf16, #tpu.memory_space<vmem>>, vector<1x128x384xbf16>
    %34 = vector.shape_cast %33 : vector<1x128x384xbf16> to vector<128x384xbf16>
    %cst_21 = arith.constant dense<0.000000e+00> : vector<128x384xf32>
    %35 = tpu.matmul %32, %34, %cst_21 {dimension_numbers = #tpu.dot_dimension_numbers<[1], [0], [0], [1], [0, 0, 1, 1], [], []>} : vector<128x128xbf16>, vector<128x384xbf16>, vector<128x384xf32> -> vector<128x384xf32>
    %c0_22 = arith.constant 0 : index
    %c0_23 = arith.constant 0 : index
    %c0_24 = arith.constant 0 : index
    %36 = vector.load %arg8[%c0_22, %c0_23, %c0_24] : memref<2x1x384xf32, #tpu.memory_space<vmem>>, vector<1x1x384xf32>
    %37 = vector.shape_cast %36 : vector<1x1x384xf32> to vector<1x384xf32>
    %38 = vector.broadcast %37 : vector<1x384xf32> to vector<128x384xf32>
    %39 = arith.addf %35, %38 : vector<128x384xf32>
    %40 = arith.truncf %39 : vector<128x384xf32> to vector<128x384xbf16>
    %41 = vector.extract_strided_slice %40 {offsets = [0, 0], sizes = [128, 32], strides = [1, 1]} : vector<128x384xbf16> to vector<128x32xbf16>
    %42 = vector.extract_strided_slice %40 {offsets = [0, 32], sizes = [128, 32], strides = [1, 1]} : vector<128x384xbf16> to vector<128x32xbf16>
    %43 = vector.extract_strided_slice %40 {offsets = [0, 64], sizes = [128, 32], strides = [1, 1]} : vector<128x384xbf16> to vector<128x32xbf16>
    %44 = vector.extract_strided_slice %40 {offsets = [0, 96], sizes = [128, 32], strides = [1, 1]} : vector<128x384xbf16> to vector<128x32xbf16>
    %45 = vector.shape_cast %41 : vector<128x32xbf16> to vector<1x128x32xbf16>
    %46 = vector.shape_cast %42 : vector<128x32xbf16> to vector<1x128x32xbf16>
    %47 = vector.shape_cast %43 : vector<128x32xbf16> to vector<1x128x32xbf16>
    %48 = vector.shape_cast %44 : vector<128x32xbf16> to vector<1x128x32xbf16>
    %49 = tpu.concatenate %45, %46, %47, %48 in 0 : vector<1x128x32xbf16>, vector<1x128x32xbf16>, vector<1x128x32xbf16>, vector<1x128x32xbf16> -> vector<4x128x32xbf16>
    %50 = vector.extract_strided_slice %40 {offsets = [0, 128], sizes = [128, 32], strides = [1, 1]} : vector<128x384xbf16> to vector<128x32xbf16>
    %51 = vector.extract_strided_slice %40 {offsets = [0, 160], sizes = [128, 32], strides = [1, 1]} : vector<128x384xbf16> to vector<128x32xbf16>
    %52 = vector.extract_strided_slice %40 {offsets = [0, 192], sizes = [128, 32], strides = [1, 1]} : vector<128x384xbf16> to vector<128x32xbf16>
    %53 = vector.extract_strided_slice %40 {offsets = [0, 224], sizes = [128, 32], strides = [1, 1]} : vector<128x384xbf16> to vector<128x32xbf16>
    %54 = vector.shape_cast %50 : vector<128x32xbf16> to vector<1x128x32xbf16>
    %55 = vector.shape_cast %51 : vector<128x32xbf16> to vector<1x128x32xbf16>
    %56 = vector.shape_cast %52 : vector<128x32xbf16> to vector<1x128x32xbf16>
    %57 = vector.shape_cast %53 : vector<128x32xbf16> to vector<1x128x32xbf16>
    %58 = tpu.concatenate %54, %55, %56, %57 in 0 : vector<1x128x32xbf16>, vector<1x128x32xbf16>, vector<1x128x32xbf16>, vector<1x128x32xbf16> -> vector<4x128x32xbf16>
    %59 = vector.extract_strided_slice %40 {offsets = [0, 256], sizes = [128, 32], strides = [1, 1]} : vector<128x384xbf16> to vector<128x32xbf16>
    %60 = vector.extract_strided_slice %40 {offsets = [0, 288], sizes = [128, 32], strides = [1, 1]} : vector<128x384xbf16> to vector<128x32xbf16>
    %61 = vector.extract_strided_slice %40 {offsets = [0, 320], sizes = [128, 32], strides = [1, 1]} : vector<128x384xbf16> to vector<128x32xbf16>
    %62 = vector.extract_strided_slice %40 {offsets = [0, 352], sizes = [128, 32], strides = [1, 1]} : vector<128x384xbf16> to vector<128x32xbf16>
    %63 = vector.shape_cast %59 : vector<128x32xbf16> to vector<1x128x32xbf16>
    %64 = vector.shape_cast %60 : vector<128x32xbf16> to vector<1x128x32xbf16>
    %65 = vector.shape_cast %61 : vector<128x32xbf16> to vector<1x128x32xbf16>
    %66 = vector.shape_cast %62 : vector<128x32xbf16> to vector<1x128x32xbf16>
    %67 = tpu.concatenate %63, %64, %65, %66 in 0 : vector<1x128x32xbf16>, vector<1x128x32xbf16>, vector<1x128x32xbf16>, vector<1x128x32xbf16> -> vector<4x128x32xbf16>
    "tpu.trace_start"() <{level = 10 : i32, message = "hqd,hkd->hqk"}> : () -> ()
    %cst_25 = arith.constant dense<0.000000e+00> : vector<4x128x128xf32>
    %68 = tpu.matmul %49, %58, %cst_25 {dimension_numbers = #tpu.dot_dimension_numbers<[2], [2], [1], [1], [0, 0, 0, 1, 1, 1], [0], [0]>} : vector<4x128x32xbf16>, vector<4x128x32xbf16>, vector<4x128x128xf32> -> vector<4x128x128xf32>
    "tpu.trace_stop"() : () -> ()
    %69 = vector.shape_cast %5 : vector<128x128xf32> to vector<1x128x128xf32>
    %70 = vector.broadcast %69 : vector<1x128x128xf32> to vector<4x128x128xf32>
    %71 = arith.addf %68, %70 : vector<4x128x128xf32>
    %cst_26 = arith.constant dense<0xFF800000> : vector<4x128xf32>
    %72 = vector.multi_reduction <maximumf>, %71, %cst_26 [2] : vector<4x128x128xf32> to vector<4x128xf32>
    %73 = vector.shape_cast %72 : vector<4x128xf32> to vector<4x128x1xf32>
    %74 = vector.broadcast %73 : vector<4x128x1xf32> to vector<4x128x128xf32>
    %75 = arith.subf %71, %74 : vector<4x128x128xf32>
    %76 = math.exp %75 : vector<4x128x128xf32>
    %cst_27 = arith.constant dense<0.000000e+00> : vector<4x128xf32>
    %77 = vector.multi_reduction <add>, %76, %cst_27 [2] : vector<4x128x128xf32> to vector<4x128xf32>
    %78 = vector.shape_cast %77 : vector<4x128xf32> to vector<4x128x1xf32>
    %79 = tpu.reciprocal %78 {approx = true} : vector<4x128x1xf32> -> vector<4x128x1xf32>
    %80 = vector.broadcast %79 : vector<4x128x1xf32> to vector<4x128x128xf32>
    %81 = arith.mulf %76, %80 : vector<4x128x128xf32>
    %82 = arith.truncf %81 : vector<4x128x128xf32> to vector<4x128x128xbf16>
    "tpu.trace_start"() <{level = 10 : i32, message = "hqk,hkd->hqd"}> : () -> ()
    %cst_28 = arith.constant dense<0.000000e+00> : vector<4x128x32xf32>
    %83 = tpu.matmul %82, %67, %cst_28 {dimension_numbers = #tpu.dot_dimension_numbers<[2], [1], [1], [2], [0, 0, 0, 1, 1, 2], [0], [0]>} : vector<4x128x128xbf16>, vector<4x128x32xbf16>, vector<4x128x32xf32> -> vector<4x128x32xf32>
    "tpu.trace_stop"() : () -> ()
    %84 = vector.extract_strided_slice %83 {offsets = [0, 0, 0], sizes = [1, 128, 32], strides = [1, 1, 1]} : vector<4x128x32xf32> to vector<1x128x32xf32>
    %85 = vector.shape_cast %84 : vector<1x128x32xf32> to vector<128x32xf32>
    %86 = vector.extract_strided_slice %83 {offsets = [1, 0, 0], sizes = [1, 128, 32], strides = [1, 1, 1]} : vector<4x128x32xf32> to vector<1x128x32xf32>
    %87 = vector.shape_cast %86 : vector<1x128x32xf32> to vector<128x32xf32>
    %88 = vector.extract_strided_slice %83 {offsets = [2, 0, 0], sizes = [1, 128, 32], strides = [1, 1, 1]} : vector<4x128x32xf32> to vector<1x128x32xf32>
    %89 = vector.shape_cast %88 : vector<1x128x32xf32> to vector<128x32xf32>
    %90 = vector.extract_strided_slice %83 {offsets = [3, 0, 0], sizes = [1, 128, 32], strides = [1, 1, 1]} : vector<4x128x32xf32> to vector<1x128x32xf32>
    %91 = vector.shape_cast %90 : vector<1x128x32xf32> to vector<128x32xf32>
    %92 = tpu.concatenate %85, %87, %89, %91 in 1 : vector<128x32xf32>, vector<128x32xf32>, vector<128x32xf32>, vector<128x32xf32> -> vector<128x128xf32>
    %93 = arith.truncf %92 : vector<128x128xf32> to vector<128x128xbf16>
    %c0_29 = arith.constant 0 : index
    %c0_30 = arith.constant 0 : index
    %c0_31 = arith.constant 0 : index
    %94 = vector.load %arg9[%c0_29, %c0_30, %c0_31] : memref<2x128x128xbf16, #tpu.memory_space<vmem>>, vector<1x128x128xbf16>
    %95 = vector.shape_cast %94 : vector<1x128x128xbf16> to vector<128x128xbf16>
    %cst_32 = arith.constant dense<0.000000e+00> : vector<128x128xf32>
    %96 = tpu.matmul %93, %95, %cst_32 {dimension_numbers = #tpu.dot_dimension_numbers<[1], [0], [0], [1], [0, 0, 1, 1], [], []>} : vector<128x128xbf16>, vector<128x128xbf16>, vector<128x128xf32> -> vector<128x128xf32>
    %c0_33 = arith.constant 0 : index
    %c0_34 = arith.constant 0 : index
    %c0_35 = arith.constant 0 : index
    %97 = vector.load %arg10[%c0_33, %c0_34, %c0_35] : memref<2x1x128xf32, #tpu.memory_space<vmem>>, vector<1x1x128xf32>
    %98 = vector.shape_cast %97 : vector<1x1x128xf32> to vector<1x128xf32>
    %99 = vector.broadcast %98 : vector<1x128xf32> to vector<128x128xf32>
    %100 = arith.addf %96, %99 : vector<128x128xf32>
    %101 = arith.addf %4, %100 : vector<128x128xf32>
    %c0_36 = arith.constant 0 : index
    %c0_37 = arith.constant 0 : index
    %c0_38 = arith.constant 0 : index
    %102 = vector.load %arg11[%c0_36, %c0_37, %c0_38] : memref<2x1x128xf32, #tpu.memory_space<vmem>>, vector<1x1x128xf32>
    %103 = vector.shape_cast %102 : vector<1x1x128xf32> to vector<1x128xf32>
    %c0_39 = arith.constant 0 : index
    %c0_40 = arith.constant 0 : index
    %c0_41 = arith.constant 0 : index
    %104 = vector.load %arg12[%c0_39, %c0_40, %c0_41] : memref<2x1x128xf32, #tpu.memory_space<vmem>>, vector<1x1x128xf32>
    %105 = vector.shape_cast %104 : vector<1x1x128xf32> to vector<1x128xf32>
    %cst_42 = arith.constant dense<0.000000e+00> : vector<128xf32>
    %106 = vector.multi_reduction <add>, %101, %cst_42 [1] : vector<128x128xf32> to vector<128xf32>
    %107 = vector.shape_cast %106 : vector<128xf32> to vector<128x1xf32>
    %cst_43 = arith.constant 1.280000e+02 : f32
    %108 = vector.broadcast %cst_43 : f32 to vector<128x1xf32>
    %109 = arith.divf %107, %108 : vector<128x1xf32>
    %110 = vector.broadcast %109 : vector<128x1xf32> to vector<128x128xf32>
    %111 = arith.subf %101, %110 : vector<128x128xf32>
    %112 = arith.mulf %111, %111 : vector<128x128xf32>
    %cst_44 = arith.constant dense<0.000000e+00> : vector<128xf32>
    %113 = vector.multi_reduction <add>, %112, %cst_44 [1] : vector<128x128xf32> to vector<128xf32>
    %114 = vector.shape_cast %113 : vector<128xf32> to vector<128x1xf32>
    %cst_45 = arith.constant 1.280000e+02 : f32
    %115 = vector.broadcast %cst_45 : f32 to vector<128x1xf32>
    %116 = arith.divf %114, %115 : vector<128x1xf32>
    %117 = vector.broadcast %109 : vector<128x1xf32> to vector<128x128xf32>
    %118 = arith.subf %101, %117 : vector<128x128xf32>
    %cst_46 = arith.constant 9.99999996E-13 : f32
    %119 = vector.broadcast %cst_46 : f32 to vector<128x1xf32>
    %120 = arith.addf %116, %119 : vector<128x1xf32>
    %121 = math.rsqrt %120 : vector<128x1xf32>
    %122 = vector.broadcast %121 : vector<128x1xf32> to vector<128x128xf32>
    %123 = arith.mulf %118, %122 : vector<128x128xf32>
    %124 = vector.broadcast %103 : vector<1x128xf32> to vector<128x128xf32>
    %125 = arith.mulf %123, %124 : vector<128x128xf32>
    %126 = vector.broadcast %105 : vector<1x128xf32> to vector<128x128xf32>
    %127 = arith.addf %125, %126 : vector<128x128xf32>
    %128 = arith.truncf %127 : vector<128x128xf32> to vector<128x128xbf16>
    %c0_47 = arith.constant 0 : index
    %c0_48 = arith.constant 0 : index
    %c0_49 = arith.constant 0 : index
    %129 = vector.load %arg13[%c0_47, %c0_48, %c0_49] : memref<2x128x512xbf16, #tpu.memory_space<vmem>>, vector<1x128x512xbf16>
    %130 = vector.shape_cast %129 : vector<1x128x512xbf16> to vector<128x512xbf16>
    %cst_50 = arith.constant dense<0.000000e+00> : vector<128x512xf32>
    %131 = tpu.matmul %128, %130, %cst_50 {dimension_numbers = #tpu.dot_dimension_numbers<[1], [0], [0], [1], [0, 0, 1, 1], [], []>} : vector<128x128xbf16>, vector<128x512xbf16>, vector<128x512xf32> -> vector<128x512xf32>
    %c0_51 = arith.constant 0 : index
    %c0_52 = arith.constant 0 : index
    %c0_53 = arith.constant 0 : index
    %132 = vector.load %arg14[%c0_51, %c0_52, %c0_53] : memref<2x1x512xf32, #tpu.memory_space<vmem>>, vector<1x1x512xf32>
    %133 = vector.shape_cast %132 : vector<1x1x512xf32> to vector<1x512xf32>
    %134 = vector.broadcast %133 : vector<1x512xf32> to vector<128x512xf32>
    %135 = arith.addf %131, %134 : vector<128x512xf32>
    %136 = arith.mulf %135, %135 : vector<128x512xf32>
    %137 = arith.mulf %135, %136 : vector<128x512xf32>
    %cst_54 = arith.constant 4.471500e-02 : f32
    %138 = vector.broadcast %cst_54 : f32 to vector<128x512xf32>
    %139 = arith.mulf %138, %137 : vector<128x512xf32>
    %140 = arith.addf %135, %139 : vector<128x512xf32>
    %cst_55 = arith.constant 0.797884583 : f32
    %141 = vector.broadcast %cst_55 : f32 to vector<128x512xf32>
    %142 = arith.mulf %141, %140 : vector<128x512xf32>
    %143 = math.tanh %142 : vector<128x512xf32>
    %cst_56 = arith.constant 1.000000e+00 : f32
    %144 = vector.broadcast %cst_56 : f32 to vector<128x512xf32>
    %145 = arith.addf %144, %143 : vector<128x512xf32>
    %cst_57 = arith.constant 5.000000e-01 : f32
    %146 = vector.broadcast %cst_57 : f32 to vector<128x512xf32>
    %147 = arith.mulf %146, %145 : vector<128x512xf32>
    %148 = arith.mulf %135, %147 : vector<128x512xf32>
    %149 = arith.truncf %148 : vector<128x512xf32> to vector<128x512xbf16>
    %c0_58 = arith.constant 0 : index
    %c0_59 = arith.constant 0 : index
    %c0_60 = arith.constant 0 : index
    %150 = vector.load %arg15[%c0_58, %c0_59, %c0_60] : memref<2x512x128xbf16, #tpu.memory_space<vmem>>, vector<1x512x128xbf16>
    %151 = vector.shape_cast %150 : vector<1x512x128xbf16> to vector<512x128xbf16>
    %cst_61 = arith.constant dense<0.000000e+00> : vector<128x128xf32>
    %152 = tpu.matmul %149, %151, %cst_61 {dimension_numbers = #tpu.dot_dimension_numbers<[1], [0], [0], [1], [0, 0, 1, 1], [], []>} : vector<128x512xbf16>, vector<512x128xbf16>, vector<128x128xf32> -> vector<128x128xf32>
    %c0_62 = arith.constant 0 : index
    %c0_63 = arith.constant 0 : index
    %c0_64 = arith.constant 0 : index
    %153 = vector.load %arg16[%c0_62, %c0_63, %c0_64] : memref<2x1x128xf32, #tpu.memory_space<vmem>>, vector<1x1x128xf32>
    %154 = vector.shape_cast %153 : vector<1x1x128xf32> to vector<1x128xf32>
    %155 = vector.broadcast %154 : vector<1x128xf32> to vector<128x128xf32>
    %156 = arith.addf %152, %155 : vector<128x128xf32>
    %157 = arith.addf %101, %156 : vector<128x128xf32>
    %c1 = arith.constant 1 : index
    %c0_65 = arith.constant 0 : index
    %c0_66 = arith.constant 0 : index
    %158 = vector.load %arg5[%c1, %c0_65, %c0_66] : memref<2x1x128xf32, #tpu.memory_space<vmem>>, vector<1x1x128xf32>
    %159 = vector.shape_cast %158 : vector<1x1x128xf32> to vector<1x128xf32>
    %c1_67 = arith.constant 1 : index
    %c0_68 = arith.constant 0 : index
    %c0_69 = arith.constant 0 : index
    %160 = vector.load %arg6[%c1_67, %c0_68, %c0_69] : memref<2x1x128xf32, #tpu.memory_space<vmem>>, vector<1x1x128xf32>
    %161 = vector.shape_cast %160 : vector<1x1x128xf32> to vector<1x128xf32>
    %cst_70 = arith.constant dense<0.000000e+00> : vector<128xf32>
    %162 = vector.multi_reduction <add>, %157, %cst_70 [1] : vector<128x128xf32> to vector<128xf32>
    %163 = vector.shape_cast %162 : vector<128xf32> to vector<128x1xf32>
    %cst_71 = arith.constant 1.280000e+02 : f32
    %164 = vector.broadcast %cst_71 : f32 to vector<128x1xf32>
    %165 = arith.divf %163, %164 : vector<128x1xf32>
    %166 = vector.broadcast %165 : vector<128x1xf32> to vector<128x128xf32>
    %167 = arith.subf %157, %166 : vector<128x128xf32>
    %168 = arith.mulf %167, %167 : vector<128x128xf32>
    %cst_72 = arith.constant dense<0.000000e+00> : vector<128xf32>
    %169 = vector.multi_reduction <add>, %168, %cst_72 [1] : vector<128x128xf32> to vector<128xf32>
    %170 = vector.shape_cast %169 : vector<128xf32> to vector<128x1xf32>
    %cst_73 = arith.constant 1.280000e+02 : f32
    %171 = vector.broadcast %cst_73 : f32 to vector<128x1xf32>
    %172 = arith.divf %170, %171 : vector<128x1xf32>
    %173 = vector.broadcast %165 : vector<128x1xf32> to vector<128x128xf32>
    %174 = arith.subf %157, %173 : vector<128x128xf32>
    %cst_74 = arith.constant 9.99999996E-13 : f32
    %175 = vector.broadcast %cst_74 : f32 to vector<128x1xf32>
    %176 = arith.addf %172, %175 : vector<128x1xf32>
    %177 = math.rsqrt %176 : vector<128x1xf32>
    %178 = vector.broadcast %177 : vector<128x1xf32> to vector<128x128xf32>
    %179 = arith.mulf %174, %178 : vector<128x128xf32>
    %180 = vector.broadcast %159 : vector<1x128xf32> to vector<128x128xf32>
    %181 = arith.mulf %179, %180 : vector<128x128xf32>
    %182 = vector.broadcast %161 : vector<1x128xf32> to vector<128x128xf32>
    %183 = arith.addf %181, %182 : vector<128x128xf32>
    %184 = arith.truncf %183 : vector<128x128xf32> to vector<128x128xbf16>
    %c1_75 = arith.constant 1 : index
    %c0_76 = arith.constant 0 : index
    %c0_77 = arith.constant 0 : index
    %185 = vector.load %arg7[%c1_75, %c0_76, %c0_77] : memref<2x128x384xbf16, #tpu.memory_space<vmem>>, vector<1x128x384xbf16>
    %186 = vector.shape_cast %185 : vector<1x128x384xbf16> to vector<128x384xbf16>
    %cst_78 = arith.constant dense<0.000000e+00> : vector<128x384xf32>
    %187 = tpu.matmul %184, %186, %cst_78 {dimension_numbers = #tpu.dot_dimension_numbers<[1], [0], [0], [1], [0, 0, 1, 1], [], []>} : vector<128x128xbf16>, vector<128x384xbf16>, vector<128x384xf32> -> vector<128x384xf32>
    %c1_79 = arith.constant 1 : index
    %c0_80 = arith.constant 0 : index
    %c0_81 = arith.constant 0 : index
    %188 = vector.load %arg8[%c1_79, %c0_80, %c0_81] : memref<2x1x384xf32, #tpu.memory_space<vmem>>, vector<1x1x384xf32>
    %189 = vector.shape_cast %188 : vector<1x1x384xf32> to vector<1x384xf32>
    %190 = vector.broadcast %189 : vector<1x384xf32> to vector<128x384xf32>
    %191 = arith.addf %187, %190 : vector<128x384xf32>
    %192 = arith.truncf %191 : vector<128x384xf32> to vector<128x384xbf16>
    %193 = vector.extract_strided_slice %192 {offsets = [0, 0], sizes = [128, 32], strides = [1, 1]} : vector<128x384xbf16> to vector<128x32xbf16>
    %194 = vector.extract_strided_slice %192 {offsets = [0, 32], sizes = [128, 32], strides = [1, 1]} : vector<128x384xbf16> to vector<128x32xbf16>
    %195 = vector.extract_strided_slice %192 {offsets = [0, 64], sizes = [128, 32], strides = [1, 1]} : vector<128x384xbf16> to vector<128x32xbf16>
    %196 = vector.extract_strided_slice %192 {offsets = [0, 96], sizes = [128, 32], strides = [1, 1]} : vector<128x384xbf16> to vector<128x32xbf16>
    %197 = vector.shape_cast %193 : vector<128x32xbf16> to vector<1x128x32xbf16>
    %198 = vector.shape_cast %194 : vector<128x32xbf16> to vector<1x128x32xbf16>
    %199 = vector.shape_cast %195 : vector<128x32xbf16> to vector<1x128x32xbf16>
    %200 = vector.shape_cast %196 : vector<128x32xbf16> to vector<1x128x32xbf16>
    %201 = tpu.concatenate %197, %198, %199, %200 in 0 : vector<1x128x32xbf16>, vector<1x128x32xbf16>, vector<1x128x32xbf16>, vector<1x128x32xbf16> -> vector<4x128x32xbf16>
    %202 = vector.extract_strided_slice %192 {offsets = [0, 128], sizes = [128, 32], strides = [1, 1]} : vector<128x384xbf16> to vector<128x32xbf16>
    %203 = vector.extract_strided_slice %192 {offsets = [0, 160], sizes = [128, 32], strides = [1, 1]} : vector<128x384xbf16> to vector<128x32xbf16>
    %204 = vector.extract_strided_slice %192 {offsets = [0, 192], sizes = [128, 32], strides = [1, 1]} : vector<128x384xbf16> to vector<128x32xbf16>
    %205 = vector.extract_strided_slice %192 {offsets = [0, 224], sizes = [128, 32], strides = [1, 1]} : vector<128x384xbf16> to vector<128x32xbf16>
    %206 = vector.shape_cast %202 : vector<128x32xbf16> to vector<1x128x32xbf16>
    %207 = vector.shape_cast %203 : vector<128x32xbf16> to vector<1x128x32xbf16>
    %208 = vector.shape_cast %204 : vector<128x32xbf16> to vector<1x128x32xbf16>
    %209 = vector.shape_cast %205 : vector<128x32xbf16> to vector<1x128x32xbf16>
    %210 = tpu.concatenate %206, %207, %208, %209 in 0 : vector<1x128x32xbf16>, vector<1x128x32xbf16>, vector<1x128x32xbf16>, vector<1x128x32xbf16> -> vector<4x128x32xbf16>
    %211 = vector.extract_strided_slice %192 {offsets = [0, 256], sizes = [128, 32], strides = [1, 1]} : vector<128x384xbf16> to vector<128x32xbf16>
    %212 = vector.extract_strided_slice %192 {offsets = [0, 288], sizes = [128, 32], strides = [1, 1]} : vector<128x384xbf16> to vector<128x32xbf16>
    %213 = vector.extract_strided_slice %192 {offsets = [0, 320], sizes = [128, 32], strides = [1, 1]} : vector<128x384xbf16> to vector<128x32xbf16>
    %214 = vector.extract_strided_slice %192 {offsets = [0, 352], sizes = [128, 32], strides = [1, 1]} : vector<128x384xbf16> to vector<128x32xbf16>
    %215 = vector.shape_cast %211 : vector<128x32xbf16> to vector<1x128x32xbf16>
    %216 = vector.shape_cast %212 : vector<128x32xbf16> to vector<1x128x32xbf16>
    %217 = vector.shape_cast %213 : vector<128x32xbf16> to vector<1x128x32xbf16>
    %218 = vector.shape_cast %214 : vector<128x32xbf16> to vector<1x128x32xbf16>
    %219 = tpu.concatenate %215, %216, %217, %218 in 0 : vector<1x128x32xbf16>, vector<1x128x32xbf16>, vector<1x128x32xbf16>, vector<1x128x32xbf16> -> vector<4x128x32xbf16>
    "tpu.trace_start"() <{level = 10 : i32, message = "hqd,hkd->hqk"}> : () -> ()
    %cst_82 = arith.constant dense<0.000000e+00> : vector<4x128x128xf32>
    %220 = tpu.matmul %201, %210, %cst_82 {dimension_numbers = #tpu.dot_dimension_numbers<[2], [2], [1], [1], [0, 0, 0, 1, 1, 1], [0], [0]>} : vector<4x128x32xbf16>, vector<4x128x32xbf16>, vector<4x128x128xf32> -> vector<4x128x128xf32>
    "tpu.trace_stop"() : () -> ()
    %221 = vector.shape_cast %5 : vector<128x128xf32> to vector<1x128x128xf32>
    %222 = vector.broadcast %221 : vector<1x128x128xf32> to vector<4x128x128xf32>
    %223 = arith.addf %220, %222 : vector<4x128x128xf32>
    %cst_83 = arith.constant dense<0xFF800000> : vector<4x128xf32>
    %224 = vector.multi_reduction <maximumf>, %223, %cst_83 [2] : vector<4x128x128xf32> to vector<4x128xf32>
    %225 = vector.shape_cast %224 : vector<4x128xf32> to vector<4x128x1xf32>
    %226 = vector.broadcast %225 : vector<4x128x1xf32> to vector<4x128x128xf32>
    %227 = arith.subf %223, %226 : vector<4x128x128xf32>
    %228 = math.exp %227 : vector<4x128x128xf32>
    %cst_84 = arith.constant dense<0.000000e+00> : vector<4x128xf32>
    %229 = vector.multi_reduction <add>, %228, %cst_84 [2] : vector<4x128x128xf32> to vector<4x128xf32>
    %230 = vector.shape_cast %229 : vector<4x128xf32> to vector<4x128x1xf32>
    %231 = tpu.reciprocal %230 {approx = true} : vector<4x128x1xf32> -> vector<4x128x1xf32>
    %232 = vector.broadcast %231 : vector<4x128x1xf32> to vector<4x128x128xf32>
    %233 = arith.mulf %228, %232 : vector<4x128x128xf32>
    %234 = arith.truncf %233 : vector<4x128x128xf32> to vector<4x128x128xbf16>
    "tpu.trace_start"() <{level = 10 : i32, message = "hqk,hkd->hqd"}> : () -> ()
    %cst_85 = arith.constant dense<0.000000e+00> : vector<4x128x32xf32>
    %235 = tpu.matmul %234, %219, %cst_85 {dimension_numbers = #tpu.dot_dimension_numbers<[2], [1], [1], [2], [0, 0, 0, 1, 1, 2], [0], [0]>} : vector<4x128x128xbf16>, vector<4x128x32xbf16>, vector<4x128x32xf32> -> vector<4x128x32xf32>
    "tpu.trace_stop"() : () -> ()
    %236 = vector.extract_strided_slice %235 {offsets = [0, 0, 0], sizes = [1, 128, 32], strides = [1, 1, 1]} : vector<4x128x32xf32> to vector<1x128x32xf32>
    %237 = vector.shape_cast %236 : vector<1x128x32xf32> to vector<128x32xf32>
    %238 = vector.extract_strided_slice %235 {offsets = [1, 0, 0], sizes = [1, 128, 32], strides = [1, 1, 1]} : vector<4x128x32xf32> to vector<1x128x32xf32>
    %239 = vector.shape_cast %238 : vector<1x128x32xf32> to vector<128x32xf32>
    %240 = vector.extract_strided_slice %235 {offsets = [2, 0, 0], sizes = [1, 128, 32], strides = [1, 1, 1]} : vector<4x128x32xf32> to vector<1x128x32xf32>
    %241 = vector.shape_cast %240 : vector<1x128x32xf32> to vector<128x32xf32>
    %242 = vector.extract_strided_slice %235 {offsets = [3, 0, 0], sizes = [1, 128, 32], strides = [1, 1, 1]} : vector<4x128x32xf32> to vector<1x128x32xf32>
    %243 = vector.shape_cast %242 : vector<1x128x32xf32> to vector<128x32xf32>
    %244 = tpu.concatenate %237, %239, %241, %243 in 1 : vector<128x32xf32>, vector<128x32xf32>, vector<128x32xf32>, vector<128x32xf32> -> vector<128x128xf32>
    %245 = arith.truncf %244 : vector<128x128xf32> to vector<128x128xbf16>
    %c1_86 = arith.constant 1 : index
    %c0_87 = arith.constant 0 : index
    %c0_88 = arith.constant 0 : index
    %246 = vector.load %arg9[%c1_86, %c0_87, %c0_88] : memref<2x128x128xbf16, #tpu.memory_space<vmem>>, vector<1x128x128xbf16>
    %247 = vector.shape_cast %246 : vector<1x128x128xbf16> to vector<128x128xbf16>
    %cst_89 = arith.constant dense<0.000000e+00> : vector<128x128xf32>
    %248 = tpu.matmul %245, %247, %cst_89 {dimension_numbers = #tpu.dot_dimension_numbers<[1], [0], [0], [1], [0, 0, 1, 1], [], []>} : vector<128x128xbf16>, vector<128x128xbf16>, vector<128x128xf32> -> vector<128x128xf32>
    %c1_90 = arith.constant 1 : index
    %c0_91 = arith.constant 0 : index
    %c0_92 = arith.constant 0 : index
    %249 = vector.load %arg10[%c1_90, %c0_91, %c0_92] : memref<2x1x128xf32, #tpu.memory_space<vmem>>, vector<1x1x128xf32>
    %250 = vector.shape_cast %249 : vector<1x1x128xf32> to vector<1x128xf32>
    %251 = vector.broadcast %250 : vector<1x128xf32> to vector<128x128xf32>
    %252 = arith.addf %248, %251 : vector<128x128xf32>
    %253 = arith.addf %157, %252 : vector<128x128xf32>
    %c1_93 = arith.constant 1 : index
    %c0_94 = arith.constant 0 : index
    %c0_95 = arith.constant 0 : index
    %254 = vector.load %arg11[%c1_93, %c0_94, %c0_95] : memref<2x1x128xf32, #tpu.memory_space<vmem>>, vector<1x1x128xf32>
    %255 = vector.shape_cast %254 : vector<1x1x128xf32> to vector<1x128xf32>
    %c1_96 = arith.constant 1 : index
    %c0_97 = arith.constant 0 : index
    %c0_98 = arith.constant 0 : index
    %256 = vector.load %arg12[%c1_96, %c0_97, %c0_98] : memref<2x1x128xf32, #tpu.memory_space<vmem>>, vector<1x1x128xf32>
    %257 = vector.shape_cast %256 : vector<1x1x128xf32> to vector<1x128xf32>
    %cst_99 = arith.constant dense<0.000000e+00> : vector<128xf32>
    %258 = vector.multi_reduction <add>, %253, %cst_99 [1] : vector<128x128xf32> to vector<128xf32>
    %259 = vector.shape_cast %258 : vector<128xf32> to vector<128x1xf32>
    %cst_100 = arith.constant 1.280000e+02 : f32
    %260 = vector.broadcast %cst_100 : f32 to vector<128x1xf32>
    %261 = arith.divf %259, %260 : vector<128x1xf32>
    %262 = vector.broadcast %261 : vector<128x1xf32> to vector<128x128xf32>
    %263 = arith.subf %253, %262 : vector<128x128xf32>
    %264 = arith.mulf %263, %263 : vector<128x128xf32>
    %cst_101 = arith.constant dense<0.000000e+00> : vector<128xf32>
    %265 = vector.multi_reduction <add>, %264, %cst_101 [1] : vector<128x128xf32> to vector<128xf32>
    %266 = vector.shape_cast %265 : vector<128xf32> to vector<128x1xf32>
    %cst_102 = arith.constant 1.280000e+02 : f32
    %267 = vector.broadcast %cst_102 : f32 to vector<128x1xf32>
    %268 = arith.divf %266, %267 : vector<128x1xf32>
    %269 = vector.broadcast %261 : vector<128x1xf32> to vector<128x128xf32>
    %270 = arith.subf %253, %269 : vector<128x128xf32>
    %cst_103 = arith.constant 9.99999996E-13 : f32
    %271 = vector.broadcast %cst_103 : f32 to vector<128x1xf32>
    %272 = arith.addf %268, %271 : vector<128x1xf32>
    %273 = math.rsqrt %272 : vector<128x1xf32>
    %274 = vector.broadcast %273 : vector<128x1xf32> to vector<128x128xf32>
    %275 = arith.mulf %270, %274 : vector<128x128xf32>
    %276 = vector.broadcast %255 : vector<1x128xf32> to vector<128x128xf32>
    %277 = arith.mulf %275, %276 : vector<128x128xf32>
    %278 = vector.broadcast %257 : vector<1x128xf32> to vector<128x128xf32>
    %279 = arith.addf %277, %278 : vector<128x128xf32>
    %280 = arith.truncf %279 : vector<128x128xf32> to vector<128x128xbf16>
    %c1_104 = arith.constant 1 : index
    %c0_105 = arith.constant 0 : index
    %c0_106 = arith.constant 0 : index
    %281 = vector.load %arg13[%c1_104, %c0_105, %c0_106] : memref<2x128x512xbf16, #tpu.memory_space<vmem>>, vector<1x128x512xbf16>
    %282 = vector.shape_cast %281 : vector<1x128x512xbf16> to vector<128x512xbf16>
    %cst_107 = arith.constant dense<0.000000e+00> : vector<128x512xf32>
    %283 = tpu.matmul %280, %282, %cst_107 {dimension_numbers = #tpu.dot_dimension_numbers<[1], [0], [0], [1], [0, 0, 1, 1], [], []>} : vector<128x128xbf16>, vector<128x512xbf16>, vector<128x512xf32> -> vector<128x512xf32>
    %c1_108 = arith.constant 1 : index
    %c0_109 = arith.constant 0 : index
    %c0_110 = arith.constant 0 : index
    %284 = vector.load %arg14[%c1_108, %c0_109, %c0_110] : memref<2x1x512xf32, #tpu.memory_space<vmem>>, vector<1x1x512xf32>
    %285 = vector.shape_cast %284 : vector<1x1x512xf32> to vector<1x512xf32>
    %286 = vector.broadcast %285 : vector<1x512xf32> to vector<128x512xf32>
    %287 = arith.addf %283, %286 : vector<128x512xf32>
    %288 = arith.mulf %287, %287 : vector<128x512xf32>
    %289 = arith.mulf %287, %288 : vector<128x512xf32>
    %cst_111 = arith.constant 4.471500e-02 : f32
    %290 = vector.broadcast %cst_111 : f32 to vector<128x512xf32>
    %291 = arith.mulf %290, %289 : vector<128x512xf32>
    %292 = arith.addf %287, %291 : vector<128x512xf32>
    %cst_112 = arith.constant 0.797884583 : f32
    %293 = vector.broadcast %cst_112 : f32 to vector<128x512xf32>
    %294 = arith.mulf %293, %292 : vector<128x512xf32>
    %295 = math.tanh %294 : vector<128x512xf32>
    %cst_113 = arith.constant 1.000000e+00 : f32
    %296 = vector.broadcast %cst_113 : f32 to vector<128x512xf32>
    %297 = arith.addf %296, %295 : vector<128x512xf32>
    %cst_114 = arith.constant 5.000000e-01 : f32
    %298 = vector.broadcast %cst_114 : f32 to vector<128x512xf32>
    %299 = arith.mulf %298, %297 : vector<128x512xf32>
    %300 = arith.mulf %287, %299 : vector<128x512xf32>
    %301 = arith.truncf %300 : vector<128x512xf32> to vector<128x512xbf16>
    %c1_115 = arith.constant 1 : index
    %c0_116 = arith.constant 0 : index
    %c0_117 = arith.constant 0 : index
    %302 = vector.load %arg15[%c1_115, %c0_116, %c0_117] : memref<2x512x128xbf16, #tpu.memory_space<vmem>>, vector<1x512x128xbf16>
    %303 = vector.shape_cast %302 : vector<1x512x128xbf16> to vector<512x128xbf16>
    %cst_118 = arith.constant dense<0.000000e+00> : vector<128x128xf32>
    %304 = tpu.matmul %301, %303, %cst_118 {dimension_numbers = #tpu.dot_dimension_numbers<[1], [0], [0], [1], [0, 0, 1, 1], [], []>} : vector<128x512xbf16>, vector<512x128xbf16>, vector<128x128xf32> -> vector<128x128xf32>
    %c1_119 = arith.constant 1 : index
    %c0_120 = arith.constant 0 : index
    %c0_121 = arith.constant 0 : index
    %305 = vector.load %arg16[%c1_119, %c0_120, %c0_121] : memref<2x1x128xf32, #tpu.memory_space<vmem>>, vector<1x1x128xf32>
    %306 = vector.shape_cast %305 : vector<1x1x128xf32> to vector<1x128xf32>
    %307 = vector.broadcast %306 : vector<1x128xf32> to vector<128x128xf32>
    %308 = arith.addf %304, %307 : vector<128x128xf32>
    %309 = arith.addf %253, %308 : vector<128x128xf32>
    %c0_122 = arith.constant 0 : index
    %c0_123 = arith.constant 0 : index
    %310 = vector.load %arg17[%c0_122, %c0_123] : memref<1x128xf32, #tpu.memory_space<vmem>>, vector<1x128xf32>
    %c0_124 = arith.constant 0 : index
    %c0_125 = arith.constant 0 : index
    %311 = vector.load %arg18[%c0_124, %c0_125] : memref<1x128xf32, #tpu.memory_space<vmem>>, vector<1x128xf32>
    %cst_126 = arith.constant dense<0.000000e+00> : vector<128xf32>
    %312 = vector.multi_reduction <add>, %309, %cst_126 [1] : vector<128x128xf32> to vector<128xf32>
    %313 = vector.shape_cast %312 : vector<128xf32> to vector<128x1xf32>
    %cst_127 = arith.constant 1.280000e+02 : f32
    %314 = vector.broadcast %cst_127 : f32 to vector<128x1xf32>
    %315 = arith.divf %313, %314 : vector<128x1xf32>
    %316 = vector.broadcast %315 : vector<128x1xf32> to vector<128x128xf32>
    %317 = arith.subf %309, %316 : vector<128x128xf32>
    %318 = arith.mulf %317, %317 : vector<128x128xf32>
    %cst_128 = arith.constant dense<0.000000e+00> : vector<128xf32>
    %319 = vector.multi_reduction <add>, %318, %cst_128 [1] : vector<128x128xf32> to vector<128xf32>
    %320 = vector.shape_cast %319 : vector<128xf32> to vector<128x1xf32>
    %cst_129 = arith.constant 1.280000e+02 : f32
    %321 = vector.broadcast %cst_129 : f32 to vector<128x1xf32>
    %322 = arith.divf %320, %321 : vector<128x1xf32>
    %323 = vector.broadcast %315 : vector<128x1xf32> to vector<128x128xf32>
    %324 = arith.subf %309, %323 : vector<128x128xf32>
    %cst_130 = arith.constant 9.99999996E-13 : f32
    %325 = vector.broadcast %cst_130 : f32 to vector<128x1xf32>
    %326 = arith.addf %322, %325 : vector<128x1xf32>
    %327 = math.rsqrt %326 : vector<128x1xf32>
    %328 = vector.broadcast %327 : vector<128x1xf32> to vector<128x128xf32>
    %329 = arith.mulf %324, %328 : vector<128x128xf32>
    %330 = vector.broadcast %310 : vector<1x128xf32> to vector<128x128xf32>
    %331 = arith.mulf %329, %330 : vector<128x128xf32>
    %332 = vector.broadcast %311 : vector<1x128xf32> to vector<128x128xf32>
    %333 = arith.addf %331, %332 : vector<128x128xf32>
    %334 = arith.truncf %333 : vector<128x128xf32> to vector<128x128xbf16>
    %c0_131 = arith.constant 0 : index
    %c0_132 = arith.constant 0 : index
    %335 = vector.load %arg19[%c0_131, %c0_132] : memref<128x128xbf16, #tpu.memory_space<vmem>>, vector<128x128xbf16>
    %cst_133 = arith.constant dense<0.000000e+00> : vector<128x128xf32>
    %336 = tpu.matmul %334, %335, %cst_133 {dimension_numbers = #tpu.dot_dimension_numbers<[1], [0], [0], [1], [0, 0, 1, 1], [], []>} : vector<128x128xbf16>, vector<128x128xbf16>, vector<128x128xf32> -> vector<128x128xf32>
    %c0_134 = arith.constant 0 : index
    %c0_135 = arith.constant 0 : index
    %337 = vector.load %arg20[%c0_134, %c0_135] : memref<1x128xf32, #tpu.memory_space<vmem>>, vector<1x128xf32>
    %338 = vector.broadcast %337 : vector<1x128xf32> to vector<128x128xf32>
    %339 = arith.addf %336, %338 : vector<128x128xf32>
    %c0_136 = arith.constant 0 : index
    %c0_137 = arith.constant 0 : index
    %340 = vector.load %arg21[%c0_136, %c0_137] : memref<128x128xf32, #tpu.memory_space<vmem>>, vector<128x128xf32>
    tpu.vector_store %arg21[%c0_136, %c0_137], %339 {strides = array<i32>} : memref<128x128xf32, #tpu.memory_space<vmem>>, vector<128x128xf32>,
    return
  }
  func.func @transform_0(%arg0: i32) -> (i32, i32) {
    %c0_i32 = arith.constant 0 : i32
    %c0_i32_0 = arith.constant 0 : i32
    return %arg0, %c0_i32 : i32, i32
  }
  func.func @transform_1(%arg0: i32) -> (i32, i32) {
    %c0_i32 = arith.constant 0 : i32
    %c0_i32_0 = arith.constant 0 : i32
    %c0_i32_1 = arith.constant 0 : i32
    return %c0_i32, %c0_i32_0 : i32, i32
  }
  func.func @transform_2(%arg0: i32) -> (i32, i32) {
    %c0_i32 = arith.constant 0 : i32
    %c0_i32_0 = arith.constant 0 : i32
    %c0_i32_1 = arith.constant 0 : i32
    return %c0_i32, %c0_i32_0 : i32, i32
  }
  func.func @transform_3(%arg0: i32) -> (i32, i32) {
    %c0_i32 = arith.constant 0 : i32
    %c0_i32_0 = arith.constant 0 : i32
    %c0_i32_1 = arith.constant 0 : i32
    return %c0_i32, %c0_i32_0 : i32, i32
  }
  func.func @transform_4(%arg0: i32) -> (i32, i32, i32) {
    %c0_i32 = arith.constant 0 : i32
    %c0_i32_0 = arith.constant 0 : i32
    %c0_i32_1 = arith.constant 0 : i32
    %c0_i32_2 = arith.constant 0 : i32
    return %c0_i32, %c0_i32_0, %c0_i32_1 : i32, i32, i32
  }
  func.func @transform_5(%arg0: i32) -> (i32, i32, i32) {
    %c0_i32 = arith.constant 0 : i32
    %c0_i32_0 = arith.constant 0 : i32
    %c0_i32_1 = arith.constant 0 : i32
    %c0_i32_2 = arith.constant 0 : i32
    return %c0_i32, %c0_i32_0, %c0_i32_1 : i32, i32, i32
  }
  func.func @transform_6(%arg0: i32) -> (i32, i32, i32) {
    %c0_i32 = arith.constant 0 : i32
    %c0_i32_0 = arith.constant 0 : i32
    %c0_i32_1 = arith.constant 0 : i32
    %c0_i32_2 = arith.constant 0 : i32
    return %c0_i32, %c0_i32_0, %c0_i32_1 : i32, i32, i32
  }
  func.func @transform_7(%arg0: i32) -> (i32, i32, i32) {
    %c0_i32 = arith.constant 0 : i32
    %c0_i32_0 = arith.constant 0 : i32
    %c0_i32_1 = arith.constant 0 : i32
    %c0_i32_2 = arith.constant 0 : i32
    return %c0_i32, %c0_i32_0, %c0_i32_1 : i32, i32, i32
  }
  func.func @transform_8(%arg0: i32) -> (i32, i32, i32) {
    %c0_i32 = arith.constant 0 : i32
    %c0_i32_0 = arith.constant 0 : i32
    %c0_i32_1 = arith.constant 0 : i32
    %c0_i32_2 = arith.constant 0 : i32
    return %c0_i32, %c0_i32_0, %c0_i32_1 : i32, i32, i32
  }
  func.func @transform_9(%arg0: i32) -> (i32, i32, i32) {
    %c0_i32 = arith.constant 0 : i32
    %c0_i32_0 = arith.constant 0 : i32
    %c0_i32_1 = arith.constant 0 : i32
    %c0_i32_2 = arith.constant 0 : i32
    return %c0_i32, %c0_i32_0, %c0_i32_1 : i32, i32, i32
  }
  func.func @transform_10(%arg0: i32) -> (i32, i32, i32) {
    %c0_i32 = arith.constant 0 : i32
    %c0_i32_0 = arith.constant 0 : i32
    %c0_i32_1 = arith.constant 0 : i32
    %c0_i32_2 = arith.constant 0 : i32
    return %c0_i32, %c0_i32_0, %c0_i32_1 : i32, i32, i32
  }
  func.func @transform_11(%arg0: i32) -> (i32, i32, i32) {
    %c0_i32 = arith.constant 0 : i32
    %c0_i32_0 = arith.constant 0 : i32
    %c0_i32_1 = arith.constant 0 : i32
    %c0_i32_2 = arith.constant 0 : i32
    return %c0_i32, %c0_i32_0, %c0_i32_1 : i32, i32, i32
  }
  func.func @transform_12(%arg0: i32) -> (i32, i32, i32) {
    %c0_i32 = arith.constant 0 : i32
    %c0_i32_0 = arith.constant 0 : i32
    %c0_i32_1 = arith.constant 0 : i32
    %c0_i32_2 = arith.constant 0 : i32
    return %c0_i32, %c0_i32_0, %c0_i32_1 : i32, i32, i32
  }
  func.func @transform_13(%arg0: i32) -> (i32, i32, i32) {
    %c0_i32 = arith.constant 0 : i32
    %c0_i32_0 = arith.constant 0 : i32
    %c0_i32_1 = arith.constant 0 : i32
    %c0_i32_2 = arith.constant 0 : i32
    return %c0_i32, %c0_i32_0, %c0_i32_1 : i32, i32, i32
  }
  func.func @transform_14(%arg0: i32) -> (i32, i32, i32) {
    %c0_i32 = arith.constant 0 : i32
    %c0_i32_0 = arith.constant 0 : i32
    %c0_i32_1 = arith.constant 0 : i32
    %c0_i32_2 = arith.constant 0 : i32
    return %c0_i32, %c0_i32_0, %c0_i32_1 : i32, i32, i32
  }
  func.func @transform_15(%arg0: i32) -> (i32, i32, i32) {
    %c0_i32 = arith.constant 0 : i32
    %c0_i32_0 = arith.constant 0 : i32
    %c0_i32_1 = arith.constant 0 : i32
    %c0_i32_2 = arith.constant 0 : i32
    return %c0_i32, %c0_i32_0, %c0_i32_1 : i32, i32, i32
  }
  func.func @transform_16(%arg0: i32) -> (i32, i32) {
    %c0_i32 = arith.constant 0 : i32
    %c0_i32_0 = arith.constant 0 : i32
    %c0_i32_1 = arith.constant 0 : i32
    return %c0_i32, %c0_i32_0 : i32, i32
  }
  func.func @transform_17(%arg0: i32) -> (i32, i32) {
    %c0_i32 = arith.constant 0 : i32
    %c0_i32_0 = arith.constant 0 : i32
    %c0_i32_1 = arith.constant 0 : i32
    return %c0_i32, %c0_i32_0 : i32, i32
  }
  func.func @transform_18(%arg0: i32) -> (i32, i32) {
    %c0_i32 = arith.constant 0 : i32
    %c0_i32_0 = arith.constant 0 : i32
    %c0_i32_1 = arith.constant 0 : i32
    return %c0_i32, %c0_i32_0 : i32, i32
  }
  func.func @transform_19(%arg0: i32) -> (i32, i32) {
    %c0_i32 = arith.constant 0 : i32
    %c0_i32_0 = arith.constant 0 : i32
    %c0_i32_1 = arith.constant 0 : i32
    return %c0_i32, %c0_i32_0 : i32, i32
  }
  func.func @transform_20(%arg0: i32) -> (i32, i32) {
    %c0_i32 = arith.constant 0 : i32
    %c0_i32_0 = arith.constant 0 : i32
    return %arg0, %c0_i32 : i32, i32
  }
}

</mosaic_0001>

<llo_original>
// kernel: grasp_vit_forward.1
$region0: #{grasp_vit_forward.1}
  #allocation0 [shape = 'u32[]', space=smem, size = 0x4, offset = 0x4, fixed_abs, tag = 'smem constant byte address 0x4 - core index']
  #allocation1 [shape = 'u32[144,128]{1,0:T(1,128)}', space=vmem, size = 0x12000, scoped, tag = 'internal scratch']
  %s0 = inlined_call_operand.vmem [shape: bf16[128,768], index: 0, kind: input, shape index: {}]
  %s1 = inlined_call_operand.vmem [shape: bf16[768,128], index: 1, kind: input, shape index: {}]
  %s2 = inlined_call_operand.vmem [shape: f32[128,128], index: 2, kind: input, shape index: {}]
  %s3 = inlined_call_operand.hbm [shape: f32[128,128], index: 3, kind: input, shape index: {}]
  %s4 = inlined_call_operand.hbm [shape: f32[2,1,128], index: 4, kind: input, shape index: {}]
  %s5 = inlined_call_operand.hbm [shape: f32[2,1,128], index: 5, kind: input, shape index: {}]
  %s6 = inlined_call_operand.hbm [shape: bf16[2,128,384], index: 6, kind: input, shape index: {}]
  %s7 = inlined_call_operand.vmem [shape: f32[2,1,384], index: 7, kind: input, shape index: {}]
  %s8 = inlined_call_operand.hbm [shape: bf16[2,128,128], index: 8, kind: input, shape index: {}]
  %s9 = inlined_call_operand.hbm [shape: f32[2,1,128], index: 9, kind: input, shape index: {}]
  %s10 = inlined_call_operand.vmem [shape: f32[2,1,128], index: 10, kind: input, shape index: {}]
  %s11 = inlined_call_operand.vmem [shape: f32[2,1,128], index: 11, kind: input, shape index: {}]
  %s12 = inlined_call_operand.vmem [shape: bf16[2,128,512], index: 12, kind: input, shape index: {}]
  %s13 = inlined_call_operand.hbm [shape: f32[2,1,512], index: 13, kind: input, shape index: {}]
  %s14 = inlined_call_operand.vmem [shape: bf16[2,512,128], index: 14, kind: input, shape index: {}]
  %s15 = inlined_call_operand.hbm [shape: f32[2,1,128], index: 15, kind: input, shape index: {}]
  %s16 = inlined_call_operand.vmem [shape: f32[1,128], index: 16, kind: input, shape index: {}]
  %s17 = inlined_call_operand.vmem [shape: f32[1,128], index: 17, kind: input, shape index: {}]
  %s18 = inlined_call_operand.vmem [shape: bf16[128,128], index: 18, kind: input, shape index: {}]
  %s19 = inlined_call_operand.hbm [shape: f32[1,128], index: 19, kind: input, shape index: {}]
  %s20 = inlined_call_operand.vmem [shape: f32[128,128], index: 20, kind: output, shape index: {}]
  %s21 = sld [smem:[#allocation0]]
  $region126: #{grasp_vit_forward.1} parent=0
    _
  %s23 = ssub.s32 1, %s21
  %s24 = scalar_select 0, %s23, %s21
  $region1: #{grasp_vit_forward.1} parent=0
    #allocation2 [shape = 'u8[65536]{0}', space=vmem, size = 0x10000, scoped, tag = 'input window, operand 3, single buffered']
    #allocation3 [shape = 's32[1]{0}', space=sflag, size = 0x4, scoped, tag = 'scoped memory for grasp_vit_forward.1']
    #allocation4 [shape = 'u8[1024]{0}', space=vmem, size = 0x400, scoped, tag = 'input window, operand 4, single buffered']
    #allocation5 [shape = 's32[1]{0}', space=sflag, size = 0x4, scoped, tag = 'scoped memory for grasp_vit_forward.1']
    #allocation6 [shape = 'u8[1024]{0}', space=vmem, size = 0x400, scoped, tag = 'input window, operand 5, single buffered']
    #allocation7 [shape = 'u8[196608]{0}', space=vmem, size = 0x30000, scoped, tag = 'input window, operand 6, single buffered']
    #allocation8 [shape = 's32[1]{0}', space=sflag, size = 0x4, scoped, tag = 'scoped memory for grasp_vit_forward.1']
    #allocation9 [shape = 'u8[65536]{0}', space=vmem, size = 0x10000, scoped, tag = 'input window, operand 8, single buffered']
    #allocation10 [shape = 'u8[1024]{0}', space=vmem, size = 0x400, scoped, tag = 'input window, operand 9, single buffered']
    #allocation11 [shape = 's32[1]{0}', space=sflag, size = 0x4, scoped, tag = 'scoped memory for grasp_vit_forward.1']
    #allocation12 [shape = 'u8[4096]{0}', space=vmem, size = 0x1000, scoped, tag = 'input window, operand 13, single buffered']
    #allocation13 [shape = 'u8[1024]{0}', space=vmem, size = 0x400, scoped, tag = 'input window, operand 15, single buffered']
    #allocation14 [shape = 's32[1]{0}', space=sflag, size = 0x4, scoped, tag = 'scoped memory for grasp_vit_forward.1']
    #allocation15 [shape = 'u8[512]{0}', space=vmem, size = 0x400, scoped, tag = 'input window, operand 19, single buffered']
    %25 = vsyncpa [#allocation3], 0
    %26 = vsyncpa [#allocation5], 0
    %27 = vsyncpa [#allocation8], 0
    %28 = vsyncpa [#allocation11], 0
    %29 = vsyncpa [#allocation14], 0
    // Predicated region
    $region2: #{grasp_vit_forward.1} parent=1 // pred_check
      _
    $region3: #{grasp_vit_forward.1} parent=1 // pred_check_branch
      %31 = sbr.rel (0) target = $region5
    $region4: #{grasp_vit_forward.1} parent=1 // pred_region
      _
    $region5: #{grasp_vit_forward.1} parent=1 // pred_fallthru
      _
    // Predicated region
    $region6: #{grasp_vit_forward.1} parent=1 // pred_check
      _
    $region7: #{grasp_vit_forward.1} parent=1 // pred_check_branch
      %33 = sbr.rel (0) target = $region9
    $region8: #{grasp_vit_forward.1} parent=1 // pred_region
      _
    $region9: #{grasp_vit_forward.1} parent=1 // pred_fallthru
      _
    // Predicated region
    $region10: #{grasp_vit_forward.1} parent=1 // pred_check
      _
    $region11: #{grasp_vit_forward.1} parent=1 // pred_check_branch
      %35 = sbr.rel (0) target = $region13
    $region12: #{grasp_vit_forward.1} parent=1 // pred_region
      _
    $region13: #{grasp_vit_forward.1} parent=1 // pred_fallthru
      _
    // Predicated region
    $region14: #{grasp_vit_forward.1} parent=1 // pred_check
      _
    $region15: #{grasp_vit_forward.1} parent=1 // pred_check_branch
      %37 = sbr.rel (0) target = $region17
    $region16: #{grasp_vit_forward.1} parent=1 // pred_region
      %s39 = ssub.s32 2048, 2048
      %40 = vsyncadd [#allocation3], %s39
      %s41 = sshll.u32 [#allocation2], 4
      %s42 = int_to_ptr.vmem [resolvable:$true] %s41
      %47 = dma.hbm_to_vmem [thread:$0]  %s3, 2048, %s42, [#allocation3], 128, 128, 8
    $region17: #{grasp_vit_forward.1} parent=1 // pred_fallthru
      _
    // Predicated region
    $region18: #{grasp_vit_forward.1} parent=1 // pred_check
      _
    $region19: #{grasp_vit_forward.1} parent=1 // pred_check_branch
      %49 = sbr.rel (0) target = $region21
    $region20: #{grasp_vit_forward.1} parent=1 // pred_region
      %s51 = ssub.s32 32, 32
      %52 = vsyncadd [#allocation5], %s51
      %s53 = sshll.u32 [#allocation4], 4
      %s54 = int_to_ptr.vmem [resolvable:$true] %s53
      %59 = dma.hbm_to_vmem [thread:$0]  %s4, 32, %s54, [#allocation5], 16, 16, 1
    $region21: #{grasp_vit_forward.1} parent=1 // pred_fallthru
      _
    // Predicated region
    $region22: #{grasp_vit_forward.1} parent=1 // pred_check
      _
    $region23: #{grasp_vit_forward.1} parent=1 // pred_check_branch
      %61 = sbr.rel (0) target = $region25
    $region24: #{grasp_vit_forward.1} parent=1 // pred_region
      %s63 = ssub.s32 32, 32
      %64 = vsyncadd [#allocation5], %s63
      %s65 = sshll.u32 [#allocation6], 4
      %s66 = int_to_ptr.vmem [resolvable:$true] %s65
      %71 = dma.hbm_to_vmem [thread:$0]  %s5, 32, %s66, [#allocation5], 16, 16, 1
    $region25: #{grasp_vit_forward.1} parent=1 // pred_fallthru
      _
    // Predicated region
    $region26: #{grasp_vit_forward.1} parent=1 // pred_check
      _
    $region27: #{grasp_vit_forward.1} parent=1 // pred_check_branch
      %73 = sbr.rel (0) target = $region29
    $region28: #{grasp_vit_forward.1} parent=1 // pred_region
      %s75 = ssub.s32 6144, 6144
      %76 = vsyncadd [#allocation8], %s75
      %s77 = sshll.u32 [#allocation7], 4
      %s78 = int_to_ptr.vmem [resolvable:$true] %s77
      %83 = dma.hbm_to_vmem [thread:$0]  %s6, 6144, %s78, [#allocation8], 192, 192, 12
    $region29: #{grasp_vit_forward.1} parent=1 // pred_fallthru
      _
    // Predicated region
    $region30: #{grasp_vit_forward.1} parent=1 // pred_check
      _
    $region31: #{grasp_vit_forward.1} parent=1 // pred_check_branch
      %85 = sbr.rel (0) target = $region33
    $region32: #{grasp_vit_forward.1} parent=1 // pred_region
      _
    $region33: #{grasp_vit_forward.1} parent=1 // pred_fallthru
      _
    // Predicated region
    $region34: #{grasp_vit_forward.1} parent=1 // pred_check
      _
    $region35: #{grasp_vit_forward.1} parent=1 // pred_check_branch
      %87 = sbr.rel (0) target = $region37
    $region36: #{grasp_vit_forward.1} parent=1 // pred_region
      %s89 = ssub.s32 2048, 2048
      %90 = vsyncadd [#allocation8], %s89
      %s91 = sshll.u32 [#allocation9], 4
      %s92 = int_to_ptr.vmem [resolvable:$true] %s91
      %97 = dma.hbm_to_vmem [thread:$0]  %s8, 2048, %s92, [#allocation8], 64, 64, 4
    $region37: #{grasp_vit_forward.1} parent=1 // pred_fallthru
      _
    // Predicated region
    $region38: #{grasp_vit_forward.1} parent=1 // pred_check
      _
    $region39: #{grasp_vit_forward.1} parent=1 // pred_check_branch
      %99 = sbr.rel (0) target = $region41
    $region40: #{grasp_vit_forward.1} parent=1 // pred_region
      %s101 = ssub.s32 32, 32
      %102 = vsyncadd [#allocation11], %s101
      %s103 = sshll.u32 [#allocation10], 4
      %s104 = int_to_ptr.vmem [resolvable:$true] %s103
      %109 = dma.hbm_to_vmem [thread:$0]  %s9, 32, %s104, [#allocation11], 16, 16, 1
    $region41: #{grasp_vit_forward.1} parent=1 // pred_fallthru
      _
    // Predicated region
    $region42: #{grasp_vit_forward.1} parent=1 // pred_check
      _
    $region43: #{grasp_vit_forward.1} parent=1 // pred_check_branch
      %111 = sbr.rel (0) target = $region45
    $region44: #{grasp_vit_forward.1} parent=1 // pred_region
      _
    $region45: #{grasp_vit_forward.1} parent=1 // pred_fallthru
      _
    // Predicated region
    $region46: #{grasp_vit_forward.1} parent=1 // pred_check
      _
    $region47: #{grasp_vit_forward.1} parent=1 // pred_check_branch
      %113 = sbr.rel (0) target = $region49
    $region48: #{grasp_vit_forward.1} parent=1 // pred_region
      _
    $region49: #{grasp_vit_forward.1} parent=1 // pred_fallthru
      _
    // Predicated region
    $region50: #{grasp_vit_forward.1} parent=1 // pred_check
      _
    $region51: #{grasp_vit_forward.1} parent=1 // pred_check_branch
      %115 = sbr.rel (0) target = $region53
    $region52: #{grasp_vit_forward.1} parent=1 // pred_region
      _
    $region53: #{grasp_vit_forward.1} parent=1 // pred_fallthru
      _
    // Predicated region
    $region54: #{grasp_vit_forward.1} parent=1 // pred_check
      _
    $region55: #{grasp_vit_forward.1} parent=1 // pred_check_branch
      %117 = sbr.rel (0) target = $region57
    $region56: #{grasp_vit_forward.1} parent=1 // pred_region
      %s119 = ssub.s32 128, 128
      %120 = vsyncadd [#allocation11], %s119
      %s121 = sshll.u32 [#allocation12], 4
      %s122 = int_to_ptr.vmem [resolvable:$true] %s121
      %127 = dma.hbm_to_vmem [thread:$0]  %s13, 128, %s122, [#allocation11], 64, 64, 4
    $region57: #{grasp_vit_forward.1} parent=1 // pred_fallthru
      _
    // Predicated region
    $region58: #{grasp_vit_forward.1} parent=1 // pred_check
      _
    $region59: #{grasp_vit_forward.1} parent=1 // pred_check_branch
      %129 = sbr.rel (0) target = $region61
    $region60: #{grasp_vit_forward.1} parent=1 // pred_region
      _
    $region61: #{grasp_vit_forward.1} parent=1 // pred_fallthru
      _
    // Predicated region
    $region62: #{grasp_vit_forward.1} parent=1 // pred_check
      _
    $region63: #{grasp_vit_forward.1} parent=1 // pred_check_branch
      %131 = sbr.rel (0) target = $region65
    $region64: #{grasp_vit_forward.1} parent=1 // pred_region
      %s133 = ssub.s32 32, 32
      %134 = vsyncadd [#allocation14], %s133
      %s135 = sshll.u32 [#allocation13], 4
      %s136 = int_to_ptr.vmem [resolvable:$true] %s135
      %141 = dma.hbm_to_vmem [thread:$0]  %s15, 32, %s136, [#allocation14], 16, 16, 1
    $region65: #{grasp_vit_forward.1} parent=1 // pred_fallthru
      _
    // Predicated region
    $region66: #{grasp_vit_forward.1} parent=1 // pred_check
      _
    $region67: #{grasp_vit_forward.1} parent=1 // pred_check_branch
      %143 = sbr.rel (0) target = $region69
    $region68: #{grasp_vit_forward.1} parent=1 // pred_region
      _
    $region69: #{grasp_vit_forward.1} parent=1 // pred_fallthru
      _
    // Predicated region
    $region70: #{grasp_vit_forward.1} parent=1 // pred_check
      _
    $region71: #{grasp_vit_forward.1} parent=1 // pred_check_branch
      %145 = sbr.rel (0) target = $region73
    $region72: #{grasp_vit_forward.1} parent=1 // pred_region
      _
    $region73: #{grasp_vit_forward.1} parent=1 // pred_fallthru
      _
    // Predicated region
    $region74: #{grasp_vit_forward.1} parent=1 // pred_check
      _
    $region75: #{grasp_vit_forward.1} parent=1 // pred_check_branch
      %147 = sbr.rel (0) target = $region77
    $region76: #{grasp_vit_forward.1} parent=1 // pred_region
      _
    $region77: #{grasp_vit_forward.1} parent=1 // pred_fallthru
      _
    // Predicated region
    $region78: #{grasp_vit_forward.1} parent=1 // pred_check
      _
    $region79: #{grasp_vit_forward.1} parent=1 // pred_check_branch
      %149 = sbr.rel (0) target = $region81
    $region80: #{grasp_vit_forward.1} parent=1 // pred_region
      %s151 = ssub.s32 16, 16
      %152 = vsyncadd [#allocation14], %s151
      %s154 = sshll.u32 [#allocation15], 4
      %s155 = int_to_ptr.vmem [resolvable:$true] %s154
      %157 = dma.hbm_to_vmem [thread:$0]  %s19, 16, %s155, [#allocation14]
    $region81: #{grasp_vit_forward.1} parent=1 // pred_fallthru
      _
    // Predicated region
    $region82: #{grasp_vit_forward.1} parent=1 // pred_check
      _
    $region83: #{grasp_vit_forward.1} parent=1 // pred_check_branch
      %159 = sbr.rel (0) target = $region85
    $region84: #{grasp_vit_forward.1} parent=1 // pred_region
      %160 = dma.done [#allocation3], 2048
    $region85: #{grasp_vit_forward.1} parent=1 // pred_fallthru
      _
    // Predicated region
    $region86: #{grasp_vit_forward.1} parent=1 // pred_check
      _
    $region87: #{grasp_vit_forward.1} parent=1 // pred_check_branch
      %162 = sbr.rel (0) target = $region89
    $region88: #{grasp_vit_forward.1} parent=1 // pred_region
      %163 = dma.done [#allocation5], 32
    $region89: #{grasp_vit_forward.1} parent=1 // pred_fallthru
      _
    // Predicated region
    $region90: #{grasp_vit_forward.1} parent=1 // pred_check
      _
    $region91: #{grasp_vit_forward.1} parent=1 // pred_check_branch
      %165 = sbr.rel (0) target = $region93
    $region92: #{grasp_vit_forward.1} parent=1 // pred_region
      %166 = dma.done [#allocation5], 32
    $region93: #{grasp_vit_forward.1} parent=1 // pred_fallthru
      _
    // Predicated region
    $region94: #{grasp_vit_forward.1} parent=1 // pred_check
      _
    $region95: #{grasp_vit_forward.1} parent=1 // pred_check_branch
      %168 = sbr.rel (0) target = $region97
    $region96: #{grasp_vit_forward.1} parent=1 // pred_region
      %169 = dma.done [#allocation8], 6144
    $region97: #{grasp_vit_forward.1} parent=1 // pred_fallthru
      _
    // Predicated region
    $region98: #{grasp_vit_forward.1} parent=1 // pred_check
      _
    $region99: #{grasp_vit_forward.1} parent=1 // pred_check_branch
      %171 = sbr.rel (0) target = $region101
    $region100: #{grasp_vit_forward.1} parent=1 // pred_region
      %172 = dma.done [#allocation8], 2048
    $region101: #{grasp_vit_forward.1} parent=1 // pred_fallthru
      _
    // Predicated region
    $region102: #{grasp_vit_forward.1} parent=1 // pred_check
      _
    $region103: #{grasp_vit_forward.1} parent=1 // pred_check_branch
      %174 = sbr.rel (0) target = $region105
    $region104: #{grasp_vit_forward.1} parent=1 // pred_region
      %175 = dma.done [#allocation11], 32
    $region105: #{grasp_vit_forward.1} parent=1 // pred_fallthru
      _
    // Predicated region
    $region106: #{grasp_vit_forward.1} parent=1 // pred_check
      _
    $region107: #{grasp_vit_forward.1} parent=1 // pred_check_branch
      %177 = sbr.rel (0) target = $region109
    $region108: #{grasp_vit_forward.1} parent=1 // pred_region
      %178 = dma.done [#allocation11], 128
    $region109: #{grasp_vit_forward.1} parent=1 // pred_fallthru
      _
    // Predicated region
    $region110: #{grasp_vit_forward.1} parent=1 // pred_check
      _
    $region111: #{grasp_vit_forward.1} parent=1 // pred_check_branch
      %180 = sbr.rel (0) target = $region113
    $region112: #{grasp_vit_forward.1} parent=1 // pred_region
      %181 = dma.done [#allocation14], 32
    $region113: #{grasp_vit_forward.1} parent=1 // pred_fallthru
      _
    // Predicated region
    $region114: #{grasp_vit_forward.1} parent=1 // pred_check
      _
    $region115: #{grasp_vit_forward.1} parent=1 // pred_check_branch
      %183 = sbr.rel (0) target = $region117
    $region116: #{grasp_vit_forward.1} parent=1 // pred_region
      %184 = dma.done [#allocation14], 16
    $region117: #{grasp_vit_forward.1} parent=1 // pred_fallthru
      _
    %v186 = vld [vmem:[%s0] sm:$0xff]
    %v187 = vld [vmem:[%s0 + $0x8] sm:$0xff]
    %v188 = vld [vmem:[%s0 + $0x10] sm:$0xff]
    %v189 = vld [vmem:[%s0 + $0x18] sm:$0xff]
    %v190 = vld [vmem:[%s0 + $0x20] sm:$0xff]
    %v191 = vld [vmem:[%s0 + $0x28] sm:$0xff]
    %v192 = vld [vmem:[%s0 + $0x30] sm:$0xff]
    %v193 = vld [vmem:[%s0 + $0x38] sm:$0xff]
    %v194 = vld [vmem:[%s0 + $0x40] sm:$0xff]
    %v195 = vld [vmem:[%s0 + $0x48] sm:$0xff]
    %v196 = vld [vmem:[%s0 + $0x50] sm:$0xff]
    %v197 = vld [vmem:[%s0 + $0x58] sm:$0xff]
    %v198 = vld [vmem:[%s0 + $0x60] sm:$0xff]
    %v199 = vld [vmem:[%s0 + $0x68] sm:$0xff]
    %v200 = vld [vmem:[%s0 + $0x70] sm:$0xff]
    %v201 = vld [vmem:[%s0 + $0x78] sm:$0xff]
    %v202 = vld [vmem:[%s0 + $0x80] sm:$0xff]
    %v203 = vld [vmem:[%s0 + $0x88] sm:$0xff]
    %v204 = vld [vmem:[%s0 + $0x90] sm:$0xff]
    %v205 = vld [vmem:[%s0 + $0x98] sm:$0xff]
    %v206 = vld [vmem:[%s0 + $0xa0] sm:$0xff]
    %v207 = vld [vmem:[%s0 + $0xa8] sm:$0xff]
    %v208 = vld [vmem:[%s0 + $0xb0] sm:$0xff]
    %v209 = vld [vmem:[%s0 + $0xb8] sm:$0xff]
    %v210 = vld [vmem:[%s0 + $0xc0] sm:$0xff]
    %v211 = vld [vmem:[%s0 + $0xc8] sm:$0xff]
    %v212 = vld [vmem:[%s0 + $0xd0] sm:$0xff]
    %v213 = vld [vmem:[%s0 + $0xd8] sm:$0xff]
    %v214 = vld [vmem:[%s0 + $0xe0] sm:$0xff]
    %v215 = vld [vmem:[%s0 + $0xe8] sm:$0xff]
    %v216 = vld [vmem:[%s0 + $0xf0] sm:$0xff]
    %v217 = vld [vmem:[%s0 + $0xf8] sm:$0xff]
    %v218 = vld [vmem:[%s0 + $0x100] sm:$0xff]
    %v219 = vld [vmem:[%s0 + $0x108] sm:$0xff]
    %v220 = vld [vmem:[%s0 + $0x110] sm:$0xff]
    %v221 = vld [vmem:[%s0 + $0x118] sm:$0xff]
    %v222 = vld [vmem:[%s0 + $0x120] sm:$0xff]
    %v223 = vld [vmem:[%s0 + $0x128] sm:$0xff]
    %v224 = vld [vmem:[%s0 + $0x130] sm:$0xff]
    %v225 = vld [vmem:[%s0 + $0x138] sm:$0xff]
    %v226 = vld [vmem:[%s0 + $0x140] sm:$0xff]
    %v227 = vld [vmem:[%s0 + $0x148] sm:$0xff]
    %v228 = vld [vmem:[%s0 + $0x150] sm:$0xff]
    %v229 = vld [vmem:[%s0 + $0x158] sm:$0xff]
    %v230 = vld [vmem:[%s0 + $0x160] sm:$0xff]
    %v231 = vld [vmem:[%s0 + $0x168] sm:$0xff]
    %v232 = vld [vmem:[%s0 + $0x170] sm:$0xff]
    %v233 = vld [vmem:[%s0 + $0x178] sm:$0xff]
    %v234 = vld [vmem:[%s1] sm:$0xf]
    %v235 = vld [vmem:[%s1 + $0x4] sm:$0xf]
    %v236 = vld [vmem:[%s1 + $0x8] sm:$0xf]
    %v237 = vld [vmem:[%s1 + $0xc] sm:$0xf]
    %v238 = vld [vmem:[%s1 + $0x10] sm:$0xf]
    %v239 = vld [vmem:[%s1 + $0x14] sm:$0xf]
    %v240 = vld [vmem:[%s1 + $0x18] sm:$0xf]
    %v241 = vld [vmem:[%s1 + $0x1c] sm:$0xf]
    %v242 = vld [vmem:[%s1 + $0x20] sm:$0xf]
    %v243 = vld [vmem:[%s1 + $0x24] sm:$0xf]
    %v244 = vld [vmem:[%s1 + $0x28] sm:$0xf]
    %v245 = vld [vmem:[%s1 + $0x2c] sm:$0xf]
    %v246 = vld [vmem:[%s1 + $0x30] sm:$0xf]
    %v247 = vld [vmem:[%s1 + $0x34] sm:$0xf]
    %v248 = vld [vmem:[%s1 + $0x38] sm:$0xf]
    %v249 = vld [vmem:[%s1 + $0x3c] sm:$0xf]
    %v250 = vld [vmem:[%s1 + $0x40] sm:$0xf]
    %v251 = vld [vmem:[%s1 + $0x44] sm:$0xf]
    %v252 = vld [vmem:[%s1 + $0x48] sm:$0xf]
    %v253 = vld [vmem:[%s1 + $0x4c] sm:$0xf]
    %v254 = vld [vmem:[%s1 + $0x50] sm:$0xf]
    %v255 = vld [vmem:[%s1 + $0x54] sm:$0xf]
    %v256 = vld [vmem:[%s1 + $0x58] sm:$0xf]
    %v257 = vld [vmem:[%s1 + $0x5c] sm:$0xf]
    %v258 = vld [vmem:[%s1 + $0x60] sm:$0xf]
    %v259 = vld [vmem:[%s1 + $0x64] sm:$0xf]
    %v260 = vld [vmem:[%s1 + $0x68] sm:$0xf]
    %v261 = vld [vmem:[%s1 + $0x6c] sm:$0xf]
    %v262 = vld [vmem:[%s1 + $0x70] sm:$0xf]
    %v263 = vld [vmem:[%s1 + $0x74] sm:$0xf]
    %v264 = vld [vmem:[%s1 + $0x78] sm:$0xf]
    %v265 = vld [vmem:[%s1 + $0x7c] sm:$0xf]
    %v266 = vld [vmem:[%s1 + $0x80] sm:$0xf]
    %v267 = vld [vmem:[%s1 + $0x84] sm:$0xf]
    %v268 = vld [vmem:[%s1 + $0x88] sm:$0xf]
    %v269 = vld [vmem:[%s1 + $0x8c] sm:$0xf]
    %v270 = vld [vmem:[%s1 + $0x90] sm:$0xf]
    %v271 = vld [vmem:[%s1 + $0x94] sm:$0xf]
    %v272 = vld [vmem:[%s1 + $0x98] sm:$0xf]
    %v273 = vld [vmem:[%s1 + $0x9c] sm:$0xf]
    %v274 = vld [vmem:[%s1 + $0xa0] sm:$0xf]
    %v275 = vld [vmem:[%s1 + $0xa4] sm:$0xf]
    %v276 = vld [vmem:[%s1 + $0xa8] sm:$0xf]
    %v277 = vld [vmem:[%s1 + $0xac] sm:$0xf]
    %v278 = vld [vmem:[%s1 + $0xb0] sm:$0xf]
    %v279 = vld [vmem:[%s1 + $0xb4] sm:$0xf]
    %v280 = vld [vmem:[%s1 + $0xb8] sm:$0xf]
    %v281 = vld [vmem:[%s1 + $0xbc] sm:$0xf]
    %v282 = vld [vmem:[%s1 + $0xc0] sm:$0xf]
    %v283 = vld [vmem:[%s1 + $0xc4] sm:$0xf]
    %v284 = vld [vmem:[%s1 + $0xc8] sm:$0xf]
    %v285 = vld [vmem:[%s1 + $0xcc] sm:$0xf]
    %v286 = vld [vmem:[%s1 + $0xd0] sm:$0xf]
    %v287 = vld [vmem:[%s1 + $0xd4] sm:$0xf]
    %v288 = vld [vmem:[%s1 + $0xd8] sm:$0xf]
    %v289 = vld [vmem:[%s1 + $0xdc] sm:$0xf]
    %v290 = vld [vmem:[%s1 + $0xe0] sm:$0xf]
    %v291 = vld [vmem:[%s1 + $0xe4] sm:$0xf]
    %v292 = vld [vmem:[%s1 + $0xe8] sm:$0xf]
    %v293 = vld [vmem:[%s1 + $0xec] sm:$0xf]
    %v294 = vld [vmem:[%s1 + $0xf0] sm:$0xf]
    %v295 = vld [vmem:[%s1 + $0xf4] sm:$0xf]
    %v296 = vld [vmem:[%s1 + $0xf8] sm:$0xf]
    %v297 = vld [vmem:[%s1 + $0xfc] sm:$0xf]
    %v298 = vld [vmem:[%s1 + $0x100] sm:$0xf]
    %v299 = vld [vmem:[%s1 + $0x104] sm:$0xf]
    %v300 = vld [vmem:[%s1 + $0x108] sm:$0xf]
    %v301 = vld [vmem:[%s1 + $0x10c] sm:$0xf]
    %v302 = vld [vmem:[%s1 + $0x110] sm:$0xf]
    %v303 = vld [vmem:[%s1 + $0x114] sm:$0xf]
    %v304 = vld [vmem:[%s1 + $0x118] sm:$0xf]
    %v305 = vld [vmem:[%s1 + $0x11c] sm:$0xf]
    %v306 = vld [vmem:[%s1 + $0x120] sm:$0xf]
    %v307 = vld [vmem:[%s1 + $0x124] sm:$0xf]
    %v308 = vld [vmem:[%s1 + $0x128] sm:$0xf]
    %v309 = vld [vmem:[%s1 + $0x12c] sm:$0xf]
    %v310 = vld [vmem:[%s1 + $0x130] sm:$0xf]
    %v311 = vld [vmem:[%s1 + $0x134] sm:$0xf]
    %v312 = vld [vmem:[%s1 + $0x138] sm:$0xf]
    %v313 = vld [vmem:[%s1 + $0x13c] sm:$0xf]
    %v314 = vld [vmem:[%s1 + $0x140] sm:$0xf]
    %v315 = vld [vmem:[%s1 + $0x144] sm:$0xf]
    %v316 = vld [vmem:[%s1 + $0x148] sm:$0xf]
    %v317 = vld [vmem:[%s1 + $0x14c] sm:$0xf]
    %v318 = vld [vmem:[%s1 + $0x150] sm:$0xf]
    %v319 = vld [vmem:[%s1 + $0x154] sm:$0xf]
    %v320 = vld [vmem:[%s1 + $0x158] sm:$0xf]
    %v321 = vld [vmem:[%s1 + $0x15c] sm:$0xf]
    %v322 = vld [vmem:[%s1 + $0x160] sm:$0xf]
    %v323 = vld [vmem:[%s1 + $0x164] sm:$0xf]
    %v324 = vld [vmem:[%s1 + $0x168] sm:$0xf]
    %v325 = vld [vmem:[%s1 + $0x16c] sm:$0xf]
    %v326 = vld [vmem:[%s1 + $0x170] sm:$0xf]
    %v327 = vld [vmem:[%s1 + $0x174] sm:$0xf]
    %v328 = vld [vmem:[%s1 + $0x178] sm:$0xf]
    %v329 = vld [vmem:[%s1 + $0x17c] sm:$0xf]
    %v330 = vld [vmem:[%s2] sm:$0xff]
    %v331 = vld [vmem:[%s2 + $0x8] sm:$0xff]
    %v332 = vld [vmem:[%s2 + $0x10] sm:$0xff]
    %v333 = vld [vmem:[%s2 + $0x18] sm:$0xff]
    %v334 = vld [vmem:[%s2 + $0x20] sm:$0xff]
    %v335 = vld [vmem:[%s2 + $0x28] sm:$0xff]
    %v336 = vld [vmem:[%s2 + $0x30] sm:$0xff]
    %v337 = vld [vmem:[%s2 + $0x38] sm:$0xff]
    %v338 = vld [vmem:[%s2 + $0x40] sm:$0xff]
    %v339 = vld [vmem:[%s2 + $0x48] sm:$0xff]
    %v340 = vld [vmem:[%s2 + $0x50] sm:$0xff]
    %v341 = vld [vmem:[%s2 + $0x58] sm:$0xff]
    %v342 = vld [vmem:[%s2 + $0x60] sm:$0xff]
    %v343 = vld [vmem:[%s2 + $0x68] sm:$0xff]
    %v344 = vld [vmem:[%s2 + $0x70] sm:$0xff]
    %v345 = vld [vmem:[%s2 + $0x78] sm:$0xff]
    %v394 = vunpack.c.l.b16 %v186
    %v395 = vunpack.c.h.b16 %v186
    %v396 = vunpack.c.l.b16 %v187
    %v397 = vunpack.c.h.b16 %v187
    %v398 = vunpack.c.l.b16 %v188
    %v399 = vunpack.c.h.b16 %v188
    %v400 = vunpack.c.l.b16 %v189
    %v401 = vunpack.c.h.b16 %v189
    %v402 = vunpack.c.l.b16 %v190
    %v403 = vunpack.c.h.b16 %v190
    %v404 = vunpack.c.l.b16 %v191
    %v405 = vunpack.c.h.b16 %v191
    %v406 = vunpack.c.l.b16 %v192
    %v407 = vunpack.c.h.b16 %v192
    %v408 = vunpack.c.l.b16 %v193
    %v409 = vunpack.c.h.b16 %v193
    %v410 = vunpack.c.l.b16 %v194
    %v411 = vunpack.c.h.b16 %v194
    %v412 = vunpack.c.l.b16 %v195
    %v413 = vunpack.c.h.b16 %v195
    %v414 = vunpack.c.l.b16 %v196
    %v415 = vunpack.c.h.b16 %v196
    %v416 = vunpack.c.l.b16 %v197
    %v417 = vunpack.c.h.b16 %v197
    %v418 = vunpack.c.l.b16 %v198
    %v419 = vunpack.c.h.b16 %v198
    %v420 = vunpack.c.l.b16 %v199
    %v421 = vunpack.c.h.b16 %v199
    %v422 = vunpack.c.l.b16 %v200
    %v423 = vunpack.c.h.b16 %v200
    %v424 = vunpack.c.l.b16 %v201
    %v425 = vunpack.c.h.b16 %v201
    %v426 = vunpack.c.l.b16 %v202
    %v427 = vunpack.c.h.b16 %v202
    %v428 = vunpack.c.l.b16 %v203
    %v429 = vunpack.c.h.b16 %v203
    %v430 = vunpack.c.l.b16 %v204
    %v431 = vunpack.c.h.b16 %v204
    %v432 = vunpack.c.l.b16 %v205
    %v433 = vunpack.c.h.b16 %v205
    %v434 = vunpack.c.l.b16 %v206
    %v435 = vunpack.c.h.b16 %v206
    %v436 = vunpack.c.l.b16 %v207
    %v437 = vunpack.c.h.b16 %v207
    %v438 = vunpack.c.l.b16 %v208
    %v439 = vunpack.c.h.b16 %v208
    %v440 = vunpack.c.l.b16 %v209
    %v441 = vunpack.c.h.b16 %v209
    %v442 = vunpack.c.l.b16 %v210
    %v443 = vunpack.c.h.b16 %v210
    %v444 = vunpack.c.l.b16 %v211
    %v445 = vunpack.c.h.b16 %v211
    %v446 = vunpack.c.l.b16 %v212
    %v447 = vunpack.c.h.b16 %v212
    %v448 = vunpack.c.l.b16 %v213
    %v449 = vunpack.c.h.b16 %v213
    %v450 = vunpack.c.l.b16 %v214
    %v451 = vunpack.c.h.b16 %v214
    %v452 = vunpack.c.l.b16 %v215
    %v453 = vunpack.c.h.b16 %v215
    %v454 = vunpack.c.l.b16 %v216
    %v455 = vunpack.c.h.b16 %v216
    %v456 = vunpack.c.l.b16 %v217
    %v457 = vunpack.c.h.b16 %v217
    %v458 = vunpack.c.l.b16 %v218
    %v459 = vunpack.c.h.b16 %v218
    %v460 = vunpack.c.l.b16 %v219
    %v461 = vunpack.c.h.b16 %v219
    %v462 = vunpack.c.l.b16 %v220
    %v463 = vunpack.c.h.b16 %v220
    %v464 = vunpack.c.l.b16 %v221
    %v465 = vunpack.c.h.b16 %v221
    %v466 = vunpack.c.l.b16 %v222
    %v467 = vunpack.c.h.b16 %v222
    %v468 = vunpack.c.l.b16 %v223
    %v469 = vunpack.c.h.b16 %v223
    %v470 = vunpack.c.l.b16 %v224
    %v471 = vunpack.c.h.b16 %v224
    %v472 = vunpack.c.l.b16 %v225
    %v473 = vunpack.c.h.b16 %v225
    %v474 = vunpack.c.l.b16 %v226
    %v475 = vunpack.c.h.b16 %v226
    %v476 = vunpack.c.l.b16 %v227
    %v477 = vunpack.c.h.b16 %v227
    %v478 = vunpack.c.l.b16 %v228
    %v479 = vunpack.c.h.b16 %v228
    %v480 = vunpack.c.l.b16 %v229
    %v481 = vunpack.c.h.b16 %v229
    %v482 = vunpack.c.l.b16 %v230
    %v483 = vunpack.c.h.b16 %v230
    %v484 = vunpack.c.l.b16 %v231
    %v485 = vunpack.c.h.b16 %v231
    %v486 = vunpack.c.l.b16 %v232
    %v487 = vunpack.c.h.b16 %v232
    %v488 = vunpack.c.l.b16 %v233
    %v489 = vunpack.c.h.b16 %v233
    %v490 = vpack.c.b16 %v400, %v394
    %v491 = vpack.c.b16 %v401, %v395
    %v492 = vpack.c.b16 %v402, %v396
    %v493 = vpack.c.b16 %v403, %v397
    %v494 = vpack.c.b16 %v404, %v398
    %v495 = vpack.c.b16 %v405, %v399
    %v496 = vpack.c.b16 %v412, %v406
    %v497 = vpack.c.b16 %v413, %v407
    %v498 = vpack.c.b16 %v414, %v408
    %v499 = vpack.c.b16 %v415, %v409
    %v500 = vpack.c.b16 %v416, %v410
    %v501 = vpack.c.b16 %v417, %v411
    %v502 = vpack.c.b16 %v424, %v418
    %v503 = vpack.c.b16 %v425, %v419
    %v504 = vpack.c.b16 %v426, %v420
    %v505 = vpack.c.b16 %v427, %v421
    %v506 = vpack.c.b16 %v428, %v422
    %v507 = vpack.c.b16 %v429, %v423
    %v508 = vpack.c.b16 %v436, %v430
    %v509 = vpack.c.b16 %v437, %v431
    %v510 = vpack.c.b16 %v438, %v432
    %v511 = vpack.c.b16 %v439, %v433
    %v512 = vpack.c.b16 %v440, %v434
    %v513 = vpack.c.b16 %v441, %v435
    %v514 = vpack.c.b16 %v448, %v442
    %v515 = vpack.c.b16 %v449, %v443
    %v516 = vpack.c.b16 %v450, %v444
    %v517 = vpack.c.b16 %v451, %v445
    %v518 = vpack.c.b16 %v452, %v446
    %v519 = vpack.c.b16 %v453, %v447
    %v520 = vpack.c.b16 %v460, %v454
    %v521 = vpack.c.b16 %v461, %v455
    %v522 = vpack.c.b16 %v462, %v456
    %v523 = vpack.c.b16 %v463, %v457
    %v524 = vpack.c.b16 %v464, %v458
    %v525 = vpack.c.b16 %v465, %v459
    %v526 = vpack.c.b16 %v472, %v466
    %v527 = vpack.c.b16 %v473, %v467
    %v528 = vpack.c.b16 %v474, %v468
    %v529 = vpack.c.b16 %v475, %v469
    %v530 = vpack.c.b16 %v476, %v470
    %v531 = vpack.c.b16 %v477, %v471
    %v532 = vpack.c.b16 %v484, %v478
    %v533 = vpack.c.b16 %v485, %v479
    %v534 = vpack.c.b16 %v486, %v480
    %v535 = vpack.c.b16 %v487, %v481
    %v536 = vpack.c.b16 %v488, %v482
    %v537 = vpack.c.b16 %v489, %v483
    %v682 = vunpack.c.l.b16 %v234
    %v683 = vunpack.c.l.b16 %v235
    %v684 = vunpack.c.l.b16 %v236
    %v685 = vunpack.c.l.b16 %v237
    %v686 = vunpack.c.l.b16 %v238
    %v687 = vunpack.c.l.b16 %v239
    %v688 = vunpack.c.l.b16 %v240
    %v689 = vunpack.c.l.b16 %v241
    %v690 = vunpack.c.l.b16 %v242
    %v691 = vunpack.c.l.b16 %v243
    %v692 = vunpack.c.l.b16 %v244
    %v693 = vunpack.c.l.b16 %v245
    %v694 = vunpack.c.l.b16 %v246
    %v695 = vunpack.c.l.b16 %v247
    %v696 = vunpack.c.l.b16 %v248
    %v697 = vunpack.c.l.b16 %v249
    %v698 = vunpack.c.l.b16 %v250
    %v699 = vunpack.c.l.b16 %v251
    %v700 = vunpack.c.l.b16 %v252
    %v701 = vunpack.c.l.b16 %v253
    %v702 = vunpack.c.l.b16 %v254
    %v703 = vunpack.c.l.b16 %v255
    %v704 = vunpack.c.l.b16 %v256
    %v705 = vunpack.c.l.b16 %v257
    %v706 = vunpack.c.l.b16 %v258
    %v707 = vunpack.c.l.b16 %v259
    %v708 = vunpack.c.l.b16 %v260
    %v709 = vunpack.c.l.b16 %v261
    %v710 = vunpack.c.l.b16 %v262
    %v711 = vunpack.c.l.b16 %v263
    %v712 = vunpack.c.l.b16 %v264
    %v713 = vunpack.c.l.b16 %v265
    %v714 = vunpack.c.l.b16 %v266
    %v715 = vunpack.c.l.b16 %v267
    %v716 = vunpack.c.l.b16 %v268
    %v717 = vunpack.c.l.b16 %v269
    %v718 = vunpack.c.l.b16 %v270
    %v719 = vunpack.c.l.b16 %v271
    %v720 = vunpack.c.l.b16 %v272
    %v721 = vunpack.c.l.b16 %v273
    %v722 = vunpack.c.l.b16 %v274
    %v723 = vunpack.c.l.b16 %v275
    %v724 = vunpack.c.l.b16 %v276
    %v725 = vunpack.c.l.b16 %v277
    %v726 = vunpack.c.l.b16 %v278
    %v727 = vunpack.c.l.b16 %v279
    %v728 = vunpack.c.l.b16 %v280
    %v729 = vunpack.c.l.b16 %v281
    %v730 = vunpack.c.l.b16 %v282
    %v731 = vunpack.c.l.b16 %v283
    %v732 = vunpack.c.l.b16 %v284
    %v733 = vunpack.c.l.b16 %v285
    %v734 = vunpack.c.l.b16 %v286
    %v735 = vunpack.c.l.b16 %v287
    %v736 = vunpack.c.l.b16 %v288
    %v737 = vunpack.c.l.b16 %v289
    %v738 = vunpack.c.l.b16 %v290
    %v739 = vunpack.c.l.b16 %v291
    %v740 = vunpack.c.l.b16 %v292
    %v741 = vunpack.c.l.b16 %v293
    %v742 = vunpack.c.l.b16 %v294
    %v743 = vunpack.c.l.b16 %v295
    %v744 = vunpack.c.l.b16 %v296
    %v745 = vunpack.c.l.b16 %v297
    %v746 = vunpack.c.l.b16 %v298
    %v747 = vunpack.c.l.b16 %v299
    %v748 = vunpack.c.l.b16 %v300
    %v749 = vunpack.c.l.b16 %v301
    %v750 = vunpack.c.l.b16 %v302
    %v751 = vunpack.c.l.b16 %v303
    %v752 = vunpack.c.l.b16 %v304
    %v753 = vunpack.c.l.b16 %v305
    %v754 = vunpack.c.l.b16 %v306
    %v755 = vunpack.c.l.b16 %v307
    %v756 = vunpack.c.l.b16 %v308
    %v757 = vunpack.c.l.b16 %v309
    %v758 = vunpack.c.l.b16 %v310
    %v759 = vunpack.c.l.b16 %v311
    %v760 = vunpack.c.l.b16 %v312
    %v761 = vunpack.c.l.b16 %v313
    %v762 = vunpack.c.l.b16 %v314
    %v763 = vunpack.c.l.b16 %v315
    %v764 = vunpack.c.l.b16 %v316
    %v765 = vunpack.c.l.b16 %v317
    %v766 = vunpack.c.l.b16 %v318
    %v767 = vunpack.c.l.b16 %v319
    %v768 = vunpack.c.l.b16 %v320
    %v769 = vunpack.c.l.b16 %v321
    %v770 = vunpack.c.l.b16 %v322
    %v771 = vunpack.c.l.b16 %v323
    %v772 = vunpack.c.l.b16 %v324
    %v773 = vunpack.c.l.b16 %v325
    %v774 = vunpack.c.l.b16 %v326
    %v775 = vunpack.c.l.b16 %v327
    %v776 = vunpack.c.l.b16 %v328
    %v777 = vunpack.c.l.b16 %v329
    %v778 = vpack.c.b16 %v683, %v682
    %v779 = vpack.c.b16 %v685, %v684
    %v780 = vpack.c.b16 %v687, %v686
    %v781 = vpack.c.b16 %v689, %v688
    %v782 = vpack.c.b16 %v691, %v690
    %v783 = vpack.c.b16 %v693, %v692
    %v784 = vpack.c.b16 %v695, %v694
    %v785 = vpack.c.b16 %v697, %v696
    %v786 = vpack.c.b16 %v699, %v698
    %v787 = vpack.c.b16 %v701, %v700
    %v788 = vpack.c.b16 %v703, %v702
    %v789 = vpack.c.b16 %v705, %v704
    %v790 = vpack.c.b16 %v707, %v706
    %v791 = vpack.c.b16 %v709, %v708
    %v792 = vpack.c.b16 %v711, %v710
    %v793 = vpack.c.b16 %v713, %v712
    %v794 = vpack.c.b16 %v715, %v714
    %v795 = vpack.c.b16 %v717, %v716
    %v796 = vpack.c.b16 %v719, %v718
    %v797 = vpack.c.b16 %v721, %v720
    %v798 = vpack.c.b16 %v723, %v722
    %v799 = vpack.c.b16 %v725, %v724
    %v800 = vpack.c.b16 %v727, %v726
    %v801 = vpack.c.b16 %v729, %v728
    %v802 = vpack.c.b16 %v731, %v730
    %v803 = vpack.c.b16 %v733, %v732
    %v804 = vpack.c.b16 %v735, %v734
    %v805 = vpack.c.b16 %v737, %v736
    %v806 = vpack.c.b16 %v739, %v738
    %v807 = vpack.c.b16 %v741, %v740
    %v808 = vpack.c.b16 %v743, %v742
    %v809 = vpack.c.b16 %v745, %v744
    %v810 = vpack.c.b16 %v747, %v746
    %v811 = vpack.c.b16 %v749, %v748
    %v812 = vpack.c.b16 %v751, %v750
    %v813 = vpack.c.b16 %v753, %v752
    %v814 = vpack.c.b16 %v755, %v754
    %v815 = vpack.c.b16 %v757, %v756
    %v816 = vpack.c.b16 %v759, %v758
    %v817 = vpack.c.b16 %v761, %v760
    %v818 = vpack.c.b16 %v763, %v762
    %v819 = vpack.c.b16 %v765, %v764
    %v820 = vpack.c.b16 %v767, %v766
    %v821 = vpack.c.b16 %v769, %v768
    %v822 = vpack.c.b16 %v771, %v770
    %v823 = vpack.c.b16 %v773, %v772
    %v824 = vpack.c.b16 %v775, %v774
    %v825 = vpack.c.b16 %v777, %v776
    %874 = vmatprep.subr.bf16.mxu0 0
    %875 = vmatpush1.bf16.msra.mxu0 %v778
    %876 = vmatprep.subr.bf16.mxu0 0
    %877 = vmatpush1.bf16.msra.mxu0 %v779
    %878 = vmatprep.subr.bf16.mxu0 0
    %879 = vmatpush1.bf16.msra.mxu0 %v780
    %880 = vmatprep.subr.bf16.mxu0 0
    %881 = vmatpush1.bf16.msra.mxu0 %v781
    %882 = vmatprep.subr.bf16.mxu0 0
    %883 = vmatpush1.bf16.msra.mxu0 %v782
    %884 = vmatprep.subr.bf16.mxu0 0
    %885 = vmatpush1.bf16.msra.mxu0 %v783
    %886 = vmatprep.subr.bf16.mxu0 0
    %887 = vmatpush1.bf16.msra.mxu0 %v784
    %888 = vmatprep.subr.bf16.mxu0 0
    %889 = vmatpush1.bf16.msra.mxu0 %v785
    %890 = vmatprep.subr.bf16.mxu0 0
    %891 = vmatpush1.bf16.msra.mxu0 %v786
    %892 = vmatprep.subr.bf16.mxu0 0
    %893 = vmatpush1.bf16.msra.mxu0 %v787
    %894 = vmatprep.subr.bf16.mxu0 0
    %895 = vmatpush1.bf16.msra.mxu0 %v788
    %896 = vmatprep.subr.bf16.mxu0 0
    %897 = vmatpush1.bf16.msra.mxu0 %v789
    %898 = vmatprep.subr.bf16.mxu0 0
    %899 = vmatpush1.bf16.msra.mxu0 %v790
    %900 = vmatprep.subr.bf16.mxu0 0
    %901 = vmatpush1.bf16.msra.mxu0 %v791
    %902 = vmatprep.subr.bf16.mxu0 0
    %903 = vmatpush1.bf16.msra.mxu0 %v792
    %904 = vmatprep.subr.bf16.mxu0 0
    %905 = vmatpush1.bf16.msra.mxu0 %v793
    %906 = vmatprep.mubr.bf16.mxu0 %v491
    %907 = vmatmul.mubr.bf16.gmra.mrb[0].mxu0 %v490
    %v908 = vpop.f32.mrb[0].mxu0
    %v909 = vadd.f32 %v330, %v908
    %v910 = vpop.f32.mrb[0].mxu0
    %v911 = vpop.f32.mrb[0].mxu0
    %v912 = vadd.f32 %v331, %v911
    %v913 = vpop.f32.mrb[0].mxu0
    %914 = vmatprep.mubr.bf16.mxu0 %v497
    %915 = vmatmul.mubr.bf16.gmra.mrb[0].mxu0 %v496
    %v916 = vpop.f32.mrb[0].mxu0
    %v917 = vadd.f32 %v332, %v916
    %v918 = vpop.f32.mrb[0].mxu0
    %v919 = vpop.f32.mrb[0].mxu0
    %v920 = vadd.f32 %v333, %v919
    %v921 = vpop.f32.mrb[0].mxu0
    %922 = vmatprep.mubr.bf16.mxu0 %v503
    %923 = vmatmul.mubr.bf16.gmra.mrb[0].mxu0 %v502
    %v924 = vpop.f32.mrb[0].mxu0
    %v925 = vadd.f32 %v334, %v924
    %v926 = vpop.f32.mrb[0].mxu0
    %v927 = vpop.f32.mrb[0].mxu0
    %v928 = vadd.f32 %v335, %v927
    %v929 = vpop.f32.mrb[0].mxu0
    %930 = vmatprep.mubr.bf16.mxu0 %v509
    %931 = vmatmul.mubr.bf16.gmra.mrb[0].mxu0 %v508
    %v932 = vpop.f32.mrb[0].mxu0
    %v933 = vadd.f32 %v336, %v932
    %v934 = vpop.f32.mrb[0].mxu0
    %v935 = vpop.f32.mrb[0].mxu0
    %v936 = vadd.f32 %v337, %v935
    %v937 = vpop.f32.mrb[0].mxu0
    %938 = vmatprep.mubr.bf16.mxu0 %v515
    %939 = vmatmul.mubr.bf16.gmra.mrb[0].mxu0 %v514
    %v940 = vpop.f32.mrb[0].mxu0
    %v941 = vadd.f32 %v338, %v940
    %v942 = vpop.f32.mrb[0].mxu0
    %v943 = vpop.f32.mrb[0].mxu0
    %v944 = vadd.f32 %v339, %v943
    %v945 = vpop.f32.mrb[0].mxu0
    %946 = vmatprep.mubr.bf16.mxu0 %v521
    %947 = vmatmul.mubr.bf16.gmra.mrb[0].mxu0 %v520
    %v948 = vpop.f32.mrb[0].mxu0
    %v949 = vadd.f32 %v340, %v948
    %v950 = vpop.f32.mrb[0].mxu0
    %v951 = vpop.f32.mrb[0].mxu0
    %v952 = vadd.f32 %v341, %v951
    %v953 = vpop.f32.mrb[0].mxu0
    %954 = vmatprep.mubr.bf16.mxu0 %v527
    %955 = vmatmul.mubr.bf16.gmra.mrb[0].mxu0 %v526
    %v956 = vpop.f32.mrb[0].mxu0
    %v957 = vadd.f32 %v342, %v956
    %v958 = vpop.f32.mrb[0].mxu0
    %v959 = vpop.f32.mrb[0].mxu0
    %v960 = vadd.f32 %v343, %v959
    %v961 = vpop.f32.mrb[0].mxu0
    %962 = vmatprep.mubr.bf16.mxu0 %v533
    %963 = vmatmul.mubr.bf16.gmra.mrb[0].mxu0 %v532
    %v964 = vpop.f32.mrb[0].mxu0
    %v965 = vadd.f32 %v344, %v964
    %v966 = vpop.f32.mrb[0].mxu0
    %v967 = vpop.f32.mrb[0].mxu0
    %v968 = vadd.f32 %v345, %v967
    %v969 = vpop.f32.mrb[0].mxu0
    %970 = vdwg.mxu0
    %971 = vmatprep.subr.bf16.mxu0 0
    %972 = vmatpush1.bf16.msra.mxu0 %v794
    %973 = vmatprep.subr.bf16.mxu0 0
    %974 = vmatpush1.bf16.msra.mxu0 %v795
    %975 = vmatprep.subr.bf16.mxu0 0
    %976 = vmatpush1.bf16.msra.mxu0 %v796
    %977 = vmatprep.subr.bf16.mxu0 0
    %978 = vmatpush1.bf16.msra.mxu0 %v797
    %979 = vmatprep.subr.bf16.mxu0 0
    %980 = vmatpush1.bf16.msra.mxu0 %v798
    %981 = vmatprep.subr.bf16.mxu0 0
    %982 = vmatpush1.bf16.msra.mxu0 %v799
    %983 = vmatprep.subr.bf16.mxu0 0
    %984 = vmatpush1.bf16.msra.mxu0 %v800
    %985 = vmatprep.subr.bf16.mxu0 0
    %986 = vmatpush1.bf16.msra.mxu0 %v801
    %987 = vmatprep.subr.bf16.mxu0 0
    %988 = vmatpush1.bf16.msra.mxu0 %v802
    %989 = vmatprep.subr.bf16.mxu0 0
    %990 = vmatpush1.bf16.msra.mxu0 %v803
    %991 = vmatprep.subr.bf16.mxu0 0
    %992 = vmatpush1.bf16.msra.mxu0 %v804
    %993 = vmatprep.subr.bf16.mxu0 0
    %994 = vmatpush1.bf16.msra.mxu0 %v805
    %995 = vmatprep.subr.bf16.mxu0 0
    %996 = vmatpush1.bf16.msra.mxu0 %v806
    %997 = vmatprep.subr.bf16.mxu0 0
    %998 = vmatpush1.bf16.msra.mxu0 %v807
    %999 = vmatprep.subr.bf16.mxu0 0
    %1000 = vmatpush1.bf16.msra.mxu0 %v808
    %1001 = vmatprep.subr.bf16.mxu0 0
    %1002 = vmatpush1.bf16.msra.mxu0 %v809
    %1003 = vmatprep.mubr.bf16.mxu0 %v493
    %1004 = vmatmul.mubr.bf16.gmra.mrb[0].mxu0 %v492
    %v1005 = vpop.f32.mrb[0].mxu0
    %v1006 = vadd.f32 %v909, %v1005
    %v1007 = vpop.f32.mrb[0].mxu0
    %v1008 = vpop.f32.mrb[0].mxu0
    %v1009 = vadd.f32 %v912, %v1008
    %v1010 = vpop.f32.mrb[0].mxu0
    %1011 = vmatprep.mubr.bf16.mxu0 %v499
    %1012 = vmatmul.mubr.bf16.gmra.mrb[0].mxu0 %v498
    %v1013 = vpop.f32.mrb[0].mxu0
    %v1014 = vadd.f32 %v917, %v1013
    %v1015 = vpop.f32.mrb[0].mxu0
    %v1016 = vpop.f32.mrb[0].mxu0
    %v1017 = vadd.f32 %v920, %v1016
    %v1018 = vpop.f32.mrb[0].mxu0
    %1019 = vmatprep.mubr.bf16.mxu0 %v505
    %1020 = vmatmul.mubr.bf16.gmra.mrb[0].mxu0 %v504
    %v1021 = vpop.f32.mrb[0].mxu0
    %v1022 = vadd.f32 %v925, %v1021
    %v1023 = vpop.f32.mrb[0].mxu0
    %v1024 = vpop.f32.mrb[0].mxu0
    %v1025 = vadd.f32 %v928, %v1024
    %v1026 = vpop.f32.mrb[0].mxu0
    %1027 = vmatprep.mubr.bf16.mxu0 %v511
    %1028 = vmatmul.mubr.bf16.gmra.mrb[0].mxu0 %v510
    %v1029 = vpop.f32.mrb[0].mxu0
    %v1030 = vadd.f32 %v933, %v1029
    %v1031 = vpop.f32.mrb[0].mxu0
    %v1032 = vpop.f32.mrb[0].mxu0
    %v1033 = vadd.f32 %v936, %v1032
    %v1034 = vpop.f32.mrb[0].mxu0
    %1035 = vmatprep.mubr.bf16.mxu0 %v517
    %1036 = vmatmul.mubr.bf16.gmra.mrb[0].mxu0 %v516
    %v1037 = vpop.f32.mrb[0].mxu0
    %v1038 = vadd.f32 %v941, %v1037
    %v1039 = vpop.f32.mrb[0].mxu0
    %v1040 = vpop.f32.mrb[0].mxu0
    %v1041 = vadd.f32 %v944, %v1040
    %v1042 = vpop.f32.mrb[0].mxu0
    %1043 = vmatprep.mubr.bf16.mxu0 %v523
    %1044 = vmatmul.mubr.bf16.gmra.mrb[0].mxu0 %v522
    %v1045 = vpop.f32.mrb[0].mxu0
    %v1046 = vadd.f32 %v949, %v1045
    %v1047 = vpop.f32.mrb[0].mxu0
    %v1048 = vpop.f32.mrb[0].mxu0
    %v1049 = vadd.f32 %v952, %v1048
    %v1050 = vpop.f32.mrb[0].mxu0
    %1051 = vmatprep.mubr.bf16.mxu0 %v529
    %1052 = vmatmul.mubr.bf16.gmra.mrb[0].mxu0 %v528
    %v1053 = vpop.f32.mrb[0].mxu0
    %v1054 = vadd.f32 %v957, %v1053
    %v1055 = vpop.f32.mrb[0].mxu0
    %v1056 = vpop.f32.mrb[0].mxu0
    %v1057 = vadd.f32 %v960, %v1056
    %v1058 = vpop.f32.mrb[0].mxu0
    %1059 = vmatprep.mubr.bf16.mxu0 %v535
    %1060 = vmatmul.mubr.bf16.gmra.mrb[0].mxu0 %v534
    %v1061 = vpop.f32.mrb[0].mxu0
    %v1062 = vadd.f32 %v965, %v1061
    %v1063 = vpop.f32.mrb[0].mxu0
    %v1064 = vpop.f32.mrb[0].mxu0
    %v1065 = vadd.f32 %v968, %v1064
    %v1066 = vpop.f32.mrb[0].mxu0
    %1067 = vdwg.mxu0
    %1068 = vmatprep.subr.bf16.mxu0 0
    %1069 = vmatpush1.bf16.msra.mxu0 %v810
    %1070 = vmatprep.subr.bf16.mxu0 0
    %1071 = vmatpush1.bf16.msra.mxu0 %v811
    %1072 = vmatprep.subr.bf16.mxu0 0
    %1073 = vmatpush1.bf16.msra.mxu0 %v812
    %1074 = vmatprep.subr.bf16.mxu0 0
    %1075 = vmatpush1.bf16.msra.mxu0 %v813
    %1076 = vmatprep.subr.bf16.mxu0 0
    %1077 = vmatpush1.bf16.msra.mxu0 %v814
    %1078 = vmatprep.subr.bf16.mxu0 0
    %1079 = vmatpush1.bf16.msra.mxu0 %v815
    %1080 = vmatprep.subr.bf16.mxu0 0
    %1081 = vmatpush1.bf16.msra.mxu0 %v816
    %1082 = vmatprep.subr.bf16.mxu0 0
    %1083 = vmatpush1.bf16.msra.mxu0 %v817
    %1084 = vmatprep.subr.bf16.mxu0 0
    %1085 = vmatpush1.bf16.msra.mxu0 %v818
    %1086 = vmatprep.subr.bf16.mxu0 0
    %1087 = vmatpush1.bf16.msra.mxu0 %v819
    %1088 = vmatprep.subr.bf16.mxu0 0
    %1089 = vmatpush1.bf16.msra.mxu0 %v820
    %1090 = vmatprep.subr.bf16.mxu0 0
    %1091 = vmatpush1.bf16.msra.mxu0 %v821
    %1092 = vmatprep.subr.bf16.mxu0 0
    %1093 = vmatpush1.bf16.msra.mxu0 %v822
    %1094 = vmatprep.subr.bf16.mxu0 0
    %1095 = vmatpush1.bf16.msra.mxu0 %v823
    %1096 = vmatprep.subr.bf16.mxu0 0
    %1097 = vmatpush1.bf16.msra.mxu0 %v824
    %1098 = vmatprep.subr.bf16.mxu0 0
    %1099 = vmatpush1.bf16.msra.mxu0 %v825
    %1100 = vmatprep.mubr.bf16.mxu0 %v495
    %1101 = vmatmul.mubr.bf16.gmra.mrb[0].mxu0 %v494
    %v1102 = vpop.f32.mrb[0].mxu0
    %v1103 = vadd.f32 %v1006, %v1102
    %v1104 = vpop.f32.mrb[0].mxu0
    %v1105 = vpop.f32.mrb[0].mxu0
    %v1106 = vadd.f32 %v1009, %v1105
    %v1107 = vpop.f32.mrb[0].mxu0
    %1108 = vmatprep.mubr.bf16.mxu0 %v501
    %1109 = vmatmul.mubr.bf16.gmra.mrb[0].mxu0 %v500
    %v1110 = vpop.f32.mrb[0].mxu0
    %v1111 = vadd.f32 %v1014, %v1110
    %v1112 = vpop.f32.mrb[0].mxu0
    %v1113 = vpop.f32.mrb[0].mxu0
    %v1114 = vadd.f32 %v1017, %v1113
    %v1115 = vpop.f32.mrb[0].mxu0
    %1116 = vmatprep.mubr.bf16.mxu0 %v507
    %1117 = vmatmul.mubr.bf16.gmra.mrb[0].mxu0 %v506
    %v1118 = vpop.f32.mrb[0].mxu0
    %v1119 = vadd.f32 %v1022, %v1118
    %v1120 = vpop.f32.mrb[0].mxu0
    %v1121 = vpop.f32.mrb[0].mxu0
    %v1122 = vadd.f32 %v1025, %v1121
    %v1123 = vpop.f32.mrb[0].mxu0
    %1124 = vmatprep.mubr.bf16.mxu0 %v513
    %1125 = vmatmul.mubr.bf16.gmra.mrb[0].mxu0 %v512
    %v1126 = vpop.f32.mrb[0].mxu0
    %v1127 = vadd.f32 %v1030, %v1126
    %v1128 = vpop.f32.mrb[0].mxu0
    %v1129 = vpop.f32.mrb[0].mxu0
    %v1130 = vadd.f32 %v1033, %v1129
    %v1131 = vpop.f32.mrb[0].mxu0
    %1132 = vmatprep.mubr.bf16.mxu0 %v519
    %1133 = vmatmul.mubr.bf16.gmra.mrb[0].mxu0 %v518
    %v1134 = vpop.f32.mrb[0].mxu0
    %v1135 = vadd.f32 %v1038, %v1134
    %v1136 = vpop.f32.mrb[0].mxu0
    %v1137 = vpop.f32.mrb[0].mxu0
    %v1138 = vadd.f32 %v1041, %v1137
    %v1139 = vpop.f32.mrb[0].mxu0
    %1140 = vmatprep.mubr.bf16.mxu0 %v525
    %1141 = vmatmul.mubr.bf16.gmra.mrb[0].mxu0 %v524
    %v1142 = vpop.f32.mrb[0].mxu0
    %v1143 = vadd.f32 %v1046, %v1142
    %v1144 = vpop.f32.mrb[0].mxu0
    %v1145 = vpop.f32.mrb[0].mxu0
    %v1146 = vadd.f32 %v1049, %v1145
    %v1147 = vpop.f32.mrb[0].mxu0
    %1148 = vmatprep.mubr.bf16.mxu0 %v531
    %1149 = vmatmul.mubr.bf16.gmra.mrb[0].mxu0 %v530
    %v1150 = vpop.f32.mrb[0].mxu0
    %v1151 = vadd.f32 %v1054, %v1150
    %v1152 = vpop.f32.mrb[0].mxu0
    %v1153 = vpop.f32.mrb[0].mxu0
    %v1154 = vadd.f32 %v1057, %v1153
    %v1155 = vpop.f32.mrb[0].mxu0
    %1156 = vmatprep.mubr.bf16.mxu0 %v537
    %1157 = vmatmul.mubr.bf16.gmra.mrb[0].mxu0 %v536
    %v1158 = vpop.f32.mrb[0].mxu0
    %v1159 = vadd.f32 %v1062, %v1158
    %v1160 = vpop.f32.mrb[0].mxu0
    %v1161 = vpop.f32.mrb[0].mxu0
    %v1162 = vadd.f32 %v1065, %v1161
    %v1163 = vpop.f32.mrb[0].mxu0
    %1164 = vdwg.mxu0
    %v1165 = vld [vmem:[#allocation2] sm:$0xff]
    %v1166 = vld [vmem:[#allocation2 + $0x8] sm:$0xff]
    %v1167 = vld [vmem:[#allocation2 + $0x10] sm:$0xff]
    %v1168 = vld [vmem:[#allocation2 + $0x18] sm:$0xff]
    %v1169 = vld [vmem:[#allocation2 + $0x20] sm:$0xff]
    %v1170 = vld [vmem:[#allocation2 + $0x28] sm:$0xff]
    %v1171 = vld [vmem:[#allocation2 + $0x30] sm:$0xff]
    %v1172 = vld [vmem:[#allocation2 + $0x38] sm:$0xff]
    %v1173 = vld [vmem:[#allocation2 + $0x40] sm:$0xff]
    %v1174 = vld [vmem:[#allocation2 + $0x48] sm:$0xff]
    %v1175 = vld [vmem:[#allocation2 + $0x50] sm:$0xff]
    %v1176 = vld [vmem:[#allocation2 + $0x58] sm:$0xff]
    %v1177 = vld [vmem:[#allocation2 + $0x60] sm:$0xff]
    %v1178 = vld [vmem:[#allocation2 + $0x68] sm:$0xff]
    %v1179 = vld [vmem:[#allocation2 + $0x70] sm:$0xff]
    %v1180 = vld [vmem:[#allocation2 + $0x78] sm:$0xff]
    %v1181 = vld [vmem:[#allocation4] sm:$0x1]
    %v1182 = vld [vmem:[#allocation6] sm:$0x1]
    %1183 = vadd.xlane.f32.xlu0 %v1103
    %v1184 = vpop.xlane.xlu0 %1183
    %1185 = vadd.xlane.f32.xlu0 %v1106
    %v1186 = vpop.xlane.xlu0 %1185
    %1187 = vadd.xlane.f32.xlu0 %v1111
    %v1188 = vpop.xlane.xlu0 %1187
    %1189 = vadd.xlane.f32.xlu0 %v1114
    %v1190 = vpop.xlane.xlu0 %1189
    %1191 = vadd.xlane.f32.xlu0 %v1119
    %v1192 = vpop.xlane.xlu0 %1191
    %1193 = vadd.xlane.f32.xlu0 %v1122
    %v1194 = vpop.xlane.xlu0 %1193
    %1195 = vadd.xlane.f32.xlu0 %v1127
    %v1196 = vpop.xlane.xlu0 %1195
    %1197 = vadd.xlane.f32.xlu0 %v1130
    %v1198 = vpop.xlane.xlu0 %1197
    %1199 = vadd.xlane.f32.xlu0 %v1135
    %v1200 = vpop.xlane.xlu0 %1199
    %1201 = vadd.xlane.f32.xlu0 %v1138
    %v1202 = vpop.xlane.xlu0 %1201
    %1203 = vadd.xlane.f32.xlu0 %v1143
    %v1204 = vpop.xlane.xlu0 %1203
    %1205 = vadd.xlane.f32.xlu0 %v1146
    %v1206 = vpop.xlane.xlu0 %1205
    %1207 = vadd.xlane.f32.xlu0 %v1151
    %v1208 = vpop.xlane.xlu0 %1207
    %1209 = vadd.xlane.f32.xlu0 %v1154
    %v1210 = vpop.xlane.xlu0 %1209
    %1211 = vadd.xlane.f32.xlu0 %v1159
    %v1212 = vpop.xlane.xlu0 %1211
    %1213 = vadd.xlane.f32.xlu0 %v1162
    %v1214 = vpop.xlane.xlu0 %1213
    %v1215 = vrcp.pop 128.0
    %v1216 = vmul.f32 %v1184, %v1215
    %v1217 = vmul.f32 %v1186, %v1215
    %v1218 = vmul.f32 %v1188, %v1215
    %v1219 = vmul.f32 %v1190, %v1215
    %v1220 = vmul.f32 %v1192, %v1215
    %v1221 = vmul.f32 %v1194, %v1215
    %v1222 = vmul.f32 %v1196, %v1215
    %v1223 = vmul.f32 %v1198, %v1215
    %v1224 = vmul.f32 %v1200, %v1215
    %v1225 = vmul.f32 %v1202, %v1215
    %v1226 = vmul.f32 %v1204, %v1215
    %v1227 = vmul.f32 %v1206, %v1215
    %v1228 = vmul.f32 %v1208, %v1215
    %v1229 = vmul.f32 %v1210, %v1215
    %v1230 = vmul.f32 %v1212, %v1215
    %v1231 = vmul.f32 %v1214, %v1215
    %v1232 = vsub.f32 %v1103, %v1216
    %v1233 = vsub.f32 %v1106, %v1217
    %v1234 = vsub.f32 %v1111, %v1218
    %v1235 = vsub.f32 %v1114, %v1219
    %v1236 = vsub.f32 %v1119, %v1220
    %v1237 = vsub.f32 %v1122, %v1221
    %v1238 = vsub.f32 %v1127, %v1222
    %v1239 = vsub.f32 %v1130, %v1223
    %v1240 = vsub.f32 %v1135, %v1224
    %v1241 = vsub.f32 %v1138, %v1225
    %v1242 = vsub.f32 %v1143, %v1226
    %v1243 = vsub.f32 %v1146, %v1227
    %v1244 = vsub.f32 %v1151, %v1228
    %v1245 = vsub.f32 %v1154, %v1229
    %v1246 = vsub.f32 %v1159, %v1230
    %v1247 = vsub.f32 %v1162, %v1231
    %v1248 = vmul.f32 %v1232, %v1232
    %v1249 = vmul.f32 %v1233, %v1233
    %v1250 = vmul.f32 %v1234, %v1234
    %v1251 = vmul.f32 %v1235, %v1235
    %v1252 = vmul.f32 %v1236, %v1236
    %v1253 = vmul.f32 %v1237, %v1237
    %v1254 = vmul.f32 %v1238, %v1238
    %v1255 = vmul.f32 %v1239, %v1239
    %v1256 = vmul.f32 %v1240, %v1240
    %v1257 = vmul.f32 %v1241, %v1241
    %v1258 = vmul.f32 %v1242, %v1242
    %v1259 = vmul.f32 %v1243, %v1243
    %v1260 = vmul.f32 %v1244, %v1244
    %v1261 = vmul.f32 %v1245, %v1245
    %v1262 = vmul.f32 %v1246, %v1246
    %v1263 = vmul.f32 %v1247, %v1247
    %1264 = vadd.xlane.f32.xlu0 %v1248
    %v1265 = vpop.xlane.xlu0 %1264
    %1266 = vadd.xlane.f32.xlu0 %v1249
    %v1267 = vpop.xlane.xlu0 %1266
    %1268 = vadd.xlane.f32.xlu0 %v1250
    %v1269 = vpop.xlane.xlu0 %1268
    %1270 = vadd.xlane.f32.xlu0 %v1251
    %v1271 = vpop.xlane.xlu0 %1270
    %1272 = vadd.xlane.f32.xlu0 %v1252
    %v1273 = vpop.xlane.xlu0 %1272
    %1274 = vadd.xlane.f32.xlu0 %v1253
    %v1275 = vpop.xlane.xlu0 %1274
    %1276 = vadd.xlane.f32.xlu0 %v1254
    %v1277 = vpop.xlane.xlu0 %1276
    %1278 = vadd.xlane.f32.xlu0 %v1255
    %v1279 = vpop.xlane.xlu0 %1278
    %1280 = vadd.xlane.f32.xlu0 %v1256
    %v1281 = vpop.xlane.xlu0 %1280
    %1282 = vadd.xlane.f32.xlu0 %v1257
    %v1283 = vpop.xlane.xlu0 %1282
    %1284 = vadd.xlane.f32.xlu0 %v1258
    %v1285 = vpop.xlane.xlu0 %1284
    %1286 = vadd.xlane.f32.xlu0 %v1259
    %v1287 = vpop.xlane.xlu0 %1286
    %1288 = vadd.xlane.f32.xlu0 %v1260
    %v1289 = vpop.xlane.xlu0 %1288
    %1290 = vadd.xlane.f32.xlu0 %v1261
    %v1291 = vpop.xlane.xlu0 %1290
    %1292 = vadd.xlane.f32.xlu0 %v1262
    %v1293 = vpop.xlane.xlu0 %1292
    %1294 = vadd.xlane.f32.xlu0 %v1263
    %v1295 = vpop.xlane.xlu0 %1294
    %v1296 = vmul.f32 %v1265, %v1215
    %v1297 = vmul.f32 %v1267, %v1215
    %v1298 = vmul.f32 %v1269, %v1215
    %v1299 = vmul.f32 %v1271, %v1215
    %v1300 = vmul.f32 %v1273, %v1215
    %v1301 = vmul.f32 %v1275, %v1215
    %v1302 = vmul.f32 %v1277, %v1215
    %v1303 = vmul.f32 %v1279, %v1215
    %v1304 = vmul.f32 %v1281, %v1215
    %v1305 = vmul.f32 %v1283, %v1215
    %v1306 = vmul.f32 %v1285, %v1215
    %v1307 = vmul.f32 %v1287, %v1215
    %v1308 = vmul.f32 %v1289, %v1215
    %v1309 = vmul.f32 %v1291, %v1215
    %v1310 = vmul.f32 %v1293, %v1215
    %v1311 = vmul.f32 %v1295, %v1215
    %v1312 = vadd.f32 %v1296, 1e-12
    %v1313 = vadd.f32 %v1297, 1e-12
    %v1314 = vadd.f32 %v1298, 1e-12
    %v1315 = vadd.f32 %v1299, 1e-12
    %v1316 = vadd.f32 %v1300, 1e-12
    %v1317 = vadd.f32 %v1301, 1e-12
    %v1318 = vadd.f32 %v1302, 1e-12
    %v1319 = vadd.f32 %v1303, 1e-12
    %v1320 = vadd.f32 %v1304, 1e-12
    %v1321 = vadd.f32 %v1305, 1e-12
    %v1322 = vadd.f32 %v1306, 1e-12
    %v1323 = vadd.f32 %v1307, 1e-12
    %v1324 = vadd.f32 %v1308, 1e-12
    %v1325 = vadd.f32 %v1309, 1e-12
    %v1326 = vadd.f32 %v1310, 1e-12
    %v1327 = vadd.f32 %v1311, 1e-12
    %v1328 = vrsqrt.pop %v1312
    %v1329 = vrsqrt.pop %v1313
    %v1330 = vrsqrt.pop %v1314
    %v1331 = vrsqrt.pop %v1315
    %v1332 = vrsqrt.pop %v1316
    %v1333 = vrsqrt.pop %v1317
    %v1334 = vrsqrt.pop %v1318
    %v1335 = vrsqrt.pop %v1319
    %v1336 = vrsqrt.pop %v1320
    %v1337 = vrsqrt.pop %v1321
    %v1338 = vrsqrt.pop %v1322
    %v1339 = vrsqrt.pop %v1323
    %v1340 = vrsqrt.pop %v1324
    %v1341 = vrsqrt.pop %v1325
    %v1342 = vrsqrt.pop %v1326
    %v1343 = vrsqrt.pop %v1327
    %v1344 = vmul.f32 %v1232, %v1328
    %v1345 = vmul.f32 %v1233, %v1329
    %v1346 = vmul.f32 %v1234, %v1330
    %v1347 = vmul.f32 %v1235, %v1331
    %v1348 = vmul.f32 %v1236, %v1332
    %v1349 = vmul.f32 %v1237, %v1333
    %v1350 = vmul.f32 %v1238, %v1334
    %v1351 = vmul.f32 %v1239, %v1335
    %v1352 = vmul.f32 %v1240, %v1336
    %v1353 = vmul.f32 %v1241, %v1337
    %v1354 = vmul.f32 %v1242, %v1338
    %v1355 = vmul.f32 %v1243, %v1339
    %v1356 = vmul.f32 %v1244, %v1340
    %v1357 = vmul.f32 %v1245, %v1341
    %v1358 = vmul.f32 %v1246, %v1342
    %v1359 = vmul.f32 %v1247, %v1343
    %v1361 = vlaneseq
    %v1362 = vshrl.u32 %v1361, 7
    %v1363 = vsub.s32 0, %v1362
    %v1364 = vrot.slane %v1181, %v1363
    %v1366 = vmul.f32 %v1344, %v1364
    %v1367 = vmul.f32 %v1345, %v1364
    %v1368 = vmul.f32 %v1346, %v1364
    %v1369 = vmul.f32 %v1347, %v1364
    %v1370 = vmul.f32 %v1348, %v1364
    %v1371 = vmul.f32 %v1349, %v1364
    %v1372 = vmul.f32 %v1350, %v1364
    %v1373 = vmul.f32 %v1351, %v1364
    %v1374 = vmul.f32 %v1352, %v1364
    %v1375 = vmul.f32 %v1353, %v1364
    %v1376 = vmul.f32 %v1354, %v1364
    %v1377 = vmul.f32 %v1355, %v1364
    %v1378 = vmul.f32 %v1356, %v1364
    %v1379 = vmul.f32 %v1357, %v1364
    %v1380 = vmul.f32 %v1358, %v1364
    %v1381 = vmul.f32 %v1359, %v1364
    %v1383 = vlaneseq
    %v1384 = vshrl.u32 %v1383, 7
    %v1385 = vsub.s32 0, %v1384
    %v1386 = vrot.slane %v1182, %v1385
    %v1388 = vadd.f32 %v1366, %v1386
    %v1389 = vadd.f32 %v1367, %v1386
    %v1390 = vadd.f32 %v1368, %v1386
    %v1391 = vadd.f32 %v1369, %v1386
    %v1392 = vadd.f32 %v1370, %v1386
    %v1393 = vadd.f32 %v1371, %v1386
    %v1394 = vadd.f32 %v1372, %v1386
    %v1395 = vadd.f32 %v1373, %v1386
    %v1396 = vadd.f32 %v1374, %v1386
    %v1397 = vadd.f32 %v1375, %v1386
    %v1398 = vadd.f32 %v1376, %v1386
    %v1399 = vadd.f32 %v1377, %v1386
    %v1400 = vadd.f32 %v1378, %v1386
    %v1401 = vadd.f32 %v1379, %v1386
    %v1402 = vadd.f32 %v1380, %v1386
    %v1403 = vadd.f32 %v1381, %v1386
    %v1404 = vpack.c.bf16 %v1389, %v1388
    %v1405 = vpack.c.bf16 %v1391, %v1390
    %v1406 = vpack.c.bf16 %v1393, %v1392
    %v1407 = vpack.c.bf16 %v1395, %v1394
    %v1408 = vpack.c.bf16 %v1397, %v1396
    %v1409 = vpack.c.bf16 %v1399, %v1398
    %v1410 = vpack.c.bf16 %v1401, %v1400
    %v1411 = vpack.c.bf16 %v1403, %v1402
    %v1412 = vld [vmem:[#allocation7] sm:$0xff]
    %v1413 = vld [vmem:[#allocation7 + $0x8] sm:$0xf]
    %v1414 = vld [vmem:[#allocation7 + $0xc] sm:$0xff]
    %v1415 = vld [vmem:[#allocation7 + $0x14] sm:$0xf]
    %v1416 = vld [vmem:[#allocation7 + $0x18] sm:$0xff]
    %v1417 = vld [vmem:[#allocation7 + $0x20] sm:$0xf]
    %v1418 = vld [vmem:[#allocation7 + $0x24] sm:$0xff]
    %v1419 = vld [vmem:[#allocation7 + $0x2c] sm:$0xf]
    %v1420 = vld [vmem:[#allocation7 + $0x30] sm:$0xff]
    %v1421 = vld [vmem:[#allocation7 + $0x38] sm:$0xf]
    %v1422 = vld [vmem:[#allocation7 + $0x3c] sm:$0xff]
    %v1423 = vld [vmem:[#allocation7 + $0x44] sm:$0xf]
    %v1424 = vld [vmem:[#allocation7 + $0x48] sm:$0xff]
    %v1425 = vld [vmem:[#allocation7 + $0x50] sm:$0xf]
    %v1426 = vld [vmem:[#allocation7 + $0x54] sm:$0xff]
    %v1427 = vld [vmem:[#allocation7 + $0x5c] sm:$0xf]
    %v1428 = vld [vmem:[#allocation7 + $0x60] sm:$0xff]
    %v1429 = vld [vmem:[#allocation7 + $0x68] sm:$0xf]
    %v1430 = vld [vmem:[#allocation7 + $0x6c] sm:$0xff]
    %v1431 = vld [vmem:[#allocation7 + $0x74] sm:$0xf]
    %v1432 = vld [vmem:[#allocation7 + $0x78] sm:$0xff]
    %v1433 = vld [vmem:[#allocation7 + $0x80] sm:$0xf]
    %v1434 = vld [vmem:[#allocation7 + $0x84] sm:$0xff]
    %v1435 = vld [vmem:[#allocation7 + $0x8c] sm:$0xf]
    %v1436 = vld [vmem:[#allocation7 + $0x90] sm:$0xff]
    %v1437 = vld [vmem:[#allocation7 + $0x98] sm:$0xf]
    %v1438 = vld [vmem:[#allocation7 + $0x9c] sm:$0xff]
    %v1439 = vld [vmem:[#allocation7 + $0xa4] sm:$0xf]
    %v1440 = vld [vmem:[#allocation7 + $0xa8] sm:$0xff]
    %v1441 = vld [vmem:[#allocation7 + $0xb0] sm:$0xf]
    %v1442 = vld [vmem:[#allocation7 + $0xb4] sm:$0xff]
    %v1443 = vld [vmem:[#allocation7 + $0xbc] sm:$0xf]
    %v1444 = vld [vmem:[%s7] sm:$0x7]
    %v1446 = vlaneseq
    %v1447 = vshrl.u32 %v1446, 7
    %v1448 = vsub.s32 0, %v1447
    %v1449 = vrot.slane %v1444, %v1448
    %v1450 = vlaneseq
    %v1451 = vshrl.u32 %v1450, 7
    %v1452 = vsub.s32 1, %v1451
    %v1453 = vrot.slane %v1444, %v1452
    %v1454 = vlaneseq
    %v1455 = vshrl.u32 %v1454, 7
    %v1456 = vsub.s32 2, %v1455
    %v1457 = vrot.slane %v1444, %v1456
    %v1493 = vunpack.c.l.b16 %v1412
    %v1494 = vunpack.c.h.b16 %v1412
    %v1495 = vunpack.c.l.b16 %v1413
    %v1496 = vunpack.c.l.b16 %v1414
    %v1497 = vunpack.c.h.b16 %v1414
    %v1498 = vunpack.c.l.b16 %v1415
    %v1499 = vunpack.c.l.b16 %v1416
    %v1500 = vunpack.c.h.b16 %v1416
    %v1501 = vunpack.c.l.b16 %v1417
    %v1502 = vunpack.c.l.b16 %v1418
    %v1503 = vunpack.c.h.b16 %v1418
    %v1504 = vunpack.c.l.b16 %v1419
    %v1505 = vunpack.c.l.b16 %v1420
    %v1506 = vunpack.c.h.b16 %v1420
    %v1507 = vunpack.c.l.b16 %v1421
    %v1508 = vunpack.c.l.b16 %v1422
    %v1509 = vunpack.c.h.b16 %v1422
    %v1510 = vunpack.c.l.b16 %v1423
    %v1511 = vunpack.c.l.b16 %v1424
    %v1512 = vunpack.c.h.b16 %v1424
    %v1513 = vunpack.c.l.b16 %v1425
    %v1514 = vunpack.c.l.b16 %v1426
    %v1515 = vunpack.c.h.b16 %v1426
    %v1516 = vunpack.c.l.b16 %v1427
    %v1517 = vunpack.c.l.b16 %v1428
    %v1518 = vunpack.c.h.b16 %v1428
    %v1519 = vunpack.c.l.b16 %v1429
    %v1520 = vunpack.c.l.b16 %v1430
    %v1521 = vunpack.c.h.b16 %v1430
    %v1522 = vunpack.c.l.b16 %v1431
    %v1523 = vunpack.c.l.b16 %v1432
    %v1524 = vunpack.c.h.b16 %v1432
    %v1525 = vunpack.c.l.b16 %v1433
    %v1526 = vunpack.c.l.b16 %v1434
    %v1527 = vunpack.c.h.b16 %v1434
    %v1528 = vunpack.c.l.b16 %v1435
    %v1529 = vunpack.c.l.b16 %v1436
    %v1530 = vunpack.c.h.b16 %v1436
    %v1531 = vunpack.c.l.b16 %v1437
    %v1532 = vunpack.c.l.b16 %v1438
    %v1533 = vunpack.c.h.b16 %v1438
    %v1534 = vunpack.c.l.b16 %v1439
    %v1535 = vunpack.c.l.b16 %v1440
    %v1536 = vunpack.c.h.b16 %v1440
    %v1537 = vunpack.c.l.b16 %v1441
    %v1538 = vunpack.c.l.b16 %v1442
    %v1539 = vunpack.c.h.b16 %v1442
    %v1540 = vunpack.c.l.b16 %v1443
    %v1541 = vpack.c.b16 %v1496, %v1493
    %v1542 = vpack.c.b16 %v1497, %v1494
    %v1543 = vpack.c.b16 %v1498, %v1495
    %v1544 = vpack.c.b16 %v1502, %v1499
    %v1545 = vpack.c.b16 %v1503, %v1500
    %v1546 = vpack.c.b16 %v1504, %v1501
    %v1547 = vpack.c.b16 %v1508, %v1505
    %v1548 = vpack.c.b16 %v1509, %v1506
    %v1549 = vpack.c.b16 %v1510, %v1507
    %v1550 = vpack.c.b16 %v1514, %v1511
    %v1551 = vpack.c.b16 %v1515, %v1512
    %v1552 = vpack.c.b16 %v1516, %v1513
    %v1553 = vpack.c.b16 %v1520, %v1517
    %v1554 = vpack.c.b16 %v1521, %v1518
    %v1555 = vpack.c.b16 %v1522, %v1519
    %v1556 = vpack.c.b16 %v1526, %v1523
    %v1557 = vpack.c.b16 %v1527, %v1524
    %v1558 = vpack.c.b16 %v1528, %v1525
    %v1559 = vpack.c.b16 %v1532, %v1529
    %v1560 = vpack.c.b16 %v1533, %v1530
    %v1561 = vpack.c.b16 %v1534, %v1531
    %v1562 = vpack.c.b16 %v1538, %v1535
    %v1563 = vpack.c.b16 %v1539, %v1536
    %v1564 = vpack.c.b16 %v1540, %v1537
    %1589 = vmatprep.subr.bf16.mxu0 %v1542
    %1590 = vmatpush1.bf16.msra.mxu0 %v1541
    %1591 = vmatprep.subr.bf16.mxu0 %v1545
    %1592 = vmatpush1.bf16.msra.mxu0 %v1544
    %1593 = vmatprep.subr.bf16.mxu0 %v1548
    %1594 = vmatpush1.bf16.msra.mxu0 %v1547
    %1595 = vmatprep.subr.bf16.mxu0 %v1551
    %1596 = vmatpush1.bf16.msra.mxu0 %v1550
    %1597 = vmatprep.subr.bf16.mxu0 %v1554
    %1598 = vmatpush1.bf16.msra.mxu0 %v1553
    %1599 = vmatprep.subr.bf16.mxu0 %v1557
    %1600 = vmatpush1.bf16.msra.mxu0 %v1556
    %1601 = vmatprep.subr.bf16.mxu0 %v1560
    %1602 = vmatpush1.bf16.msra.mxu0 %v1559
    %1603 = vmatprep.subr.bf16.mxu0 %v1563
    %1604 = vmatpush1.bf16.msra.mxu0 %v1562
    %1605 = vmatprep.subr.bf16.mxu0 0
    %1606 = vmatpush1.bf16.msra.mxu0 0
    %1607 = vmatprep.subr.bf16.mxu0 0
    %1608 = vmatpush1.bf16.msra.mxu0 0
    %1609 = vmatprep.subr.bf16.mxu0 0
    %1610 = vmatpush1.bf16.msra.mxu0 0
    %1611 = vmatprep.subr.bf16.mxu0 0
    %1612 = vmatpush1.bf16.msra.mxu0 0
    %1613 = vmatprep.subr.bf16.mxu0 0
    %1614 = vmatpush1.bf16.msra.mxu0 0
    %1615 = vmatprep.subr.bf16.mxu0 0
    %1616 = vmatpush1.bf16.msra.mxu0 0
    %1617 = vmatprep.subr.bf16.mxu0 0
    %1618 = vmatpush1.bf16.msra.mxu0 0
    %1619 = vmatprep.subr.bf16.mxu0 0
    %1620 = vmatpush1.bf16.msra.mxu0 0
    %1621 = vmatprep.mubr.bf16.mxu0 0
    %1622 = vmatmul.mubr.bf16.gmra.mrb[0].mxu0 %v1404
    %v1623 = vpop.f32.mrb[0].mxu0
    %v1624 = vadd.f32 %v1449, %v1623
    %v1625 = vpop.f32.mrb[0].mxu0
    %v1626 = vadd.f32 %v1453, %v1625
    %v1627 = vpop.f32.mrb[0].mxu0
    %v1628 = vadd.f32 %v1449, %v1627
    %v1629 = vpop.f32.mrb[0].mxu0
    %v1630 = vadd.f32 %v1453, %v1629
    %1631 = vmatprep.mubr.bf16.mxu0 0
    %1632 = vmatmul.mubr.bf16.gmra.mrb[0].mxu0 %v1405
    %v1633 = vpop.f32.mrb[0].mxu0
    %v1634 = vadd.f32 %v1449, %v1633
    %v1635 = vpop.f32.mrb[0].mxu0
    %v1636 = vadd.f32 %v1453, %v1635
    %v1637 = vpop.f32.mrb[0].mxu0
    %v1638 = vadd.f32 %v1449, %v1637
    %v1639 = vpop.f32.mrb[0].mxu0
    %v1640 = vadd.f32 %v1453, %v1639
    %1641 = vmatprep.mubr.bf16.mxu0 0
    %1642 = vmatmul.mubr.bf16.gmra.mrb[0].mxu0 %v1406
    %v1643 = vpop.f32.mrb[0].mxu0
    %v1644 = vadd.f32 %v1449, %v1643
    %v1645 = vpop.f32.mrb[0].mxu0
    %v1646 = vadd.f32 %v1453, %v1645
    %v1647 = vpop.f32.mrb[0].mxu0
    %v1648 = vadd.f32 %v1449, %v1647
    %v1649 = vpop.f32.mrb[0].mxu0
    %v1650 = vadd.f32 %v1453, %v1649
    %1651 = vmatprep.mubr.bf16.mxu0 0
    %1652 = vmatmul.mubr.bf16.gmra.mrb[0].mxu0 %v1407
    %v1653 = vpop.f32.mrb[0].mxu0
    %v1654 = vadd.f32 %v1449, %v1653
    %v1655 = vpop.f32.mrb[0].mxu0
    %v1656 = vadd.f32 %v1453, %v1655
    %v1657 = vpop.f32.mrb[0].mxu0
    %v1658 = vadd.f32 %v1449, %v1657
    %v1659 = vpop.f32.mrb[0].mxu0
    %v1660 = vadd.f32 %v1453, %v1659
    %1661 = vmatprep.mubr.bf16.mxu0 0
    %1662 = vmatmul.mubr.bf16.gmra.mrb[0].mxu0 %v1408
    %v1663 = vpop.f32.mrb[0].mxu0
    %v1664 = vadd.f32 %v1449, %v1663
    %v1665 = vpop.f32.mrb[0].mxu0
    %v1666 = vadd.f32 %v1453, %v1665
    %v1667 = vpop.f32.mrb[0].mxu0
    %v1668 = vadd.f32 %v1449, %v1667
    %v1669 = vpop.f32.mrb[0].mxu0
    %v1670 = vadd.f32 %v1453, %v1669
    %1671 = vmatprep.mubr.bf16.mxu0 0
    %1672 = vmatmul.mubr.bf16.gmra.mrb[0].mxu0 %v1409
    %v1673 = vpop.f32.mrb[0].mxu0
    %v1674 = vadd.f32 %v1449, %v1673
    %v1675 = vpop.f32.mrb[0].mxu0
    %v1676 = vadd.f32 %v1453, %v1675
    %v1677 = vpop.f32.mrb[0].mxu0
    %v1678 = vadd.f32 %v1449, %v1677
    %v1679 = vpop.f32.mrb[0].mxu0
    %v1680 = vadd.f32 %v1453, %v1679
    %1681 = vmatprep.mubr.bf16.mxu0 0
    %1682 = vmatmul.mubr.bf16.gmra.mrb[0].mxu0 %v1410
    %v1683 = vpop.f32.mrb[0].mxu0
    %v1684 = vadd.f32 %v1449, %v1683
    %v1685 = vpop.f32.mrb[0].mxu0
    %v1686 = vadd.f32 %v1453, %v1685
    %v1687 = vpop.f32.mrb[0].mxu0
    %v1688 = vadd.f32 %v1449, %v1687
    %v1689 = vpop.f32.mrb[0].mxu0
    %v1690 = vadd.f32 %v1453, %v1689
    %1691 = vmatprep.mubr.bf16.mxu0 0
    %1692 = vmatmul.mubr.bf16.gmra.mrb[0].mxu0 %v1411
    %v1693 = vpop.f32.mrb[0].mxu0
    %v1694 = vadd.f32 %v1449, %v1693
    %v1695 = vpop.f32.mrb[0].mxu0
    %v1696 = vadd.f32 %v1453, %v1695
    %v1697 = vpop.f32.mrb[0].mxu0
    %v1698 = vadd.f32 %v1449, %v1697
    %v1699 = vpop.f32.mrb[0].mxu0
    %v1700 = vadd.f32 %v1453, %v1699
    %1701 = vdwg.mxu0
    %1702 = vmatprep.subr.bf16.mxu0 0
    %1703 = vmatpush1.bf16.msra.mxu0 %v1543
    %1704 = vmatprep.subr.bf16.mxu0 0
    %1705 = vmatpush1.bf16.msra.mxu0 %v1546
    %1706 = vmatprep.subr.bf16.mxu0 0
    %1707 = vmatpush1.bf16.msra.mxu0 %v1549
    %1708 = vmatprep.subr.bf16.mxu0 0
    %1709 = vmatpush1.bf16.msra.mxu0 %v1552
    %1710 = vmatprep.subr.bf16.mxu0 0
    %1711 = vmatpush1.bf16.msra.mxu0 %v1555
    %1712 = vmatprep.subr.bf16.mxu0 0
    %1713 = vmatpush1.bf16.msra.mxu0 %v1558
    %1714 = vmatprep.subr.bf16.mxu0 0
    %1715 = vmatpush1.bf16.msra.mxu0 %v1561
    %1716 = vmatprep.subr.bf16.mxu0 0
    %1717 = vmatpush1.bf16.msra.mxu0 %v1564
    %1718 = vmatprep.subr.bf16.mxu0 0
    %1719 = vmatpush1.bf16.msra.mxu0 0
    %1720 = vmatprep.subr.bf16.mxu0 0
    %1721 = vmatpush1.bf16.msra.mxu0 0
    %1722 = vmatprep.subr.bf16.mxu0 0
    %1723 = vmatpush1.bf16.msra.mxu0 0
    %1724 = vmatprep.subr.bf16.mxu0 0
    %1725 = vmatpush1.bf16.msra.mxu0 0
    %1726 = vmatprep.subr.bf16.mxu0 0
    %1727 = vmatpush1.bf16.msra.mxu0 0
    %1728 = vmatprep.subr.bf16.mxu0 0
    %1729 = vmatpush1.bf16.msra.mxu0 0
    %1730 = vmatprep.subr.bf16.mxu0 0
    %1731 = vmatpush1.bf16.msra.mxu0 0
    %1732 = vmatprep.subr.bf16.mxu0 0
    %1733 = vmatpush1.bf16.msra.mxu0 0
    %1734 = vmatprep.mubr.bf16.mxu0 0
    %1735 = vmatmul.mubr.bf16.gmra.mrb[0].mxu0 %v1404
    %v1736 = vpop.f32.mrb[0].mxu0
    %v1737 = vadd.f32 %v1457, %v1736
    %v1738 = vpop.f32.mrb[0].mxu0
    %v1739 = vpop.f32.mrb[0].mxu0
    %v1740 = vadd.f32 %v1457, %v1739
    %v1741 = vpop.f32.mrb[0].mxu0
    %1742 = vmatprep.mubr.bf16.mxu0 0
    %1743 = vmatmul.mubr.bf16.gmra.mrb[0].mxu0 %v1405
    %v1744 = vpop.f32.mrb[0].mxu0
    %v1745 = vadd.f32 %v1457, %v1744
    %v1746 = vpop.f32.mrb[0].mxu0
    %v1747 = vpop.f32.mrb[0].mxu0
    %v1748 = vadd.f32 %v1457, %v1747
    %v1749 = vpop.f32.mrb[0].mxu0
    %1750 = vmatprep.mubr.bf16.mxu0 0
    %1751 = vmatmul.mubr.bf16.gmra.mrb[0].mxu0 %v1406
    %v1752 = vpop.f32.mrb[0].mxu0
    %v1753 = vadd.f32 %v1457, %v1752
    %v1754 = vpop.f32.mrb[0].mxu0
    %v1755 = vpop.f32.mrb[0].mxu0
    %v1756 = vadd.f32 %v1457, %v1755
    %v1757 = vpop.f32.mrb[0].mxu0
    %1758 = vmatprep.mubr.bf16.mxu0 0
    %1759 = vmatmul.mubr.bf16.gmra.mrb[0].mxu0 %v1407
    %v1760 = vpop.f32.mrb[0].mxu0
    %v1761 = vadd.f32 %v1457, %v1760
    %v1762 = vpop.f32.mrb[0].mxu0
    %v1763 = vpop.f32.mrb[0].mxu0
    %v1764 = vadd.f32 %v1457, %v1763
    %v1765 = vpop.f32.mrb[0].mxu0
    %1766 = vmatprep.mubr.bf16.mxu0 0
    %1767 = vmatmul.mubr.bf16.gmra.mrb[0].mxu0 %v1408
    %v1768 = vpop.f32.mrb[0].mxu0
    %v1769 = vadd.f32 %v1457, %v1768
    %v1770 = vpop.f32.mrb[0].mxu0
    %v1771 = vpop.f32.mrb[0].mxu0
    %v1772 = vadd.f32 %v1457, %v1771
    %v1773 = vpop.f32.mrb[0].mxu0
    %1774 = vmatprep.mubr.bf16.mxu0 0
    %1775 = vmatmul.mubr.bf16.gmra.mrb[0].mxu0 %v1409
    %v1776 = vpop.f32.mrb[0].mxu0
    %v1777 = vadd.f32 %v1457, %v1776
    %v1778 = vpop.f32.mrb[0].mxu0
    %v1779 = vpop.f32.mrb[0].mxu0
    %v1780 = vadd.f32 %v1457, %v1779
    %v1781 = vpop.f32.mrb[0].mxu0
    %1782 = vmatprep.mubr.bf16.mxu0 0
    %1783 = vmatmul.mubr.bf16.gmra.mrb[0].mxu0 %v1410
    %v1784 = vpop.f32.mrb[0].mxu0
    %v1785 = vadd.f32 %v1457, %v1784
    %v1786 = vpop.f32.mrb[0].mxu0
    %v1787 = vpop.f32.mrb[0].mxu0
    %v1788 = vadd.f32 %v1457, %v1787
    %v1789 = vpop.f32.mrb[0].mxu0
    %1790 = vmatprep.mubr.bf16.mxu0 0
    %1791 = vmatmul.mubr.bf16.gmra.mrb[0].mxu0 %v1411
    %v1792 = vpop.f32.mrb[0].mxu0
    %v1793 = vadd.f32 %v1457, %v1792
    %v1794 = vpop.f32.mrb[0].mxu0
    %v1795 = vpop.f32.mrb[0].mxu0
    %v1796 = vadd.f32 %v1457, %v1795
    %v1797 = vpop.f32.mrb[0].mxu0
    %1798 = vdwg.mxu0
    %v1799 = vpack.c.bf16 %v1628, %v1624
    %v1800 = vpack.c.bf16 %v1630, %v1626
    %v1801 = vpack.c.bf16 %v1740, %v1737
    %v1802 = vpack.c.bf16 %v1638, %v1634
    %v1803 = vpack.c.bf16 %v1640, %v1636
    %v1804 = vpack.c.bf16 %v1748, %v1745
    %v1805 = vpack.c.bf16 %v1648, %v1644
    %v1806 = vpack.c.bf16 %v1650, %v1646
    %v1807 = vpack.c.bf16 %v1756, %v1753
    %v1808 = vpack.c.bf16 %v1658, %v1654
    %v1809 = vpack.c.bf16 %v1660, %v1656
    %v1810 = vpack.c.bf16 %v1764, %v1761
    %v1811 = vpack.c.bf16 %v1668, %v1664
    %v1812 = vpack.c.bf16 %v1670, %v1666
    %v1813 = vpack.c.bf16 %v1772, %v1769
    %v1814 = vpack.c.bf16 %v1678, %v1674
    %v1815 = vpack.c.bf16 %v1680, %v1676
    %v1816 = vpack.c.bf16 %v1780, %v1777
    %v1817 = vpack.c.bf16 %v1688, %v1684
    %v1818 = vpack.c.bf16 %v1690, %v1686
    %v1819 = vpack.c.bf16 %v1788, %v1785
    %v1820 = vpack.c.bf16 %v1698, %v1694
    %v1821 = vpack.c.bf16 %v1700, %v1696
    %v1822 = vpack.c.bf16 %v1796, %v1793
    %1831 = vrot.lane.b32.xlu0 %v1799, 96
    %v1832 = vpop.permute.xlu0 %1831
    %1833 = vrot.lane.b32.xlu0 %v1802, 96
    %v1834 = vpop.permute.xlu0 %1833
    %1835 = vrot.lane.b32.xlu0 %v1805, 96
    %v1836 = vpop.permute.xlu0 %1835
    %1837 = vrot.lane.b32.xlu0 %v1808, 96
    %v1838 = vpop.permute.xlu0 %1837
    %1839 = vrot.lane.b32.xlu0 %v1811, 96
    %v1840 = vpop.permute.xlu0 %1839
    %1841 = vrot.lane.b32.xlu0 %v1814, 96
    %v1842 = vpop.permute.xlu0 %1841
    %1843 = vrot.lane.b32.xlu0 %v1817, 96
    %v1844 = vpop.permute.xlu0 %1843
    %1845 = vrot.lane.b32.xlu0 %v1820, 96
    %v1846 = vpop.permute.xlu0 %1845
    %1847 = vrot.lane.b32.xlu0 %v1799, 64
    %v1848 = vpop.permute.xlu0 %1847
    %1849 = vrot.lane.b32.xlu0 %v1802, 64
    %v1850 = vpop.permute.xlu0 %1849
    %1851 = vrot.lane.b32.xlu0 %v1805, 64
    %v1852 = vpop.permute.xlu0 %1851
    %1853 = vrot.lane.b32.xlu0 %v1808, 64
    %v1854 = vpop.permute.xlu0 %1853
    %1855 = vrot.lane.b32.xlu0 %v1811, 64
    %v1856 = vpop.permute.xlu0 %1855
    %1857 = vrot.lane.b32.xlu0 %v1814, 64
    %v1858 = vpop.permute.xlu0 %1857
    %1859 = vrot.lane.b32.xlu0 %v1817, 64
    %v1860 = vpop.permute.xlu0 %1859
    %1861 = vrot.lane.b32.xlu0 %v1820, 64
    %v1862 = vpop.permute.xlu0 %1861
    %1863 = vrot.lane.b32.xlu0 %v1799, 32
    %v1864 = vpop.permute.xlu0 %1863
    %1865 = vrot.lane.b32.xlu0 %v1802, 32
    %v1866 = vpop.permute.xlu0 %1865
    %1867 = vrot.lane.b32.xlu0 %v1805, 32
    %v1868 = vpop.permute.xlu0 %1867
    %1869 = vrot.lane.b32.xlu0 %v1808, 32
    %v1870 = vpop.permute.xlu0 %1869
    %1871 = vrot.lane.b32.xlu0 %v1811, 32
    %v1872 = vpop.permute.xlu0 %1871
    %1873 = vrot.lane.b32.xlu0 %v1814, 32
    %v1874 = vpop.permute.xlu0 %1873
    %1875 = vrot.lane.b32.xlu0 %v1817, 32
    %v1876 = vpop.permute.xlu0 %1875
    %1877 = vrot.lane.b32.xlu0 %v1820, 32
    %v1878 = vpop.permute.xlu0 %1877
    %1887 = vrot.lane.b32.xlu0 %v1800, 96
    %v1888 = vpop.permute.xlu0 %1887
    %1889 = vrot.lane.b32.xlu0 %v1803, 96
    %v1890 = vpop.permute.xlu0 %1889
    %1891 = vrot.lane.b32.xlu0 %v1806, 96
    %v1892 = vpop.permute.xlu0 %1891
    %1893 = vrot.lane.b32.xlu0 %v1809, 96
    %v1894 = vpop.permute.xlu0 %1893
    %1895 = vrot.lane.b32.xlu0 %v1812, 96
    %v1896 = vpop.permute.xlu0 %1895
    %1897 = vrot.lane.b32.xlu0 %v1815, 96
    %v1898 = vpop.permute.xlu0 %1897
    %1899 = vrot.lane.b32.xlu0 %v1818, 96
    %v1900 = vpop.permute.xlu0 %1899
    %1901 = vrot.lane.b32.xlu0 %v1821, 96
    %v1902 = vpop.permute.xlu0 %1901
    %1903 = vrot.lane.b32.xlu0 %v1800, 64
    %v1904 = vpop.permute.xlu0 %1903
    %1905 = vrot.lane.b32.xlu0 %v1803, 64
    %v1906 = vpop.permute.xlu0 %1905
    %1907 = vrot.lane.b32.xlu0 %v1806, 64
    %v1908 = vpop.permute.xlu0 %1907
    %1909 = vrot.lane.b32.xlu0 %v1809, 64
    %v1910 = vpop.permute.xlu0 %1909
    %1911 = vrot.lane.b32.xlu0 %v1812, 64
    %v1912 = vpop.permute.xlu0 %1911
    %1913 = vrot.lane.b32.xlu0 %v1815, 64
    %v1914 = vpop.permute.xlu0 %1913
    %1915 = vrot.lane.b32.xlu0 %v1818, 64
    %v1916 = vpop.permute.xlu0 %1915
    %1917 = vrot.lane.b32.xlu0 %v1821, 64
    %v1918 = vpop.permute.xlu0 %1917
    %1919 = vrot.lane.b32.xlu0 %v1800, 32
    %v1920 = vpop.permute.xlu0 %1919
    %1921 = vrot.lane.b32.xlu0 %v1803, 32
    %v1922 = vpop.permute.xlu0 %1921
    %1923 = vrot.lane.b32.xlu0 %v1806, 32
    %v1924 = vpop.permute.xlu0 %1923
    %1925 = vrot.lane.b32.xlu0 %v1809, 32
    %v1926 = vpop.permute.xlu0 %1925
    %1927 = vrot.lane.b32.xlu0 %v1812, 32
    %v1928 = vpop.permute.xlu0 %1927
    %1929 = vrot.lane.b32.xlu0 %v1815, 32
    %v1930 = vpop.permute.xlu0 %1929
    %1931 = vrot.lane.b32.xlu0 %v1818, 32
    %v1932 = vpop.permute.xlu0 %1931
    %1933 = vrot.lane.b32.xlu0 %v1821, 32
    %v1934 = vpop.permute.xlu0 %1933
    %1943 = vrot.lane.b32.xlu0 %v1801, 96
    %v1944 = vpop.permute.xlu0 %1943
    %1945 = vrot.lane.b32.xlu0 %v1804, 96
    %v1946 = vpop.permute.xlu0 %1945
    %1947 = vrot.lane.b32.xlu0 %v1807, 96
    %v1948 = vpop.permute.xlu0 %1947
    %1949 = vrot.lane.b32.xlu0 %v1810, 96
    %v1950 = vpop.permute.xlu0 %1949
    %1951 = vrot.lane.b32.xlu0 %v1813, 96
    %v1952 = vpop.permute.xlu0 %1951
    %1953 = vrot.lane.b32.xlu0 %v1816, 96
    %v1954 = vpop.permute.xlu0 %1953
    %1955 = vrot.lane.b32.xlu0 %v1819, 96
    %v1956 = vpop.permute.xlu0 %1955
    %1957 = vrot.lane.b32.xlu0 %v1822, 96
    %v1958 = vpop.permute.xlu0 %1957
    %1967 = vrot.lane.b32.xlu0 %v1801, 64
    %v1968 = vpop.permute.xlu0 %1967
    %1969 = vrot.lane.b32.xlu0 %v1804, 64
    %v1970 = vpop.permute.xlu0 %1969
    %1971 = vrot.lane.b32.xlu0 %v1807, 64
    %v1972 = vpop.permute.xlu0 %1971
    %1973 = vrot.lane.b32.xlu0 %v1810, 64
    %v1974 = vpop.permute.xlu0 %1973
    %1975 = vrot.lane.b32.xlu0 %v1813, 64
    %v1976 = vpop.permute.xlu0 %1975
    %1977 = vrot.lane.b32.xlu0 %v1816, 64
    %v1978 = vpop.permute.xlu0 %1977
    %1979 = vrot.lane.b32.xlu0 %v1819, 64
    %v1980 = vpop.permute.xlu0 %1979
    %1981 = vrot.lane.b32.xlu0 %v1822, 64
    %v1982 = vpop.permute.xlu0 %1981
    %1991 = vrot.lane.b32.xlu0 %v1801, 32
    %v1992 = vpop.permute.xlu0 %1991
    %1993 = vrot.lane.b32.xlu0 %v1804, 32
    %v1994 = vpop.permute.xlu0 %1993
    %1995 = vrot.lane.b32.xlu0 %v1807, 32
    %v1996 = vpop.permute.xlu0 %1995
    %1997 = vrot.lane.b32.xlu0 %v1810, 32
    %v1998 = vpop.permute.xlu0 %1997
    %1999 = vrot.lane.b32.xlu0 %v1813, 32
    %v2000 = vpop.permute.xlu0 %1999
    %2001 = vrot.lane.b32.xlu0 %v1816, 32
    %v2002 = vpop.permute.xlu0 %2001
    %2003 = vrot.lane.b32.xlu0 %v1819, 32
    %v2004 = vpop.permute.xlu0 %2003
    %2005 = vrot.lane.b32.xlu0 %v1822, 32
    %v2006 = vpop.permute.xlu0 %2005
    %vm2015 = vcmask 261120
    %v2017 = vsel %vm2015, %v1799, 0
    %v2020 = vsel %vm2015, %v1802, 0
    %v2023 = vsel %vm2015, %v1805, 0
    %v2026 = vsel %vm2015, %v1808, 0
    %v2029 = vsel %vm2015, %v1811, 0
    %v2032 = vsel %vm2015, %v1814, 0
    %v2035 = vsel %vm2015, %v1817, 0
    %v2038 = vsel %vm2015, %v1820, 0
    %v2041 = vsel %vm2015, %v1800, 0
    %v2044 = vsel %vm2015, %v1803, 0
    %v2047 = vsel %vm2015, %v1806, 0
    %v2050 = vsel %vm2015, %v1809, 0
    %v2053 = vsel %vm2015, %v1812, 0
    %v2056 = vsel %vm2015, %v1815, 0
    %v2059 = vsel %vm2015, %v1818, 0
    %v2062 = vsel %vm2015, %v1821, 0
    %2064 = vmatprep.subr.bf16.mxu0 0
    %2065 = vmatpush1.bf16.xpose.msra.mxu0 %v2041
    %2066 = vmatprep.subr.bf16.mxu0 0
    %2067 = vmatpush1.bf16.xpose.msra.mxu0 %v2044
    %2068 = vmatprep.subr.bf16.mxu0 0
    %2069 = vmatpush1.bf16.xpose.msra.mxu0 %v2047
    %2070 = vmatprep.subr.bf16.mxu0 0
    %2071 = vmatpush1.bf16.xpose.msra.mxu0 %v2050
    %2072 = vmatprep.subr.bf16.mxu0 0
    %2073 = vmatpush1.bf16.xpose.msra.mxu0 %v2053
    %2074 = vmatprep.subr.bf16.mxu0 0
    %2075 = vmatpush1.bf16.xpose.msra.mxu0 %v2056
    %2076 = vmatprep.subr.bf16.mxu0 0
    %2077 = vmatpush1.bf16.xpose.msra.mxu0 %v2059
    %2078 = vmatprep.subr.bf16.mxu0 0
    %2079 = vmatpush1.bf16.xpose.msra.mxu0 %v2062
    %2080 = vmatprep.subr.bf16.mxu0 0
    %2081 = vmatpush1.bf16.xpose.msra.mxu0 0
    %2082 = vmatprep.subr.bf16.mxu0 0
    %2083 = vmatpush1.bf16.xpose.msra.mxu0 0
    %2084 = vmatprep.subr.bf16.mxu0 0
    %2085 = vmatpush1.bf16.xpose.msra.mxu0 0
    %2086 = vmatprep.subr.bf16.mxu0 0
    %2087 = vmatpush1.bf16.xpose.msra.mxu0 0
    %2088 = vmatprep.subr.bf16.mxu0 0
    %2089 = vmatpush1.bf16.xpose.msra.mxu0 0
    %2090 = vmatprep.subr.bf16.mxu0 0
    %2091 = vmatpush1.bf16.xpose.msra.mxu0 0
    %2092 = vmatprep.subr.bf16.mxu0 0
    %2093 = vmatpush1.bf16.xpose.msra.mxu0 0
    %2094 = vmatprep.subr.bf16.mxu0 0
    %2095 = vmatpush1.bf16.xpose.msra.mxu0 0
    %2096 = vmatprep.mubr.bf16.mxu0 0
    %2097 = vmatmul.mubr.bf16.gmra.mrb[0].mxu0 %v2017
    %v2098 = vpop.f32.mrb[0].mxu0
    %v2099 = vadd.f32 %v1165, %v2098
    %v2100 = vpop.f32.mrb[0].mxu0
    %v2101 = vpop.f32.mrb[0].mxu0
    %v2102 = vadd.f32 %v1166, %v2101
    %v2103 = vpop.f32.mrb[0].mxu0
    %2104 = vmatprep.mubr.bf16.mxu0 0
    %2105 = vmatmul.mubr.bf16.gmra.mrb[0].mxu0 %v2020
    %v2106 = vpop.f32.mrb[0].mxu0
    %v2107 = vadd.f32 %v1167, %v2106
    %v2108 = vpop.f32.mrb[0].mxu0
    %v2109 = vpop.f32.mrb[0].mxu0
    %v2110 = vadd.f32 %v1168, %v2109
    %v2111 = vpop.f32.mrb[0].mxu0
    %2112 = vmatprep.mubr.bf16.mxu0 0
    %2113 = vmatmul.mubr.bf16.gmra.mrb[0].mxu0 %v2023
    %v2114 = vpop.f32.mrb[0].mxu0
    %v2115 = vadd.f32 %v1169, %v2114
    %v2116 = vpop.f32.mrb[0].mxu0
    %v2117 = vpop.f32.mrb[0].mxu0
    %v2118 = vadd.f32 %v1170, %v2117
    %v2119 = vpop.f32.mrb[0].mxu0
    %2120 = vmatprep.mubr.bf16.mxu0 0
    %2121 = vmatmul.mubr.bf16.gmra.mrb[0].mxu0 %v2026
    %v2122 = vpop.f32.mrb[0].mxu0
    %v2123 = vadd.f32 %v1171, %v2122
    %v2124 = vpop.f32.mrb[0].mxu0
    %v2125 = vpop.f32.mrb[0].mxu0
    %v2126 = vadd.f32 %v1172, %v2125
    %v2127 = vpop.f32.mrb[0].mxu0
    %2128 = vmatprep.mubr.bf16.mxu0 0
    %2129 = vmatmul.mubr.bf16.gmra.mrb[0].mxu0 %v2029
    %v2130 = vpop.f32.mrb[0].mxu0
    %v2131 = vadd.f32 %v1173, %v2130
    %v2132 = vpop.f32.mrb[0].mxu0
    %v2133 = vpop.f32.mrb[0].mxu0
    %v2134 = vadd.f32 %v1174, %v2133
    %v2135 = vpop.f32.mrb[0].mxu0
    %2136 = vmatprep.mubr.bf16.mxu0 0
    %2137 = vmatmul.mubr.bf16.gmra.mrb[0].mxu0 %v2032
    %v2138 = vpop.f32.mrb[0].mxu0
    %v2139 = vadd.f32 %v1175, %v2138
    %v2140 = vpop.f32.mrb[0].mxu0
    %v2141 = vpop.f32.mrb[0].mxu0
    %v2142 = vadd.f32 %v1176, %v2141
    %v2143 = vpop.f32.mrb[0].mxu0
    %2144 = vmatprep.mubr.bf16.mxu0 0
    %2145 = vmatmul.mubr.bf16.gmra.mrb[0].mxu0 %v2035
    %v2146 = vpop.f32.mrb[0].mxu0
    %v2147 = vadd.f32 %v1177, %v2146
    %v2148 = vpop.f32.mrb[0].mxu0
    %v2149 = vpop.f32.mrb[0].mxu0
    %v2150 = vadd.f32 %v1178, %v2149
    %v2151 = vpop.f32.mrb[0].mxu0
    %2152 = vmatprep.mubr.bf16.mxu0 0
    %2153 = vmatmul.mubr.bf16.gmra.mrb[0].mxu0 %v2038
    %v2154 = vpop.f32.mrb[0].mxu0
    %v2155 = vadd.f32 %v1179, %v2154
    %v2156 = vpop.f32.mrb[0].mxu0
    %v2157 = vpop.f32.mrb[0].mxu0
    %v2158 = vadd.f32 %v1180, %v2157
    %v2159 = vpop.f32.mrb[0].mxu0
    %2160 = vdwg.mxu0
    %v2162 = vsel %vm2015, %v1832, 0
    %v2165 = vsel %vm2015, %v1834, 0
    %v2168 = vsel %vm2015, %v1836, 0
    %v2171 = vsel %vm2015, %v1838, 0
    %v2174 = vsel %vm2015, %v1840, 0
    %v2177 = vsel %vm2015, %v1842, 0
    %v2180 = vsel %vm2015, %v1844, 0
    %v2183 = vsel %vm2015, %v1846, 0
    %v2186 = vsel %vm2015, %v1888, 0
    %v2189 = vsel %vm2015, %v1890, 0
    %v2192 = vsel %vm2015, %v1892, 0
    %v2195 = vsel %vm2015, %v1894, 0
    %v2198 = vsel %vm2015, %v1896, 0
    %v2201 = vsel %vm2015, %v1898, 0
    %v2204 = vsel %vm2015, %v1900, 0
    %v2207 = vsel %vm2015, %v1902, 0
    %2209 = vmatprep.subr.bf16.mxu0 0
    %2210 = vmatpush1.bf16.xpose.msra.mxu0 %v2186
    %2211 = vmatprep.subr.bf16.mxu0 0
    %2212 = vmatpush1.bf16.xpose.msra.mxu0 %v2189
    %2213 = vmatprep.subr.bf16.mxu0 0
    %2214 = vmatpush1.bf16.xpose.msra.mxu0 %v2192
    %2215 = vmatprep.subr.bf16.mxu0 0
    %2216 = vmatpush1.bf16.xpose.msra.mxu0 %v2195
    %2217 = vmatprep.subr.bf16.mxu0 0
    %2218 = vmatpush1.bf16.xpose.msra.mxu0 %v2198
    %2219 = vmatprep.subr.bf16.mxu0 0
    %2220 = vmatpush1.bf16.xpose.msra.mxu0 %v2201
    %2221 = vmatprep.subr.bf16.mxu0 0
    %2222 = vmatpush1.bf16.xpose.msra.mxu0 %v2204
    %2223 = vmatprep.subr.bf16.mxu0 0
    %2224 = vmatpush1.bf16.xpose.msra.mxu0 %v2207
    %2225 = vmatprep.subr.bf16.mxu0 0
    %2226 = vmatpush1.bf16.xpose.msra.mxu0 0
    %2227 = vmatprep.subr.bf16.mxu0 0
    %2228 = vmatpush1.bf16.xpose.msra.mxu0 0
    %2229 = vmatprep.subr.bf16.mxu0 0
    %2230 = vmatpush1.bf16.xpose.msra.mxu0 0
    %2231 = vmatprep.subr.bf16.mxu0 0
    %2232 = vmatpush1.bf16.xpose.msra.mxu0 0
    %2233 = vmatprep.subr.bf16.mxu0 0
    %2234 = vmatpush1.bf16.xpose.msra.mxu0 0
    %2235 = vmatprep.subr.bf16.mxu0 0
    %2236 = vmatpush1.bf16.xpose.msra.mxu0 0
    %2237 = vmatprep.subr.bf16.mxu0 0
    %2238 = vmatpush1.bf16.xpose.msra.mxu0 0
    %2239 = vmatprep.subr.bf16.mxu0 0
    %2240 = vmatpush1.bf16.xpose.msra.mxu0 0
    %2241 = vmatprep.mubr.bf16.mxu0 0
    %2242 = vmatmul.mubr.bf16.gmra.mrb[0].mxu0 %v2162
    %v2243 = vpop.f32.mrb[0].mxu0
    %v2244 = vadd.f32 %v1165, %v2243
    %v2245 = vpop.f32.mrb[0].mxu0
    %v2246 = vpop.f32.mrb[0].mxu0
    %v2247 = vadd.f32 %v1166, %v2246
    %v2248 = vpop.f32.mrb[0].mxu0
    %2249 = vmatprep.mubr.bf16.mxu0 0
    %2250 = vmatmul.mubr.bf16.gmra.mrb[0].mxu0 %v2165
    %v2251 = vpop.f32.mrb[0].mxu0
    %v2252 = vadd.f32 %v1167, %v2251
    %v2253 = vpop.f32.mrb[0].mxu0
    %v2254 = vpop.f32.mrb[0].mxu0
    %v2255 = vadd.f32 %v1168, %v2254
    %v2256 = vpop.f32.mrb[0].mxu0
    %2257 = vmatprep.mubr.bf16.mxu0 0
    %2258 = vmatmul.mubr.bf16.gmra.mrb[0].mxu0 %v2168
    %v2259 = vpop.f32.mrb[0].mxu0
    %v2260 = vadd.f32 %v1169, %v2259
    %v2261 = vpop.f32.mrb[0].mxu0
    %v2262 = vpop.f32.mrb[0].mxu0
    %v2263 = vadd.f32 %v1170, %v2262
    %v2264 = vpop.f32.mrb[0].mxu0
    %2265 = vmatprep.mubr.bf16.mxu0 0
    %2266 = vmatmul.mubr.bf16.gmra.mrb[0].mxu0 %v2171
    %v2267 = vpop.f32.mrb[0].mxu0
    %v2268 = vadd.f32 %v1171, %v2267
    %v2269 = vpop.f32.mrb[0].mxu0
    %v2270 = vpop.f32.mrb[0].mxu0
    %v2271 = vadd.f32 %v1172, %v2270
    %v2272 = vpop.f32.mrb[0].mxu0
    %2273 = vmatprep.mubr.bf16.mxu0 0
    %2274 = vmatmul.mubr.bf16.gmra.mrb[0].mxu0 %v2174
    %v2275 = vpop.f32.mrb[0].mxu0
    %v2276 = vadd.f32 %v1173, %v2275
    %v2277 = vpop.f32.mrb[0].mxu0
    %v2278 = vpop.f32.mrb[0].mxu0
    %v2279 = vadd.f32 %v1174, %v2278
    %v2280 = vpop.f32.mrb[0].mxu0
    %2281 = vmatprep.mubr.bf16.mxu0 0
    %2282 = vmatmul.mubr.bf16.gmra.mrb[0].mxu0 %v2177
    %v2283 = vpop.f32.mrb[0].mxu0
    %v2284 = vadd.f32 %v1175, %v2283
    %v2285 = vpop.f32.mrb[0].mxu0
    %v2286 = vpop.f32.mrb[0].mxu0
    %v2287 = vadd.f32 %v1176, %v2286
    %v2288 = vpop.f32.mrb[0].mxu0
    %2289 = vmatprep.mubr.bf16.mxu0 0
    %2290 = vmatmul.mubr.bf16.gmra.mrb[0].mxu0 %v2180
    %v2291 = vpop.f32.mrb[0].mxu0
    %v2292 = vadd.f32 %v1177, %v2291
    %v2293 = vpop.f32.mrb[0].mxu0
    %v2294 = vpop.f32.mrb[0].mxu0
    %v2295 = vadd.f32 %v1178, %v2294
    %v2296 = vpop.f32.mrb[0].mxu0
    %2297 = vmatprep.mubr.bf16.mxu0 0
    %2298 = vmatmul.mubr.bf16.gmra.mrb[0].mxu0 %v2183
    %v2299 = vpop.f32.mrb[0].mxu0
    %v2300 = vadd.f32 %v1179, %v2299
    %v2301 = vpop.f32.mrb[0].mxu0
    %v2302 = vpop.f32.mrb[0].mxu0
    %v2303 = vadd.f32 %v1180, %v2302
    %v2304 = vpop.f32.mrb[0].mxu0
    %2305 = vdwg.mxu0
    %v2307 = vsel %vm2015, %v1848, 0
    %v2310 = vsel %vm2015, %v1850, 0
    %v2313 = vsel %vm2015, %v1852, 0
    %v2316 = vsel %vm2015, %v1854, 0
    %v2319 = vsel %vm2015, %v1856, 0
    %v2322 = vsel %vm2015, %v1858, 0
    %v2325 = vsel %vm2015, %v1860, 0
    %v2328 = vsel %vm2015, %v1862, 0
    %v2331 = vsel %vm2015, %v1904, 0
    %v2334 = vsel %vm2015, %v1906, 0
    %v2337 = vsel %vm2015, %v1908, 0
    %v2340 = vsel %vm2015, %v1910, 0
    %v2343 = vsel %vm2015, %v1912, 0
    %v2346 = vsel %vm2015, %v1914, 0
    %v2349 = vsel %vm2015, %v1916, 0
    %v2352 = vsel %vm2015, %v1918, 0
    %2354 = vmatprep.subr.bf16.mxu0 0
    %2355 = vmatpush1.bf16.xpose.msra.mxu0 %v2331
    %2356 = vmatprep.subr.bf16.mxu0 0
    %2357 = vmatpush1.bf16.xpose.msra.mxu0 %v2334
    %2358 = vmatprep.subr.bf16.mxu0 0
    %2359 = vmatpush1.bf16.xpose.msra.mxu0 %v2337
    %2360 = vmatprep.subr.bf16.mxu0 0
    %2361 = vmatpush1.bf16.xpose.msra.mxu0 %v2340
    %2362 = vmatprep.subr.bf16.mxu0 0
    %2363 = vmatpush1.bf16.xpose.msra.mxu0 %v2343
    %2364 = vmatprep.subr.bf16.mxu0 0
    %2365 = vmatpush1.bf16.xpose.msra.mxu0 %v2346
    %2366 = vmatprep.subr.bf16.mxu0 0
    %2367 = vmatpush1.bf16.xpose.msra.mxu0 %v2349
    %2368 = vmatprep.subr.bf16.mxu0 0
    %2369 = vmatpush1.bf16.xpose.msra.mxu0 %v2352
    %2370 = vmatprep.subr.bf16.mxu0 0
    %2371 = vmatpush1.bf16.xpose.msra.mxu0 0
    %2372 = vmatprep.subr.bf16.mxu0 0
    %2373 = vmatpush1.bf16.xpose.msra.mxu0 0
    %2374 = vmatprep.subr.bf16.mxu0 0
    %2375 = vmatpush1.bf16.xpose.msra.mxu0 0
    %2376 = vmatprep.subr.bf16.mxu0 0
    %2377 = vmatpush1.bf16.xpose.msra.mxu0 0
    %2378 = vmatprep.subr.bf16.mxu0 0
    %2379 = vmatpush1.bf16.xpose.msra.mxu0 0
    %2380 = vmatprep.subr.bf16.mxu0 0
    %2381 = vmatpush1.bf16.xpose.msra.mxu0 0
    %2382 = vmatprep.subr.bf16.mxu0 0
    %2383 = vmatpush1.bf16.xpose.msra.mxu0 0
    %2384 = vmatprep.subr.bf16.mxu0 0
    %2385 = vmatpush1.bf16.xpose.msra.mxu0 0
    %2386 = vmatprep.mubr.bf16.mxu0 0
    %2387 = vmatmul.mubr.bf16.gmra.mrb[0].mxu0 %v2307
    %v2388 = vpop.f32.mrb[0].mxu0
    %v2389 = vadd.f32 %v1165, %v2388
    %v2390 = vpop.f32.mrb[0].mxu0
    %v2391 = vpop.f32.mrb[0].mxu0
    %v2392 = vadd.f32 %v1166, %v2391
    %v2393 = vpop.f32.mrb[0].mxu0
    %2394 = vmatprep.mubr.bf16.mxu0 0
    %2395 = vmatmul.mubr.bf16.gmra.mrb[0].mxu0 %v2310
    %v2396 = vpop.f32.mrb[0].mxu0
    %v2397 = vadd.f32 %v1167, %v2396
    %v2398 = vpop.f32.mrb[0].mxu0
    %v2399 = vpop.f32.mrb[0].mxu0
    %v2400 = vadd.f32 %v1168, %v2399
    %v2401 = vpop.f32.mrb[0].mxu0
    %2402 = vmatprep.mubr.bf16.mxu0 0
    %2403 = vmatmul.mubr.bf16.gmra.mrb[0].mxu0 %v2313
    %v2404 = vpop.f32.mrb[0].mxu0
    %v2405 = vadd.f32 %v1169, %v2404
    %v2406 = vpop.f32.mrb[0].mxu0
    %v2407 = vpop.f32.mrb[0].mxu0
    %v2408 = vadd.f32 %v1170, %v2407
    %v2409 = vpop.f32.mrb[0].mxu0
    %2410 = vmatprep.mubr.bf16.mxu0 0
    %2411 = vmatmul.mubr.bf16.gmra.mrb[0].mxu0 %v2316
    %v2412 = vpop.f32.mrb[0].mxu0
    %v2413 = vadd.f32 %v1171, %v2412
    %v2414 = vpop.f32.mrb[0].mxu0
    %v2415 = vpop.f32.mrb[0].mxu0
    %v2416 = vadd.f32 %v1172, %v2415
    %v2417 = vpop.f32.mrb[0].mxu0
    %2418 = vmatprep.mubr.bf16.mxu0 0
    %2419 = vmatmul.mubr.bf16.gmra.mrb[0].mxu0 %v2319
    %v2420 = vpop.f32.mrb[0].mxu0
    %v2421 = vadd.f32 %v1173, %v2420
    %v2422 = vpop.f32.mrb[0].mxu0
    %v2423 = vpop.f32.mrb[0].mxu0
    %v2424 = vadd.f32 %v1174, %v2423
    %v2425 = vpop.f32.mrb[0].mxu0
    %2426 = vmatprep.mubr.bf16.mxu0 0
    %2427 = vmatmul.mubr.bf16.gmra.mrb[0].mxu0 %v2322
    %v2428 = vpop.f32.mrb[0].mxu0
    %v2429 = vadd.f32 %v1175, %v2428
    %v2430 = vpop.f32.mrb[0].mxu0
    %v2431 = vpop.f32.mrb[0].mxu0
    %v2432 = vadd.f32 %v1176, %v2431
    %v2433 = vpop.f32.mrb[0].mxu0
    %2434 = vmatprep.mubr.bf16.mxu0 0
    %2435 = vmatmul.mubr.bf16.gmra.mrb[0].mxu0 %v2325
    %v2436 = vpop.f32.mrb[0].mxu0
    %v2437 = vadd.f32 %v1177, %v2436
    %v2438 = vpop.f32.mrb[0].mxu0
    %v2439 = vpop.f32.mrb[0].mxu0
    %v2440 = vadd.f32 %v1178, %v2439
    %v2441 = vpop.f32.mrb[0].mxu0
    %2442 = vmatprep.mubr.bf16.mxu0 0
    %2443 = vmatmul.mubr.bf16.gmra.mrb[0].mxu0 %v2328
    %v2444 = vpop.f32.mrb[0].mxu0
    %v2445 = vadd.f32 %v1179, %v2444
    %v2446 = vpop.f32.mrb[0].mxu0
    %v2447 = vpop.f32.mrb[0].mxu0
    %v2448 = vadd.f32 %v1180, %v2447
    %v2449 = vpop.f32.mrb[0].mxu0
    %2450 = vdwg.mxu0
    %v2452 = vsel %vm2015, %v1864, 0
    %v2455 = vsel %vm2015, %v1866, 0
    %v2458 = vsel %vm2015, %v1868, 0
    %v2461 = vsel %vm2015, %v1870, 0
    %v2464 = vsel %vm2015, %v1872, 0
    %v2467 = vsel %vm2015, %v1874, 0
    %v2470 = vsel %vm2015, %v1876, 0
    %v2473 = vsel %vm2015, %v1878, 0
    %v2476 = vsel %vm2015, %v1920, 0
    %v2479 = vsel %vm2015, %v1922, 0
    %v2482 = vsel %vm2015, %v1924, 0
    %v2485 = vsel %vm2015, %v1926, 0
    %v2488 = vsel %vm2015, %v1928, 0
    %v2491 = vsel %vm2015, %v1930, 0
    %v2494 = vsel %vm2015, %v1932, 0
    %v2497 = vsel %vm2015, %v1934, 0
    %2499 = vmatprep.subr.bf16.mxu0 0
    %2500 = vmatpush1.bf16.xpose.msra.mxu0 %v2476
    %2501 = vmatprep.subr.bf16.mxu0 0
    %2502 = vmatpush1.bf16.xpose.msra.mxu0 %v2479
    %2503 = vmatprep.subr.bf16.mxu0 0
    %2504 = vmatpush1.bf16.xpose.msra.mxu0 %v2482
    %2505 = vmatprep.subr.bf16.mxu0 0
    %2506 = vmatpush1.bf16.xpose.msra.mxu0 %v2485
    %2507 = vmatprep.subr.bf16.mxu0 0
    %2508 = vmatpush1.bf16.xpose.msra.mxu0 %v2488
    %2509 = vmatprep.subr.bf16.mxu0 0
    %2510 = vmatpush1.bf16.xpose.msra.mxu0 %v2491
    %2511 = vmatprep.subr.bf16.mxu0 0
    %2512 = vmatpush1.bf16.xpose.msra.mxu0 %v2494
    %2513 = vmatprep.subr.bf16.mxu0 0
    %2514 = vmatpush1.bf16.xpose.msra.mxu0 %v2497
    %2515 = vmatprep.subr.bf16.mxu0 0
    %2516 = vmatpush1.bf16.xpose.msra.mxu0 0
    %2517 = vmatprep.subr.bf16.mxu0 0
    %2518 = vmatpush1.bf16.xpose.msra.mxu0 0
    %2519 = vmatprep.subr.bf16.mxu0 0
    %2520 = vmatpush1.bf16.xpose.msra.mxu0 0
    %2521 = vmatprep.subr.bf16.mxu0 0
    %2522 = vmatpush1.bf16.xpose.msra.mxu0 0
    %2523 = vmatprep.subr.bf16.mxu0 0
    %2524 = vmatpush1.bf16.xpose.msra.mxu0 0
    %2525 = vmatprep.subr.bf16.mxu0 0
    %2526 = vmatpush1.bf16.xpose.msra.mxu0 0
    %2527 = vmatprep.subr.bf16.mxu0 0
    %2528 = vmatpush1.bf16.xpose.msra.mxu0 0
    %2529 = vmatprep.subr.bf16.mxu0 0
    %2530 = vmatpush1.bf16.xpose.msra.mxu0 0
    %2531 = vmatprep.mubr.bf16.mxu0 0
    %2532 = vmatmul.mubr.bf16.gmra.mrb[0].mxu0 %v2452
    %v2533 = vpop.f32.mrb[0].mxu0
    %v2534 = vadd.f32 %v1165, %v2533
    %v2535 = vpop.f32.mrb[0].mxu0
    %v2536 = vpop.f32.mrb[0].mxu0
    %v2537 = vadd.f32 %v1166, %v2536
    %v2538 = vpop.f32.mrb[0].mxu0
    %2539 = vmatprep.mubr.bf16.mxu0 0
    %2540 = vmatmul.mubr.bf16.gmra.mrb[0].mxu0 %v2455
    %v2541 = vpop.f32.mrb[0].mxu0
    %v2542 = vadd.f32 %v1167, %v2541
    %v2543 = vpop.f32.mrb[0].mxu0
    %v2544 = vpop.f32.mrb[0].mxu0
    %v2545 = vadd.f32 %v1168, %v2544
    %v2546 = vpop.f32.mrb[0].mxu0
    %2547 = vmatprep.mubr.bf16.mxu0 0
    %2548 = vmatmul.mubr.bf16.gmra.mrb[0].mxu0 %v2458
    %v2549 = vpop.f32.mrb[0].mxu0
    %v2550 = vadd.f32 %v1169, %v2549
    %v2551 = vpop.f32.mrb[0].mxu0
    %v2552 = vpop.f32.mrb[0].mxu0
    %v2553 = vadd.f32 %v1170, %v2552
    %v2554 = vpop.f32.mrb[0].mxu0
    %2555 = vmatprep.mubr.bf16.mxu0 0
    %2556 = vmatmul.mubr.bf16.gmra.mrb[0].mxu0 %v2461
    %v2557 = vpop.f32.mrb[0].mxu0
    %v2558 = vadd.f32 %v1171, %v2557
    %v2559 = vpop.f32.mrb[0].mxu0
    %v2560 = vpop.f32.mrb[0].mxu0
    %v2561 = vadd.f32 %v1172, %v2560
    %v2562 = vpop.f32.mrb[0].mxu0
    %2563 = vmatprep.mubr.bf16.mxu0 0
    %2564 = vmatmul.mubr.bf16.gmra.mrb[0].mxu0 %v2464
    %v2565 = vpop.f32.mrb[0].mxu0
    %v2566 = vadd.f32 %v1173, %v2565
    %v2567 = vpop.f32.mrb[0].mxu0
    %v2568 = vpop.f32.mrb[0].mxu0
    %v2569 = vadd.f32 %v1174, %v2568
    %v2570 = vpop.f32.mrb[0].mxu0
    %2571 = vmatprep.mubr.bf16.mxu0 0
    %2572 = vmatmul.mubr.bf16.gmra.mrb[0].mxu0 %v2467
    %v2573 = vpop.f32.mrb[0].mxu0
    %v2574 = vadd.f32 %v1175, %v2573
    %v2575 = vpop.f32.mrb[0].mxu0
    %v2576 = vpop.f32.mrb[0].mxu0
    %v2577 = vadd.f32 %v1176, %v2576
    %v2578 = vpop.f32.mrb[0].mxu0
    %2579 = vmatprep.mubr.bf16.mxu0 0
    %2580 = vmatmul.mubr.bf16.gmra.mrb[0].mxu0 %v2470
    %v2581 = vpop.f32.mrb[0].mxu0
    %v2582 = vadd.f32 %v1177, %v2581
    %v2583 = vpop.f32.mrb[0].mxu0
    %v2584 = vpop.f32.mrb[0].mxu0
    %v2585 = vadd.f32 %v1178, %v2584
    %v2586 = vpop.f32.mrb[0].mxu0
    %2587 = vmatprep.mubr.bf16.mxu0 0
    %2588 = vmatmul.mubr.bf16.gmra.mrb[0].mxu0 %v2473
    %v2589 = vpop.f32.mrb[0].mxu0
    %v2590 = vadd.f32 %v1179, %v2589
    %v2591 = vpop.f32.mrb[0].mxu0
    %v2592 = vpop.f32.mrb[0].mxu0
    %v2593 = vadd.f32 %v1180, %v2592
    %v2594 = vpop.f32.mrb[0].mxu0
    %2595 = vdwg.mxu0
    %2596 = vmax.xlane.f32.xlu0 %v2099
    %v2597 = vpop.xlane.xlu0 %2596
    %2598 = vmax.xlane.f32.xlu0 %v2102
    %v2599 = vpop.xlane.xlu0 %2598
    %2600 = vmax.xlane.f32.xlu0 %v2107
    %v2601 = vpop.xlane.xlu0 %2600
    %2602 = vmax.xlane.f32.xlu0 %v2110
    %v2603 = vpop.xlane.xlu0 %2602
    %2604 = vmax.xlane.f32.xlu0 %v2115
    %v2605 = vpop.xlane.xlu0 %2604
    %2606 = vmax.xlane.f32.xlu0 %v2118
    %v2607 = vpop.xlane.xlu0 %2606
    %2608 = vmax.xlane.f32.xlu0 %v2123
    %v2609 = vpop.xlane.xlu0 %2608
    %2610 = vmax.xlane.f32.xlu0 %v2126
    %v2611 = vpop.xlane.xlu0 %2610
    %2612 = vmax.xlane.f32.xlu0 %v2131
    %v2613 = vpop.xlane.xlu0 %2612
    %2614 = vmax.xlane.f32.xlu0 %v2134
    %v2615 = vpop.xlane.xlu0 %2614
    %2616 = vmax.xlane.f32.xlu0 %v2139
    %v2617 = vpop.xlane.xlu0 %2616
    %2618 = vmax.xlane.f32.xlu0 %v2142
    %v2619 = vpop.xlane.xlu0 %2618
    %2620 = vmax.xlane.f32.xlu0 %v2147
    %v2621 = vpop.xlane.xlu0 %2620
    %2622 = vmax.xlane.f32.xlu0 %v2150
    %v2623 = vpop.xlane.xlu0 %2622
    %2624 = vmax.xlane.f32.xlu0 %v2155
    %v2625 = vpop.xlane.xlu0 %2624
    %2626 = vmax.xlane.f32.xlu0 %v2158
    %v2627 = vpop.xlane.xlu0 %2626
    %2628 = vmax.xlane.f32.xlu0 %v2244
    %v2629 = vpop.xlane.xlu0 %2628
    %2630 = vmax.xlane.f32.xlu0 %v2247
    %v2631 = vpop.xlane.xlu0 %2630
    %2632 = vmax.xlane.f32.xlu0 %v2252
    %v2633 = vpop.xlane.xlu0 %2632
    %2634 = vmax.xlane.f32.xlu0 %v2255
    %v2635 = vpop.xlane.xlu0 %2634
    %2636 = vmax.xlane.f32.xlu0 %v2260
    %v2637 = vpop.xlane.xlu0 %2636
    %2638 = vmax.xlane.f32.xlu0 %v2263
    %v2639 = vpop.xlane.xlu0 %2638
    %2640 = vmax.xlane.f32.xlu0 %v2268
    %v2641 = vpop.xlane.xlu0 %2640
    %2642 = vmax.xlane.f32.xlu0 %v2271
    %v2643 = vpop.xlane.xlu0 %2642
    %2644 = vmax.xlane.f32.xlu0 %v2276
    %v2645 = vpop.xlane.xlu0 %2644
    %2646 = vmax.xlane.f32.xlu0 %v2279
    %v2647 = vpop.xlane.xlu0 %2646
    %2648 = vmax.xlane.f32.xlu0 %v2284
    %v2649 = vpop.xlane.xlu0 %2648
    %2650 = vmax.xlane.f32.xlu0 %v2287
    %v2651 = vpop.xlane.xlu0 %2650
    %2652 = vmax.xlane.f32.xlu0 %v2292
    %v2653 = vpop.xlane.xlu0 %2652
    %2654 = vmax.xlane.f32.xlu0 %v2295
    %v2655 = vpop.xlane.xlu0 %2654
    %2656 = vmax.xlane.f32.xlu0 %v2300
    %v2657 = vpop.xlane.xlu0 %2656
    %2658 = vmax.xlane.f32.xlu0 %v2303
    %v2659 = vpop.xlane.xlu0 %2658
    %2660 = vmax.xlane.f32.xlu0 %v2389
    %v2661 = vpop.xlane.xlu0 %2660
    %2662 = vmax.xlane.f32.xlu0 %v2392
    %v2663 = vpop.xlane.xlu0 %2662
    %2664 = vmax.xlane.f32.xlu0 %v2397
    %v2665 = vpop.xlane.xlu0 %2664
    %2666 = vmax.xlane.f32.xlu0 %v2400
    %v2667 = vpop.xlane.xlu0 %2666
    %2668 = vmax.xlane.f32.xlu0 %v2405
    %v2669 = vpop.xlane.xlu0 %2668
    %2670 = vmax.xlane.f32.xlu0 %v2408
    %v2671 = vpop.xlane.xlu0 %2670
    %2672 = vmax.xlane.f32.xlu0 %v2413
    %v2673 = vpop.xlane.xlu0 %2672
    %2674 = vmax.xlane.f32.xlu0 %v2416
    %v2675 = vpop.xlane.xlu0 %2674
    %2676 = vmax.xlane.f32.xlu0 %v2421
    %v2677 = vpop.xlane.xlu0 %2676
    %2678 = vmax.xlane.f32.xlu0 %v2424
    %v2679 = vpop.xlane.xlu0 %2678
    %2680 = vmax.xlane.f32.xlu0 %v2429
    %v2681 = vpop.xlane.xlu0 %2680
    %2682 = vmax.xlane.f32.xlu0 %v2432
    %v2683 = vpop.xlane.xlu0 %2682
    %2684 = vmax.xlane.f32.xlu0 %v2437
    %v2685 = vpop.xlane.xlu0 %2684
    %2686 = vmax.xlane.f32.xlu0 %v2440
    %v2687 = vpop.xlane.xlu0 %2686
    %2688 = vmax.xlane.f32.xlu0 %v2445
    %v2689 = vpop.xlane.xlu0 %2688
    %2690 = vmax.xlane.f32.xlu0 %v2448
    %v2691 = vpop.xlane.xlu0 %2690
    %2692 = vmax.xlane.f32.xlu0 %v2534
    %v2693 = vpop.xlane.xlu0 %2692
    %2694 = vmax.xlane.f32.xlu0 %v2537
    %v2695 = vpop.xlane.xlu0 %2694
    %2696 = vmax.xlane.f32.xlu0 %v2542
    %v2697 = vpop.xlane.xlu0 %2696
    %2698 = vmax.xlane.f32.xlu0 %v2545
    %v2699 = vpop.xlane.xlu0 %2698
    %2700 = vmax.xlane.f32.xlu0 %v2550
    %v2701 = vpop.xlane.xlu0 %2700
    %2702 = vmax.xlane.f32.xlu0 %v2553
    %v2703 = vpop.xlane.xlu0 %2702
    %2704 = vmax.xlane.f32.xlu0 %v2558
    %v2705 = vpop.xlane.xlu0 %2704
    %2706 = vmax.xlane.f32.xlu0 %v2561
    %v2707 = vpop.xlane.xlu0 %2706
    %2708 = vmax.xlane.f32.xlu0 %v2566
    %v2709 = vpop.xlane.xlu0 %2708
    %2710 = vmax.xlane.f32.xlu0 %v2569
    %v2711 = vpop.xlane.xlu0 %2710
    %2712 = vmax.xlane.f32.xlu0 %v2574
    %v2713 = vpop.xlane.xlu0 %2712
    %2714 = vmax.xlane.f32.xlu0 %v2577
    %v2715 = vpop.xlane.xlu0 %2714
    %2716 = vmax.xlane.f32.xlu0 %v2582
    %v2717 = vpop.xlane.xlu0 %2716
    %2718 = vmax.xlane.f32.xlu0 %v2585
    %v2719 = vpop.xlane.xlu0 %2718
    %2720 = vmax.xlane.f32.xlu0 %v2590
    %v2721 = vpop.xlane.xlu0 %2720
    %2722 = vmax.xlane.f32.xlu0 %v2593
    %v2723 = vpop.xlane.xlu0 %2722
    %v2724 = vsub.f32 %v2099, %v2597
    %v2725 = vsub.f32 %v2102, %v2599
    %v2726 = vsub.f32 %v2107, %v2601
    %v2727 = vsub.f32 %v2110, %v2603
    %v2728 = vsub.f32 %v2115, %v2605
    %v2729 = vsub.f32 %v2118, %v2607
    %v2730 = vsub.f32 %v2123, %v2609
    %v2731 = vsub.f32 %v2126, %v2611
    %v2732 = vsub.f32 %v2131, %v2613
    %v2733 = vsub.f32 %v2134, %v2615
    %v2734 = vsub.f32 %v2139, %v2617
    %v2735 = vsub.f32 %v2142, %v2619
    %v2736 = vsub.f32 %v2147, %v2621
    %v2737 = vsub.f32 %v2150, %v2623
    %v2738 = vsub.f32 %v2155, %v2625
    %v2739 = vsub.f32 %v2158, %v2627
    %v2740 = vsub.f32 %v2244, %v2629
    %v2741 = vsub.f32 %v2247, %v2631
    %v2742 = vsub.f32 %v2252, %v2633
    %v2743 = vsub.f32 %v2255, %v2635
    %v2744 = vsub.f32 %v2260, %v2637
    %v2745 = vsub.f32 %v2263, %v2639
    %v2746 = vsub.f32 %v2268, %v2641
    %v2747 = vsub.f32 %v2271, %v2643
    %v2748 = vsub.f32 %v2276, %v2645
    %v2749 = vsub.f32 %v2279, %v2647
    %v2750 = vsub.f32 %v2284, %v2649
    %v2751 = vsub.f32 %v2287, %v2651
    %v2752 = vsub.f32 %v2292, %v2653
    %v2753 = vsub.f32 %v2295, %v2655
    %v2754 = vsub.f32 %v2300, %v2657
    %v2755 = vsub.f32 %v2303, %v2659
    %v2756 = vsub.f32 %v2389, %v2661
    %v2757 = vsub.f32 %v2392, %v2663
    %v2758 = vsub.f32 %v2397, %v2665
    %v2759 = vsub.f32 %v2400, %v2667
    %v2760 = vsub.f32 %v2405, %v2669
    %v2761 = vsub.f32 %v2408, %v2671
    %v2762 = vsub.f32 %v2413, %v2673
    %v2763 = vsub.f32 %v2416, %v2675
    %v2764 = vsub.f32 %v2421, %v2677
    %v2765 = vsub.f32 %v2424, %v2679
    %v2766 = vsub.f32 %v2429, %v2681
    %v2767 = vsub.f32 %v2432, %v2683
    %v2768 = vsub.f32 %v2437, %v2685
    %v2769 = vsub.f32 %v2440, %v2687
    %v2770 = vsub.f32 %v2445, %v2689
    %v2771 = vsub.f32 %v2448, %v2691
    %v2772 = vsub.f32 %v2534, %v2693
    %v2773 = vsub.f32 %v2537, %v2695
    %v2774 = vsub.f32 %v2542, %v2697
    %v2775 = vsub.f32 %v2545, %v2699
    %v2776 = vsub.f32 %v2550, %v2701
    %v2777 = vsub.f32 %v2553, %v2703
    %v2778 = vsub.f32 %v2558, %v2705
    %v2779 = vsub.f32 %v2561, %v2707
    %v2780 = vsub.f32 %v2566, %v2709
    %v2781 = vsub.f32 %v2569, %v2711
    %v2782 = vsub.f32 %v2574, %v2713
    %v2783 = vsub.f32 %v2577, %v2715
    %v2784 = vsub.f32 %v2582, %v2717
    %v2785 = vsub.f32 %v2585, %v2719
    %v2786 = vsub.f32 %v2590, %v2721
    %v2787 = vsub.f32 %v2593, %v2723
    %v2788 = vmul.f32 %v2724, 1.442695
    %v2789 = vpow.pop %v2788
    %v2790 = vmul.f32 %v2725, 1.442695
    %v2791 = vpow.pop %v2790
    %v2792 = vmul.f32 %v2726, 1.442695
    %v2793 = vpow.pop %v2792
    %v2794 = vmul.f32 %v2727, 1.442695
    %v2795 = vpow.pop %v2794
    %v2796 = vmul.f32 %v2728, 1.442695
    %v2797 = vpow.pop %v2796
    %v2798 = vmul.f32 %v2729, 1.442695
    %v2799 = vpow.pop %v2798
    %v2800 = vmul.f32 %v2730, 1.442695
    %v2801 = vpow.pop %v2800
    %v2802 = vmul.f32 %v2731, 1.442695
    %v2803 = vpow.pop %v2802
    %v2804 = vmul.f32 %v2732, 1.442695
    %v2805 = vpow.pop %v2804
    %v2806 = vmul.f32 %v2733, 1.442695
    %v2807 = vpow.pop %v2806
    %v2808 = vmul.f32 %v2734, 1.442695
    %v2809 = vpow.pop %v2808
    %v2810 = vmul.f32 %v2735, 1.442695
    %v2811 = vpow.pop %v2810
    %v2812 = vmul.f32 %v2736, 1.442695
    %v2813 = vpow.pop %v2812
    %v2814 = vmul.f32 %v2737, 1.442695
    %v2815 = vpow.pop %v2814
    %v2816 = vmul.f32 %v2738, 1.442695
    %v2817 = vpow.pop %v2816
    %v2818 = vmul.f32 %v2739, 1.442695
    %v2819 = vpow.pop %v2818
    %v2820 = vmul.f32 %v2740, 1.442695
    %v2821 = vpow.pop %v2820
    %v2822 = vmul.f32 %v2741, 1.442695
    %v2823 = vpow.pop %v2822
    %v2824 = vmul.f32 %v2742, 1.442695
    %v2825 = vpow.pop %v2824
    %v2826 = vmul.f32 %v2743, 1.442695
    %v2827 = vpow.pop %v2826
    %v2828 = vmul.f32 %v2744, 1.442695
    %v2829 = vpow.pop %v2828
    %v2830 = vmul.f32 %v2745, 1.442695
    %v2831 = vpow.pop %v2830
    %v2832 = vmul.f32 %v2746, 1.442695
    %v2833 = vpow.pop %v2832
    %v2834 = vmul.f32 %v2747, 1.442695
    %v2835 = vpow.pop %v2834
    %v2836 = vmul.f32 %v2748, 1.442695
    %v2837 = vpow.pop %v2836
    %v2838 = vmul.f32 %v2749, 1.442695
    %v2839 = vpow.pop %v2838
    %v2840 = vmul.f32 %v2750, 1.442695
    %v2841 = vpow.pop %v2840
    %v2842 = vmul.f32 %v2751, 1.442695
    %v2843 = vpow.pop %v2842
    %v2844 = vmul.f32 %v2752, 1.442695
    %v2845 = vpow.pop %v2844
    %v2846 = vmul.f32 %v2753, 1.442695
    %v2847 = vpow.pop %v2846
    %v2848 = vmul.f32 %v2754, 1.442695
    %v2849 = vpow.pop %v2848
    %v2850 = vmul.f32 %v2755, 1.442695
    %v2851 = vpow.pop %v2850
    %v2852 = vmul.f32 %v2756, 1.442695
    %v2853 = vpow.pop %v2852
    %v2854 = vmul.f32 %v2757, 1.442695
    %v2855 = vpow.pop %v2854
    %v2856 = vmul.f32 %v2758, 1.442695
    %v2857 = vpow.pop %v2856
    %v2858 = vmul.f32 %v2759, 1.442695
    %v2859 = vpow.pop %v2858
    %v2860 = vmul.f32 %v2760, 1.442695
    %v2861 = vpow.pop %v2860
    %v2862 = vmul.f32 %v2761, 1.442695
    %v2863 = vpow.pop %v2862
    %v2864 = vmul.f32 %v2762, 1.442695
    %v2865 = vpow.pop %v2864
    %v2866 = vmul.f32 %v2763, 1.442695
    %v2867 = vpow.pop %v2866
    %v2868 = vmul.f32 %v2764, 1.442695
    %v2869 = vpow.pop %v2868
    %v2870 = vmul.f32 %v2765, 1.442695
    %v2871 = vpow.pop %v2870
    %v2872 = vmul.f32 %v2766, 1.442695
    %v2873 = vpow.pop %v2872
    %v2874 = vmul.f32 %v2767, 1.442695
    %v2875 = vpow.pop %v2874
    %v2876 = vmul.f32 %v2768, 1.442695
    %v2877 = vpow.pop %v2876
    %v2878 = vmul.f32 %v2769, 1.442695
    %v2879 = vpow.pop %v2878
    %v2880 = vmul.f32 %v2770, 1.442695
    %v2881 = vpow.pop %v2880
    %v2882 = vmul.f32 %v2771, 1.442695
    %v2883 = vpow.pop %v2882
    %v2884 = vmul.f32 %v2772, 1.442695
    %v2885 = vpow.pop %v2884
    %v2886 = vmul.f32 %v2773, 1.442695
    %v2887 = vpow.pop %v2886
    %v2888 = vmul.f32 %v2774, 1.442695
    %v2889 = vpow.pop %v2888
    %v2890 = vmul.f32 %v2775, 1.442695
    %v2891 = vpow.pop %v2890
    %v2892 = vmul.f32 %v2776, 1.442695
    %v2893 = vpow.pop %v2892
    %v2894 = vmul.f32 %v2777, 1.442695
    %v2895 = vpow.pop %v2894
    %v2896 = vmul.f32 %v2778, 1.442695
    %v2897 = vpow.pop %v2896
    %v2898 = vmul.f32 %v2779, 1.442695
    %v2899 = vpow.pop %v2898
    %v2900 = vmul.f32 %v2780, 1.442695
    %v2901 = vpow.pop %v2900
    %v2902 = vmul.f32 %v2781, 1.442695
    %v2903 = vpow.pop %v2902
    %v2904 = vmul.f32 %v2782, 1.442695
    %v2905 = vpow.pop %v2904
    %v2906 = vmul.f32 %v2783, 1.442695
    %v2907 = vpow.pop %v2906
    %v2908 = vmul.f32 %v2784, 1.442695
    %v2909 = vpow.pop %v2908
    %v2910 = vmul.f32 %v2785, 1.442695
    %v2911 = vpow.pop %v2910
    %v2912 = vmul.f32 %v2786, 1.442695
    %v2913 = vpow.pop %v2912
    %v2914 = vmul.f32 %v2787, 1.442695
    %v2915 = vpow.pop %v2914
    %2916 = vadd.xlane.f32.xlu0 %v2789
    %v2917 = vpop.xlane.xlu0 %2916
    %2918 = vadd.xlane.f32.xlu0 %v2791
    %v2919 = vpop.xlane.xlu0 %2918
    %2920 = vadd.xlane.f32.xlu0 %v2793
    %v2921 = vpop.xlane.xlu0 %2920
    %2922 = vadd.xlane.f32.xlu0 %v2795
    %v2923 = vpop.xlane.xlu0 %2922
    %2924 = vadd.xlane.f32.xlu0 %v2797
    %v2925 = vpop.xlane.xlu0 %2924
    %2926 = vadd.xlane.f32.xlu0 %v2799
    %v2927 = vpop.xlane.xlu0 %2926
    %2928 = vadd.xlane.f32.xlu0 %v2801
    %v2929 = vpop.xlane.xlu0 %2928
    %2930 = vadd.xlane.f32.xlu0 %v2803
    %v2931 = vpop.xlane.xlu0 %2930
    %2932 = vadd.xlane.f32.xlu0 %v2805
    %v2933 = vpop.xlane.xlu0 %2932
    %2934 = vadd.xlane.f32.xlu0 %v2807
    %v2935 = vpop.xlane.xlu0 %2934
    %2936 = vadd.xlane.f32.xlu0 %v2809
    %v2937 = vpop.xlane.xlu0 %2936
    %2938 = vadd.xlane.f32.xlu0 %v2811
    %v2939 = vpop.xlane.xlu0 %2938
    %2940 = vadd.xlane.f32.xlu0 %v2813
    %v2941 = vpop.xlane.xlu0 %2940
    %2942 = vadd.xlane.f32.xlu0 %v2815
    %v2943 = vpop.xlane.xlu0 %2942
    %2944 = vadd.xlane.f32.xlu0 %v2817
    %v2945 = vpop.xlane.xlu0 %2944
    %2946 = vadd.xlane.f32.xlu0 %v2819
    %v2947 = vpop.xlane.xlu0 %2946
    %2948 = vadd.xlane.f32.xlu0 %v2821
    %v2949 = vpop.xlane.xlu0 %2948
    %2950 = vadd.xlane.f32.xlu0 %v2823
    %v2951 = vpop.xlane.xlu0 %2950
    %2952 = vadd.xlane.f32.xlu0 %v2825
    %v2953 = vpop.xlane.xlu0 %2952
    %2954 = vadd.xlane.f32.xlu0 %v2827
    %v2955 = vpop.xlane.xlu0 %2954
    %2956 = vadd.xlane.f32.xlu0 %v2829
    %v2957 = vpop.xlane.xlu0 %2956
    %2958 = vadd.xlane.f32.xlu0 %v2831
    %v2959 = vpop.xlane.xlu0 %2958
    %2960 = vadd.xlane.f32.xlu0 %v2833
    %v2961 = vpop.xlane.xlu0 %2960
    %2962 = vadd.xlane.f32.xlu0 %v2835
    %v2963 = vpop.xlane.xlu0 %2962
    %2964 = vadd.xlane.f32.xlu0 %v2837
    %v2965 = vpop.xlane.xlu0 %2964
    %2966 = vadd.xlane.f32.xlu0 %v2839
    %v2967 = vpop.xlane.xlu0 %2966
    %2968 = vadd.xlane.f32.xlu0 %v2841
    %v2969 = vpop.xlane.xlu0 %2968
    %2970 = vadd.xlane.f32.xlu0 %v2843
    %v2971 = vpop.xlane.xlu0 %2970
    %2972 = vadd.xlane.f32.xlu0 %v2845
    %v2973 = vpop.xlane.xlu0 %2972
    %2974 = vadd.xlane.f32.xlu0 %v2847
    %v2975 = vpop.xlane.xlu0 %2974
    %2976 = vadd.xlane.f32.xlu0 %v2849
    %v2977 = vpop.xlane.xlu0 %2976
    %2978 = vadd.xlane.f32.xlu0 %v2851
    %v2979 = vpop.xlane.xlu0 %2978
    %2980 = vadd.xlane.f32.xlu0 %v2853
    %v2981 = vpop.xlane.xlu0 %2980
    %2982 = vadd.xlane.f32.xlu0 %v2855
    %v2983 = vpop.xlane.xlu0 %2982
    %2984 = vadd.xlane.f32.xlu0 %v2857
    %v2985 = vpop.xlane.xlu0 %2984
    %2986 = vadd.xlane.f32.xlu0 %v2859
    %v2987 = vpop.xlane.xlu0 %2986
    %2988 = vadd.xlane.f32.xlu0 %v2861
    %v2989 = vpop.xlane.xlu0 %2988
    %2990 = vadd.xlane.f32.xlu0 %v2863
    %v2991 = vpop.xlane.xlu0 %2990
    %2992 = vadd.xlane.f32.xlu0 %v2865
    %v2993 = vpop.xlane.xlu0 %2992
    %2994 = vadd.xlane.f32.xlu0 %v2867
    %v2995 = vpop.xlane.xlu0 %2994
    %2996 = vadd.xlane.f32.xlu0 %v2869
    %v2997 = vpop.xlane.xlu0 %2996
    %2998 = vadd.xlane.f32.xlu0 %v2871
    %v2999 = vpop.xlane.xlu0 %2998
    %3000 = vadd.xlane.f32.xlu0 %v2873
    %v3001 = vpop.xlane.xlu0 %3000
    %3002 = vadd.xlane.f32.xlu0 %v2875
    %v3003 = vpop.xlane.xlu0 %3002
    %3004 = vadd.xlane.f32.xlu0 %v2877
    %v3005 = vpop.xlane.xlu0 %3004
    %3006 = vadd.xlane.f32.xlu0 %v2879
    %v3007 = vpop.xlane.xlu0 %3006
    %3008 = vadd.xlane.f32.xlu0 %v2881
    %v3009 = vpop.xlane.xlu0 %3008
    %3010 = vadd.xlane.f32.xlu0 %v2883
    %v3011 = vpop.xlane.xlu0 %3010
    %3012 = vadd.xlane.f32.xlu0 %v2885
    %v3013 = vpop.xlane.xlu0 %3012
    %3014 = vadd.xlane.f32.xlu0 %v2887
    %v3015 = vpop.xlane.xlu0 %3014
    %3016 = vadd.xlane.f32.xlu0 %v2889
    %v3017 = vpop.xlane.xlu0 %3016
    %3018 = vadd.xlane.f32.xlu0 %v2891
    %v3019 = vpop.xlane.xlu0 %3018
    %3020 = vadd.xlane.f32.xlu0 %v2893
    %v3021 = vpop.xlane.xlu0 %3020
    %3022 = vadd.xlane.f32.xlu0 %v2895
    %v3023 = vpop.xlane.xlu0 %3022
    %3024 = vadd.xlane.f32.xlu0 %v2897
    %v3025 = vpop.xlane.xlu0 %3024
    %3026 = vadd.xlane.f32.xlu0 %v2899
    %v3027 = vpop.xlane.xlu0 %3026
    %3028 = vadd.xlane.f32.xlu0 %v2901
    %v3029 = vpop.xlane.xlu0 %3028
    %3030 = vadd.xlane.f32.xlu0 %v2903
    %v3031 = vpop.xlane.xlu0 %3030
    %3032 = vadd.xlane.f32.xlu0 %v2905
    %v3033 = vpop.xlane.xlu0 %3032
    %3034 = vadd.xlane.f32.xlu0 %v2907
    %v3035 = vpop.xlane.xlu0 %3034
    %3036 = vadd.xlane.f32.xlu0 %v2909
    %v3037 = vpop.xlane.xlu0 %3036
    %3038 = vadd.xlane.f32.xlu0 %v2911
    %v3039 = vpop.xlane.xlu0 %3038
    %3040 = vadd.xlane.f32.xlu0 %v2913
    %v3041 = vpop.xlane.xlu0 %3040
    %3042 = vadd.xlane.f32.xlu0 %v2915
    %v3043 = vpop.xlane.xlu0 %3042
    %v3044 = vrcp.pop %v2917
    %v3045 = vrcp.pop %v2919
    %v3046 = vrcp.pop %v2921
    %v3047 = vrcp.pop %v2923
    %v3048 = vrcp.pop %v2925
    %v3049 = vrcp.pop %v2927
    %v3050 = vrcp.pop %v2929
    %v3051 = vrcp.pop %v2931
    %v3052 = vrcp.pop %v2933
    %v3053 = vrcp.pop %v2935
    %v3054 = vrcp.pop %v2937
    %v3055 = vrcp.pop %v2939
    %v3056 = vrcp.pop %v2941
    %v3057 = vrcp.pop %v2943
    %v3058 = vrcp.pop %v2945
    %v3059 = vrcp.pop %v2947
    %v3060 = vrcp.pop %v2949
    %v3061 = vrcp.pop %v2951
    %v3062 = vrcp.pop %v2953
    %v3063 = vrcp.pop %v2955
    %v3064 = vrcp.pop %v2957
    %v3065 = vrcp.pop %v2959
    %v3066 = vrcp.pop %v2961
    %v3067 = vrcp.pop %v2963
    %v3068 = vrcp.pop %v2965
    %v3069 = vrcp.pop %v2967
    %v3070 = vrcp.pop %v2969
    %v3071 = vrcp.pop %v2971
    %v3072 = vrcp.pop %v2973
    %v3073 = vrcp.pop %v2975
    %v3074 = vrcp.pop %v2977
    %v3075 = vrcp.pop %v2979
    %v3076 = vrcp.pop %v2981
    %v3077 = vrcp.pop %v2983
    %v3078 = vrcp.pop %v2985
    %v3079 = vrcp.pop %v2987
    %v3080 = vrcp.pop %v2989
    %v3081 = vrcp.pop %v2991
    %v3082 = vrcp.pop %v2993
    %v3083 = vrcp.pop %v2995
    %v3084 = vrcp.pop %v2997
    %v3085 = vrcp.pop %v2999
    %v3086 = vrcp.pop %v3001
    %v3087 = vrcp.pop %v3003
    %v3088 = vrcp.pop %v3005
    %v3089 = vrcp.pop %v3007
    %v3090 = vrcp.pop %v3009
    %v3091 = vrcp.pop %v3011
    %v3092 = vrcp.pop %v3013
    %v3093 = vrcp.pop %v3015
    %v3094 = vrcp.pop %v3017
    %v3095 = vrcp.pop %v3019
    %v3096 = vrcp.pop %v3021
    %v3097 = vrcp.pop %v3023
    %v3098 = vrcp.pop %v3025
    %v3099 = vrcp.pop %v3027
    %v3100 = vrcp.pop %v3029
    %v3101 = vrcp.pop %v3031
    %v3102 = vrcp.pop %v3033
    %v3103 = vrcp.pop %v3035
    %v3104 = vrcp.pop %v3037
    %v3105 = vrcp.pop %v3039
    %v3106 = vrcp.pop %v3041
    %v3107 = vrcp.pop %v3043
    %v3108 = vmul.f32 %v2789, %v3044
    %v3109 = vmul.f32 %v2791, %v3045
    %v3110 = vmul.f32 %v2793, %v3046
    %v3111 = vmul.f32 %v2795, %v3047
    %v3112 = vmul.f32 %v2797, %v3048
    %v3113 = vmul.f32 %v2799, %v3049
    %v3114 = vmul.f32 %v2801, %v3050
    %v3115 = vmul.f32 %v2803, %v3051
    %v3116 = vmul.f32 %v2805, %v3052
    %v3117 = vmul.f32 %v2807, %v3053
    %v3118 = vmul.f32 %v2809, %v3054
    %v3119 = vmul.f32 %v2811, %v3055
    %v3120 = vmul.f32 %v2813, %v3056
    %v3121 = vmul.f32 %v2815, %v3057
    %v3122 = vmul.f32 %v2817, %v3058
    %v3123 = vmul.f32 %v2819, %v3059
    %v3124 = vmul.f32 %v2821, %v3060
    %v3125 = vmul.f32 %v2823, %v3061
    %v3126 = vmul.f32 %v2825, %v3062
    %v3127 = vmul.f32 %v2827, %v3063
    %v3128 = vmul.f32 %v2829, %v3064
    %v3129 = vmul.f32 %v2831, %v3065
    %v3130 = vmul.f32 %v2833, %v3066
    %v3131 = vmul.f32 %v2835, %v3067
    %v3132 = vmul.f32 %v2837, %v3068
    %v3133 = vmul.f32 %v2839, %v3069
    %v3134 = vmul.f32 %v2841, %v3070
    %v3135 = vmul.f32 %v2843, %v3071
    %v3136 = vmul.f32 %v2845, %v3072
    %v3137 = vmul.f32 %v2847, %v3073
    %v3138 = vmul.f32 %v2849, %v3074
    %v3139 = vmul.f32 %v2851, %v3075
    %v3140 = vmul.f32 %v2853, %v3076
    %v3141 = vmul.f32 %v2855, %v3077
    %v3142 = vmul.f32 %v2857, %v3078
    %v3143 = vmul.f32 %v2859, %v3079
    %v3144 = vmul.f32 %v2861, %v3080
    %v3145 = vmul.f32 %v2863, %v3081
    %v3146 = vmul.f32 %v2865, %v3082
    %v3147 = vmul.f32 %v2867, %v3083
    %v3148 = vmul.f32 %v2869, %v3084
    %v3149 = vmul.f32 %v2871, %v3085
    %v3150 = vmul.f32 %v2873, %v3086
    %v3151 = vmul.f32 %v2875, %v3087
    %v3152 = vmul.f32 %v2877, %v3088
    %v3153 = vmul.f32 %v2879, %v3089
    %v3154 = vmul.f32 %v2881, %v3090
    %v3155 = vmul.f32 %v2883, %v3091
    %v3156 = vmul.f32 %v2885, %v3092
    %v3157 = vmul.f32 %v2887, %v3093
    %v3158 = vmul.f32 %v2889, %v3094
    %v3159 = vmul.f32 %v2891, %v3095
    %v3160 = vmul.f32 %v2893, %v3096
    %v3161 = vmul.f32 %v2895, %v3097
    %v3162 = vmul.f32 %v2897, %v3098
    %v3163 = vmul.f32 %v2899, %v3099
    %v3164 = vmul.f32 %v2901, %v3100
    %v3165 = vmul.f32 %v2903, %v3101
    %v3166 = vmul.f32 %v2905, %v3102
    %v3167 = vmul.f32 %v2907, %v3103
    %v3168 = vmul.f32 %v2909, %v3104
    %v3169 = vmul.f32 %v2911, %v3105
    %v3170 = vmul.f32 %v2913, %v3106
    %v3171 = vmul.f32 %v2915, %v3107
    %v3172 = vpack.c.bf16 %v3109, %v3108
    %v3173 = vpack.c.bf16 %v3111, %v3110
    %v3174 = vpack.c.bf16 %v3113, %v3112
    %v3175 = vpack.c.bf16 %v3115, %v3114
    %v3176 = vpack.c.bf16 %v3117, %v3116
    %v3177 = vpack.c.bf16 %v3119, %v3118
    %v3178 = vpack.c.bf16 %v3121, %v3120
    %v3179 = vpack.c.bf16 %v3123, %v3122
    %v3180 = vpack.c.bf16 %v3125, %v3124
    %v3181 = vpack.c.bf16 %v3127, %v3126
    %v3182 = vpack.c.bf16 %v3129, %v3128
    %v3183 = vpack.c.bf16 %v3131, %v3130
    %v3184 = vpack.c.bf16 %v3133, %v3132
    %v3185 = vpack.c.bf16 %v3135, %v3134
    %v3186 = vpack.c.bf16 %v3137, %v3136
    %v3187 = vpack.c.bf16 %v3139, %v3138
    %v3188 = vpack.c.bf16 %v3141, %v3140
    %v3189 = vpack.c.bf16 %v3143, %v3142
    %v3190 = vpack.c.bf16 %v3145, %v3144
    %v3191 = vpack.c.bf16 %v3147, %v3146
    %v3192 = vpack.c.bf16 %v3149, %v3148
    %v3193 = vpack.c.bf16 %v3151, %v3150
    %v3194 = vpack.c.bf16 %v3153, %v3152
    %v3195 = vpack.c.bf16 %v3155, %v3154
    %v3196 = vpack.c.bf16 %v3157, %v3156
    %v3197 = vpack.c.bf16 %v3159, %v3158
    %v3198 = vpack.c.bf16 %v3161, %v3160
    %v3199 = vpack.c.bf16 %v3163, %v3162
    %v3200 = vpack.c.bf16 %v3165, %v3164
    %v3201 = vpack.c.bf16 %v3167, %v3166
    %v3202 = vpack.c.bf16 %v3169, %v3168
    %v3203 = vpack.c.bf16 %v3171, %v3170
    %3204 = vmatprep.subr.bf16.mxu0 0
    %3205 = vmatpush1.bf16.msra.mxu0 %v1801
    %3206 = vmatprep.subr.bf16.mxu0 0
    %3207 = vmatpush1.bf16.msra.mxu0 %v1804
    %3208 = vmatprep.subr.bf16.mxu0 0
    %3209 = vmatpush1.bf16.msra.mxu0 %v1807
    %3210 = vmatprep.subr.bf16.mxu0 0
    %3211 = vmatpush1.bf16.msra.mxu0 %v1810
    %3212 = vmatprep.subr.bf16.mxu0 0
    %3213 = vmatpush1.bf16.msra.mxu0 %v1813
    %3214 = vmatprep.subr.bf16.mxu0 0
    %3215 = vmatpush1.bf16.msra.mxu0 %v1816
    %3216 = vmatprep.subr.bf16.mxu0 0
    %3217 = vmatpush1.bf16.msra.mxu0 %v1819
    %3218 = vmatprep.subr.bf16.mxu0 0
    %3219 = vmatpush1.bf16.msra.mxu0 %v1822
    %3220 = vmatprep.subr.bf16.mxu0 0
    %3221 = vmatpush1.bf16.msra.mxu0 0
    %3222 = vmatprep.subr.bf16.mxu0 0
    %3223 = vmatpush1.bf16.msra.mxu0 0
    %3224 = vmatprep.subr.bf16.mxu0 0
    %3225 = vmatpush1.bf16.msra.mxu0 0
    %3226 = vmatprep.subr.bf16.mxu0 0
    %3227 = vmatpush1.bf16.msra.mxu0 0
    %3228 = vmatprep.subr.bf16.mxu0 0
    %3229 = vmatpush1.bf16.msra.mxu0 0
    %3230 = vmatprep.subr.bf16.mxu0 0
    %3231 = vmatpush1.bf16.msra.mxu0 0
    %3232 = vmatprep.subr.bf16.mxu0 0
    %3233 = vmatpush1.bf16.msra.mxu0 0
    %3234 = vmatprep.subr.bf16.mxu0 0
    %3235 = vmatpush1.bf16.msra.mxu0 0
    %3236 = vmatprep.mubr.bf16.mxu0 0
    %3237 = vmatmul.mubr.bf16.gmra.mrb[0].mxu0 %v3172
    %v3238 = vpop.f32.mrb[0].mxu0
    %v3239 = vadd.f32 0.0, %v3238
    %v3240 = vpop.f32.mrb[0].mxu0
    %v3241 = vpop.f32.mrb[0].mxu0
    %v3242 = vadd.f32 0.0, %v3241
    %v3243 = vpop.f32.mrb[0].mxu0
    %3244 = vmatprep.mubr.bf16.mxu0 0
    %3245 = vmatmul.mubr.bf16.gmra.mrb[0].mxu0 %v3173
    %v3246 = vpop.f32.mrb[0].mxu0
    %v3247 = vadd.f32 0.0, %v3246
    %v3248 = vpop.f32.mrb[0].mxu0
    %v3249 = vpop.f32.mrb[0].mxu0
    %v3250 = vadd.f32 0.0, %v3249
    %v3251 = vpop.f32.mrb[0].mxu0
    %3252 = vmatprep.mubr.bf16.mxu0 0
    %3253 = vmatmul.mubr.bf16.gmra.mrb[0].mxu0 %v3174
    %v3254 = vpop.f32.mrb[0].mxu0
    %v3255 = vadd.f32 0.0, %v3254
    %v3256 = vpop.f32.mrb[0].mxu0
    %v3257 = vpop.f32.mrb[0].mxu0
    %v3258 = vadd.f32 0.0, %v3257
    %v3259 = vpop.f32.mrb[0].mxu0
    %3260 = vmatprep.mubr.bf16.mxu0 0
    %3261 = vmatmul.mubr.bf16.gmra.mrb[0].mxu0 %v3175
    %v3262 = vpop.f32.mrb[0].mxu0
    %v3263 = vadd.f32 0.0, %v3262
    %v3264 = vpop.f32.mrb[0].mxu0
    %v3265 = vpop.f32.mrb[0].mxu0
    %v3266 = vadd.f32 0.0, %v3265
    %v3267 = vpop.f32.mrb[0].mxu0
    %3268 = vmatprep.mubr.bf16.mxu0 0
    %3269 = vmatmul.mubr.bf16.gmra.mrb[0].mxu0 %v3176
    %v3270 = vpop.f32.mrb[0].mxu0
    %v3271 = vadd.f32 0.0, %v3270
    %v3272 = vpop.f32.mrb[0].mxu0
    %v3273 = vpop.f32.mrb[0].mxu0
    %v3274 = vadd.f32 0.0, %v3273
    %v3275 = vpop.f32.mrb[0].mxu0
    %3276 = vmatprep.mubr.bf16.mxu0 0
    %3277 = vmatmul.mubr.bf16.gmra.mrb[0].mxu0 %v3177
    %v3278 = vpop.f32.mrb[0].mxu0
    %v3279 = vadd.f32 0.0, %v3278
    %v3280 = vpop.f32.mrb[0].mxu0
    %v3281 = vpop.f32.mrb[0].mxu0
    %v3282 = vadd.f32 0.0, %v3281
    %v3283 = vpop.f32.mrb[0].mxu0
    %3284 = vmatprep.mubr.bf16.mxu0 0
    %3285 = vmatmul.mubr.bf16.gmra.mrb[0].mxu0 %v3178
    %v3286 = vpop.f32.mrb[0].mxu0
    %v3287 = vadd.f32 0.0, %v3286
    %v3288 = vpop.f32.mrb[0].mxu0
    %v3289 = vpop.f32.mrb[0].mxu0
    %v3290 = vadd.f32 0.0, %v3289
    %v3291 = vpop.f32.mrb[0].mxu0
    %3292 = vmatprep.mubr.bf16.mxu0 0
    %3293 = vmatmul.mubr.bf16.gmra.mrb[0].mxu0 %v3179
    %v3294 = vpop.f32.mrb[0].mxu0
    %v3295 = vadd.f32 0.0, %v3294
    %v3296 = vpop.f32.mrb[0].mxu0
    %v3297 = vpop.f32.mrb[0].mxu0
    %v3298 = vadd.f32 0.0, %v3297
    %v3299 = vpop.f32.mrb[0].mxu0
    %3300 = vdwg.mxu0
    %3301 = vmatprep.subr.bf16.mxu0 0
    %3302 = vmatpush1.bf16.msra.mxu0 %v1944
    %3303 = vmatprep.subr.bf16.mxu0 0
    %3304 = vmatpush1.bf16.msra.mxu0 %v1946
    %3305 = vmatprep.subr.bf16.mxu0 0
    %3306 = vmatpush1.bf16.msra.mxu0 %v1948
    %3307 = vmatprep.subr.bf16.mxu0 0
    %3308 = vmatpush1.bf16.msra.mxu0 %v1950
    %3309 = vmatprep.subr.bf16.mxu0 0
    %3310 = vmatpush1.bf16.msra.mxu0 %v1952
    %3311 = vmatprep.subr.bf16.mxu0 0
    %3312 = vmatpush1.bf16.msra.mxu0 %v1954
    %3313 = vmatprep.subr.bf16.mxu0 0
    %3314 = vmatpush1.bf16.msra.mxu0 %v1956
    %3315 = vmatprep.subr.bf16.mxu0 0
    %3316 = vmatpush1.bf16.msra.mxu0 %v1958
    %3317 = vmatprep.subr.bf16.mxu0 0
    %3318 = vmatpush1.bf16.msra.mxu0 0
    %3319 = vmatprep.subr.bf16.mxu0 0
    %3320 = vmatpush1.bf16.msra.mxu0 0
    %3321 = vmatprep.subr.bf16.mxu0 0
    %3322 = vmatpush1.bf16.msra.mxu0 0
    %3323 = vmatprep.subr.bf16.mxu0 0
    %3324 = vmatpush1.bf16.msra.mxu0 0
    %3325 = vmatprep.subr.bf16.mxu0 0
    %3326 = vmatpush1.bf16.msra.mxu0 0
    %3327 = vmatprep.subr.bf16.mxu0 0
    %3328 = vmatpush1.bf16.msra.mxu0 0
    %3329 = vmatprep.subr.bf16.mxu0 0
    %3330 = vmatpush1.bf16.msra.mxu0 0
    %3331 = vmatprep.subr.bf16.mxu0 0
    %3332 = vmatpush1.bf16.msra.mxu0 0
    %3333 = vmatprep.mubr.bf16.mxu0 0
    %3334 = vmatmul.mubr.bf16.gmra.mrb[0].mxu0 %v3180
    %v3335 = vpop.f32.mrb[0].mxu0
    %v3336 = vadd.f32 0.0, %v3335
    %v3337 = vpop.f32.mrb[0].mxu0
    %v3338 = vpop.f32.mrb[0].mxu0
    %v3339 = vadd.f32 0.0, %v3338
    %v3340 = vpop.f32.mrb[0].mxu0
    %3341 = vmatprep.mubr.bf16.mxu0 0
    %3342 = vmatmul.mubr.bf16.gmra.mrb[0].mxu0 %v3181
    %v3343 = vpop.f32.mrb[0].mxu0
    %v3344 = vadd.f32 0.0, %v3343
    %v3345 = vpop.f32.mrb[0].mxu0
    %v3346 = vpop.f32.mrb[0].mxu0
    %v3347 = vadd.f32 0.0, %v3346
    %v3348 = vpop.f32.mrb[0].mxu0
    %3349 = vmatprep.mubr.bf16.mxu0 0
    %3350 = vmatmul.mubr.bf16.gmra.mrb[0].mxu0 %v3182
    %v3351 = vpop.f32.mrb[0].mxu0
    %v3352 = vadd.f32 0.0, %v3351
    %v3353 = vpop.f32.mrb[0].mxu0
    %v3354 = vpop.f32.mrb[0].mxu0
    %v3355 = vadd.f32 0.0, %v3354
    %v3356 = vpop.f32.mrb[0].mxu0
    %3357 = vmatprep.mubr.bf16.mxu0 0
    %3358 = vmatmul.mubr.bf16.gmra.mrb[0].mxu0 %v3183
    %v3359 = vpop.f32.mrb[0].mxu0
    %v3360 = vadd.f32 0.0, %v3359
    %v3361 = vpop.f32.mrb[0].mxu0
    %v3362 = vpop.f32.mrb[0].mxu0
    %v3363 = vadd.f32 0.0, %v3362
    %v3364 = vpop.f32.mrb[0].mxu0
    %3365 = vmatprep.mubr.bf16.mxu0 0
    %3366 = vmatmul.mubr.bf16.gmra.mrb[0].mxu0 %v3184
    %v3367 = vpop.f32.mrb[0].mxu0
    %v3368 = vadd.f32 0.0, %v3367
    %v3369 = vpop.f32.mrb[0].mxu0
    %v3370 = vpop.f32.mrb[0].mxu0
    %v3371 = vadd.f32 0.0, %v3370
    %v3372 = vpop.f32.mrb[0].mxu0
    %3373 = vmatprep.mubr.bf16.mxu0 0
    %3374 = vmatmul.mubr.bf16.gmra.mrb[0].mxu0 %v3185
    %v3375 = vpop.f32.mrb[0].mxu0
    %v3376 = vadd.f32 0.0, %v3375
    %v3377 = vpop.f32.mrb[0].mxu0
    %v3378 = vpop.f32.mrb[0].mxu0
    %v3379 = vadd.f32 0.0, %v3378
    %v3380 = vpop.f32.mrb[0].mxu0
    %3381 = vmatprep.mubr.bf16.mxu0 0
    %3382 = vmatmul.mubr.bf16.gmra.mrb[0].mxu0 %v3186
    %v3383 = vpop.f32.mrb[0].mxu0
    %v3384 = vadd.f32 0.0, %v3383
    %v3385 = vpop.f32.mrb[0].mxu0
    %v3386 = vpop.f32.mrb[0].mxu0
    %v3387 = vadd.f32 0.0, %v3386
    %v3388 = vpop.f32.mrb[0].mxu0
    %3389 = vmatprep.mubr.bf16.mxu0 0
    %3390 = vmatmul.mubr.bf16.gmra.mrb[0].mxu0 %v3187
    %v3391 = vpop.f32.mrb[0].mxu0
    %v3392 = vadd.f32 0.0, %v3391
    %v3393 = vpop.f32.mrb[0].mxu0
    %v3394 = vpop.f32.mrb[0].mxu0
    %v3395 = vadd.f32 0.0, %v3394
    %v3396 = vpop.f32.mrb[0].mxu0
    %3397 = vdwg.mxu0
    %3398 = vmatprep.subr.bf16.mxu0 0
    %3399 = vmatpush1.bf16.msra.mxu0 %v1968
    %3400 = vmatprep.subr.bf16.mxu0 0
    %3401 = vmatpush1.bf16.msra.mxu0 %v1970
    %3402 = vmatprep.subr.bf16.mxu0 0
    %3403 = vmatpush1.bf16.msra.mxu0 %v1972
    %3404 = vmatprep.subr.bf16.mxu0 0
    %3405 = vmatpush1.bf16.msra.mxu0 %v1974
    %3406 = vmatprep.subr.bf16.mxu0 0
    %3407 = vmatpush1.bf16.msra.mxu0 %v1976
    %3408 = vmatprep.subr.bf16.mxu0 0
    %3409 = vmatpush1.bf16.msra.mxu0 %v1978
    %3410 = vmatprep.subr.bf16.mxu0 0
    %3411 = vmatpush1.bf16.msra.mxu0 %v1980
    %3412 = vmatprep.subr.bf16.mxu0 0
    %3413 = vmatpush1.bf16.msra.mxu0 %v1982
    %3414 = vmatprep.subr.bf16.mxu0 0
    %3415 = vmatpush1.bf16.msra.mxu0 0
    %3416 = vmatprep.subr.bf16.mxu0 0
    %3417 = vmatpush1.bf16.msra.mxu0 0
    %3418 = vmatprep.subr.bf16.mxu0 0
    %3419 = vmatpush1.bf16.msra.mxu0 0
    %3420 = vmatprep.subr.bf16.mxu0 0
    %3421 = vmatpush1.bf16.msra.mxu0 0
    %3422 = vmatprep.subr.bf16.mxu0 0
    %3423 = vmatpush1.bf16.msra.mxu0 0
    %3424 = vmatprep.subr.bf16.mxu0 0
    %3425 = vmatpush1.bf16.msra.mxu0 0
    %3426 = vmatprep.subr.bf16.mxu0 0
    %3427 = vmatpush1.bf16.msra.mxu0 0
    %3428 = vmatprep.subr.bf16.mxu0 0
    %3429 = vmatpush1.bf16.msra.mxu0 0
    %3430 = vmatprep.mubr.bf16.mxu0 0
    %3431 = vmatmul.mubr.bf16.gmra.mrb[0].mxu0 %v3188
    %v3432 = vpop.f32.mrb[0].mxu0
    %v3433 = vadd.f32 0.0, %v3432
    %v3434 = vpop.f32.mrb[0].mxu0
    %v3435 = vpop.f32.mrb[0].mxu0
    %v3436 = vadd.f32 0.0, %v3435
    %v3437 = vpop.f32.mrb[0].mxu0
    %3438 = vmatprep.mubr.bf16.mxu0 0
    %3439 = vmatmul.mubr.bf16.gmra.mrb[0].mxu0 %v3189
    %v3440 = vpop.f32.mrb[0].mxu0
    %v3441 = vadd.f32 0.0, %v3440
    %v3442 = vpop.f32.mrb[0].mxu0
    %v3443 = vpop.f32.mrb[0].mxu0
    %v3444 = vadd.f32 0.0, %v3443
    %v3445 = vpop.f32.mrb[0].mxu0
    %3446 = vmatprep.mubr.bf16.mxu0 0
    %3447 = vmatmul.mubr.bf16.gmra.mrb[0].mxu0 %v3190
    %v3448 = vpop.f32.mrb[0].mxu0
    %v3449 = vadd.f32 0.0, %v3448
    %v3450 = vpop.f32.mrb[0].mxu0
    %v3451 = vpop.f32.mrb[0].mxu0
    %v3452 = vadd.f32 0.0, %v3451
    %v3453 = vpop.f32.mrb[0].mxu0
    %3454 = vmatprep.mubr.bf16.mxu0 0
    %3455 = vmatmul.mubr.bf16.gmra.mrb[0].mxu0 %v3191
    %v3456 = vpop.f32.mrb[0].mxu0
    %v3457 = vadd.f32 0.0, %v3456
    %v3458 = vpop.f32.mrb[0].mxu0
    %v3459 = vpop.f32.mrb[0].mxu0
    %v3460 = vadd.f32 0.0, %v3459
    %v3461 = vpop.f32.mrb[0].mxu0
    %3462 = vmatprep.mubr.bf16.mxu0 0
    %3463 = vmatmul.mubr.bf16.gmra.mrb[0].mxu0 %v3192
    %v3464 = vpop.f32.mrb[0].mxu0
    %v3465 = vadd.f32 0.0, %v3464
    %v3466 = vpop.f32.mrb[0].mxu0
    %v3467 = vpop.f32.mrb[0].mxu0
    %v3468 = vadd.f32 0.0, %v3467
    %v3469 = vpop.f32.mrb[0].mxu0
    %3470 = vmatprep.mubr.bf16.mxu0 0
    %3471 = vmatmul.mubr.bf16.gmra.mrb[0].mxu0 %v3193
    %v3472 = vpop.f32.mrb[0].mxu0
    %v3473 = vadd.f32 0.0, %v3472
    %v3474 = vpop.f32.mrb[0].mxu0
    %v3475 = vpop.f32.mrb[0].mxu0
    %v3476 = vadd.f32 0.0, %v3475
    %v3477 = vpop.f32.mrb[0].mxu0
    %3478 = vmatprep.mubr.bf16.mxu0 0
    %3479 = vmatmul.mubr.bf16.gmra.mrb[0].mxu0 %v3194
    %v3480 = vpop.f32.mrb[0].mxu0
    %v3481 = vadd.f32 0.0, %v3480
    %v3482 = vpop.f32.mrb[0].mxu0
    %v3483 = vpop.f32.mrb[0].mxu0
    %v3484 = vadd.f32 0.0, %v3483
    %v3485 = vpop.f32.mrb[0].mxu0
    %3486 = vmatprep.mubr.bf16.mxu0 0
    %3487 = vmatmul.mubr.bf16.gmra.mrb[0].mxu0 %v3195
    %v3488 = vpop.f32.mrb[0].mxu0
    %v3489 = vadd.f32 0.0, %v3488
    %v3490 = vpop.f32.mrb[0].mxu0
    %v3491 = vpop.f32.mrb[0].mxu0
    %v3492 = vadd.f32 0.0, %v3491
    %v3493 = vpop.f32.mrb[0].mxu0
    %3494 = vdwg.mxu0
    %3495 = vmatprep.subr.bf16.mxu0 0
    %3496 = vmatpush1.bf16.msra.mxu0 %v1992
    %3497 = vmatprep.subr.bf16.mxu0 0
    %3498 = vmatpush1.bf16.msra.mxu0 %v1994
    %3499 = vmatprep.subr.bf16.mxu0 0
    %3500 = vmatpush1.bf16.msra.mxu0 %v1996
    %3501 = vmatprep.subr.bf16.mxu0 0
    %3502 = vmatpush1.bf16.msra.mxu0 %v1998
    %3503 = vmatprep.subr.bf16.mxu0 0
    %3504 = vmatpush1.bf16.msra.mxu0 %v2000
    %3505 = vmatprep.subr.bf16.mxu0 0
    %3506 = vmatpush1.bf16.msra.mxu0 %v2002
    %3507 = vmatprep.subr.bf16.mxu0 0
    %3508 = vmatpush1.bf16.msra.mxu0 %v2004
    %3509 = vmatprep.subr.bf16.mxu0 0
    %3510 = vmatpush1.bf16.msra.mxu0 %v2006
    %3511 = vmatprep.subr.bf16.mxu0 0
    %3512 = vmatpush1.bf16.msra.mxu0 0
    %3513 = vmatprep.subr.bf16.mxu0 0
    %3514 = vmatpush1.bf16.msra.mxu0 0
    %3515 = vmatprep.subr.bf16.mxu0 0
    %3516 = vmatpush1.bf16.msra.mxu0 0
    %3517 = vmatprep.subr.bf16.mxu0 0
    %3518 = vmatpush1.bf16.msra.mxu0 0
    %3519 = vmatprep.subr.bf16.mxu0 0
    %3520 = vmatpush1.bf16.msra.mxu0 0
    %3521 = vmatprep.subr.bf16.mxu0 0
    %3522 = vmatpush1.bf16.msra.mxu0 0
    %3523 = vmatprep.subr.bf16.mxu0 0
    %3524 = vmatpush1.bf16.msra.mxu0 0
    %3525 = vmatprep.subr.bf16.mxu0 0
    %3526 = vmatpush1.bf16.msra.mxu0 0
    %3527 = vmatprep.mubr.bf16.mxu0 0
    %3528 = vmatmul.mubr.bf16.gmra.mrb[0].mxu0 %v3196
    %v3529 = vpop.f32.mrb[0].mxu0
    %v3530 = vadd.f32 0.0, %v3529
    %v3531 = vpop.f32.mrb[0].mxu0
    %v3532 = vpop.f32.mrb[0].mxu0
    %v3533 = vadd.f32 0.0, %v3532
    %v3534 = vpop.f32.mrb[0].mxu0
    %3535 = vmatprep.mubr.bf16.mxu0 0
    %3536 = vmatmul.mubr.bf16.gmra.mrb[0].mxu0 %v3197
    %v3537 = vpop.f32.mrb[0].mxu0
    %v3538 = vadd.f32 0.0, %v3537
    %v3539 = vpop.f32.mrb[0].mxu0
    %v3540 = vpop.f32.mrb[0].mxu0
    %v3541 = vadd.f32 0.0, %v3540
    %v3542 = vpop.f32.mrb[0].mxu0
    %3543 = vmatprep.mubr.bf16.mxu0 0
    %3544 = vmatmul.mubr.bf16.gmra.mrb[0].mxu0 %v3198
    %v3545 = vpop.f32.mrb[0].mxu0
    %v3546 = vadd.f32 0.0, %v3545
    %v3547 = vpop.f32.mrb[0].mxu0
    %v3548 = vpop.f32.mrb[0].mxu0
    %v3549 = vadd.f32 0.0, %v3548
    %v3550 = vpop.f32.mrb[0].mxu0
    %3551 = vmatprep.mubr.bf16.mxu0 0
    %3552 = vmatmul.mubr.bf16.gmra.mrb[0].mxu0 %v3199
    %v3553 = vpop.f32.mrb[0].mxu0
    %v3554 = vadd.f32 0.0, %v3553
    %v3555 = vpop.f32.mrb[0].mxu0
    %v3556 = vpop.f32.mrb[0].mxu0
    %v3557 = vadd.f32 0.0, %v3556
    %v3558 = vpop.f32.mrb[0].mxu0
    %3559 = vmatprep.mubr.bf16.mxu0 0
    %3560 = vmatmul.mubr.bf16.gmra.mrb[0].mxu0 %v3200
    %v3561 = vpop.f32.mrb[0].mxu0
    %v3562 = vadd.f32 0.0, %v3561
    %v3563 = vpop.f32.mrb[0].mxu0
    %v3564 = vpop.f32.mrb[0].mxu0
    %v3565 = vadd.f32 0.0, %v3564
    %v3566 = vpop.f32.mrb[0].mxu0
    %3567 = vmatprep.mubr.bf16.mxu0 0
    %3568 = vmatmul.mubr.bf16.gmra.mrb[0].mxu0 %v3201
    %v3569 = vpop.f32.mrb[0].mxu0
    %v3570 = vadd.f32 0.0, %v3569
    %v3571 = vpop.f32.mrb[0].mxu0
    %v3572 = vpop.f32.mrb[0].mxu0
    %v3573 = vadd.f32 0.0, %v3572
    %v3574 = vpop.f32.mrb[0].mxu0
    %3575 = vmatprep.mubr.bf16.mxu0 0
    %3576 = vmatmul.mubr.bf16.gmra.mrb[0].mxu0 %v3202
    %v3577 = vpop.f32.mrb[0].mxu0
    %v3578 = vadd.f32 0.0, %v3577
    %v3579 = vpop.f32.mrb[0].mxu0
    %v3580 = vpop.f32.mrb[0].mxu0
    %v3581 = vadd.f32 0.0, %v3580
    %v3582 = vpop.f32.mrb[0].mxu0
    %3583 = vmatprep.mubr.bf16.mxu0 0
    %3584 = vmatmul.mubr.bf16.gmra.mrb[0].mxu0 %v3203
    %v3585 = vpop.f32.mrb[0].mxu0
    %v3586 = vadd.f32 0.0, %v3585
    %v3587 = vpop.f32.mrb[0].mxu0
    %v3588 = vpop.f32.mrb[0].mxu0
    %v3589 = vadd.f32 0.0, %v3588
    %v3590 = vpop.f32.mrb[0].mxu0
    %3591 = vdwg.mxu0
    %3608 = vrot.lane.b32.xlu0 %v3336, 32
    %v3609 = vpop.permute.xlu0 %3608
    %3610 = vrot.lane.b32.xlu0 %v3339, 32
    %v3611 = vpop.permute.xlu0 %3610
    %3612 = vrot.lane.b32.xlu0 %v3344, 32
    %v3613 = vpop.permute.xlu0 %3612
    %3614 = vrot.lane.b32.xlu0 %v3347, 32
    %v3615 = vpop.permute.xlu0 %3614
    %3616 = vrot.lane.b32.xlu0 %v3352, 32
    %v3617 = vpop.permute.xlu0 %3616
    %3618 = vrot.lane.b32.xlu0 %v3355, 32
    %v3619 = vpop.permute.xlu0 %3618
    %3620 = vrot.lane.b32.xlu0 %v3360, 32
    %v3621 = vpop.permute.xlu0 %3620
    %3622 = vrot.lane.b32.xlu0 %v3363, 32
    %v3623 = vpop.permute.xlu0 %3622
    %3624 = vrot.lane.b32.xlu0 %v3368, 32
    %v3625 = vpop.permute.xlu0 %3624
    %3626 = vrot.lane.b32.xlu0 %v3371, 32
    %v3627 = vpop.permute.xlu0 %3626
    %3628 = vrot.lane.b32.xlu0 %v3376, 32
    %v3629 = vpop.permute.xlu0 %3628
    %3630 = vrot.lane.b32.xlu0 %v3379, 32
    %v3631 = vpop.permute.xlu0 %3630
    %3632 = vrot.lane.b32.xlu0 %v3384, 32
    %v3633 = vpop.permute.xlu0 %3632
    %3634 = vrot.lane.b32.xlu0 %v3387, 32
    %v3635 = vpop.permute.xlu0 %3634
    %3636 = vrot.lane.b32.xlu0 %v3392, 32
    %v3637 = vpop.permute.xlu0 %3636
    %3638 = vrot.lane.b32.xlu0 %v3395, 32
    %v3639 = vpop.permute.xlu0 %3638
    %3672 = vrot.lane.b32.xlu0 %v3433, 64
    %v3673 = vpop.permute.xlu0 %3672
    %3674 = vrot.lane.b32.xlu0 %v3436, 64
    %v3675 = vpop.permute.xlu0 %3674
    %3676 = vrot.lane.b32.xlu0 %v3441, 64
    %v3677 = vpop.permute.xlu0 %3676
    %3678 = vrot.lane.b32.xlu0 %v3444, 64
    %v3679 = vpop.permute.xlu0 %3678
    %3680 = vrot.lane.b32.xlu0 %v3449, 64
    %v3681 = vpop.permute.xlu0 %3680
    %3682 = vrot.lane.b32.xlu0 %v3452, 64
    %v3683 = vpop.permute.xlu0 %3682
    %3684 = vrot.lane.b32.xlu0 %v3457, 64
    %v3685 = vpop.permute.xlu0 %3684
    %3686 = vrot.lane.b32.xlu0 %v3460, 64
    %v3687 = vpop.permute.xlu0 %3686
    %3688 = vrot.lane.b32.xlu0 %v3465, 64
    %v3689 = vpop.permute.xlu0 %3688
    %3690 = vrot.lane.b32.xlu0 %v3468, 64
    %v3691 = vpop.permute.xlu0 %3690
    %3692 = vrot.lane.b32.xlu0 %v3473, 64
    %v3693 = vpop.permute.xlu0 %3692
    %3694 = vrot.lane.b32.xlu0 %v3476, 64
    %v3695 = vpop.permute.xlu0 %3694
    %3696 = vrot.lane.b32.xlu0 %v3481, 64
    %v3697 = vpop.permute.xlu0 %3696
    %3698 = vrot.lane.b32.xlu0 %v3484, 64
    %v3699 = vpop.permute.xlu0 %3698
    %3700 = vrot.lane.b32.xlu0 %v3489, 64
    %v3701 = vpop.permute.xlu0 %3700
    %3702 = vrot.lane.b32.xlu0 %v3492, 64
    %v3703 = vpop.permute.xlu0 %3702
    %3736 = vrot.lane.b32.xlu0 %v3530, 96
    %v3737 = vpop.permute.xlu0 %3736
    %3738 = vrot.lane.b32.xlu0 %v3533, 96
    %v3739 = vpop.permute.xlu0 %3738
    %3740 = vrot.lane.b32.xlu0 %v3538, 96
    %v3741 = vpop.permute.xlu0 %3740
    %3742 = vrot.lane.b32.xlu0 %v3541, 96
    %v3743 = vpop.permute.xlu0 %3742
    %3744 = vrot.lane.b32.xlu0 %v3546, 96
    %v3745 = vpop.permute.xlu0 %3744
    %3746 = vrot.lane.b32.xlu0 %v3549, 96
    %v3747 = vpop.permute.xlu0 %3746
    %3748 = vrot.lane.b32.xlu0 %v3554, 96
    %v3749 = vpop.permute.xlu0 %3748
    %3750 = vrot.lane.b32.xlu0 %v3557, 96
    %v3751 = vpop.permute.xlu0 %3750
    %3752 = vrot.lane.b32.xlu0 %v3562, 96
    %v3753 = vpop.permute.xlu0 %3752
    %3754 = vrot.lane.b32.xlu0 %v3565, 96
    %v3755 = vpop.permute.xlu0 %3754
    %3756 = vrot.lane.b32.xlu0 %v3570, 96
    %v3757 = vpop.permute.xlu0 %3756
    %3758 = vrot.lane.b32.xlu0 %v3573, 96
    %v3759 = vpop.permute.xlu0 %3758
    %3760 = vrot.lane.b32.xlu0 %v3578, 96
    %v3761 = vpop.permute.xlu0 %3760
    %3762 = vrot.lane.b32.xlu0 %v3581, 96
    %v3763 = vpop.permute.xlu0 %3762
    %3764 = vrot.lane.b32.xlu0 %v3586, 96
    %v3765 = vpop.permute.xlu0 %3764
    %3766 = vrot.lane.b32.xlu0 %v3589, 96
    %v3767 = vpop.permute.xlu0 %3766
    %v3784 = vsel %vm2015, %v3239, %v3609
    %v3785 = vsel %vm2015, %v3242, %v3611
    %v3786 = vsel %vm2015, %v3247, %v3613
    %v3787 = vsel %vm2015, %v3250, %v3615
    %v3788 = vsel %vm2015, %v3255, %v3617
    %v3789 = vsel %vm2015, %v3258, %v3619
    %v3790 = vsel %vm2015, %v3263, %v3621
    %v3791 = vsel %vm2015, %v3266, %v3623
    %v3792 = vsel %vm2015, %v3271, %v3625
    %v3793 = vsel %vm2015, %v3274, %v3627
    %v3794 = vsel %vm2015, %v3279, %v3629
    %v3795 = vsel %vm2015, %v3282, %v3631
    %v3796 = vsel %vm2015, %v3287, %v3633
    %v3797 = vsel %vm2015, %v3290, %v3635
    %v3798 = vsel %vm2015, %v3295, %v3637
    %v3799 = vsel %vm2015, %v3298, %v3639
    %vm3800 = vcmask 523264
    %v3801 = vsel %vm3800, %v3784, %v3673
    %v3802 = vsel %vm3800, %v3785, %v3675
    %v3803 = vsel %vm3800, %v3786, %v3677
    %v3804 = vsel %vm3800, %v3787, %v3679
    %v3805 = vsel %vm3800, %v3788, %v3681
    %v3806 = vsel %vm3800, %v3789, %v3683
    %v3807 = vsel %vm3800, %v3790, %v3685
    %v3808 = vsel %vm3800, %v3791, %v3687
    %v3809 = vsel %vm3800, %v3792, %v3689
    %v3810 = vsel %vm3800, %v3793, %v3691
    %v3811 = vsel %vm3800, %v3794, %v3693
    %v3812 = vsel %vm3800, %v3795, %v3695
    %v3813 = vsel %vm3800, %v3796, %v3697
    %v3814 = vsel %vm3800, %v3797, %v3699
    %v3815 = vsel %vm3800, %v3798, %v3701
    %v3816 = vsel %vm3800, %v3799, %v3703
    %vm3817 = vcmask 785408
    %v3818 = vsel %vm3817, %v3801, %v3737
    %v3819 = vsel %vm3817, %v3802, %v3739
    %v3820 = vsel %vm3817, %v3803, %v3741
    %v3821 = vsel %vm3817, %v3804, %v3743
    %v3822 = vsel %vm3817, %v3805, %v3745
    %v3823 = vsel %vm3817, %v3806, %v3747
    %v3824 = vsel %vm3817, %v3807, %v3749
    %v3825 = vsel %vm3817, %v3808, %v3751
    %v3826 = vsel %vm3817, %v3809, %v3753
    %v3827 = vsel %vm3817, %v3810, %v3755
    %v3828 = vsel %vm3817, %v3811, %v3757
    %v3829 = vsel %vm3817, %v3812, %v3759
    %v3830 = vsel %vm3817, %v3813, %v3761
    %v3831 = vsel %vm3817, %v3814, %v3763
    %v3832 = vsel %vm3817, %v3815, %v3765
    %v3833 = vsel %vm3817, %v3816, %v3767
    %v3834 = vpack.c.bf16 %v3819, %v3818
    %v3835 = vpack.c.bf16 %v3821, %v3820
    %v3836 = vpack.c.bf16 %v3823, %v3822
    %v3837 = vpack.c.bf16 %v3825, %v3824
    %v3838 = vpack.c.bf16 %v3827, %v3826
    %v3839 = vpack.c.bf16 %v3829, %v3828
    %v3840 = vpack.c.bf16 %v3831, %v3830
    %v3841 = vpack.c.bf16 %v3833, %v3832
    %v3842 = vld [vmem:[#allocation9] sm:$0xf]
    %v3843 = vld [vmem:[#allocation9 + $0x4] sm:$0xf]
    %v3844 = vld [vmem:[#allocation9 + $0x8] sm:$0xf]
    %v3845 = vld [vmem:[#allocation9 + $0xc] sm:$0xf]
    %v3846 = vld [vmem:[#allocation9 + $0x10] sm:$0xf]
    %v3847 = vld [vmem:[#allocation9 + $0x14] sm:$0xf]
    %v3848 = vld [vmem:[#allocation9 + $0x18] sm:$0xf]
    %v3849 = vld [vmem:[#allocation9 + $0x1c] sm:$0xf]
    %v3850 = vld [vmem:[#allocation9 + $0x20] sm:$0xf]
    %v3851 = vld [vmem:[#allocation9 + $0x24] sm:$0xf]
    %v3852 = vld [vmem:[#allocation9 + $0x28] sm:$0xf]
    %v3853 = vld [vmem:[#allocation9 + $0x2c] sm:$0xf]
    %v3854 = vld [vmem:[#allocation9 + $0x30] sm:$0xf]
    %v3855 = vld [vmem:[#allocation9 + $0x34] sm:$0xf]
    %v3856 = vld [vmem:[#allocation9 + $0x38] sm:$0xf]
    %v3857 = vld [vmem:[#allocation9 + $0x3c] sm:$0xf]
    %v3858 = vld [vmem:[#allocation10] sm:$0x1]
    %v3860 = vlaneseq
    %v3861 = vshrl.u32 %v3860, 7
    %v3862 = vsub.s32 0, %v3861
    %v3863 = vrot.slane %v3858, %v3862
    %v3881 = vunpack.c.l.b16 %v3842
    %v3882 = vunpack.c.l.b16 %v3843
    %v3883 = vunpack.c.l.b16 %v3844
    %v3884 = vunpack.c.l.b16 %v3845
    %v3885 = vunpack.c.l.b16 %v3846
    %v3886 = vunpack.c.l.b16 %v3847
    %v3887 = vunpack.c.l.b16 %v3848
    %v3888 = vunpack.c.l.b16 %v3849
    %v3889 = vunpack.c.l.b16 %v3850
    %v3890 = vunpack.c.l.b16 %v3851
    %v3891 = vunpack.c.l.b16 %v3852
    %v3892 = vunpack.c.l.b16 %v3853
    %v3893 = vunpack.c.l.b16 %v3854
    %v3894 = vunpack.c.l.b16 %v3855
    %v3895 = vunpack.c.l.b16 %v3856
    %v3896 = vunpack.c.l.b16 %v3857
    %v3897 = vpack.c.b16 %v3882, %v3881
    %v3898 = vpack.c.b16 %v3884, %v3883
    %v3899 = vpack.c.b16 %v3886, %v3885
    %v3900 = vpack.c.b16 %v3888, %v3887
    %v3901 = vpack.c.b16 %v3890, %v3889
    %v3902 = vpack.c.b16 %v3892, %v3891
    %v3903 = vpack.c.b16 %v3894, %v3893
    %v3904 = vpack.c.b16 %v3896, %v3895
    %3913 = vmatprep.subr.bf16.mxu0 0
    %3914 = vmatpush1.bf16.msra.mxu0 %v3897
    %3915 = vmatprep.subr.bf16.mxu0 0
    %3916 = vmatpush1.bf16.msra.mxu0 %v3898
    %3917 = vmatprep.subr.bf16.mxu0 0
    %3918 = vmatpush1.bf16.msra.mxu0 %v3899
    %3919 = vmatprep.subr.bf16.mxu0 0
    %3920 = vmatpush1.bf16.msra.mxu0 %v3900
    %3921 = vmatprep.subr.bf16.mxu0 0
    %3922 = vmatpush1.bf16.msra.mxu0 %v3901
    %3923 = vmatprep.subr.bf16.mxu0 0
    %3924 = vmatpush1.bf16.msra.mxu0 %v3902
    %3925 = vmatprep.subr.bf16.mxu0 0
    %3926 = vmatpush1.bf16.msra.mxu0 %v3903
    %3927 = vmatprep.subr.bf16.mxu0 0
    %3928 = vmatpush1.bf16.msra.mxu0 %v3904
    %3929 = vmatprep.subr.bf16.mxu0 0
    %3930 = vmatpush1.bf16.msra.mxu0 0
    %3931 = vmatprep.subr.bf16.mxu0 0
    %3932 = vmatpush1.bf16.msra.mxu0 0
    %3933 = vmatprep.subr.bf16.mxu0 0
    %3934 = vmatpush1.bf16.msra.mxu0 0
    %3935 = vmatprep.subr.bf16.mxu0 0
    %3936 = vmatpush1.bf16.msra.mxu0 0
    %3937 = vmatprep.subr.bf16.mxu0 0
    %3938 = vmatpush1.bf16.msra.mxu0 0
    %3939 = vmatprep.subr.bf16.mxu0 0
    %3940 = vmatpush1.bf16.msra.mxu0 0
    %3941 = vmatprep.subr.bf16.mxu0 0
    %3942 = vmatpush1.bf16.msra.mxu0 0
    %3943 = vmatprep.subr.bf16.mxu0 0
    %3944 = vmatpush1.bf16.msra.mxu0 0
    %3945 = vmatprep.mubr.bf16.mxu0 0
    %3946 = vmatmul.mubr.bf16.gmra.mrb[0].mxu0 %v3834
    %v3947 = vpop.f32.mrb[0].mxu0
    %v3948 = vadd.f32 %v3863, %v3947
    %v3949 = vpop.f32.mrb[0].mxu0
    %v3950 = vpop.f32.mrb[0].mxu0
    %v3951 = vadd.f32 %v3863, %v3950
    %v3952 = vpop.f32.mrb[0].mxu0
    %3953 = vmatprep.mubr.bf16.mxu0 0
    %3954 = vmatmul.mubr.bf16.gmra.mrb[0].mxu0 %v3835
    %v3955 = vpop.f32.mrb[0].mxu0
    %v3956 = vadd.f32 %v3863, %v3955
    %v3957 = vpop.f32.mrb[0].mxu0
    %v3958 = vpop.f32.mrb[0].mxu0
    %v3959 = vadd.f32 %v3863, %v3958
    %v3960 = vpop.f32.mrb[0].mxu0
    %3961 = vmatprep.mubr.bf16.mxu0 0
    %3962 = vmatmul.mubr.bf16.gmra.mrb[0].mxu0 %v3836
    %v3963 = vpop.f32.mrb[0].mxu0
    %v3964 = vadd.f32 %v3863, %v3963
    %v3965 = vpop.f32.mrb[0].mxu0
    %v3966 = vpop.f32.mrb[0].mxu0
    %v3967 = vadd.f32 %v3863, %v3966
    %v3968 = vpop.f32.mrb[0].mxu0
    %3969 = vmatprep.mubr.bf16.mxu0 0
    %3970 = vmatmul.mubr.bf16.gmra.mrb[0].mxu0 %v3837
    %v3971 = vpop.f32.mrb[0].mxu0
    %v3972 = vadd.f32 %v3863, %v3971
    %v3973 = vpop.f32.mrb[0].mxu0
    %v3974 = vpop.f32.mrb[0].mxu0
    %v3975 = vadd.f32 %v3863, %v3974
    %v3976 = vpop.f32.mrb[0].mxu0
    %3977 = vmatprep.mubr.bf16.mxu0 0
    %3978 = vmatmul.mubr.bf16.gmra.mrb[0].mxu0 %v3838
    %v3979 = vpop.f32.mrb[0].mxu0
    %v3980 = vadd.f32 %v3863, %v3979
    %v3981 = vpop.f32.mrb[0].mxu0
    %v3982 = vpop.f32.mrb[0].mxu0
    %v3983 = vadd.f32 %v3863, %v3982
    %v3984 = vpop.f32.mrb[0].mxu0
    %3985 = vmatprep.mubr.bf16.mxu0 0
    %3986 = vmatmul.mubr.bf16.gmra.mrb[0].mxu0 %v3839
    %v3987 = vpop.f32.mrb[0].mxu0
    %v3988 = vadd.f32 %v3863, %v3987
    %v3989 = vpop.f32.mrb[0].mxu0
    %v3990 = vpop.f32.mrb[0].mxu0
    %v3991 = vadd.f32 %v3863, %v3990
    %v3992 = vpop.f32.mrb[0].mxu0
    %3993 = vmatprep.mubr.bf16.mxu0 0
    %3994 = vmatmul.mubr.bf16.gmra.mrb[0].mxu0 %v3840
    %v3995 = vpop.f32.mrb[0].mxu0
    %v3996 = vadd.f32 %v3863, %v3995
    %v3997 = vpop.f32.mrb[0].mxu0
    %v3998 = vpop.f32.mrb[0].mxu0
    %v3999 = vadd.f32 %v3863, %v3998
    %v4000 = vpop.f32.mrb[0].mxu0
    %4001 = vmatprep.mubr.bf16.mxu0 0
    %4002 = vmatmul.mubr.bf16.gmra.mrb[0].mxu0 %v3841
    %v4003 = vpop.f32.mrb[0].mxu0
    %v4004 = vadd.f32 %v3863, %v4003
    %v4005 = vpop.f32.mrb[0].mxu0
    %v4006 = vpop.f32.mrb[0].mxu0
    %v4007 = vadd.f32 %v3863, %v4006
    %v4008 = vpop.f32.mrb[0].mxu0
    %4009 = vdwg.mxu0
    %v4010 = vadd.f32 %v1103, %v3948
    %v4011 = vadd.f32 %v1106, %v3951
    %v4012 = vadd.f32 %v1111, %v3956
    %v4013 = vadd.f32 %v1114, %v3959
    %v4014 = vadd.f32 %v1119, %v3964
    %v4015 = vadd.f32 %v1122, %v3967
    %v4016 = vadd.f32 %v1127, %v3972
    %v4017 = vadd.f32 %v1130, %v3975
    %v4018 = vadd.f32 %v1135, %v3980
    %v4019 = vadd.f32 %v1138, %v3983
    %v4020 = vadd.f32 %v1143, %v3988
    %v4021 = vadd.f32 %v1146, %v3991
    %v4022 = vadd.f32 %v1151, %v3996
    %v4023 = vadd.f32 %v1154, %v3999
    %v4024 = vadd.f32 %v1159, %v4004
    %v4025 = vadd.f32 %v1162, %v4007
    %v4026 = vld [vmem:[%s10] sm:$0x1]
    %v4027 = vld [vmem:[%s11] sm:$0x1]
    %4028 = vadd.xlane.f32.xlu0 %v4010
    %v4029 = vpop.xlane.xlu0 %4028
    %4030 = vadd.xlane.f32.xlu0 %v4011
    %v4031 = vpop.xlane.xlu0 %4030
    %4032 = vadd.xlane.f32.xlu0 %v4012
    %v4033 = vpop.xlane.xlu0 %4032
    %4034 = vadd.xlane.f32.xlu0 %v4013
    %v4035 = vpop.xlane.xlu0 %4034
    %4036 = vadd.xlane.f32.xlu0 %v4014
    %v4037 = vpop.xlane.xlu0 %4036
    %4038 = vadd.xlane.f32.xlu0 %v4015
    %v4039 = vpop.xlane.xlu0 %4038
    %4040 = vadd.xlane.f32.xlu0 %v4016
    %v4041 = vpop.xlane.xlu0 %4040
    %4042 = vadd.xlane.f32.xlu0 %v4017
    %v4043 = vpop.xlane.xlu0 %4042
    %4044 = vadd.xlane.f32.xlu0 %v4018
    %v4045 = vpop.xlane.xlu0 %4044
    %4046 = vadd.xlane.f32.xlu0 %v4019
    %v4047 = vpop.xlane.xlu0 %4046
    %4048 = vadd.xlane.f32.xlu0 %v4020
    %v4049 = vpop.xlane.xlu0 %4048
    %4050 = vadd.xlane.f32.xlu0 %v4021
    %v4051 = vpop.xlane.xlu0 %4050
    %4052 = vadd.xlane.f32.xlu0 %v4022
    %v4053 = vpop.xlane.xlu0 %4052
    %4054 = vadd.xlane.f32.xlu0 %v4023
    %v4055 = vpop.xlane.xlu0 %4054
    %4056 = vadd.xlane.f32.xlu0 %v4024
    %v4057 = vpop.xlane.xlu0 %4056
    %4058 = vadd.xlane.f32.xlu0 %v4025
    %v4059 = vpop.xlane.xlu0 %4058
    %v4060 = vmul.f32 %v4029, %v1215
    %v4061 = vmul.f32 %v4031, %v1215
    %v4062 = vmul.f32 %v4033, %v1215
    %v4063 = vmul.f32 %v4035, %v1215
    %v4064 = vmul.f32 %v4037, %v1215
    %v4065 = vmul.f32 %v4039, %v1215
    %v4066 = vmul.f32 %v4041, %v1215
    %v4067 = vmul.f32 %v4043, %v1215
    %v4068 = vmul.f32 %v4045, %v1215
    %v4069 = vmul.f32 %v4047, %v1215
    %v4070 = vmul.f32 %v4049, %v1215
    %v4071 = vmul.f32 %v4051, %v1215
    %v4072 = vmul.f32 %v4053, %v1215
    %v4073 = vmul.f32 %v4055, %v1215
    %v4074 = vmul.f32 %v4057, %v1215
    %v4075 = vmul.f32 %v4059, %v1215
    %v4076 = vsub.f32 %v4010, %v4060
    %v4077 = vsub.f32 %v4011, %v4061
    %v4078 = vsub.f32 %v4012, %v4062
    %v4079 = vsub.f32 %v4013, %v4063
    %v4080 = vsub.f32 %v4014, %v4064
    %v4081 = vsub.f32 %v4015, %v4065
    %v4082 = vsub.f32 %v4016, %v4066
    %v4083 = vsub.f32 %v4017, %v4067
    %v4084 = vsub.f32 %v4018, %v4068
    %v4085 = vsub.f32 %v4019, %v4069
    %v4086 = vsub.f32 %v4020, %v4070
    %v4087 = vsub.f32 %v4021, %v4071
    %v4088 = vsub.f32 %v4022, %v4072
    %v4089 = vsub.f32 %v4023, %v4073
    %v4090 = vsub.f32 %v4024, %v4074
    %v4091 = vsub.f32 %v4025, %v4075
    %v4092 = vmul.f32 %v4076, %v4076
    %v4093 = vmul.f32 %v4077, %v4077
    %v4094 = vmul.f32 %v4078, %v4078
    %v4095 = vmul.f32 %v4079, %v4079
    %v4096 = vmul.f32 %v4080, %v4080
    %v4097 = vmul.f32 %v4081, %v4081
    %v4098 = vmul.f32 %v4082, %v4082
    %v4099 = vmul.f32 %v4083, %v4083
    %v4100 = vmul.f32 %v4084, %v4084
    %v4101 = vmul.f32 %v4085, %v4085
    %v4102 = vmul.f32 %v4086, %v4086
    %v4103 = vmul.f32 %v4087, %v4087
    %v4104 = vmul.f32 %v4088, %v4088
    %v4105 = vmul.f32 %v4089, %v4089
    %v4106 = vmul.f32 %v4090, %v4090
    %v4107 = vmul.f32 %v4091, %v4091
    %4108 = vadd.xlane.f32.xlu0 %v4092
    %v4109 = vpop.xlane.xlu0 %4108
    %4110 = vadd.xlane.f32.xlu0 %v4093
    %v4111 = vpop.xlane.xlu0 %4110
    %4112 = vadd.xlane.f32.xlu0 %v4094
    %v4113 = vpop.xlane.xlu0 %4112
    %4114 = vadd.xlane.f32.xlu0 %v4095
    %v4115 = vpop.xlane.xlu0 %4114
    %4116 = vadd.xlane.f32.xlu0 %v4096
    %v4117 = vpop.xlane.xlu0 %4116
    %4118 = vadd.xlane.f32.xlu0 %v4097
    %v4119 = vpop.xlane.xlu0 %4118
    %4120 = vadd.xlane.f32.xlu0 %v4098
    %v4121 = vpop.xlane.xlu0 %4120
    %4122 = vadd.xlane.f32.xlu0 %v4099
    %v4123 = vpop.xlane.xlu0 %4122
    %4124 = vadd.xlane.f32.xlu0 %v4100
    %v4125 = vpop.xlane.xlu0 %4124
    %4126 = vadd.xlane.f32.xlu0 %v4101
    %v4127 = vpop.xlane.xlu0 %4126
    %4128 = vadd.xlane.f32.xlu0 %v4102
    %v4129 = vpop.xlane.xlu0 %4128
    %4130 = vadd.xlane.f32.xlu0 %v4103
    %v4131 = vpop.xlane.xlu0 %4130
    %4132 = vadd.xlane.f32.xlu0 %v4104
    %v4133 = vpop.xlane.xlu0 %4132
    %4134 = vadd.xlane.f32.xlu0 %v4105
    %v4135 = vpop.xlane.xlu0 %4134
    %4136 = vadd.xlane.f32.xlu0 %v4106
    %v4137 = vpop.xlane.xlu0 %4136
    %4138 = vadd.xlane.f32.xlu0 %v4107
    %v4139 = vpop.xlane.xlu0 %4138
    %v4140 = vmul.f32 %v4109, %v1215
    %v4141 = vmul.f32 %v4111, %v1215
    %v4142 = vmul.f32 %v4113, %v1215
    %v4143 = vmul.f32 %v4115, %v1215
    %v4144 = vmul.f32 %v4117, %v1215
    %v4145 = vmul.f32 %v4119, %v1215
    %v4146 = vmul.f32 %v4121, %v1215
    %v4147 = vmul.f32 %v4123, %v1215
    %v4148 = vmul.f32 %v4125, %v1215
    %v4149 = vmul.f32 %v4127, %v1215
    %v4150 = vmul.f32 %v4129, %v1215
    %v4151 = vmul.f32 %v4131, %v1215
    %v4152 = vmul.f32 %v4133, %v1215
    %v4153 = vmul.f32 %v4135, %v1215
    %v4154 = vmul.f32 %v4137, %v1215
    %v4155 = vmul.f32 %v4139, %v1215
    %v4156 = vadd.f32 %v4140, 1e-12
    %v4157 = vadd.f32 %v4141, 1e-12
    %v4158 = vadd.f32 %v4142, 1e-12
    %v4159 = vadd.f32 %v4143, 1e-12
    %v4160 = vadd.f32 %v4144, 1e-12
    %v4161 = vadd.f32 %v4145, 1e-12
    %v4162 = vadd.f32 %v4146, 1e-12
    %v4163 = vadd.f32 %v4147, 1e-12
    %v4164 = vadd.f32 %v4148, 1e-12
    %v4165 = vadd.f32 %v4149, 1e-12
    %v4166 = vadd.f32 %v4150, 1e-12
    %v4167 = vadd.f32 %v4151, 1e-12
    %v4168 = vadd.f32 %v4152, 1e-12
    %v4169 = vadd.f32 %v4153, 1e-12
    %v4170 = vadd.f32 %v4154, 1e-12
    %v4171 = vadd.f32 %v4155, 1e-12
    %v4172 = vrsqrt.pop %v4156
    %v4173 = vrsqrt.pop %v4157
    %v4174 = vrsqrt.pop %v4158
    %v4175 = vrsqrt.pop %v4159
    %v4176 = vrsqrt.pop %v4160
    %v4177 = vrsqrt.pop %v4161
    %v4178 = vrsqrt.pop %v4162
    %v4179 = vrsqrt.pop %v4163
    %v4180 = vrsqrt.pop %v4164
    %v4181 = vrsqrt.pop %v4165
    %v4182 = vrsqrt.pop %v4166
    %v4183 = vrsqrt.pop %v4167
    %v4184 = vrsqrt.pop %v4168
    %v4185 = vrsqrt.pop %v4169
    %v4186 = vrsqrt.pop %v4170
    %v4187 = vrsqrt.pop %v4171
    %v4188 = vmul.f32 %v4076, %v4172
    %v4189 = vmul.f32 %v4077, %v4173
    %v4190 = vmul.f32 %v4078, %v4174
    %v4191 = vmul.f32 %v4079, %v4175
    %v4192 = vmul.f32 %v4080, %v4176
    %v4193 = vmul.f32 %v4081, %v4177
    %v4194 = vmul.f32 %v4082, %v4178
    %v4195 = vmul.f32 %v4083, %v4179
    %v4196 = vmul.f32 %v4084, %v4180
    %v4197 = vmul.f32 %v4085, %v4181
    %v4198 = vmul.f32 %v4086, %v4182
    %v4199 = vmul.f32 %v4087, %v4183
    %v4200 = vmul.f32 %v4088, %v4184
    %v4201 = vmul.f32 %v4089, %v4185
    %v4202 = vmul.f32 %v4090, %v4186
    %v4203 = vmul.f32 %v4091, %v4187
    %v4205 = vlaneseq
    %v4206 = vshrl.u32 %v4205, 7
    %v4207 = vsub.s32 0, %v4206
    %v4208 = vrot.slane %v4026, %v4207
    %v4210 = vmul.f32 %v4188, %v4208
    %v4211 = vmul.f32 %v4189, %v4208
    %v4212 = vmul.f32 %v4190, %v4208
    %v4213 = vmul.f32 %v4191, %v4208
    %v4214 = vmul.f32 %v4192, %v4208
    %v4215 = vmul.f32 %v4193, %v4208
    %v4216 = vmul.f32 %v4194, %v4208
    %v4217 = vmul.f32 %v4195, %v4208
    %v4218 = vmul.f32 %v4196, %v4208
    %v4219 = vmul.f32 %v4197, %v4208
    %v4220 = vmul.f32 %v4198, %v4208
    %v4221 = vmul.f32 %v4199, %v4208
    %v4222 = vmul.f32 %v4200, %v4208
    %v4223 = vmul.f32 %v4201, %v4208
    %v4224 = vmul.f32 %v4202, %v4208
    %v4225 = vmul.f32 %v4203, %v4208
    %v4227 = vlaneseq
    %v4228 = vshrl.u32 %v4227, 7
    %v4229 = vsub.s32 0, %v4228
    %v4230 = vrot.slane %v4027, %v4229
    %v4232 = vadd.f32 %v4210, %v4230
    %v4233 = vadd.f32 %v4211, %v4230
    %v4234 = vadd.f32 %v4212, %v4230
    %v4235 = vadd.f32 %v4213, %v4230
    %v4236 = vadd.f32 %v4214, %v4230
    %v4237 = vadd.f32 %v4215, %v4230
    %v4238 = vadd.f32 %v4216, %v4230
    %v4239 = vadd.f32 %v4217, %v4230
    %v4240 = vadd.f32 %v4218, %v4230
    %v4241 = vadd.f32 %v4219, %v4230
    %v4242 = vadd.f32 %v4220, %v4230
    %v4243 = vadd.f32 %v4221, %v4230
    %v4244 = vadd.f32 %v4222, %v4230
    %v4245 = vadd.f32 %v4223, %v4230
    %v4246 = vadd.f32 %v4224, %v4230
    %v4247 = vadd.f32 %v4225, %v4230
    %v4248 = vpack.c.bf16 %v4233, %v4232
    %v4249 = vpack.c.bf16 %v4235, %v4234
    %v4250 = vpack.c.bf16 %v4237, %v4236
    %v4251 = vpack.c.bf16 %v4239, %v4238
    %v4252 = vpack.c.bf16 %v4241, %v4240
    %v4253 = vpack.c.bf16 %v4243, %v4242
    %v4254 = vpack.c.bf16 %v4245, %v4244
    %v4255 = vpack.c.bf16 %v4247, %v4246
    %v4256 = vld [vmem:[%s12] sm:$0xff]
    %v4257 = vld [vmem:[%s12 + $0x8] sm:$0xff]
    %v4258 = vld [vmem:[%s12 + $0x10] sm:$0xff]
    %v4259 = vld [vmem:[%s12 + $0x18] sm:$0xff]
    %v4260 = vld [vmem:[%s12 + $0x20] sm:$0xff]
    %v4261 = vld [vmem:[%s12 + $0x28] sm:$0xff]
    %v4262 = vld [vmem:[%s12 + $0x30] sm:$0xff]
    %v4263 = vld [vmem:[%s12 + $0x38] sm:$0xff]
    %v4264 = vld [vmem:[%s12 + $0x40] sm:$0xff]
    %v4265 = vld [vmem:[%s12 + $0x48] sm:$0xff]
    %v4266 = vld [vmem:[%s12 + $0x50] sm:$0xff]
    %v4267 = vld [vmem:[%s12 + $0x58] sm:$0xff]
    %v4268 = vld [vmem:[%s12 + $0x60] sm:$0xff]
    %v4269 = vld [vmem:[%s12 + $0x68] sm:$0xff]
    %v4270 = vld [vmem:[%s12 + $0x70] sm:$0xff]
    %v4271 = vld [vmem:[%s12 + $0x78] sm:$0xff]
    %v4272 = vld [vmem:[%s12 + $0x80] sm:$0xff]
    %v4273 = vld [vmem:[%s12 + $0x88] sm:$0xff]
    %v4274 = vld [vmem:[%s12 + $0x90] sm:$0xff]
    %v4275 = vld [vmem:[%s12 + $0x98] sm:$0xff]
    %v4276 = vld [vmem:[%s12 + $0xa0] sm:$0xff]
    %v4277 = vld [vmem:[%s12 + $0xa8] sm:$0xff]
    %v4278 = vld [vmem:[%s12 + $0xb0] sm:$0xff]
    %v4279 = vld [vmem:[%s12 + $0xb8] sm:$0xff]
    %v4280 = vld [vmem:[%s12 + $0xc0] sm:$0xff]
    %v4281 = vld [vmem:[%s12 + $0xc8] sm:$0xff]
    %v4282 = vld [vmem:[%s12 + $0xd0] sm:$0xff]
    %v4283 = vld [vmem:[%s12 + $0xd8] sm:$0xff]
    %v4284 = vld [vmem:[%s12 + $0xe0] sm:$0xff]
    %v4285 = vld [vmem:[%s12 + $0xe8] sm:$0xff]
    %v4286 = vld [vmem:[%s12 + $0xf0] sm:$0xff]
    %v4287 = vld [vmem:[%s12 + $0xf8] sm:$0xff]
    %v4288 = vld [vmem:[#allocation12] sm:$0xf]
    %v4290 = vlaneseq
    %v4291 = vshrl.u32 %v4290, 7
    %v4292 = vsub.s32 0, %v4291
    %v4293 = vrot.slane %v4288, %v4292
    %v4294 = vlaneseq
    %v4295 = vshrl.u32 %v4294, 7
    %v4296 = vsub.s32 1, %v4295
    %v4297 = vrot.slane %v4288, %v4296
    %v4298 = vlaneseq
    %v4299 = vshrl.u32 %v4298, 7
    %v4300 = vsub.s32 2, %v4299
    %v4301 = vrot.slane %v4288, %v4300
    %v4302 = vlaneseq
    %v4303 = vshrl.u32 %v4302, 7
    %v4304 = vsub.s32 3, %v4303
    %v4305 = vrot.slane %v4288, %v4304
    %v4342 = vunpack.c.l.b16 %v4256
    %v4343 = vunpack.c.h.b16 %v4256
    %v4344 = vunpack.c.l.b16 %v4257
    %v4345 = vunpack.c.h.b16 %v4257
    %v4346 = vunpack.c.l.b16 %v4258
    %v4347 = vunpack.c.h.b16 %v4258
    %v4348 = vunpack.c.l.b16 %v4259
    %v4349 = vunpack.c.h.b16 %v4259
    %v4350 = vunpack.c.l.b16 %v4260
    %v4351 = vunpack.c.h.b16 %v4260
    %v4352 = vunpack.c.l.b16 %v4261
    %v4353 = vunpack.c.h.b16 %v4261
    %v4354 = vunpack.c.l.b16 %v4262
    %v4355 = vunpack.c.h.b16 %v4262
    %v4356 = vunpack.c.l.b16 %v4263
    %v4357 = vunpack.c.h.b16 %v4263
    %v4358 = vunpack.c.l.b16 %v4264
    %v4359 = vunpack.c.h.b16 %v4264
    %v4360 = vunpack.c.l.b16 %v4265
    %v4361 = vunpack.c.h.b16 %v4265
    %v4362 = vunpack.c.l.b16 %v4266
    %v4363 = vunpack.c.h.b16 %v4266
    %v4364 = vunpack.c.l.b16 %v4267
    %v4365 = vunpack.c.h.b16 %v4267
    %v4366 = vunpack.c.l.b16 %v4268
    %v4367 = vunpack.c.h.b16 %v4268
    %v4368 = vunpack.c.l.b16 %v4269
    %v4369 = vunpack.c.h.b16 %v4269
    %v4370 = vunpack.c.l.b16 %v4270
    %v4371 = vunpack.c.h.b16 %v4270
    %v4372 = vunpack.c.l.b16 %v4271
    %v4373 = vunpack.c.h.b16 %v4271
    %v4374 = vunpack.c.l.b16 %v4272
    %v4375 = vunpack.c.h.b16 %v4272
    %v4376 = vunpack.c.l.b16 %v4273
    %v4377 = vunpack.c.h.b16 %v4273
    %v4378 = vunpack.c.l.b16 %v4274
    %v4379 = vunpack.c.h.b16 %v4274
    %v4380 = vunpack.c.l.b16 %v4275
    %v4381 = vunpack.c.h.b16 %v4275
    %v4382 = vunpack.c.l.b16 %v4276
    %v4383 = vunpack.c.h.b16 %v4276
    %v4384 = vunpack.c.l.b16 %v4277
    %v4385 = vunpack.c.h.b16 %v4277
    %v4386 = vunpack.c.l.b16 %v4278
    %v4387 = vunpack.c.h.b16 %v4278
    %v4388 = vunpack.c.l.b16 %v4279
    %v4389 = vunpack.c.h.b16 %v4279
    %v4390 = vunpack.c.l.b16 %v4280
    %v4391 = vunpack.c.h.b16 %v4280
    %v4392 = vunpack.c.l.b16 %v4281
    %v4393 = vunpack.c.h.b16 %v4281
    %v4394 = vunpack.c.l.b16 %v4282
    %v4395 = vunpack.c.h.b16 %v4282
    %v4396 = vunpack.c.l.b16 %v4283
    %v4397 = vunpack.c.h.b16 %v4283
    %v4398 = vunpack.c.l.b16 %v4284
    %v4399 = vunpack.c.h.b16 %v4284
    %v4400 = vunpack.c.l.b16 %v4285
    %v4401 = vunpack.c.h.b16 %v4285
    %v4402 = vunpack.c.l.b16 %v4286
    %v4403 = vunpack.c.h.b16 %v4286
    %v4404 = vunpack.c.l.b16 %v4287
    %v4405 = vunpack.c.h.b16 %v4287
    %v4406 = vpack.c.b16 %v4346, %v4342
    %v4407 = vpack.c.b16 %v4347, %v4343
    %v4408 = vpack.c.b16 %v4348, %v4344
    %v4409 = vpack.c.b16 %v4349, %v4345
    %v4410 = vpack.c.b16 %v4354, %v4350
    %v4411 = vpack.c.b16 %v4355, %v4351
    %v4412 = vpack.c.b16 %v4356, %v4352
    %v4413 = vpack.c.b16 %v4357, %v4353
    %v4414 = vpack.c.b16 %v4362, %v4358
    %v4415 = vpack.c.b16 %v4363, %v4359
    %v4416 = vpack.c.b16 %v4364, %v4360
    %v4417 = vpack.c.b16 %v4365, %v4361
    %v4418 = vpack.c.b16 %v4370, %v4366
    %v4419 = vpack.c.b16 %v4371, %v4367
    %v4420 = vpack.c.b16 %v4372, %v4368
    %v4421 = vpack.c.b16 %v4373, %v4369
    %v4422 = vpack.c.b16 %v4378, %v4374
    %v4423 = vpack.c.b16 %v4379, %v4375
    %v4424 = vpack.c.b16 %v4380, %v4376
    %v4425 = vpack.c.b16 %v4381, %v4377
    %v4426 = vpack.c.b16 %v4386, %v4382
    %v4427 = vpack.c.b16 %v4387, %v4383
    %v4428 = vpack.c.b16 %v4388, %v4384
    %v4429 = vpack.c.b16 %v4389, %v4385
    %v4430 = vpack.c.b16 %v4394, %v4390
    %v4431 = vpack.c.b16 %v4395, %v4391
    %v4432 = vpack.c.b16 %v4396, %v4392
    %v4433 = vpack.c.b16 %v4397, %v4393
    %v4434 = vpack.c.b16 %v4402, %v4398
    %v4435 = vpack.c.b16 %v4403, %v4399
    %v4436 = vpack.c.b16 %v4404, %v4400
    %v4437 = vpack.c.b16 %v4405, %v4401
    %4470 = vmatprep.subr.bf16.mxu0 %v4407
    %4471 = vmatpush1.bf16.msra.mxu0 %v4406
    %4472 = vmatprep.subr.bf16.mxu0 %v4411
    %4473 = vmatpush1.bf16.msra.mxu0 %v4410
    %4474 = vmatprep.subr.bf16.mxu0 %v4415
    %4475 = vmatpush1.bf16.msra.mxu0 %v4414
    %4476 = vmatprep.subr.bf16.mxu0 %v4419
    %4477 = vmatpush1.bf16.msra.mxu0 %v4418
    %4478 = vmatprep.subr.bf16.mxu0 %v4423
    %4479 = vmatpush1.bf16.msra.mxu0 %v4422
    %4480 = vmatprep.subr.bf16.mxu0 %v4427
    %4481 = vmatpush1.bf16.msra.mxu0 %v4426
    %4482 = vmatprep.subr.bf16.mxu0 %v4431
    %4483 = vmatpush1.bf16.msra.mxu0 %v4430
    %4484 = vmatprep.subr.bf16.mxu0 %v4435
    %4485 = vmatpush1.bf16.msra.mxu0 %v4434
    %4486 = vmatprep.subr.bf16.mxu0 0
    %4487 = vmatpush1.bf16.msra.mxu0 0
    %4488 = vmatprep.subr.bf16.mxu0 0
    %4489 = vmatpush1.bf16.msra.mxu0 0
    %4490 = vmatprep.subr.bf16.mxu0 0
    %4491 = vmatpush1.bf16.msra.mxu0 0
    %4492 = vmatprep.subr.bf16.mxu0 0
    %4493 = vmatpush1.bf16.msra.mxu0 0
    %4494 = vmatprep.subr.bf16.mxu0 0
    %4495 = vmatpush1.bf16.msra.mxu0 0
    %4496 = vmatprep.subr.bf16.mxu0 0
    %4497 = vmatpush1.bf16.msra.mxu0 0
    %4498 = vmatprep.subr.bf16.mxu0 0
    %4499 = vmatpush1.bf16.msra.mxu0 0
    %4500 = vmatprep.subr.bf16.mxu0 0
    %4501 = vmatpush1.bf16.msra.mxu0 0
    %4502 = vmatprep.mubr.bf16.mxu0 0
    %4503 = vmatmul.mubr.bf16.gmra.mrb[0].mxu0 %v4248
    %v4504 = vpop.f32.mrb[0].mxu0
    %v4505 = vadd.f32 %v4293, %v4504
    %v4506 = vpop.f32.mrb[0].mxu0
    %v4507 = vadd.f32 %v4297, %v4506
    %v4508 = vpop.f32.mrb[0].mxu0
    %v4509 = vadd.f32 %v4293, %v4508
    %v4510 = vpop.f32.mrb[0].mxu0
    %v4511 = vadd.f32 %v4297, %v4510
    %4512 = vmatprep.mubr.bf16.mxu0 0
    %4513 = vmatmul.mubr.bf16.gmra.mrb[0].mxu0 %v4249
    %v4514 = vpop.f32.mrb[0].mxu0
    %v4515 = vadd.f32 %v4293, %v4514
    %v4516 = vpop.f32.mrb[0].mxu0
    %v4517 = vadd.f32 %v4297, %v4516
    %v4518 = vpop.f32.mrb[0].mxu0
    %v4519 = vadd.f32 %v4293, %v4518
    %v4520 = vpop.f32.mrb[0].mxu0
    %v4521 = vadd.f32 %v4297, %v4520
    %4522 = vmatprep.mubr.bf16.mxu0 0
    %4523 = vmatmul.mubr.bf16.gmra.mrb[0].mxu0 %v4250
    %v4524 = vpop.f32.mrb[0].mxu0
    %v4525 = vadd.f32 %v4293, %v4524
    %v4526 = vpop.f32.mrb[0].mxu0
    %v4527 = vadd.f32 %v4297, %v4526
    %v4528 = vpop.f32.mrb[0].mxu0
    %v4529 = vadd.f32 %v4293, %v4528
    %v4530 = vpop.f32.mrb[0].mxu0
    %v4531 = vadd.f32 %v4297, %v4530
    %4532 = vmatprep.mubr.bf16.mxu0 0
    %4533 = vmatmul.mubr.bf16.gmra.mrb[0].mxu0 %v4251
    %v4534 = vpop.f32.mrb[0].mxu0
    %v4535 = vadd.f32 %v4293, %v4534
    %v4536 = vpop.f32.mrb[0].mxu0
    %v4537 = vadd.f32 %v4297, %v4536
    %v4538 = vpop.f32.mrb[0].mxu0
    %v4539 = vadd.f32 %v4293, %v4538
    %v4540 = vpop.f32.mrb[0].mxu0
    %v4541 = vadd.f32 %v4297, %v4540
    %4542 = vmatprep.mubr.bf16.mxu0 0
    %4543 = vmatmul.mubr.bf16.gmra.mrb[0].mxu0 %v4252
    %v4544 = vpop.f32.mrb[0].mxu0
    %v4545 = vadd.f32 %v4293, %v4544
    %v4546 = vpop.f32.mrb[0].mxu0
    %v4547 = vadd.f32 %v4297, %v4546
    %v4548 = vpop.f32.mrb[0].mxu0
    %v4549 = vadd.f32 %v4293, %v4548
    %v4550 = vpop.f32.mrb[0].mxu0
    %v4551 = vadd.f32 %v4297, %v4550
    %4552 = vmatprep.mubr.bf16.mxu0 0
    %4553 = vmatmul.mubr.bf16.gmra.mrb[0].mxu0 %v4253
    %v4554 = vpop.f32.mrb[0].mxu0
    %v4555 = vadd.f32 %v4293, %v4554
    %v4556 = vpop.f32.mrb[0].mxu0
    %v4557 = vadd.f32 %v4297, %v4556
    %v4558 = vpop.f32.mrb[0].mxu0
    %v4559 = vadd.f32 %v4293, %v4558
    %v4560 = vpop.f32.mrb[0].mxu0
    %v4561 = vadd.f32 %v4297, %v4560
    %4562 = vmatprep.mubr.bf16.mxu0 0
    %4563 = vmatmul.mubr.bf16.gmra.mrb[0].mxu0 %v4254
    %v4564 = vpop.f32.mrb[0].mxu0
    %v4565 = vadd.f32 %v4293, %v4564
    %v4566 = vpop.f32.mrb[0].mxu0
    %v4567 = vadd.f32 %v4297, %v4566
    %v4568 = vpop.f32.mrb[0].mxu0
    %v4569 = vadd.f32 %v4293, %v4568
    %v4570 = vpop.f32.mrb[0].mxu0
    %v4571 = vadd.f32 %v4297, %v4570
    %4572 = vmatprep.mubr.bf16.mxu0 0
    %4573 = vmatmul.mubr.bf16.gmra.mrb[0].mxu0 %v4255
    %v4574 = vpop.f32.mrb[0].mxu0
    %v4575 = vadd.f32 %v4293, %v4574
    %v4576 = vpop.f32.mrb[0].mxu0
    %v4577 = vadd.f32 %v4297, %v4576
    %v4578 = vpop.f32.mrb[0].mxu0
    %v4579 = vadd.f32 %v4293, %v4578
    %v4580 = vpop.f32.mrb[0].mxu0
    %v4581 = vadd.f32 %v4297, %v4580
    %4582 = vdwg.mxu0
    %4583 = vmatprep.subr.bf16.mxu0 %v4409
    %4584 = vmatpush1.bf16.msra.mxu0 %v4408
    %4585 = vmatprep.subr.bf16.mxu0 %v4413
    %4586 = vmatpush1.bf16.msra.mxu0 %v4412
    %4587 = vmatprep.subr.bf16.mxu0 %v4417
    %4588 = vmatpush1.bf16.msra.mxu0 %v4416
    %4589 = vmatprep.subr.bf16.mxu0 %v4421
    %4590 = vmatpush1.bf16.msra.mxu0 %v4420
    %4591 = vmatprep.subr.bf16.mxu0 %v4425
    %4592 = vmatpush1.bf16.msra.mxu0 %v4424
    %4593 = vmatprep.subr.bf16.mxu0 %v4429
    %4594 = vmatpush1.bf16.msra.mxu0 %v4428
    %4595 = vmatprep.subr.bf16.mxu0 %v4433
    %4596 = vmatpush1.bf16.msra.mxu0 %v4432
    %4597 = vmatprep.subr.bf16.mxu0 %v4437
    %4598 = vmatpush1.bf16.msra.mxu0 %v4436
    %4599 = vmatprep.subr.bf16.mxu0 0
    %4600 = vmatpush1.bf16.msra.mxu0 0
    %4601 = vmatprep.subr.bf16.mxu0 0
    %4602 = vmatpush1.bf16.msra.mxu0 0
    %4603 = vmatprep.subr.bf16.mxu0 0
    %4604 = vmatpush1.bf16.msra.mxu0 0
    %4605 = vmatprep.subr.bf16.mxu0 0
    %4606 = vmatpush1.bf16.msra.mxu0 0
    %4607 = vmatprep.subr.bf16.mxu0 0
    %4608 = vmatpush1.bf16.msra.mxu0 0
    %4609 = vmatprep.subr.bf16.mxu0 0
    %4610 = vmatpush1.bf16.msra.mxu0 0
    %4611 = vmatprep.subr.bf16.mxu0 0
    %4612 = vmatpush1.bf16.msra.mxu0 0
    %4613 = vmatprep.subr.bf16.mxu0 0
    %4614 = vmatpush1.bf16.msra.mxu0 0
    %4615 = vmatprep.mubr.bf16.mxu0 0
    %4616 = vmatmul.mubr.bf16.gmra.mrb[0].mxu0 %v4248
    %v4617 = vpop.f32.mrb[0].mxu0
    %v4618 = vadd.f32 %v4301, %v4617
    %v4619 = vpop.f32.mrb[0].mxu0
    %v4620 = vadd.f32 %v4305, %v4619
    %v4621 = vpop.f32.mrb[0].mxu0
    %v4622 = vadd.f32 %v4301, %v4621
    %v4623 = vpop.f32.mrb[0].mxu0
    %v4624 = vadd.f32 %v4305, %v4623
    %4625 = vmatprep.mubr.bf16.mxu0 0
    %4626 = vmatmul.mubr.bf16.gmra.mrb[0].mxu0 %v4249
    %v4627 = vpop.f32.mrb[0].mxu0
    %v4628 = vadd.f32 %v4301, %v4627
    %v4629 = vpop.f32.mrb[0].mxu0
    %v4630 = vadd.f32 %v4305, %v4629
    %v4631 = vpop.f32.mrb[0].mxu0
    %v4632 = vadd.f32 %v4301, %v4631
    %v4633 = vpop.f32.mrb[0].mxu0
    %v4634 = vadd.f32 %v4305, %v4633
    %4635 = vmatprep.mubr.bf16.mxu0 0
    %4636 = vmatmul.mubr.bf16.gmra.mrb[0].mxu0 %v4250
    %v4637 = vpop.f32.mrb[0].mxu0
    %v4638 = vadd.f32 %v4301, %v4637
    %v4639 = vpop.f32.mrb[0].mxu0
    %v4640 = vadd.f32 %v4305, %v4639
    %v4641 = vpop.f32.mrb[0].mxu0
    %v4642 = vadd.f32 %v4301, %v4641
    %v4643 = vpop.f32.mrb[0].mxu0
    %v4644 = vadd.f32 %v4305, %v4643
    %4645 = vmatprep.mubr.bf16.mxu0 0
    %4646 = vmatmul.mubr.bf16.gmra.mrb[0].mxu0 %v4251
    %v4647 = vpop.f32.mrb[0].mxu0
    %v4648 = vadd.f32 %v4301, %v4647
    %v4649 = vpop.f32.mrb[0].mxu0
    %v4650 = vadd.f32 %v4305, %v4649
    %v4651 = vpop.f32.mrb[0].mxu0
    %v4652 = vadd.f32 %v4301, %v4651
    %v4653 = vpop.f32.mrb[0].mxu0
    %v4654 = vadd.f32 %v4305, %v4653
    %4655 = vmatprep.mubr.bf16.mxu0 0
    %4656 = vmatmul.mubr.bf16.gmra.mrb[0].mxu0 %v4252
    %v4657 = vpop.f32.mrb[0].mxu0
    %v4658 = vadd.f32 %v4301, %v4657
    %v4659 = vpop.f32.mrb[0].mxu0
    %v4660 = vadd.f32 %v4305, %v4659
    %v4661 = vpop.f32.mrb[0].mxu0
    %v4662 = vadd.f32 %v4301, %v4661
    %v4663 = vpop.f32.mrb[0].mxu0
    %v4664 = vadd.f32 %v4305, %v4663
    %4665 = vmatprep.mubr.bf16.mxu0 0
    %4666 = vmatmul.mubr.bf16.gmra.mrb[0].mxu0 %v4253
    %v4667 = vpop.f32.mrb[0].mxu0
    %v4668 = vadd.f32 %v4301, %v4667
    %v4669 = vpop.f32.mrb[0].mxu0
    %v4670 = vadd.f32 %v4305, %v4669
    %v4671 = vpop.f32.mrb[0].mxu0
    %v4672 = vadd.f32 %v4301, %v4671
    %v4673 = vpop.f32.mrb[0].mxu0
    %v4674 = vadd.f32 %v4305, %v4673
    %4675 = vmatprep.mubr.bf16.mxu0 0
    %4676 = vmatmul.mubr.bf16.gmra.mrb[0].mxu0 %v4254
    %v4677 = vpop.f32.mrb[0].mxu0
    %v4678 = vadd.f32 %v4301, %v4677
    %v4679 = vpop.f32.mrb[0].mxu0
    %v4680 = vadd.f32 %v4305, %v4679
    %v4681 = vpop.f32.mrb[0].mxu0
    %v4682 = vadd.f32 %v4301, %v4681
    %v4683 = vpop.f32.mrb[0].mxu0
    %v4684 = vadd.f32 %v4305, %v4683
    %4685 = vmatprep.mubr.bf16.mxu0 0
    %4686 = vmatmul.mubr.bf16.gmra.mrb[0].mxu0 %v4255
    %v4687 = vpop.f32.mrb[0].mxu0
    %v4688 = vadd.f32 %v4301, %v4687
    %v4689 = vpop.f32.mrb[0].mxu0
    %v4690 = vadd.f32 %v4305, %v4689
    %v4691 = vpop.f32.mrb[0].mxu0
    %v4692 = vadd.f32 %v4301, %v4691
    %v4693 = vpop.f32.mrb[0].mxu0
    %v4694 = vadd.f32 %v4305, %v4693
    %4695 = vdwg.mxu0
    %v4696 = vmul.f32 %v4505, %v4505
    %v4697 = vmul.f32 %v4507, %v4507
    %v4698 = vmul.f32 %v4618, %v4618
    %v4699 = vmul.f32 %v4620, %v4620
    %v4700 = vmul.f32 %v4509, %v4509
    %v4701 = vmul.f32 %v4511, %v4511
    %v4702 = vmul.f32 %v4622, %v4622
    %v4703 = vmul.f32 %v4624, %v4624
    %v4704 = vmul.f32 %v4515, %v4515
    %v4705 = vmul.f32 %v4517, %v4517
    %v4706 = vmul.f32 %v4628, %v4628
    %v4707 = vmul.f32 %v4630, %v4630
    %v4708 = vmul.f32 %v4519, %v4519
    %v4709 = vmul.f32 %v4521, %v4521
    %v4710 = vmul.f32 %v4632, %v4632
    %v4711 = vmul.f32 %v4634, %v4634
    %v4712 = vmul.f32 %v4525, %v4525
    %v4713 = vmul.f32 %v4527, %v4527
    %v4714 = vmul.f32 %v4638, %v4638
    %v4715 = vmul.f32 %v4640, %v4640
    %v4716 = vmul.f32 %v4529, %v4529
    %v4717 = vmul.f32 %v4531, %v4531
    %v4718 = vmul.f32 %v4642, %v4642
    %v4719 = vmul.f32 %v4644, %v4644
    %v4720 = vmul.f32 %v4535, %v4535
    %v4721 = vmul.f32 %v4537, %v4537
    %v4722 = vmul.f32 %v4648, %v4648
    %v4723 = vmul.f32 %v4650, %v4650
    %v4724 = vmul.f32 %v4539, %v4539
    %v4725 = vmul.f32 %v4541, %v4541
    %v4726 = vmul.f32 %v4652, %v4652
    %v4727 = vmul.f32 %v4654, %v4654
    %v4728 = vmul.f32 %v4545, %v4545
    %v4729 = vmul.f32 %v4547, %v4547
    %v4730 = vmul.f32 %v4658, %v4658
    %v4731 = vmul.f32 %v4660, %v4660
    %v4732 = vmul.f32 %v4549, %v4549
    %v4733 = vmul.f32 %v4551, %v4551
    %v4734 = vmul.f32 %v4662, %v4662
    %v4735 = vmul.f32 %v4664, %v4664
    %v4736 = vmul.f32 %v4555, %v4555
    %v4737 = vmul.f32 %v4557, %v4557
    %v4738 = vmul.f32 %v4668, %v4668
    %v4739 = vmul.f32 %v4670, %v4670
    %v4740 = vmul.f32 %v4559, %v4559
    %v4741 = vmul.f32 %v4561, %v4561
    %v4742 = vmul.f32 %v4672, %v4672
    %v4743 = vmul.f32 %v4674, %v4674
    %v4744 = vmul.f32 %v4565, %v4565
    %v4745 = vmul.f32 %v4567, %v4567
    %v4746 = vmul.f32 %v4678, %v4678
    %v4747 = vmul.f32 %v4680, %v4680
    %v4748 = vmul.f32 %v4569, %v4569
    %v4749 = vmul.f32 %v4571, %v4571
    %v4750 = vmul.f32 %v4682, %v4682
    %v4751 = vmul.f32 %v4684, %v4684
    %v4752 = vmul.f32 %v4575, %v4575
    %v4753 = vmul.f32 %v4577, %v4577
    %v4754 = vmul.f32 %v4688, %v4688
    %v4755 = vmul.f32 %v4690, %v4690
    %v4756 = vmul.f32 %v4579, %v4579
    %v4757 = vmul.f32 %v4581, %v4581
    %v4758 = vmul.f32 %v4692, %v4692
    %v4759 = vmul.f32 %v4694, %v4694
    %v4760 = vmul.f32 %v4505, %v4696
    %v4761 = vmul.f32 %v4507, %v4697
    %v4762 = vmul.f32 %v4618, %v4698
    %v4763 = vmul.f32 %v4620, %v4699
    %v4764 = vmul.f32 %v4509, %v4700
    %v4765 = vmul.f32 %v4511, %v4701
    %v4766 = vmul.f32 %v4622, %v4702
    %v4767 = vmul.f32 %v4624, %v4703
    %v4768 = vmul.f32 %v4515, %v4704
    %v4769 = vmul.f32 %v4517, %v4705
    %v4770 = vmul.f32 %v4628, %v4706
    %v4771 = vmul.f32 %v4630, %v4707
    %v4772 = vmul.f32 %v4519, %v4708
    %v4773 = vmul.f32 %v4521, %v4709
    %v4774 = vmul.f32 %v4632, %v4710
    %v4775 = vmul.f32 %v4634, %v4711
    %v4776 = vmul.f32 %v4525, %v4712
    %v4777 = vmul.f32 %v4527, %v4713
    %v4778 = vmul.f32 %v4638, %v4714
    %v4779 = vmul.f32 %v4640, %v4715
    %v4780 = vmul.f32 %v4529, %v4716
    %v4781 = vmul.f32 %v4531, %v4717
    %v4782 = vmul.f32 %v4642, %v4718
    %v4783 = vmul.f32 %v4644, %v4719
    %v4784 = vmul.f32 %v4535, %v4720
    %v4785 = vmul.f32 %v4537, %v4721
    %v4786 = vmul.f32 %v4648, %v4722
    %v4787 = vmul.f32 %v4650, %v4723
    %v4788 = vmul.f32 %v4539, %v4724
    %v4789 = vmul.f32 %v4541, %v4725
    %v4790 = vmul.f32 %v4652, %v4726
    %v4791 = vmul.f32 %v4654, %v4727
    %v4792 = vmul.f32 %v4545, %v4728
    %v4793 = vmul.f32 %v4547, %v4729
    %v4794 = vmul.f32 %v4658, %v4730
    %v4795 = vmul.f32 %v4660, %v4731
    %v4796 = vmul.f32 %v4549, %v4732
    %v4797 = vmul.f32 %v4551, %v4733
    %v4798 = vmul.f32 %v4662, %v4734
    %v4799 = vmul.f32 %v4664, %v4735
    %v4800 = vmul.f32 %v4555, %v4736
    %v4801 = vmul.f32 %v4557, %v4737
    %v4802 = vmul.f32 %v4668, %v4738
    %v4803 = vmul.f32 %v4670, %v4739
    %v4804 = vmul.f32 %v4559, %v4740
    %v4805 = vmul.f32 %v4561, %v4741
    %v4806 = vmul.f32 %v4672, %v4742
    %v4807 = vmul.f32 %v4674, %v4743
    %v4808 = vmul.f32 %v4565, %v4744
    %v4809 = vmul.f32 %v4567, %v4745
    %v4810 = vmul.f32 %v4678, %v4746
    %v4811 = vmul.f32 %v4680, %v4747
    %v4812 = vmul.f32 %v4569, %v4748
    %v4813 = vmul.f32 %v4571, %v4749
    %v4814 = vmul.f32 %v4682, %v4750
    %v4815 = vmul.f32 %v4684, %v4751
    %v4816 = vmul.f32 %v4575, %v4752
    %v4817 = vmul.f32 %v4577, %v4753
    %v4818 = vmul.f32 %v4688, %v4754
    %v4819 = vmul.f32 %v4690, %v4755
    %v4820 = vmul.f32 %v4579, %v4756
    %v4821 = vmul.f32 %v4581, %v4757
    %v4822 = vmul.f32 %v4692, %v4758
    %v4823 = vmul.f32 %v4694, %v4759
    %v4824 = vmul.f32 %v4760, 0.044715
    %v4825 = vmul.f32 %v4761, 0.044715
    %v4826 = vmul.f32 %v4762, 0.044715
    %v4827 = vmul.f32 %v4763, 0.044715
    %v4828 = vmul.f32 %v4764, 0.044715
    %v4829 = vmul.f32 %v4765, 0.044715
    %v4830 = vmul.f32 %v4766, 0.044715
    %v4831 = vmul.f32 %v4767, 0.044715
    %v4832 = vmul.f32 %v4768, 0.044715
    %v4833 = vmul.f32 %v4769, 0.044715
    %v4834 = vmul.f32 %v4770, 0.044715
    %v4835 = vmul.f32 %v4771, 0.044715
    %v4836 = vmul.f32 %v4772, 0.044715
    %v4837 = vmul.f32 %v4773, 0.044715
    %v4838 = vmul.f32 %v4774, 0.044715
    %v4839 = vmul.f32 %v4775, 0.044715
    %v4840 = vmul.f32 %v4776, 0.044715
    %v4841 = vmul.f32 %v4777, 0.044715
    %v4842 = vmul.f32 %v4778, 0.044715
    %v4843 = vmul.f32 %v4779, 0.044715
    %v4844 = vmul.f32 %v4780, 0.044715
    %v4845 = vmul.f32 %v4781, 0.044715
    %v4846 = vmul.f32 %v4782, 0.044715
    %v4847 = vmul.f32 %v4783, 0.044715
    %v4848 = vmul.f32 %v4784, 0.044715
    %v4849 = vmul.f32 %v4785, 0.044715
    %v4850 = vmul.f32 %v4786, 0.044715
    %v4851 = vmul.f32 %v4787, 0.044715
    %v4852 = vmul.f32 %v4788, 0.044715
    %v4853 = vmul.f32 %v4789, 0.044715
    %v4854 = vmul.f32 %v4790, 0.044715
    %v4855 = vmul.f32 %v4791, 0.044715
    %v4856 = vmul.f32 %v4792, 0.044715
    %v4857 = vmul.f32 %v4793, 0.044715
    %v4858 = vmul.f32 %v4794, 0.044715
    %v4859 = vmul.f32 %v4795, 0.044715
    %v4860 = vmul.f32 %v4796, 0.044715
    %v4861 = vmul.f32 %v4797, 0.044715
    %v4862 = vmul.f32 %v4798, 0.044715
    %v4863 = vmul.f32 %v4799, 0.044715
    %v4864 = vmul.f32 %v4800, 0.044715
    %v4865 = vmul.f32 %v4801, 0.044715
    %v4866 = vmul.f32 %v4802, 0.044715
    %v4867 = vmul.f32 %v4803, 0.044715
    %v4868 = vmul.f32 %v4804, 0.044715
    %v4869 = vmul.f32 %v4805, 0.044715
    %v4870 = vmul.f32 %v4806, 0.044715
    %v4871 = vmul.f32 %v4807, 0.044715
    %v4872 = vmul.f32 %v4808, 0.044715
    %v4873 = vmul.f32 %v4809, 0.044715
    %v4874 = vmul.f32 %v4810, 0.044715
    %v4875 = vmul.f32 %v4811, 0.044715
    %v4876 = vmul.f32 %v4812, 0.044715
    %v4877 = vmul.f32 %v4813, 0.044715
    %v4878 = vmul.f32 %v4814, 0.044715
    %v4879 = vmul.f32 %v4815, 0.044715
    %v4880 = vmul.f32 %v4816, 0.044715
    %v4881 = vmul.f32 %v4817, 0.044715
    %v4882 = vmul.f32 %v4818, 0.044715
    %v4883 = vmul.f32 %v4819, 0.044715
    %v4884 = vmul.f32 %v4820, 0.044715
    %v4885 = vmul.f32 %v4821, 0.044715
    %v4886 = vmul.f32 %v4822, 0.044715
    %v4887 = vmul.f32 %v4823, 0.044715
    %v4888 = vadd.f32 %v4505, %v4824
    %v4889 = vadd.f32 %v4507, %v4825
    %v4890 = vadd.f32 %v4618, %v4826
    %v4891 = vadd.f32 %v4620, %v4827
    %v4892 = vadd.f32 %v4509, %v4828
    %v4893 = vadd.f32 %v4511, %v4829
    %v4894 = vadd.f32 %v4622, %v4830
    %v4895 = vadd.f32 %v4624, %v4831
    %v4896 = vadd.f32 %v4515, %v4832
    %v4897 = vadd.f32 %v4517, %v4833
    %v4898 = vadd.f32 %v4628, %v4834
    %v4899 = vadd.f32 %v4630, %v4835
    %v4900 = vadd.f32 %v4519, %v4836
    %v4901 = vadd.f32 %v4521, %v4837
    %v4902 = vadd.f32 %v4632, %v4838
    %v4903 = vadd.f32 %v4634, %v4839
    %v4904 = vadd.f32 %v4525, %v4840
    %v4905 = vadd.f32 %v4527, %v4841
    %v4906 = vadd.f32 %v4638, %v4842
    %v4907 = vadd.f32 %v4640, %v4843
    %v4908 = vadd.f32 %v4529, %v4844
    %v4909 = vadd.f32 %v4531, %v4845
    %v4910 = vadd.f32 %v4642, %v4846
    %v4911 = vadd.f32 %v4644, %v4847
    %v4912 = vadd.f32 %v4535, %v4848
    %v4913 = vadd.f32 %v4537, %v4849
    %v4914 = vadd.f32 %v4648, %v4850
    %v4915 = vadd.f32 %v4650, %v4851
    %v4916 = vadd.f32 %v4539, %v4852
    %v4917 = vadd.f32 %v4541, %v4853
    %v4918 = vadd.f32 %v4652, %v4854
    %v4919 = vadd.f32 %v4654, %v4855
    %v4920 = vadd.f32 %v4545, %v4856
    %v4921 = vadd.f32 %v4547, %v4857
    %v4922 = vadd.f32 %v4658, %v4858
    %v4923 = vadd.f32 %v4660, %v4859
    %v4924 = vadd.f32 %v4549, %v4860
    %v4925 = vadd.f32 %v4551, %v4861
    %v4926 = vadd.f32 %v4662, %v4862
    %v4927 = vadd.f32 %v4664, %v4863
    %v4928 = vadd.f32 %v4555, %v4864
    %v4929 = vadd.f32 %v4557, %v4865
    %v4930 = vadd.f32 %v4668, %v4866
    %v4931 = vadd.f32 %v4670, %v4867
    %v4932 = vadd.f32 %v4559, %v4868
    %v4933 = vadd.f32 %v4561, %v4869
    %v4934 = vadd.f32 %v4672, %v4870
    %v4935 = vadd.f32 %v4674, %v4871
    %v4936 = vadd.f32 %v4565, %v4872
    %v4937 = vadd.f32 %v4567, %v4873
    %v4938 = vadd.f32 %v4678, %v4874
    %v4939 = vadd.f32 %v4680, %v4875
    %v4940 = vadd.f32 %v4569, %v4876
    %v4941 = vadd.f32 %v4571, %v4877
    %v4942 = vadd.f32 %v4682, %v4878
    %v4943 = vadd.f32 %v4684, %v4879
    %v4944 = vadd.f32 %v4575, %v4880
    %v4945 = vadd.f32 %v4577, %v4881
    %v4946 = vadd.f32 %v4688, %v4882
    %v4947 = vadd.f32 %v4690, %v4883
    %v4948 = vadd.f32 %v4579, %v4884
    %v4949 = vadd.f32 %v4581, %v4885
    %v4950 = vadd.f32 %v4692, %v4886
    %v4951 = vadd.f32 %v4694, %v4887
    %v4952 = vmul.f32 %v4888, 0.7978846
    %v4953 = vmul.f32 %v4889, 0.7978846
    %v4954 = vmul.f32 %v4890, 0.7978846
    %v4955 = vmul.f32 %v4891, 0.7978846
    %v4956 = vmul.f32 %v4892, 0.7978846
    %v4957 = vmul.f32 %v4893, 0.7978846
    %v4958 = vmul.f32 %v4894, 0.7978846
    %v4959 = vmul.f32 %v4895, 0.7978846
    %v4960 = vmul.f32 %v4896, 0.7978846
    %v4961 = vmul.f32 %v4897, 0.7978846
    %v4962 = vmul.f32 %v4898, 0.7978846
    %v4963 = vmul.f32 %v4899, 0.7978846
    %v4964 = vmul.f32 %v4900, 0.7978846
    %v4965 = vmul.f32 %v4901, 0.7978846
    %v4966 = vmul.f32 %v4902, 0.7978846
    %v4967 = vmul.f32 %v4903, 0.7978846
    %v4968 = vmul.f32 %v4904, 0.7978846
    %v4969 = vmul.f32 %v4905, 0.7978846
    %v4970 = vmul.f32 %v4906, 0.7978846
    %v4971 = vmul.f32 %v4907, 0.7978846
    %v4972 = vmul.f32 %v4908, 0.7978846
    %v4973 = vmul.f32 %v4909, 0.7978846
    %v4974 = vmul.f32 %v4910, 0.7978846
    %v4975 = vmul.f32 %v4911, 0.7978846
    %v4976 = vmul.f32 %v4912, 0.7978846
    %v4977 = vmul.f32 %v4913, 0.7978846
    %v4978 = vmul.f32 %v4914, 0.7978846
    %v4979 = vmul.f32 %v4915, 0.7978846
    %v4980 = vmul.f32 %v4916, 0.7978846
    %v4981 = vmul.f32 %v4917, 0.7978846
    %v4982 = vmul.f32 %v4918, 0.7978846
    %v4983 = vmul.f32 %v4919, 0.7978846
    %v4984 = vmul.f32 %v4920, 0.7978846
    %v4985 = vmul.f32 %v4921, 0.7978846
    %v4986 = vmul.f32 %v4922, 0.7978846
    %v4987 = vmul.f32 %v4923, 0.7978846
    %v4988 = vmul.f32 %v4924, 0.7978846
    %v4989 = vmul.f32 %v4925, 0.7978846
    %v4990 = vmul.f32 %v4926, 0.7978846
    %v4991 = vmul.f32 %v4927, 0.7978846
    %v4992 = vmul.f32 %v4928, 0.7978846
    %v4993 = vmul.f32 %v4929, 0.7978846
    %v4994 = vmul.f32 %v4930, 0.7978846
    %v4995 = vmul.f32 %v4931, 0.7978846
    %v4996 = vmul.f32 %v4932, 0.7978846
    %v4997 = vmul.f32 %v4933, 0.7978846
    %v4998 = vmul.f32 %v4934, 0.7978846
    %v4999 = vmul.f32 %v4935, 0.7978846
    %v5000 = vmul.f32 %v4936, 0.7978846
    %v5001 = vmul.f32 %v4937, 0.7978846
    %v5002 = vmul.f32 %v4938, 0.7978846
    %v5003 = vmul.f32 %v4939, 0.7978846
    %v5004 = vmul.f32 %v4940, 0.7978846
    %v5005 = vmul.f32 %v4941, 0.7978846
    %v5006 = vmul.f32 %v4942, 0.7978846
    %v5007 = vmul.f32 %v4943, 0.7978846
    %v5008 = vmul.f32 %v4944, 0.7978846
    %v5009 = vmul.f32 %v4945, 0.7978846
    %v5010 = vmul.f32 %v4946, 0.7978846
    %v5011 = vmul.f32 %v4947, 0.7978846
    %v5012 = vmul.f32 %v4948, 0.7978846
    %v5013 = vmul.f32 %v4949, 0.7978846
    %v5014 = vmul.f32 %v4950, 0.7978846
    %v5015 = vmul.f32 %v4951, 0.7978846
    %v5016 = vtanh.pop %v4952
    %v5017 = vtanh.pop %v4953
    %v5018 = vtanh.pop %v4954
    %v5019 = vtanh.pop %v4955
    %v5020 = vtanh.pop %v4956
    %v5021 = vtanh.pop %v4957
    %v5022 = vtanh.pop %v4958
    %v5023 = vtanh.pop %v4959
    %v5024 = vtanh.pop %v4960
    %v5025 = vtanh.pop %v4961
    %v5026 = vtanh.pop %v4962
    %v5027 = vtanh.pop %v4963
    %v5028 = vtanh.pop %v4964
    %v5029 = vtanh.pop %v4965
    %v5030 = vtanh.pop %v4966
    %v5031 = vtanh.pop %v4967
    %v5032 = vtanh.pop %v4968
    %v5033 = vtanh.pop %v4969
    %v5034 = vtanh.pop %v4970
    %v5035 = vtanh.pop %v4971
    %v5036 = vtanh.pop %v4972
    %v5037 = vtanh.pop %v4973
    %v5038 = vtanh.pop %v4974
    %v5039 = vtanh.pop %v4975
    %v5040 = vtanh.pop %v4976
    %v5041 = vtanh.pop %v4977
    %v5042 = vtanh.pop %v4978
    %v5043 = vtanh.pop %v4979
    %v5044 = vtanh.pop %v4980
    %v5045 = vtanh.pop %v4981
    %v5046 = vtanh.pop %v4982
    %v5047 = vtanh.pop %v4983
    %v5048 = vtanh.pop %v4984
    %v5049 = vtanh.pop %v4985
    %v5050 = vtanh.pop %v4986
    %v5051 = vtanh.pop %v4987
    %v5052 = vtanh.pop %v4988
    %v5053 = vtanh.pop %v4989
    %v5054 = vtanh.pop %v4990
    %v5055 = vtanh.pop %v4991
    %v5056 = vtanh.pop %v4992
    %v5057 = vtanh.pop %v4993
    %v5058 = vtanh.pop %v4994
    %v5059 = vtanh.pop %v4995
    %v5060 = vtanh.pop %v4996
    %v5061 = vtanh.pop %v4997
    %v5062 = vtanh.pop %v4998
    %v5063 = vtanh.pop %v4999
    %v5064 = vtanh.pop %v5000
    %v5065 = vtanh.pop %v5001
    %v5066 = vtanh.pop %v5002
    %v5067 = vtanh.pop %v5003
    %v5068 = vtanh.pop %v5004
    %v5069 = vtanh.pop %v5005
    %v5070 = vtanh.pop %v5006
    %v5071 = vtanh.pop %v5007
    %v5072 = vtanh.pop %v5008
    %v5073 = vtanh.pop %v5009
    %v5074 = vtanh.pop %v5010
    %v5075 = vtanh.pop %v5011
    %v5076 = vtanh.pop %v5012
    %v5077 = vtanh.pop %v5013
    %v5078 = vtanh.pop %v5014
    %v5079 = vtanh.pop %v5015
    %v5080 = vadd.f32 %v5016, 1.0
    %v5081 = vadd.f32 %v5017, 1.0
    %v5082 = vadd.f32 %v5018, 1.0
    %v5083 = vadd.f32 %v5019, 1.0
    %v5084 = vadd.f32 %v5020, 1.0
    %v5085 = vadd.f32 %v5021, 1.0
    %v5086 = vadd.f32 %v5022, 1.0
    %v5087 = vadd.f32 %v5023, 1.0
    %v5088 = vadd.f32 %v5024, 1.0
    %v5089 = vadd.f32 %v5025, 1.0
    %v5090 = vadd.f32 %v5026, 1.0
    %v5091 = vadd.f32 %v5027, 1.0
    %v5092 = vadd.f32 %v5028, 1.0
    %v5093 = vadd.f32 %v5029, 1.0
    %v5094 = vadd.f32 %v5030, 1.0
    %v5095 = vadd.f32 %v5031, 1.0
    %v5096 = vadd.f32 %v5032, 1.0
    %v5097 = vadd.f32 %v5033, 1.0
    %v5098 = vadd.f32 %v5034, 1.0
    %v5099 = vadd.f32 %v5035, 1.0
    %v5100 = vadd.f32 %v5036, 1.0
    %v5101 = vadd.f32 %v5037, 1.0
    %v5102 = vadd.f32 %v5038, 1.0
    %v5103 = vadd.f32 %v5039, 1.0
    %v5104 = vadd.f32 %v5040, 1.0
    %v5105 = vadd.f32 %v5041, 1.0
    %v5106 = vadd.f32 %v5042, 1.0
    %v5107 = vadd.f32 %v5043, 1.0
    %v5108 = vadd.f32 %v5044, 1.0
    %v5109 = vadd.f32 %v5045, 1.0
    %v5110 = vadd.f32 %v5046, 1.0
    %v5111 = vadd.f32 %v5047, 1.0
    %v5112 = vadd.f32 %v5048, 1.0
    %v5113 = vadd.f32 %v5049, 1.0
    %v5114 = vadd.f32 %v5050, 1.0
    %v5115 = vadd.f32 %v5051, 1.0
    %v5116 = vadd.f32 %v5052, 1.0
    %v5117 = vadd.f32 %v5053, 1.0
    %v5118 = vadd.f32 %v5054, 1.0
    %v5119 = vadd.f32 %v5055, 1.0
    %v5120 = vadd.f32 %v5056, 1.0
    %v5121 = vadd.f32 %v5057, 1.0
    %v5122 = vadd.f32 %v5058, 1.0
    %v5123 = vadd.f32 %v5059, 1.0
    %v5124 = vadd.f32 %v5060, 1.0
    %v5125 = vadd.f32 %v5061, 1.0
    %v5126 = vadd.f32 %v5062, 1.0
    %v5127 = vadd.f32 %v5063, 1.0
    %v5128 = vadd.f32 %v5064, 1.0
    %v5129 = vadd.f32 %v5065, 1.0
    %v5130 = vadd.f32 %v5066, 1.0
    %v5131 = vadd.f32 %v5067, 1.0
    %v5132 = vadd.f32 %v5068, 1.0
    %v5133 = vadd.f32 %v5069, 1.0
    %v5134 = vadd.f32 %v5070, 1.0
    %v5135 = vadd.f32 %v5071, 1.0
    %v5136 = vadd.f32 %v5072, 1.0
    %v5137 = vadd.f32 %v5073, 1.0
    %v5138 = vadd.f32 %v5074, 1.0
    %v5139 = vadd.f32 %v5075, 1.0
    %v5140 = vadd.f32 %v5076, 1.0
    %v5141 = vadd.f32 %v5077, 1.0
    %v5142 = vadd.f32 %v5078, 1.0
    %v5143 = vadd.f32 %v5079, 1.0
    %v5144 = vmul.f32 %v5080, 0.5
    %v5145 = vmul.f32 %v5081, 0.5
    %v5146 = vmul.f32 %v5082, 0.5
    %v5147 = vmul.f32 %v5083, 0.5
    %v5148 = vmul.f32 %v5084, 0.5
    %v5149 = vmul.f32 %v5085, 0.5
    %v5150 = vmul.f32 %v5086, 0.5
    %v5151 = vmul.f32 %v5087, 0.5
    %v5152 = vmul.f32 %v5088, 0.5
    %v5153 = vmul.f32 %v5089, 0.5
    %v5154 = vmul.f32 %v5090, 0.5
    %v5155 = vmul.f32 %v5091, 0.5
    %v5156 = vmul.f32 %v5092, 0.5
    %v5157 = vmul.f32 %v5093, 0.5
    %v5158 = vmul.f32 %v5094, 0.5
    %v5159 = vmul.f32 %v5095, 0.5
    %v5160 = vmul.f32 %v5096, 0.5
    %v5161 = vmul.f32 %v5097, 0.5
    %v5162 = vmul.f32 %v5098, 0.5
    %v5163 = vmul.f32 %v5099, 0.5
    %v5164 = vmul.f32 %v5100, 0.5
    %v5165 = vmul.f32 %v5101, 0.5
    %v5166 = vmul.f32 %v5102, 0.5
    %v5167 = vmul.f32 %v5103, 0.5
    %v5168 = vmul.f32 %v5104, 0.5
    %v5169 = vmul.f32 %v5105, 0.5
    %v5170 = vmul.f32 %v5106, 0.5
    %v5171 = vmul.f32 %v5107, 0.5
    %v5172 = vmul.f32 %v5108, 0.5
    %v5173 = vmul.f32 %v5109, 0.5
    %v5174 = vmul.f32 %v5110, 0.5
    %v5175 = vmul.f32 %v5111, 0.5
    %v5176 = vmul.f32 %v5112, 0.5
    %v5177 = vmul.f32 %v5113, 0.5
    %v5178 = vmul.f32 %v5114, 0.5
    %v5179 = vmul.f32 %v5115, 0.5
    %v5180 = vmul.f32 %v5116, 0.5
    %v5181 = vmul.f32 %v5117, 0.5
    %v5182 = vmul.f32 %v5118, 0.5
    %v5183 = vmul.f32 %v5119, 0.5
    %v5184 = vmul.f32 %v5120, 0.5
    %v5185 = vmul.f32 %v5121, 0.5
    %v5186 = vmul.f32 %v5122, 0.5
    %v5187 = vmul.f32 %v5123, 0.5
    %v5188 = vmul.f32 %v5124, 0.5
    %v5189 = vmul.f32 %v5125, 0.5
    %v5190 = vmul.f32 %v5126, 0.5
    %v5191 = vmul.f32 %v5127, 0.5
    %v5192 = vmul.f32 %v5128, 0.5
    %v5193 = vmul.f32 %v5129, 0.5
    %v5194 = vmul.f32 %v5130, 0.5
    %v5195 = vmul.f32 %v5131, 0.5
    %v5196 = vmul.f32 %v5132, 0.5
    %v5197 = vmul.f32 %v5133, 0.5
    %v5198 = vmul.f32 %v5134, 0.5
    %v5199 = vmul.f32 %v5135, 0.5
    %v5200 = vmul.f32 %v5136, 0.5
    %v5201 = vmul.f32 %v5137, 0.5
    %v5202 = vmul.f32 %v5138, 0.5
    %v5203 = vmul.f32 %v5139, 0.5
    %v5204 = vmul.f32 %v5140, 0.5
    %v5205 = vmul.f32 %v5141, 0.5
    %v5206 = vmul.f32 %v5142, 0.5
    %v5207 = vmul.f32 %v5143, 0.5
    %v5208 = vmul.f32 %v4505, %v5144
    %v5209 = vmul.f32 %v4507, %v5145
    %v5210 = vmul.f32 %v4618, %v5146
    %v5211 = vmul.f32 %v4620, %v5147
    %v5212 = vmul.f32 %v4509, %v5148
    %v5213 = vmul.f32 %v4511, %v5149
    %v5214 = vmul.f32 %v4622, %v5150
    %v5215 = vmul.f32 %v4624, %v5151
    %v5216 = vmul.f32 %v4515, %v5152
    %v5217 = vmul.f32 %v4517, %v5153
    %v5218 = vmul.f32 %v4628, %v5154
    %v5219 = vmul.f32 %v4630, %v5155
    %v5220 = vmul.f32 %v4519, %v5156
    %v5221 = vmul.f32 %v4521, %v5157
    %v5222 = vmul.f32 %v4632, %v5158
    %v5223 = vmul.f32 %v4634, %v5159
    %v5224 = vmul.f32 %v4525, %v5160
    %v5225 = vmul.f32 %v4527, %v5161
    %v5226 = vmul.f32 %v4638, %v5162
    %v5227 = vmul.f32 %v4640, %v5163
    %v5228 = vmul.f32 %v4529, %v5164
    %v5229 = vmul.f32 %v4531, %v5165
    %v5230 = vmul.f32 %v4642, %v5166
    %v5231 = vmul.f32 %v4644, %v5167
    %v5232 = vmul.f32 %v4535, %v5168
    %v5233 = vmul.f32 %v4537, %v5169
    %v5234 = vmul.f32 %v4648, %v5170
    %v5235 = vmul.f32 %v4650, %v5171
    %v5236 = vmul.f32 %v4539, %v5172
    %v5237 = vmul.f32 %v4541, %v5173
    %v5238 = vmul.f32 %v4652, %v5174
    %v5239 = vmul.f32 %v4654, %v5175
    %v5240 = vmul.f32 %v4545, %v5176
    %v5241 = vmul.f32 %v4547, %v5177
    %v5242 = vmul.f32 %v4658, %v5178
    %v5243 = vmul.f32 %v4660, %v5179
    %v5244 = vmul.f32 %v4549, %v5180
    %v5245 = vmul.f32 %v4551, %v5181
    %v5246 = vmul.f32 %v4662, %v5182
    %v5247 = vmul.f32 %v4664, %v5183
    %v5248 = vmul.f32 %v4555, %v5184
    %v5249 = vmul.f32 %v4557, %v5185
    %v5250 = vmul.f32 %v4668, %v5186
    %v5251 = vmul.f32 %v4670, %v5187
    %v5252 = vmul.f32 %v4559, %v5188
    %v5253 = vmul.f32 %v4561, %v5189
    %v5254 = vmul.f32 %v4672, %v5190
    %v5255 = vmul.f32 %v4674, %v5191
    %v5256 = vmul.f32 %v4565, %v5192
    %v5257 = vmul.f32 %v4567, %v5193
    %v5258 = vmul.f32 %v4678, %v5194
    %v5259 = vmul.f32 %v4680, %v5195
    %v5260 = vmul.f32 %v4569, %v5196
    %v5261 = vmul.f32 %v4571, %v5197
    %v5262 = vmul.f32 %v4682, %v5198
    %v5263 = vmul.f32 %v4684, %v5199
    %v5264 = vmul.f32 %v4575, %v5200
    %v5265 = vmul.f32 %v4577, %v5201
    %v5266 = vmul.f32 %v4688, %v5202
    %v5267 = vmul.f32 %v4690, %v5203
    %v5268 = vmul.f32 %v4579, %v5204
    %v5269 = vmul.f32 %v4581, %v5205
    %v5270 = vmul.f32 %v4692, %v5206
    %v5271 = vmul.f32 %v4694, %v5207
    %v5272 = vpack.c.bf16 %v5212, %v5208
    %v5273 = vpack.c.bf16 %v5213, %v5209
    %v5274 = vpack.c.bf16 %v5214, %v5210
    %v5275 = vpack.c.bf16 %v5215, %v5211
    %v5276 = vpack.c.bf16 %v5220, %v5216
    %v5277 = vpack.c.bf16 %v5221, %v5217
    %v5278 = vpack.c.bf16 %v5222, %v5218
    %v5279 = vpack.c.bf16 %v5223, %v5219
    %v5280 = vpack.c.bf16 %v5228, %v5224
    %v5281 = vpack.c.bf16 %v5229, %v5225
    %v5282 = vpack.c.bf16 %v5230, %v5226
    %v5283 = vpack.c.bf16 %v5231, %v5227
    %v5284 = vpack.c.bf16 %v5236, %v5232
    %v5285 = vpack.c.bf16 %v5237, %v5233
    %v5286 = vpack.c.bf16 %v5238, %v5234
    %v5287 = vpack.c.bf16 %v5239, %v5235
    %v5288 = vpack.c.bf16 %v5244, %v5240
    %v5289 = vpack.c.bf16 %v5245, %v5241
    %v5290 = vpack.c.bf16 %v5246, %v5242
    %v5291 = vpack.c.bf16 %v5247, %v5243
    %v5292 = vpack.c.bf16 %v5252, %v5248
    %v5293 = vpack.c.bf16 %v5253, %v5249
    %v5294 = vpack.c.bf16 %v5254, %v5250
    %v5295 = vpack.c.bf16 %v5255, %v5251
    %v5296 = vpack.c.bf16 %v5260, %v5256
    %v5297 = vpack.c.bf16 %v5261, %v5257
    %v5298 = vpack.c.bf16 %v5262, %v5258
    %v5299 = vpack.c.bf16 %v5263, %v5259
    %v5300 = vpack.c.bf16 %v5268, %v5264
    %v5301 = vpack.c.bf16 %v5269, %v5265
    %v5302 = vpack.c.bf16 %v5270, %v5266
    %v5303 = vpack.c.bf16 %v5271, %v5267
    %v5304 = vld [vmem:[%s14] sm:$0xf]
    %v5305 = vld [vmem:[%s14 + $0x4] sm:$0xf]
    %v5306 = vld [vmem:[%s14 + $0x8] sm:$0xf]
    %v5307 = vld [vmem:[%s14 + $0xc] sm:$0xf]
    %v5308 = vld [vmem:[%s14 + $0x10] sm:$0xf]
    %v5309 = vld [vmem:[%s14 + $0x14] sm:$0xf]
    %v5310 = vld [vmem:[%s14 + $0x18] sm:$0xf]
    %v5311 = vld [vmem:[%s14 + $0x1c] sm:$0xf]
    %v5312 = vld [vmem:[%s14 + $0x20] sm:$0xf]
    %v5313 = vld [vmem:[%s14 + $0x24] sm:$0xf]
    %v5314 = vld [vmem:[%s14 + $0x28] sm:$0xf]
    %v5315 = vld [vmem:[%s14 + $0x2c] sm:$0xf]
    %v5316 = vld [vmem:[%s14 + $0x30] sm:$0xf]
    %v5317 = vld [vmem:[%s14 + $0x34] sm:$0xf]
    %v5318 = vld [vmem:[%s14 + $0x38] sm:$0xf]
    %v5319 = vld [vmem:[%s14 + $0x3c] sm:$0xf]
    %v5320 = vld [vmem:[%s14 + $0x40] sm:$0xf]
    %v5321 = vld [vmem:[%s14 + $0x44] sm:$0xf]
    %v5322 = vld [vmem:[%s14 + $0x48] sm:$0xf]
    %v5323 = vld [vmem:[%s14 + $0x4c] sm:$0xf]
    %v5324 = vld [vmem:[%s14 + $0x50] sm:$0xf]
    %v5325 = vld [vmem:[%s14 + $0x54] sm:$0xf]
    %v5326 = vld [vmem:[%s14 + $0x58] sm:$0xf]
    %v5327 = vld [vmem:[%s14 + $0x5c] sm:$0xf]
    %v5328 = vld [vmem:[%s14 + $0x60] sm:$0xf]
    %v5329 = vld [vmem:[%s14 + $0x64] sm:$0xf]
    %v5330 = vld [vmem:[%s14 + $0x68] sm:$0xf]
    %v5331 = vld [vmem:[%s14 + $0x6c] sm:$0xf]
    %v5332 = vld [vmem:[%s14 + $0x70] sm:$0xf]
    %v5333 = vld [vmem:[%s14 + $0x74] sm:$0xf]
    %v5334 = vld [vmem:[%s14 + $0x78] sm:$0xf]
    %v5335 = vld [vmem:[%s14 + $0x7c] sm:$0xf]
    %v5336 = vld [vmem:[%s14 + $0x80] sm:$0xf]
    %v5337 = vld [vmem:[%s14 + $0x84] sm:$0xf]
    %v5338 = vld [vmem:[%s14 + $0x88] sm:$0xf]
    %v5339 = vld [vmem:[%s14 + $0x8c] sm:$0xf]
    %v5340 = vld [vmem:[%s14 + $0x90] sm:$0xf]
    %v5341 = vld [vmem:[%s14 + $0x94] sm:$0xf]
    %v5342 = vld [vmem:[%s14 + $0x98] sm:$0xf]
    %v5343 = vld [vmem:[%s14 + $0x9c] sm:$0xf]
    %v5344 = vld [vmem:[%s14 + $0xa0] sm:$0xf]
    %v5345 = vld [vmem:[%s14 + $0xa4] sm:$0xf]
    %v5346 = vld [vmem:[%s14 + $0xa8] sm:$0xf]
    %v5347 = vld [vmem:[%s14 + $0xac] sm:$0xf]
    %v5348 = vld [vmem:[%s14 + $0xb0] sm:$0xf]
    %v5349 = vld [vmem:[%s14 + $0xb4] sm:$0xf]
    %v5350 = vld [vmem:[%s14 + $0xb8] sm:$0xf]
    %v5351 = vld [vmem:[%s14 + $0xbc] sm:$0xf]
    %v5352 = vld [vmem:[%s14 + $0xc0] sm:$0xf]
    %v5353 = vld [vmem:[%s14 + $0xc4] sm:$0xf]
    %v5354 = vld [vmem:[%s14 + $0xc8] sm:$0xf]
    %v5355 = vld [vmem:[%s14 + $0xcc] sm:$0xf]
    %v5356 = vld [vmem:[%s14 + $0xd0] sm:$0xf]
    %v5357 = vld [vmem:[%s14 + $0xd4] sm:$0xf]
    %v5358 = vld [vmem:[%s14 + $0xd8] sm:$0xf]
    %v5359 = vld [vmem:[%s14 + $0xdc] sm:$0xf]
    %v5360 = vld [vmem:[%s14 + $0xe0] sm:$0xf]
    %v5361 = vld [vmem:[%s14 + $0xe4] sm:$0xf]
    %v5362 = vld [vmem:[%s14 + $0xe8] sm:$0xf]
    %v5363 = vld [vmem:[%s14 + $0xec] sm:$0xf]
    %v5364 = vld [vmem:[%s14 + $0xf0] sm:$0xf]
    %v5365 = vld [vmem:[%s14 + $0xf4] sm:$0xf]
    %v5366 = vld [vmem:[%s14 + $0xf8] sm:$0xf]
    %v5367 = vld [vmem:[%s14 + $0xfc] sm:$0xf]
    %v5368 = vld [vmem:[#allocation13] sm:$0x1]
    %v5370 = vlaneseq
    %v5371 = vshrl.u32 %v5370, 7
    %v5372 = vsub.s32 0, %v5371
    %v5373 = vrot.slane %v5368, %v5372
    %v5439 = vunpack.c.l.b16 %v5304
    %v5440 = vunpack.c.l.b16 %v5305
    %v5441 = vunpack.c.l.b16 %v5306
    %v5442 = vunpack.c.l.b16 %v5307
    %v5443 = vunpack.c.l.b16 %v5308
    %v5444 = vunpack.c.l.b16 %v5309
    %v5445 = vunpack.c.l.b16 %v5310
    %v5446 = vunpack.c.l.b16 %v5311
    %v5447 = vunpack.c.l.b16 %v5312
    %v5448 = vunpack.c.l.b16 %v5313
    %v5449 = vunpack.c.l.b16 %v5314
    %v5450 = vunpack.c.l.b16 %v5315
    %v5451 = vunpack.c.l.b16 %v5316
    %v5452 = vunpack.c.l.b16 %v5317
    %v5453 = vunpack.c.l.b16 %v5318
    %v5454 = vunpack.c.l.b16 %v5319
    %v5455 = vunpack.c.l.b16 %v5320
    %v5456 = vunpack.c.l.b16 %v5321
    %v5457 = vunpack.c.l.b16 %v5322
    %v5458 = vunpack.c.l.b16 %v5323
    %v5459 = vunpack.c.l.b16 %v5324
    %v5460 = vunpack.c.l.b16 %v5325
    %v5461 = vunpack.c.l.b16 %v5326
    %v5462 = vunpack.c.l.b16 %v5327
    %v5463 = vunpack.c.l.b16 %v5328
    %v5464 = vunpack.c.l.b16 %v5329
    %v5465 = vunpack.c.l.b16 %v5330
    %v5466 = vunpack.c.l.b16 %v5331
    %v5467 = vunpack.c.l.b16 %v5332
    %v5468 = vunpack.c.l.b16 %v5333
    %v5469 = vunpack.c.l.b16 %v5334
    %v5470 = vunpack.c.l.b16 %v5335
    %v5471 = vunpack.c.l.b16 %v5336
    %v5472 = vunpack.c.l.b16 %v5337
    %v5473 = vunpack.c.l.b16 %v5338
    %v5474 = vunpack.c.l.b16 %v5339
    %v5475 = vunpack.c.l.b16 %v5340
    %v5476 = vunpack.c.l.b16 %v5341
    %v5477 = vunpack.c.l.b16 %v5342
    %v5478 = vunpack.c.l.b16 %v5343
    %v5479 = vunpack.c.l.b16 %v5344
    %v5480 = vunpack.c.l.b16 %v5345
    %v5481 = vunpack.c.l.b16 %v5346
    %v5482 = vunpack.c.l.b16 %v5347
    %v5483 = vunpack.c.l.b16 %v5348
    %v5484 = vunpack.c.l.b16 %v5349
    %v5485 = vunpack.c.l.b16 %v5350
    %v5486 = vunpack.c.l.b16 %v5351
    %v5487 = vunpack.c.l.b16 %v5352
    %v5488 = vunpack.c.l.b16 %v5353
    %v5489 = vunpack.c.l.b16 %v5354
    %v5490 = vunpack.c.l.b16 %v5355
    %v5491 = vunpack.c.l.b16 %v5356
    %v5492 = vunpack.c.l.b16 %v5357
    %v5493 = vunpack.c.l.b16 %v5358
    %v5494 = vunpack.c.l.b16 %v5359
    %v5495 = vunpack.c.l.b16 %v5360
    %v5496 = vunpack.c.l.b16 %v5361
    %v5497 = vunpack.c.l.b16 %v5362
    %v5498 = vunpack.c.l.b16 %v5363
    %v5499 = vunpack.c.l.b16 %v5364
    %v5500 = vunpack.c.l.b16 %v5365
    %v5501 = vunpack.c.l.b16 %v5366
    %v5502 = vunpack.c.l.b16 %v5367
    %v5503 = vpack.c.b16 %v5440, %v5439
    %v5504 = vpack.c.b16 %v5442, %v5441
    %v5505 = vpack.c.b16 %v5444, %v5443
    %v5506 = vpack.c.b16 %v5446, %v5445
    %v5507 = vpack.c.b16 %v5448, %v5447
    %v5508 = vpack.c.b16 %v5450, %v5449
    %v5509 = vpack.c.b16 %v5452, %v5451
    %v5510 = vpack.c.b16 %v5454, %v5453
    %v5511 = vpack.c.b16 %v5456, %v5455
    %v5512 = vpack.c.b16 %v5458, %v5457
    %v5513 = vpack.c.b16 %v5460, %v5459
    %v5514 = vpack.c.b16 %v5462, %v5461
    %v5515 = vpack.c.b16 %v5464, %v5463
    %v5516 = vpack.c.b16 %v5466, %v5465
    %v5517 = vpack.c.b16 %v5468, %v5467
    %v5518 = vpack.c.b16 %v5470, %v5469
    %v5519 = vpack.c.b16 %v5472, %v5471
    %v5520 = vpack.c.b16 %v5474, %v5473
    %v5521 = vpack.c.b16 %v5476, %v5475
    %v5522 = vpack.c.b16 %v5478, %v5477
    %v5523 = vpack.c.b16 %v5480, %v5479
    %v5524 = vpack.c.b16 %v5482, %v5481
    %v5525 = vpack.c.b16 %v5484, %v5483
    %v5526 = vpack.c.b16 %v5486, %v5485
    %v5527 = vpack.c.b16 %v5488, %v5487
    %v5528 = vpack.c.b16 %v5490, %v5489
    %v5529 = vpack.c.b16 %v5492, %v5491
    %v5530 = vpack.c.b16 %v5494, %v5493
    %v5531 = vpack.c.b16 %v5496, %v5495
    %v5532 = vpack.c.b16 %v5498, %v5497
    %v5533 = vpack.c.b16 %v5500, %v5499
    %v5534 = vpack.c.b16 %v5502, %v5501
    %5567 = vmatprep.subr.bf16.mxu0 0
    %5568 = vmatpush1.bf16.msra.mxu0 %v5503
    %5569 = vmatprep.subr.bf16.mxu0 0
    %5570 = vmatpush1.bf16.msra.mxu0 %v5504
    %5571 = vmatprep.subr.bf16.mxu0 0
    %5572 = vmatpush1.bf16.msra.mxu0 %v5505
    %5573 = vmatprep.subr.bf16.mxu0 0
    %5574 = vmatpush1.bf16.msra.mxu0 %v5506
    %5575 = vmatprep.subr.bf16.mxu0 0
    %5576 = vmatpush1.bf16.msra.mxu0 %v5507
    %5577 = vmatprep.subr.bf16.mxu0 0
    %5578 = vmatpush1.bf16.msra.mxu0 %v5508
    %5579 = vmatprep.subr.bf16.mxu0 0
    %5580 = vmatpush1.bf16.msra.mxu0 %v5509
    %5581 = vmatprep.subr.bf16.mxu0 0
    %5582 = vmatpush1.bf16.msra.mxu0 %v5510
    %5583 = vmatprep.subr.bf16.mxu0 0
    %5584 = vmatpush1.bf16.msra.mxu0 %v5511
    %5585 = vmatprep.subr.bf16.mxu0 0
    %5586 = vmatpush1.bf16.msra.mxu0 %v5512
    %5587 = vmatprep.subr.bf16.mxu0 0
    %5588 = vmatpush1.bf16.msra.mxu0 %v5513
    %5589 = vmatprep.subr.bf16.mxu0 0
    %5590 = vmatpush1.bf16.msra.mxu0 %v5514
    %5591 = vmatprep.subr.bf16.mxu0 0
    %5592 = vmatpush1.bf16.msra.mxu0 %v5515
    %5593 = vmatprep.subr.bf16.mxu0 0
    %5594 = vmatpush1.bf16.msra.mxu0 %v5516
    %5595 = vmatprep.subr.bf16.mxu0 0
    %5596 = vmatpush1.bf16.msra.mxu0 %v5517
    %5597 = vmatprep.subr.bf16.mxu0 0
    %5598 = vmatpush1.bf16.msra.mxu0 %v5518
    %5599 = vmatprep.mubr.bf16.mxu0 %v5273
    %5600 = vmatmul.mubr.bf16.gmra.mrb[0].mxu0 %v5272
    %v5601 = vpop.f32.mrb[0].mxu0
    %v5602 = vadd.f32 %v5373, %v5601
    %v5603 = vpop.f32.mrb[0].mxu0
    %v5604 = vpop.f32.mrb[0].mxu0
    %v5605 = vadd.f32 %v5373, %v5604
    %v5606 = vpop.f32.mrb[0].mxu0
    %5607 = vmatprep.mubr.bf16.mxu0 %v5277
    %5608 = vmatmul.mubr.bf16.gmra.mrb[0].mxu0 %v5276
    %v5609 = vpop.f32.mrb[0].mxu0
    %v5610 = vadd.f32 %v5373, %v5609
    %v5611 = vpop.f32.mrb[0].mxu0
    %v5612 = vpop.f32.mrb[0].mxu0
    %v5613 = vadd.f32 %v5373, %v5612
    %v5614 = vpop.f32.mrb[0].mxu0
    %5615 = vmatprep.mubr.bf16.mxu0 %v5281
    %5616 = vmatmul.mubr.bf16.gmra.mrb[0].mxu0 %v5280
    %v5617 = vpop.f32.mrb[0].mxu0
    %v5618 = vadd.f32 %v5373, %v5617
    %v5619 = vpop.f32.mrb[0].mxu0
    %v5620 = vpop.f32.mrb[0].mxu0
    %v5621 = vadd.f32 %v5373, %v5620
    %v5622 = vpop.f32.mrb[0].mxu0
    %5623 = vmatprep.mubr.bf16.mxu0 %v5285
    %5624 = vmatmul.mubr.bf16.gmra.mrb[0].mxu0 %v5284
    %v5625 = vpop.f32.mrb[0].mxu0
    %v5626 = vadd.f32 %v5373, %v5625
    %v5627 = vpop.f32.mrb[0].mxu0
    %v5628 = vpop.f32.mrb[0].mxu0
    %v5629 = vadd.f32 %v5373, %v5628
    %v5630 = vpop.f32.mrb[0].mxu0
    %5631 = vmatprep.mubr.bf16.mxu0 %v5289
    %5632 = vmatmul.mubr.bf16.gmra.mrb[0].mxu0 %v5288
    %v5633 = vpop.f32.mrb[0].mxu0
    %v5634 = vadd.f32 %v5373, %v5633
    %v5635 = vpop.f32.mrb[0].mxu0
    %v5636 = vpop.f32.mrb[0].mxu0
    %v5637 = vadd.f32 %v5373, %v5636
    %v5638 = vpop.f32.mrb[0].mxu0
    %5639 = vmatprep.mubr.bf16.mxu0 %v5293
    %5640 = vmatmul.mubr.bf16.gmra.mrb[0].mxu0 %v5292
    %v5641 = vpop.f32.mrb[0].mxu0
    %v5642 = vadd.f32 %v5373, %v5641
    %v5643 = vpop.f32.mrb[0].mxu0
    %v5644 = vpop.f32.mrb[0].mxu0
    %v5645 = vadd.f32 %v5373, %v5644
    %v5646 = vpop.f32.mrb[0].mxu0
    %5647 = vmatprep.mubr.bf16.mxu0 %v5297
    %5648 = vmatmul.mubr.bf16.gmra.mrb[0].mxu0 %v5296
    %v5649 = vpop.f32.mrb[0].mxu0
    %v5650 = vadd.f32 %v5373, %v5649
    %v5651 = vpop.f32.mrb[0].mxu0
    %v5652 = vpop.f32.mrb[0].mxu0
    %v5653 = vadd.f32 %v5373, %v5652
    %v5654 = vpop.f32.mrb[0].mxu0
    %5655 = vmatprep.mubr.bf16.mxu0 %v5301
    %5656 = vmatmul.mubr.bf16.gmra.mrb[0].mxu0 %v5300
    %v5657 = vpop.f32.mrb[0].mxu0
    %v5658 = vadd.f32 %v5373, %v5657
    %v5659 = vpop.f32.mrb[0].mxu0
    %v5660 = vpop.f32.mrb[0].mxu0
    %v5661 = vadd.f32 %v5373, %v5660
    %v5662 = vpop.f32.mrb[0].mxu0
    %5663 = vdwg.mxu0
    %5664 = vmatprep.subr.bf16.mxu0 0
    %5665 = vmatpush1.bf16.msra.mxu0 %v5519
    %5666 = vmatprep.subr.bf16.mxu0 0
    %5667 = vmatpush1.bf16.msra.mxu0 %v5520
    %5668 = vmatprep.subr.bf16.mxu0 0
    %5669 = vmatpush1.bf16.msra.mxu0 %v5521
    %5670 = vmatprep.subr.bf16.mxu0 0
    %5671 = vmatpush1.bf16.msra.mxu0 %v5522
    %5672 = vmatprep.subr.bf16.mxu0 0
    %5673 = vmatpush1.bf16.msra.mxu0 %v5523
    %5674 = vmatprep.subr.bf16.mxu0 0
    %5675 = vmatpush1.bf16.msra.mxu0 %v5524
    %5676 = vmatprep.subr.bf16.mxu0 0
    %5677 = vmatpush1.bf16.msra.mxu0 %v5525
    %5678 = vmatprep.subr.bf16.mxu0 0
    %5679 = vmatpush1.bf16.msra.mxu0 %v5526
    %5680 = vmatprep.subr.bf16.mxu0 0
    %5681 = vmatpush1.bf16.msra.mxu0 %v5527
    %5682 = vmatprep.subr.bf16.mxu0 0
    %5683 = vmatpush1.bf16.msra.mxu0 %v5528
    %5684 = vmatprep.subr.bf16.mxu0 0
    %5685 = vmatpush1.bf16.msra.mxu0 %v5529
    %5686 = vmatprep.subr.bf16.mxu0 0
    %5687 = vmatpush1.bf16.msra.mxu0 %v5530
    %5688 = vmatprep.subr.bf16.mxu0 0
    %5689 = vmatpush1.bf16.msra.mxu0 %v5531
    %5690 = vmatprep.subr.bf16.mxu0 0
    %5691 = vmatpush1.bf16.msra.mxu0 %v5532
    %5692 = vmatprep.subr.bf16.mxu0 0
    %5693 = vmatpush1.bf16.msra.mxu0 %v5533
    %5694 = vmatprep.subr.bf16.mxu0 0
    %5695 = vmatpush1.bf16.msra.mxu0 %v5534
    %5696 = vmatprep.mubr.bf16.mxu0 %v5275
    %5697 = vmatmul.mubr.bf16.gmra.mrb[0].mxu0 %v5274
    %v5698 = vpop.f32.mrb[0].mxu0
    %v5699 = vadd.f32 %v5602, %v5698
    %v5700 = vpop.f32.mrb[0].mxu0
    %v5701 = vpop.f32.mrb[0].mxu0
    %v5702 = vadd.f32 %v5605, %v5701
    %v5703 = vpop.f32.mrb[0].mxu0
    %5704 = vmatprep.mubr.bf16.mxu0 %v5279
    %5705 = vmatmul.mubr.bf16.gmra.mrb[0].mxu0 %v5278
    %v5706 = vpop.f32.mrb[0].mxu0
    %v5707 = vadd.f32 %v5610, %v5706
    %v5708 = vpop.f32.mrb[0].mxu0
    %v5709 = vpop.f32.mrb[0].mxu0
    %v5710 = vadd.f32 %v5613, %v5709
    %v5711 = vpop.f32.mrb[0].mxu0
    %5712 = vmatprep.mubr.bf16.mxu0 %v5283
    %5713 = vmatmul.mubr.bf16.gmra.mrb[0].mxu0 %v5282
    %v5714 = vpop.f32.mrb[0].mxu0
    %v5715 = vadd.f32 %v5618, %v5714
    %v5716 = vpop.f32.mrb[0].mxu0
    %v5717 = vpop.f32.mrb[0].mxu0
    %v5718 = vadd.f32 %v5621, %v5717
    %v5719 = vpop.f32.mrb[0].mxu0
    %5720 = vmatprep.mubr.bf16.mxu0 %v5287
    %5721 = vmatmul.mubr.bf16.gmra.mrb[0].mxu0 %v5286
    %v5722 = vpop.f32.mrb[0].mxu0
    %v5723 = vadd.f32 %v5626, %v5722
    %v5724 = vpop.f32.mrb[0].mxu0
    %v5725 = vpop.f32.mrb[0].mxu0
    %v5726 = vadd.f32 %v5629, %v5725
    %v5727 = vpop.f32.mrb[0].mxu0
    %5728 = vmatprep.mubr.bf16.mxu0 %v5291
    %5729 = vmatmul.mubr.bf16.gmra.mrb[0].mxu0 %v5290
    %v5730 = vpop.f32.mrb[0].mxu0
    %v5731 = vadd.f32 %v5634, %v5730
    %v5732 = vpop.f32.mrb[0].mxu0
    %v5733 = vpop.f32.mrb[0].mxu0
    %v5734 = vadd.f32 %v5637, %v5733
    %v5735 = vpop.f32.mrb[0].mxu0
    %5736 = vmatprep.mubr.bf16.mxu0 %v5295
    %5737 = vmatmul.mubr.bf16.gmra.mrb[0].mxu0 %v5294
    %v5738 = vpop.f32.mrb[0].mxu0
    %v5739 = vadd.f32 %v5642, %v5738
    %v5740 = vpop.f32.mrb[0].mxu0
    %v5741 = vpop.f32.mrb[0].mxu0
    %v5742 = vadd.f32 %v5645, %v5741
    %v5743 = vpop.f32.mrb[0].mxu0
    %5744 = vmatprep.mubr.bf16.mxu0 %v5299
    %5745 = vmatmul.mubr.bf16.gmra.mrb[0].mxu0 %v5298
    %v5746 = vpop.f32.mrb[0].mxu0
    %v5747 = vadd.f32 %v5650, %v5746
    %v5748 = vpop.f32.mrb[0].mxu0
    %v5749 = vpop.f32.mrb[0].mxu0
    %v5750 = vadd.f32 %v5653, %v5749
    %v5751 = vpop.f32.mrb[0].mxu0
    %5752 = vmatprep.mubr.bf16.mxu0 %v5303
    %5753 = vmatmul.mubr.bf16.gmra.mrb[0].mxu0 %v5302
    %v5754 = vpop.f32.mrb[0].mxu0
    %v5755 = vadd.f32 %v5658, %v5754
    %v5756 = vpop.f32.mrb[0].mxu0
    %v5757 = vpop.f32.mrb[0].mxu0
    %v5758 = vadd.f32 %v5661, %v5757
    %v5759 = vpop.f32.mrb[0].mxu0
    %5760 = vdwg.mxu0
    %v5761 = vadd.f32 %v4010, %v5699
    %v5762 = vadd.f32 %v4011, %v5702
    %v5763 = vadd.f32 %v4012, %v5707
    %v5764 = vadd.f32 %v4013, %v5710
    %v5765 = vadd.f32 %v4014, %v5715
    %v5766 = vadd.f32 %v4015, %v5718
    %v5767 = vadd.f32 %v4016, %v5723
    %v5768 = vadd.f32 %v4017, %v5726
    %v5769 = vadd.f32 %v4018, %v5731
    %v5770 = vadd.f32 %v4019, %v5734
    %v5771 = vadd.f32 %v4020, %v5739
    %v5772 = vadd.f32 %v4021, %v5742
    %v5773 = vadd.f32 %v4022, %v5747
    %v5774 = vadd.f32 %v4023, %v5750
    %v5775 = vadd.f32 %v4024, %v5755
    %v5776 = vadd.f32 %v4025, %v5758
    %s5777 = scalar_lea.vmem [#allocation4], 1
    %v5778 = vld [vmem:[%s5777] sm:$0x1]
    %s5779 = scalar_lea.vmem [#allocation6], 1
    %v5780 = vld [vmem:[%s5779] sm:$0x1]
    %5781 = vadd.xlane.f32.xlu0 %v5761
    %v5782 = vpop.xlane.xlu0 %5781
    %5783 = vadd.xlane.f32.xlu0 %v5762
    %v5784 = vpop.xlane.xlu0 %5783
    %5785 = vadd.xlane.f32.xlu0 %v5763
    %v5786 = vpop.xlane.xlu0 %5785
    %5787 = vadd.xlane.f32.xlu0 %v5764
    %v5788 = vpop.xlane.xlu0 %5787
    %5789 = vadd.xlane.f32.xlu0 %v5765
    %v5790 = vpop.xlane.xlu0 %5789
    %5791 = vadd.xlane.f32.xlu0 %v5766
    %v5792 = vpop.xlane.xlu0 %5791
    %5793 = vadd.xlane.f32.xlu0 %v5767
    %v5794 = vpop.xlane.xlu0 %5793
    %5795 = vadd.xlane.f32.xlu0 %v5768
    %v5796 = vpop.xlane.xlu0 %5795
    %5797 = vadd.xlane.f32.xlu0 %v5769
    %v5798 = vpop.xlane.xlu0 %5797
    %5799 = vadd.xlane.f32.xlu0 %v5770
    %v5800 = vpop.xlane.xlu0 %5799
    %5801 = vadd.xlane.f32.xlu0 %v5771
    %v5802 = vpop.xlane.xlu0 %5801
    %5803 = vadd.xlane.f32.xlu0 %v5772
    %v5804 = vpop.xlane.xlu0 %5803
    %5805 = vadd.xlane.f32.xlu0 %v5773
    %v5806 = vpop.xlane.xlu0 %5805
    %5807 = vadd.xlane.f32.xlu0 %v5774
    %v5808 = vpop.xlane.xlu0 %5807
    %5809 = vadd.xlane.f32.xlu0 %v5775
    %v5810 = vpop.xlane.xlu0 %5809
    %5811 = vadd.xlane.f32.xlu0 %v5776
    %v5812 = vpop.xlane.xlu0 %5811
    %v5813 = vmul.f32 %v5782, %v1215
    %v5814 = vmul.f32 %v5784, %v1215
    %v5815 = vmul.f32 %v5786, %v1215
    %v5816 = vmul.f32 %v5788, %v1215
    %v5817 = vmul.f32 %v5790, %v1215
    %v5818 = vmul.f32 %v5792, %v1215
    %v5819 = vmul.f32 %v5794, %v1215
    %v5820 = vmul.f32 %v5796, %v1215
    %v5821 = vmul.f32 %v5798, %v1215
    %v5822 = vmul.f32 %v5800, %v1215
    %v5823 = vmul.f32 %v5802, %v1215
    %v5824 = vmul.f32 %v5804, %v1215
    %v5825 = vmul.f32 %v5806, %v1215
    %v5826 = vmul.f32 %v5808, %v1215
    %v5827 = vmul.f32 %v5810, %v1215
    %v5828 = vmul.f32 %v5812, %v1215
    %v5829 = vsub.f32 %v5761, %v5813
    %v5830 = vsub.f32 %v5762, %v5814
    %v5831 = vsub.f32 %v5763, %v5815
    %v5832 = vsub.f32 %v5764, %v5816
    %v5833 = vsub.f32 %v5765, %v5817
    %v5834 = vsub.f32 %v5766, %v5818
    %v5835 = vsub.f32 %v5767, %v5819
    %v5836 = vsub.f32 %v5768, %v5820
    %v5837 = vsub.f32 %v5769, %v5821
    %v5838 = vsub.f32 %v5770, %v5822
    %v5839 = vsub.f32 %v5771, %v5823
    %v5840 = vsub.f32 %v5772, %v5824
    %v5841 = vsub.f32 %v5773, %v5825
    %v5842 = vsub.f32 %v5774, %v5826
    %v5843 = vsub.f32 %v5775, %v5827
    %v5844 = vsub.f32 %v5776, %v5828
    %v5845 = vmul.f32 %v5829, %v5829
    %v5846 = vmul.f32 %v5830, %v5830
    %v5847 = vmul.f32 %v5831, %v5831
    %v5848 = vmul.f32 %v5832, %v5832
    %v5849 = vmul.f32 %v5833, %v5833
    %v5850 = vmul.f32 %v5834, %v5834
    %v5851 = vmul.f32 %v5835, %v5835
    %v5852 = vmul.f32 %v5836, %v5836
    %v5853 = vmul.f32 %v5837, %v5837
    %v5854 = vmul.f32 %v5838, %v5838
    %v5855 = vmul.f32 %v5839, %v5839
    %v5856 = vmul.f32 %v5840, %v5840
    %v5857 = vmul.f32 %v5841, %v5841
    %v5858 = vmul.f32 %v5842, %v5842
    %v5859 = vmul.f32 %v5843, %v5843
    %v5860 = vmul.f32 %v5844, %v5844
    %5861 = vadd.xlane.f32.xlu0 %v5845
    %v5862 = vpop.xlane.xlu0 %5861
    %5863 = vadd.xlane.f32.xlu0 %v5846
    %v5864 = vpop.xlane.xlu0 %5863
    %5865 = vadd.xlane.f32.xlu0 %v5847
    %v5866 = vpop.xlane.xlu0 %5865
    %5867 = vadd.xlane.f32.xlu0 %v5848
    %v5868 = vpop.xlane.xlu0 %5867
    %5869 = vadd.xlane.f32.xlu0 %v5849
    %v5870 = vpop.xlane.xlu0 %5869
    %5871 = vadd.xlane.f32.xlu0 %v5850
    %v5872 = vpop.xlane.xlu0 %5871
    %5873 = vadd.xlane.f32.xlu0 %v5851
    %v5874 = vpop.xlane.xlu0 %5873
    %5875 = vadd.xlane.f32.xlu0 %v5852
    %v5876 = vpop.xlane.xlu0 %5875
    %5877 = vadd.xlane.f32.xlu0 %v5853
    %v5878 = vpop.xlane.xlu0 %5877
    %5879 = vadd.xlane.f32.xlu0 %v5854
    %v5880 = vpop.xlane.xlu0 %5879
    %5881 = vadd.xlane.f32.xlu0 %v5855
    %v5882 = vpop.xlane.xlu0 %5881
    %5883 = vadd.xlane.f32.xlu0 %v5856
    %v5884 = vpop.xlane.xlu0 %5883
    %5885 = vadd.xlane.f32.xlu0 %v5857
    %v5886 = vpop.xlane.xlu0 %5885
    %5887 = vadd.xlane.f32.xlu0 %v5858
    %v5888 = vpop.xlane.xlu0 %5887
    %5889 = vadd.xlane.f32.xlu0 %v5859
    %v5890 = vpop.xlane.xlu0 %5889
    %5891 = vadd.xlane.f32.xlu0 %v5860
    %v5892 = vpop.xlane.xlu0 %5891
    %v5893 = vmul.f32 %v5862, %v1215
    %v5894 = vmul.f32 %v5864, %v1215
    %v5895 = vmul.f32 %v5866, %v1215
    %v5896 = vmul.f32 %v5868, %v1215
    %v5897 = vmul.f32 %v5870, %v1215
    %v5898 = vmul.f32 %v5872, %v1215
    %v5899 = vmul.f32 %v5874, %v1215
    %v5900 = vmul.f32 %v5876, %v1215
    %v5901 = vmul.f32 %v5878, %v1215
    %v5902 = vmul.f32 %v5880, %v1215
    %v5903 = vmul.f32 %v5882, %v1215
    %v5904 = vmul.f32 %v5884, %v1215
    %v5905 = vmul.f32 %v5886, %v1215
    %v5906 = vmul.f32 %v5888, %v1215
    %v5907 = vmul.f32 %v5890, %v1215
    %v5908 = vmul.f32 %v5892, %v1215
    %v5909 = vadd.f32 %v5893, 1e-12
    %v5910 = vadd.f32 %v5894, 1e-12
    %v5911 = vadd.f32 %v5895, 1e-12
    %v5912 = vadd.f32 %v5896, 1e-12
    %v5913 = vadd.f32 %v5897, 1e-12
    %v5914 = vadd.f32 %v5898, 1e-12
    %v5915 = vadd.f32 %v5899, 1e-12
    %v5916 = vadd.f32 %v5900, 1e-12
    %v5917 = vadd.f32 %v5901, 1e-12
    %v5918 = vadd.f32 %v5902, 1e-12
    %v5919 = vadd.f32 %v5903, 1e-12
    %v5920 = vadd.f32 %v5904, 1e-12
    %v5921 = vadd.f32 %v5905, 1e-12
    %v5922 = vadd.f32 %v5906, 1e-12
    %v5923 = vadd.f32 %v5907, 1e-12
    %v5924 = vadd.f32 %v5908, 1e-12
    %v5925 = vrsqrt.pop %v5909
    %v5926 = vrsqrt.pop %v5910
    %v5927 = vrsqrt.pop %v5911
    %v5928 = vrsqrt.pop %v5912
    %v5929 = vrsqrt.pop %v5913
    %v5930 = vrsqrt.pop %v5914
    %v5931 = vrsqrt.pop %v5915
    %v5932 = vrsqrt.pop %v5916
    %v5933 = vrsqrt.pop %v5917
    %v5934 = vrsqrt.pop %v5918
    %v5935 = vrsqrt.pop %v5919
    %v5936 = vrsqrt.pop %v5920
    %v5937 = vrsqrt.pop %v5921
    %v5938 = vrsqrt.pop %v5922
    %v5939 = vrsqrt.pop %v5923
    %v5940 = vrsqrt.pop %v5924
    %v5941 = vmul.f32 %v5829, %v5925
    %v5942 = vmul.f32 %v5830, %v5926
    %v5943 = vmul.f32 %v5831, %v5927
    %v5944 = vmul.f32 %v5832, %v5928
    %v5945 = vmul.f32 %v5833, %v5929
    %v5946 = vmul.f32 %v5834, %v5930
    %v5947 = vmul.f32 %v5835, %v5931
    %v5948 = vmul.f32 %v5836, %v5932
    %v5949 = vmul.f32 %v5837, %v5933
    %v5950 = vmul.f32 %v5838, %v5934
    %v5951 = vmul.f32 %v5839, %v5935
    %v5952 = vmul.f32 %v5840, %v5936
    %v5953 = vmul.f32 %v5841, %v5937
    %v5954 = vmul.f32 %v5842, %v5938
    %v5955 = vmul.f32 %v5843, %v5939
    %v5956 = vmul.f32 %v5844, %v5940
    %v5958 = vlaneseq
    %v5959 = vshrl.u32 %v5958, 7
    %v5960 = vsub.s32 0, %v5959
    %v5961 = vrot.slane %v5778, %v5960
    %v5963 = vmul.f32 %v5941, %v5961
    %v5964 = vmul.f32 %v5942, %v5961
    %v5965 = vmul.f32 %v5943, %v5961
    %v5966 = vmul.f32 %v5944, %v5961
    %v5967 = vmul.f32 %v5945, %v5961
    %v5968 = vmul.f32 %v5946, %v5961
    %v5969 = vmul.f32 %v5947, %v5961
    %v5970 = vmul.f32 %v5948, %v5961
    %v5971 = vmul.f32 %v5949, %v5961
    %v5972 = vmul.f32 %v5950, %v5961
    %v5973 = vmul.f32 %v5951, %v5961
    %v5974 = vmul.f32 %v5952, %v5961
    %v5975 = vmul.f32 %v5953, %v5961
    %v5976 = vmul.f32 %v5954, %v5961
    %v5977 = vmul.f32 %v5955, %v5961
    %v5978 = vmul.f32 %v5956, %v5961
    %v5980 = vlaneseq
    %v5981 = vshrl.u32 %v5980, 7
    %v5982 = vsub.s32 0, %v5981
    %v5983 = vrot.slane %v5780, %v5982
    %v5985 = vadd.f32 %v5963, %v5983
    %v5986 = vadd.f32 %v5964, %v5983
    %v5987 = vadd.f32 %v5965, %v5983
    %v5988 = vadd.f32 %v5966, %v5983
    %v5989 = vadd.f32 %v5967, %v5983
    %v5990 = vadd.f32 %v5968, %v5983
    %v5991 = vadd.f32 %v5969, %v5983
    %v5992 = vadd.f32 %v5970, %v5983
    %v5993 = vadd.f32 %v5971, %v5983
    %v5994 = vadd.f32 %v5972, %v5983
    %v5995 = vadd.f32 %v5973, %v5983
    %v5996 = vadd.f32 %v5974, %v5983
    %v5997 = vadd.f32 %v5975, %v5983
    %v5998 = vadd.f32 %v5976, %v5983
    %v5999 = vadd.f32 %v5977, %v5983
    %v6000 = vadd.f32 %v5978, %v5983
    %v6001 = vpack.c.bf16 %v5986, %v5985
    %v6002 = vpack.c.bf16 %v5988, %v5987
    %v6003 = vpack.c.bf16 %v5990, %v5989
    %v6004 = vpack.c.bf16 %v5992, %v5991
    %v6005 = vpack.c.bf16 %v5994, %v5993
    %v6006 = vpack.c.bf16 %v5996, %v5995
    %v6007 = vpack.c.bf16 %v5998, %v5997
    %v6008 = vpack.c.bf16 %v6000, %v5999
    %s6009 = scalar_lea.vmem [#allocation7], 192
    %v6010 = vld [vmem:[%s6009] sm:$0xff]
    %v6011 = vld [vmem:[%s6009 + $0x8] sm:$0xf]
    %v6012 = vld [vmem:[%s6009 + $0xc] sm:$0xff]
    %v6013 = vld [vmem:[%s6009 + $0x14] sm:$0xf]
    %v6014 = vld [vmem:[%s6009 + $0x18] sm:$0xff]
    %v6015 = vld [vmem:[%s6009 + $0x20] sm:$0xf]
    %v6016 = vld [vmem:[%s6009 + $0x24] sm:$0xff]
    %v6017 = vld [vmem:[%s6009 + $0x2c] sm:$0xf]
    %v6018 = vld [vmem:[%s6009 + $0x30] sm:$0xff]
    %v6019 = vld [vmem:[%s6009 + $0x38] sm:$0xf]
    %v6020 = vld [vmem:[%s6009 + $0x3c] sm:$0xff]
    %v6021 = vld [vmem:[%s6009 + $0x44] sm:$0xf]
    %v6022 = vld [vmem:[%s6009 + $0x48] sm:$0xff]
    %v6023 = vld [vmem:[%s6009 + $0x50] sm:$0xf]
    %v6024 = vld [vmem:[%s6009 + $0x54] sm:$0xff]
    %v6025 = vld [vmem:[%s6009 + $0x5c] sm:$0xf]
    %v6026 = vld [vmem:[%s6009 + $0x60] sm:$0xff]
    %v6027 = vld [vmem:[%s6009 + $0x68] sm:$0xf]
    %v6028 = vld [vmem:[%s6009 + $0x6c] sm:$0xff]
    %v6029 = vld [vmem:[%s6009 + $0x74] sm:$0xf]
    %v6030 = vld [vmem:[%s6009 + $0x78] sm:$0xff]
    %v6031 = vld [vmem:[%s6009 + $0x80] sm:$0xf]
    %v6032 = vld [vmem:[%s6009 + $0x84] sm:$0xff]
    %v6033 = vld [vmem:[%s6009 + $0x8c] sm:$0xf]
    %v6034 = vld [vmem:[%s6009 + $0x90] sm:$0xff]
    %v6035 = vld [vmem:[%s6009 + $0x98] sm:$0xf]
    %v6036 = vld [vmem:[%s6009 + $0x9c] sm:$0xff]
    %v6037 = vld [vmem:[%s6009 + $0xa4] sm:$0xf]
    %v6038 = vld [vmem:[%s6009 + $0xa8] sm:$0xff]
    %v6039 = vld [vmem:[%s6009 + $0xb0] sm:$0xf]
    %v6040 = vld [vmem:[%s6009 + $0xb4] sm:$0xff]
    %v6041 = vld [vmem:[%s6009 + $0xbc] sm:$0xf]
    %s6042 = scalar_lea.vmem %s7, 3
    %v6043 = vld [vmem:[%s6042] sm:$0x7]
    %v6045 = vlaneseq
    %v6046 = vshrl.u32 %v6045, 7
    %v6047 = vsub.s32 0, %v6046
    %v6048 = vrot.slane %v6043, %v6047
    %v6049 = vlaneseq
    %v6050 = vshrl.u32 %v6049, 7
    %v6051 = vsub.s32 1, %v6050
    %v6052 = vrot.slane %v6043, %v6051
    %v6053 = vlaneseq
    %v6054 = vshrl.u32 %v6053, 7
    %v6055 = vsub.s32 2, %v6054
    %v6056 = vrot.slane %v6043, %v6055
    %v6092 = vunpack.c.l.b16 %v6010
    %v6093 = vunpack.c.h.b16 %v6010
    %v6094 = vunpack.c.l.b16 %v6011
    %v6095 = vunpack.c.l.b16 %v6012
    %v6096 = vunpack.c.h.b16 %v6012
    %v6097 = vunpack.c.l.b16 %v6013
    %v6098 = vunpack.c.l.b16 %v6014
    %v6099 = vunpack.c.h.b16 %v6014
    %v6100 = vunpack.c.l.b16 %v6015
    %v6101 = vunpack.c.l.b16 %v6016
    %v6102 = vunpack.c.h.b16 %v6016
    %v6103 = vunpack.c.l.b16 %v6017
    %v6104 = vunpack.c.l.b16 %v6018
    %v6105 = vunpack.c.h.b16 %v6018
    %v6106 = vunpack.c.l.b16 %v6019
    %v6107 = vunpack.c.l.b16 %v6020
    %v6108 = vunpack.c.h.b16 %v6020
    %v6109 = vunpack.c.l.b16 %v6021
    %v6110 = vunpack.c.l.b16 %v6022
    %v6111 = vunpack.c.h.b16 %v6022
    %v6112 = vunpack.c.l.b16 %v6023
    %v6113 = vunpack.c.l.b16 %v6024
    %v6114 = vunpack.c.h.b16 %v6024
    %v6115 = vunpack.c.l.b16 %v6025
    %v6116 = vunpack.c.l.b16 %v6026
    %v6117 = vunpack.c.h.b16 %v6026
    %v6118 = vunpack.c.l.b16 %v6027
    %v6119 = vunpack.c.l.b16 %v6028
    %v6120 = vunpack.c.h.b16 %v6028
    %v6121 = vunpack.c.l.b16 %v6029
    %v6122 = vunpack.c.l.b16 %v6030
    %v6123 = vunpack.c.h.b16 %v6030
    %v6124 = vunpack.c.l.b16 %v6031
    %v6125 = vunpack.c.l.b16 %v6032
    %v6126 = vunpack.c.h.b16 %v6032
    %v6127 = vunpack.c.l.b16 %v6033
    %v6128 = vunpack.c.l.b16 %v6034
    %v6129 = vunpack.c.h.b16 %v6034
    %v6130 = vunpack.c.l.b16 %v6035
    %v6131 = vunpack.c.l.b16 %v6036
    %v6132 = vunpack.c.h.b16 %v6036
    %v6133 = vunpack.c.l.b16 %v6037
    %v6134 = vunpack.c.l.b16 %v6038
    %v6135 = vunpack.c.h.b16 %v6038
    %v6136 = vunpack.c.l.b16 %v6039
    %v6137 = vunpack.c.l.b16 %v6040
    %v6138 = vunpack.c.h.b16 %v6040
    %v6139 = vunpack.c.l.b16 %v6041
    %v6140 = vpack.c.b16 %v6095, %v6092
    %v6141 = vpack.c.b16 %v6096, %v6093
    %v6142 = vpack.c.b16 %v6097, %v6094
    %v6143 = vpack.c.b16 %v6101, %v6098
    %v6144 = vpack.c.b16 %v6102, %v6099
    %v6145 = vpack.c.b16 %v6103, %v6100
    %v6146 = vpack.c.b16 %v6107, %v6104
    %v6147 = vpack.c.b16 %v6108, %v6105
    %v6148 = vpack.c.b16 %v6109, %v6106
    %v6149 = vpack.c.b16 %v6113, %v6110
    %v6150 = vpack.c.b16 %v6114, %v6111
    %v6151 = vpack.c.b16 %v6115, %v6112
    %v6152 = vpack.c.b16 %v6119, %v6116
    %v6153 = vpack.c.b16 %v6120, %v6117
    %v6154 = vpack.c.b16 %v6121, %v6118
    %v6155 = vpack.c.b16 %v6125, %v6122
    %v6156 = vpack.c.b16 %v6126, %v6123
    %v6157 = vpack.c.b16 %v6127, %v6124
    %v6158 = vpack.c.b16 %v6131, %v6128
    %v6159 = vpack.c.b16 %v6132, %v6129
    %v6160 = vpack.c.b16 %v6133, %v6130
    %v6161 = vpack.c.b16 %v6137, %v6134
    %v6162 = vpack.c.b16 %v6138, %v6135
    %v6163 = vpack.c.b16 %v6139, %v6136
    %6188 = vmatprep.subr.bf16.mxu0 %v6141
    %6189 = vmatpush1.bf16.msra.mxu0 %v6140
    %6190 = vmatprep.subr.bf16.mxu0 %v6144
    %6191 = vmatpush1.bf16.msra.mxu0 %v6143
    %6192 = vmatprep.subr.bf16.mxu0 %v6147
    %6193 = vmatpush1.bf16.msra.mxu0 %v6146
    %6194 = vmatprep.subr.bf16.mxu0 %v6150
    %6195 = vmatpush1.bf16.msra.mxu0 %v6149
    %6196 = vmatprep.subr.bf16.mxu0 %v6153
    %6197 = vmatpush1.bf16.msra.mxu0 %v6152
    %6198 = vmatprep.subr.bf16.mxu0 %v6156
    %6199 = vmatpush1.bf16.msra.mxu0 %v6155
    %6200 = vmatprep.subr.bf16.mxu0 %v6159
    %6201 = vmatpush1.bf16.msra.mxu0 %v6158
    %6202 = vmatprep.subr.bf16.mxu0 %v6162
    %6203 = vmatpush1.bf16.msra.mxu0 %v6161
    %6204 = vmatprep.subr.bf16.mxu0 0
    %6205 = vmatpush1.bf16.msra.mxu0 0
    %6206 = vmatprep.subr.bf16.mxu0 0
    %6207 = vmatpush1.bf16.msra.mxu0 0
    %6208 = vmatprep.subr.bf16.mxu0 0
    %6209 = vmatpush1.bf16.msra.mxu0 0
    %6210 = vmatprep.subr.bf16.mxu0 0
    %6211 = vmatpush1.bf16.msra.mxu0 0
    %6212 = vmatprep.subr.bf16.mxu0 0
    %6213 = vmatpush1.bf16.msra.mxu0 0
    %6214 = vmatprep.subr.bf16.mxu0 0
    %6215 = vmatpush1.bf16.msra.mxu0 0
    %6216 = vmatprep.subr.bf16.mxu0 0
    %6217 = vmatpush1.bf16.msra.mxu0 0
    %6218 = vmatprep.subr.bf16.mxu0 0
    %6219 = vmatpush1.bf16.msra.mxu0 0
    %6220 = vmatprep.mubr.bf16.mxu0 0
    %6221 = vmatmul.mubr.bf16.gmra.mrb[0].mxu0 %v6001
    %v6222 = vpop.f32.mrb[0].mxu0
    %v6223 = vadd.f32 %v6048, %v6222
    %v6224 = vpop.f32.mrb[0].mxu0
    %v6225 = vadd.f32 %v6052, %v6224
    %v6226 = vpop.f32.mrb[0].mxu0
    %v6227 = vadd.f32 %v6048, %v6226
    %v6228 = vpop.f32.mrb[0].mxu0
    %v6229 = vadd.f32 %v6052, %v6228
    %6230 = vmatprep.mubr.bf16.mxu0 0
    %6231 = vmatmul.mubr.bf16.gmra.mrb[0].mxu0 %v6002
    %v6232 = vpop.f32.mrb[0].mxu0
    %v6233 = vadd.f32 %v6048, %v6232
    %v6234 = vpop.f32.mrb[0].mxu0
    %v6235 = vadd.f32 %v6052, %v6234
    %v6236 = vpop.f32.mrb[0].mxu0
    %v6237 = vadd.f32 %v6048, %v6236
    %v6238 = vpop.f32.mrb[0].mxu0
    %v6239 = vadd.f32 %v6052, %v6238
    %6240 = vmatprep.mubr.bf16.mxu0 0
    %6241 = vmatmul.mubr.bf16.gmra.mrb[0].mxu0 %v6003
    %v6242 = vpop.f32.mrb[0].mxu0
    %v6243 = vadd.f32 %v6048, %v6242
    %v6244 = vpop.f32.mrb[0].mxu0
    %v6245 = vadd.f32 %v6052, %v6244
    %v6246 = vpop.f32.mrb[0].mxu0
    %v6247 = vadd.f32 %v6048, %v6246
    %v6248 = vpop.f32.mrb[0].mxu0
    %v6249 = vadd.f32 %v6052, %v6248
    %6250 = vmatprep.mubr.bf16.mxu0 0
    %6251 = vmatmul.mubr.bf16.gmra.mrb[0].mxu0 %v6004
    %v6252 = vpop.f32.mrb[0].mxu0
    %v6253 = vadd.f32 %v6048, %v6252
    %v6254 = vpop.f32.mrb[0].mxu0
    %v6255 = vadd.f32 %v6052, %v6254
    %v6256 = vpop.f32.mrb[0].mxu0
    %v6257 = vadd.f32 %v6048, %v6256
    %v6258 = vpop.f32.mrb[0].mxu0
    %v6259 = vadd.f32 %v6052, %v6258
    %6260 = vmatprep.mubr.bf16.mxu0 0
    %6261 = vmatmul.mubr.bf16.gmra.mrb[0].mxu0 %v6005
    %v6262 = vpop.f32.mrb[0].mxu0
    %v6263 = vadd.f32 %v6048, %v6262
    %v6264 = vpop.f32.mrb[0].mxu0
    %v6265 = vadd.f32 %v6052, %v6264
    %v6266 = vpop.f32.mrb[0].mxu0
    %v6267 = vadd.f32 %v6048, %v6266
    %v6268 = vpop.f32.mrb[0].mxu0
    %v6269 = vadd.f32 %v6052, %v6268
    %6270 = vmatprep.mubr.bf16.mxu0 0
    %6271 = vmatmul.mubr.bf16.gmra.mrb[0].mxu0 %v6006
    %v6272 = vpop.f32.mrb[0].mxu0
    %v6273 = vadd.f32 %v6048, %v6272
    %v6274 = vpop.f32.mrb[0].mxu0
    %v6275 = vadd.f32 %v6052, %v6274
    %v6276 = vpop.f32.mrb[0].mxu0
    %v6277 = vadd.f32 %v6048, %v6276
    %v6278 = vpop.f32.mrb[0].mxu0
    %v6279 = vadd.f32 %v6052, %v6278
    %6280 = vmatprep.mubr.bf16.mxu0 0
    %6281 = vmatmul.mubr.bf16.gmra.mrb[0].mxu0 %v6007
    %v6282 = vpop.f32.mrb[0].mxu0
    %v6283 = vadd.f32 %v6048, %v6282
    %v6284 = vpop.f32.mrb[0].mxu0
    %v6285 = vadd.f32 %v6052, %v6284
    %v6286 = vpop.f32.mrb[0].mxu0
    %v6287 = vadd.f32 %v6048, %v6286
    %v6288 = vpop.f32.mrb[0].mxu0
    %v6289 = vadd.f32 %v6052, %v6288
    %6290 = vmatprep.mubr.bf16.mxu0 0
    %6291 = vmatmul.mubr.bf16.gmra.mrb[0].mxu0 %v6008
    %v6292 = vpop.f32.mrb[0].mxu0
    %v6293 = vadd.f32 %v6048, %v6292
    %v6294 = vpop.f32.mrb[0].mxu0
    %v6295 = vadd.f32 %v6052, %v6294
    %v6296 = vpop.f32.mrb[0].mxu0
    %v6297 = vadd.f32 %v6048, %v6296
    %v6298 = vpop.f32.mrb[0].mxu0
    %v6299 = vadd.f32 %v6052, %v6298
    %6300 = vdwg.mxu0
    %6301 = vmatprep.subr.bf16.mxu0 0
    %6302 = vmatpush1.bf16.msra.mxu0 %v6142
    %6303 = vmatprep.subr.bf16.mxu0 0
    %6304 = vmatpush1.bf16.msra.mxu0 %v6145
    %6305 = vmatprep.subr.bf16.mxu0 0
    %6306 = vmatpush1.bf16.msra.mxu0 %v6148
    %6307 = vmatprep.subr.bf16.mxu0 0
    %6308 = vmatpush1.bf16.msra.mxu0 %v6151
    %6309 = vmatprep.subr.bf16.mxu0 0
    %6310 = vmatpush1.bf16.msra.mxu0 %v6154
    %6311 = vmatprep.subr.bf16.mxu0 0
    %6312 = vmatpush1.bf16.msra.mxu0 %v6157
    %6313 = vmatprep.subr.bf16.mxu0 0
    %6314 = vmatpush1.bf16.msra.mxu0 %v6160
    %6315 = vmatprep.subr.bf16.mxu0 0
    %6316 = vmatpush1.bf16.msra.mxu0 %v6163
    %6317 = vmatprep.subr.bf16.mxu0 0
    %6318 = vmatpush1.bf16.msra.mxu0 0
    %6319 = vmatprep.subr.bf16.mxu0 0
    %6320 = vmatpush1.bf16.msra.mxu0 0
    %6321 = vmatprep.subr.bf16.mxu0 0
    %6322 = vmatpush1.bf16.msra.mxu0 0
    %6323 = vmatprep.subr.bf16.mxu0 0
    %6324 = vmatpush1.bf16.msra.mxu0 0
    %6325 = vmatprep.subr.bf16.mxu0 0
    %6326 = vmatpush1.bf16.msra.mxu0 0
    %6327 = vmatprep.subr.bf16.mxu0 0
    %6328 = vmatpush1.bf16.msra.mxu0 0
    %6329 = vmatprep.subr.bf16.mxu0 0
    %6330 = vmatpush1.bf16.msra.mxu0 0
    %6331 = vmatprep.subr.bf16.mxu0 0
    %6332 = vmatpush1.bf16.msra.mxu0 0
    %6333 = vmatprep.mubr.bf16.mxu0 0
    %6334 = vmatmul.mubr.bf16.gmra.mrb[0].mxu0 %v6001
    %v6335 = vpop.f32.mrb[0].mxu0
    %v6336 = vadd.f32 %v6056, %v6335
    %v6337 = vpop.f32.mrb[0].mxu0
    %v6338 = vpop.f32.mrb[0].mxu0
    %v6339 = vadd.f32 %v6056, %v6338
    %v6340 = vpop.f32.mrb[0].mxu0
    %6341 = vmatprep.mubr.bf16.mxu0 0
    %6342 = vmatmul.mubr.bf16.gmra.mrb[0].mxu0 %v6002
    %v6343 = vpop.f32.mrb[0].mxu0
    %v6344 = vadd.f32 %v6056, %v6343
    %v6345 = vpop.f32.mrb[0].mxu0
    %v6346 = vpop.f32.mrb[0].mxu0
    %v6347 = vadd.f32 %v6056, %v6346
    %v6348 = vpop.f32.mrb[0].mxu0
    %6349 = vmatprep.mubr.bf16.mxu0 0
    %6350 = vmatmul.mubr.bf16.gmra.mrb[0].mxu0 %v6003
    %v6351 = vpop.f32.mrb[0].mxu0
    %v6352 = vadd.f32 %v6056, %v6351
    %v6353 = vpop.f32.mrb[0].mxu0
    %v6354 = vpop.f32.mrb[0].mxu0
    %v6355 = vadd.f32 %v6056, %v6354
    %v6356 = vpop.f32.mrb[0].mxu0
    %6357 = vmatprep.mubr.bf16.mxu0 0
    %6358 = vmatmul.mubr.bf16.gmra.mrb[0].mxu0 %v6004
    %v6359 = vpop.f32.mrb[0].mxu0
    %v6360 = vadd.f32 %v6056, %v6359
    %v6361 = vpop.f32.mrb[0].mxu0
    %v6362 = vpop.f32.mrb[0].mxu0
    %v6363 = vadd.f32 %v6056, %v6362
    %v6364 = vpop.f32.mrb[0].mxu0
    %6365 = vmatprep.mubr.bf16.mxu0 0
    %6366 = vmatmul.mubr.bf16.gmra.mrb[0].mxu0 %v6005
    %v6367 = vpop.f32.mrb[0].mxu0
    %v6368 = vadd.f32 %v6056, %v6367
    %v6369 = vpop.f32.mrb[0].mxu0
    %v6370 = vpop.f32.mrb[0].mxu0
    %v6371 = vadd.f32 %v6056, %v6370
    %v6372 = vpop.f32.mrb[0].mxu0
    %6373 = vmatprep.mubr.bf16.mxu0 0
    %6374 = vmatmul.mubr.bf16.gmra.mrb[0].mxu0 %v6006
    %v6375 = vpop.f32.mrb[0].mxu0
    %v6376 = vadd.f32 %v6056, %v6375
    %v6377 = vpop.f32.mrb[0].mxu0
    %v6378 = vpop.f32.mrb[0].mxu0
    %v6379 = vadd.f32 %v6056, %v6378
    %v6380 = vpop.f32.mrb[0].mxu0
    %6381 = vmatprep.mubr.bf16.mxu0 0
    %6382 = vmatmul.mubr.bf16.gmra.mrb[0].mxu0 %v6007
    %v6383 = vpop.f32.mrb[0].mxu0
    %v6384 = vadd.f32 %v6056, %v6383
    %v6385 = vpop.f32.mrb[0].mxu0
    %v6386 = vpop.f32.mrb[0].mxu0
    %v6387 = vadd.f32 %v6056, %v6386
    %v6388 = vpop.f32.mrb[0].mxu0
    %6389 = vmatprep.mubr.bf16.mxu0 0
    %6390 = vmatmul.mubr.bf16.gmra.mrb[0].mxu0 %v6008
    %v6391 = vpop.f32.mrb[0].mxu0
    %v6392 = vadd.f32 %v6056, %v6391
    %v6393 = vpop.f32.mrb[0].mxu0
    %v6394 = vpop.f32.mrb[0].mxu0
    %v6395 = vadd.f32 %v6056, %v6394
    %v6396 = vpop.f32.mrb[0].mxu0
    %6397 = vdwg.mxu0
    %v6398 = vpack.c.bf16 %v6227, %v6223
    %v6399 = vpack.c.bf16 %v6229, %v6225
    %v6400 = vpack.c.bf16 %v6339, %v6336
    %v6401 = vpack.c.bf16 %v6237, %v6233
    %v6402 = vpack.c.bf16 %v6239, %v6235
    %v6403 = vpack.c.bf16 %v6347, %v6344
    %v6404 = vpack.c.bf16 %v6247, %v6243
    %v6405 = vpack.c.bf16 %v6249, %v6245
    %v6406 = vpack.c.bf16 %v6355, %v6352
    %v6407 = vpack.c.bf16 %v6257, %v6253
    %v6408 = vpack.c.bf16 %v6259, %v6255
    %v6409 = vpack.c.bf16 %v6363, %v6360
    %v6410 = vpack.c.bf16 %v6267, %v6263
    %v6411 = vpack.c.bf16 %v6269, %v6265
    %v6412 = vpack.c.bf16 %v6371, %v6368
    %v6413 = vpack.c.bf16 %v6277, %v6273
    %v6414 = vpack.c.bf16 %v6279, %v6275
    %v6415 = vpack.c.bf16 %v6379, %v6376
    %v6416 = vpack.c.bf16 %v6287, %v6283
    %v6417 = vpack.c.bf16 %v6289, %v6285
    %v6418 = vpack.c.bf16 %v6387, %v6384
    %v6419 = vpack.c.bf16 %v6297, %v6293
    %v6420 = vpack.c.bf16 %v6299, %v6295
    %v6421 = vpack.c.bf16 %v6395, %v6392
    %6430 = vrot.lane.b32.xlu0 %v6398, 96
    %v6431 = vpop.permute.xlu0 %6430
    %6432 = vrot.lane.b32.xlu0 %v6401, 96
    %v6433 = vpop.permute.xlu0 %6432
    %6434 = vrot.lane.b32.xlu0 %v6404, 96
    %v6435 = vpop.permute.xlu0 %6434
    %6436 = vrot.lane.b32.xlu0 %v6407, 96
    %v6437 = vpop.permute.xlu0 %6436
    %6438 = vrot.lane.b32.xlu0 %v6410, 96
    %v6439 = vpop.permute.xlu0 %6438
    %6440 = vrot.lane.b32.xlu0 %v6413, 96
    %v6441 = vpop.permute.xlu0 %6440
    %6442 = vrot.lane.b32.xlu0 %v6416, 96
    %v6443 = vpop.permute.xlu0 %6442
    %6444 = vrot.lane.b32.xlu0 %v6419, 96
    %v6445 = vpop.permute.xlu0 %6444
    %6446 = vrot.lane.b32.xlu0 %v6398, 64
    %v6447 = vpop.permute.xlu0 %6446
    %6448 = vrot.lane.b32.xlu0 %v6401, 64
    %v6449 = vpop.permute.xlu0 %6448
    %6450 = vrot.lane.b32.xlu0 %v6404, 64
    %v6451 = vpop.permute.xlu0 %6450
    %6452 = vrot.lane.b32.xlu0 %v6407, 64
    %v6453 = vpop.permute.xlu0 %6452
    %6454 = vrot.lane.b32.xlu0 %v6410, 64
    %v6455 = vpop.permute.xlu0 %6454
    %6456 = vrot.lane.b32.xlu0 %v6413, 64
    %v6457 = vpop.permute.xlu0 %6456
    %6458 = vrot.lane.b32.xlu0 %v6416, 64
    %v6459 = vpop.permute.xlu0 %6458
    %6460 = vrot.lane.b32.xlu0 %v6419, 64
    %v6461 = vpop.permute.xlu0 %6460
    %6462 = vrot.lane.b32.xlu0 %v6398, 32
    %v6463 = vpop.permute.xlu0 %6462
    %6464 = vrot.lane.b32.xlu0 %v6401, 32
    %v6465 = vpop.permute.xlu0 %6464
    %6466 = vrot.lane.b32.xlu0 %v6404, 32
    %v6467 = vpop.permute.xlu0 %6466
    %6468 = vrot.lane.b32.xlu0 %v6407, 32
    %v6469 = vpop.permute.xlu0 %6468
    %6470 = vrot.lane.b32.xlu0 %v6410, 32
    %v6471 = vpop.permute.xlu0 %6470
    %6472 = vrot.lane.b32.xlu0 %v6413, 32
    %v6473 = vpop.permute.xlu0 %6472
    %6474 = vrot.lane.b32.xlu0 %v6416, 32
    %v6475 = vpop.permute.xlu0 %6474
    %6476 = vrot.lane.b32.xlu0 %v6419, 32
    %v6477 = vpop.permute.xlu0 %6476
    %6486 = vrot.lane.b32.xlu0 %v6399, 96
    %v6487 = vpop.permute.xlu0 %6486
    %6488 = vrot.lane.b32.xlu0 %v6402, 96
    %v6489 = vpop.permute.xlu0 %6488
    %6490 = vrot.lane.b32.xlu0 %v6405, 96
    %v6491 = vpop.permute.xlu0 %6490
    %6492 = vrot.lane.b32.xlu0 %v6408, 96
    %v6493 = vpop.permute.xlu0 %6492
    %6494 = vrot.lane.b32.xlu0 %v6411, 96
    %v6495 = vpop.permute.xlu0 %6494
    %6496 = vrot.lane.b32.xlu0 %v6414, 96
    %v6497 = vpop.permute.xlu0 %6496
    %6498 = vrot.lane.b32.xlu0 %v6417, 96
    %v6499 = vpop.permute.xlu0 %6498
    %6500 = vrot.lane.b32.xlu0 %v6420, 96
    %v6501 = vpop.permute.xlu0 %6500
    %6502 = vrot.lane.b32.xlu0 %v6399, 64
    %v6503 = vpop.permute.xlu0 %6502
    %6504 = vrot.lane.b32.xlu0 %v6402, 64
    %v6505 = vpop.permute.xlu0 %6504
    %6506 = vrot.lane.b32.xlu0 %v6405, 64
    %v6507 = vpop.permute.xlu0 %6506
    %6508 = vrot.lane.b32.xlu0 %v6408, 64
    %v6509 = vpop.permute.xlu0 %6508
    %6510 = vrot.lane.b32.xlu0 %v6411, 64
    %v6511 = vpop.permute.xlu0 %6510
    %6512 = vrot.lane.b32.xlu0 %v6414, 64
    %v6513 = vpop.permute.xlu0 %6512
    %6514 = vrot.lane.b32.xlu0 %v6417, 64
    %v6515 = vpop.permute.xlu0 %6514
    %6516 = vrot.lane.b32.xlu0 %v6420, 64
    %v6517 = vpop.permute.xlu0 %6516
    %6518 = vrot.lane.b32.xlu0 %v6399, 32
    %v6519 = vpop.permute.xlu0 %6518
    %6520 = vrot.lane.b32.xlu0 %v6402, 32
    %v6521 = vpop.permute.xlu0 %6520
    %6522 = vrot.lane.b32.xlu0 %v6405, 32
    %v6523 = vpop.permute.xlu0 %6522
    %6524 = vrot.lane.b32.xlu0 %v6408, 32
    %v6525 = vpop.permute.xlu0 %6524
    %6526 = vrot.lane.b32.xlu0 %v6411, 32
    %v6527 = vpop.permute.xlu0 %6526
    %6528 = vrot.lane.b32.xlu0 %v6414, 32
    %v6529 = vpop.permute.xlu0 %6528
    %6530 = vrot.lane.b32.xlu0 %v6417, 32
    %v6531 = vpop.permute.xlu0 %6530
    %6532 = vrot.lane.b32.xlu0 %v6420, 32
    %v6533 = vpop.permute.xlu0 %6532
    %6542 = vrot.lane.b32.xlu0 %v6400, 96
    %v6543 = vpop.permute.xlu0 %6542
    %6544 = vrot.lane.b32.xlu0 %v6403, 96
    %v6545 = vpop.permute.xlu0 %6544
    %6546 = vrot.lane.b32.xlu0 %v6406, 96
    %v6547 = vpop.permute.xlu0 %6546
    %6548 = vrot.lane.b32.xlu0 %v6409, 96
    %v6549 = vpop.permute.xlu0 %6548
    %6550 = vrot.lane.b32.xlu0 %v6412, 96
    %v6551 = vpop.permute.xlu0 %6550
    %6552 = vrot.lane.b32.xlu0 %v6415, 96
    %v6553 = vpop.permute.xlu0 %6552
    %6554 = vrot.lane.b32.xlu0 %v6418, 96
    %v6555 = vpop.permute.xlu0 %6554
    %6556 = vrot.lane.b32.xlu0 %v6421, 96
    %v6557 = vpop.permute.xlu0 %6556
    %6566 = vrot.lane.b32.xlu0 %v6400, 64
    %v6567 = vpop.permute.xlu0 %6566
    %6568 = vrot.lane.b32.xlu0 %v6403, 64
    %v6569 = vpop.permute.xlu0 %6568
    %6570 = vrot.lane.b32.xlu0 %v6406, 64
    %v6571 = vpop.permute.xlu0 %6570
    %6572 = vrot.lane.b32.xlu0 %v6409, 64
    %v6573 = vpop.permute.xlu0 %6572
    %6574 = vrot.lane.b32.xlu0 %v6412, 64
    %v6575 = vpop.permute.xlu0 %6574
    %6576 = vrot.lane.b32.xlu0 %v6415, 64
    %v6577 = vpop.permute.xlu0 %6576
    %6578 = vrot.lane.b32.xlu0 %v6418, 64
    %v6579 = vpop.permute.xlu0 %6578
    %6580 = vrot.lane.b32.xlu0 %v6421, 64
    %v6581 = vpop.permute.xlu0 %6580
    %6590 = vrot.lane.b32.xlu0 %v6400, 32
    %v6591 = vpop.permute.xlu0 %6590
    %6592 = vrot.lane.b32.xlu0 %v6403, 32
    %v6593 = vpop.permute.xlu0 %6592
    %6594 = vrot.lane.b32.xlu0 %v6406, 32
    %v6595 = vpop.permute.xlu0 %6594
    %6596 = vrot.lane.b32.xlu0 %v6409, 32
    %v6597 = vpop.permute.xlu0 %6596
    %6598 = vrot.lane.b32.xlu0 %v6412, 32
    %v6599 = vpop.permute.xlu0 %6598
    %6600 = vrot.lane.b32.xlu0 %v6415, 32
    %v6601 = vpop.permute.xlu0 %6600
    %6602 = vrot.lane.b32.xlu0 %v6418, 32
    %v6603 = vpop.permute.xlu0 %6602
    %6604 = vrot.lane.b32.xlu0 %v6421, 32
    %v6605 = vpop.permute.xlu0 %6604
    %v6615 = vsel %vm2015, %v6398, 0
    %v6618 = vsel %vm2015, %v6401, 0
    %v6621 = vsel %vm2015, %v6404, 0
    %v6624 = vsel %vm2015, %v6407, 0
    %v6627 = vsel %vm2015, %v6410, 0
    %v6630 = vsel %vm2015, %v6413, 0
    %v6633 = vsel %vm2015, %v6416, 0
    %v6636 = vsel %vm2015, %v6419, 0
    %v6639 = vsel %vm2015, %v6399, 0
    %v6642 = vsel %vm2015, %v6402, 0
    %v6645 = vsel %vm2015, %v6405, 0
    %v6648 = vsel %vm2015, %v6408, 0
    %v6651 = vsel %vm2015, %v6411, 0
    %v6654 = vsel %vm2015, %v6414, 0
    %v6657 = vsel %vm2015, %v6417, 0
    %v6660 = vsel %vm2015, %v6420, 0
    %6662 = vmatprep.subr.bf16.mxu0 0
    %6663 = vmatpush1.bf16.xpose.msra.mxu0 %v6639
    %6664 = vmatprep.subr.bf16.mxu0 0
    %6665 = vmatpush1.bf16.xpose.msra.mxu0 %v6642
    %6666 = vmatprep.subr.bf16.mxu0 0
    %6667 = vmatpush1.bf16.xpose.msra.mxu0 %v6645
    %6668 = vmatprep.subr.bf16.mxu0 0
    %6669 = vmatpush1.bf16.xpose.msra.mxu0 %v6648
    %6670 = vmatprep.subr.bf16.mxu0 0
    %6671 = vmatpush1.bf16.xpose.msra.mxu0 %v6651
    %6672 = vmatprep.subr.bf16.mxu0 0
    %6673 = vmatpush1.bf16.xpose.msra.mxu0 %v6654
    %6674 = vmatprep.subr.bf16.mxu0 0
    %6675 = vmatpush1.bf16.xpose.msra.mxu0 %v6657
    %6676 = vmatprep.subr.bf16.mxu0 0
    %6677 = vmatpush1.bf16.xpose.msra.mxu0 %v6660
    %6678 = vmatprep.subr.bf16.mxu0 0
    %6679 = vmatpush1.bf16.xpose.msra.mxu0 0
    %6680 = vmatprep.subr.bf16.mxu0 0
    %6681 = vmatpush1.bf16.xpose.msra.mxu0 0
    %6682 = vmatprep.subr.bf16.mxu0 0
    %6683 = vmatpush1.bf16.xpose.msra.mxu0 0
    %6684 = vmatprep.subr.bf16.mxu0 0
    %6685 = vmatpush1.bf16.xpose.msra.mxu0 0
    %6686 = vmatprep.subr.bf16.mxu0 0
    %6687 = vmatpush1.bf16.xpose.msra.mxu0 0
    %6688 = vmatprep.subr.bf16.mxu0 0
    %6689 = vmatpush1.bf16.xpose.msra.mxu0 0
    %6690 = vmatprep.subr.bf16.mxu0 0
    %6691 = vmatpush1.bf16.xpose.msra.mxu0 0
    %6692 = vmatprep.subr.bf16.mxu0 0
    %6693 = vmatpush1.bf16.xpose.msra.mxu0 0
    %6694 = vmatprep.mubr.bf16.mxu0 0
    %6695 = vmatmul.mubr.bf16.gmra.mrb[0].mxu0 %v6615
    %v6696 = vpop.f32.mrb[0].mxu0
    %v6697 = vadd.f32 %v1165, %v6696
    %v6698 = vpop.f32.mrb[0].mxu0
    %v6699 = vpop.f32.mrb[0].mxu0
    %v6700 = vadd.f32 %v1166, %v6699
    %v6701 = vpop.f32.mrb[0].mxu0
    %6702 = vmatprep.mubr.bf16.mxu0 0
    %6703 = vmatmul.mubr.bf16.gmra.mrb[0].mxu0 %v6618
    %v6704 = vpop.f32.mrb[0].mxu0
    %v6705 = vadd.f32 %v1167, %v6704
    %v6706 = vpop.f32.mrb[0].mxu0
    %v6707 = vpop.f32.mrb[0].mxu0
    %v6708 = vadd.f32 %v1168, %v6707
    %v6709 = vpop.f32.mrb[0].mxu0
    %6710 = vmatprep.mubr.bf16.mxu0 0
    %6711 = vmatmul.mubr.bf16.gmra.mrb[0].mxu0 %v6621
    %v6712 = vpop.f32.mrb[0].mxu0
    %v6713 = vadd.f32 %v1169, %v6712
    %v6714 = vpop.f32.mrb[0].mxu0
    %v6715 = vpop.f32.mrb[0].mxu0
    %v6716 = vadd.f32 %v1170, %v6715
    %v6717 = vpop.f32.mrb[0].mxu0
    %6718 = vmatprep.mubr.bf16.mxu0 0
    %6719 = vmatmul.mubr.bf16.gmra.mrb[0].mxu0 %v6624
    %v6720 = vpop.f32.mrb[0].mxu0
    %v6721 = vadd.f32 %v1171, %v6720
    %v6722 = vpop.f32.mrb[0].mxu0
    %v6723 = vpop.f32.mrb[0].mxu0
    %v6724 = vadd.f32 %v1172, %v6723
    %v6725 = vpop.f32.mrb[0].mxu0
    %6726 = vmatprep.mubr.bf16.mxu0 0
    %6727 = vmatmul.mubr.bf16.gmra.mrb[0].mxu0 %v6627
    %v6728 = vpop.f32.mrb[0].mxu0
    %v6729 = vadd.f32 %v1173, %v6728
    %v6730 = vpop.f32.mrb[0].mxu0
    %v6731 = vpop.f32.mrb[0].mxu0
    %v6732 = vadd.f32 %v1174, %v6731
    %v6733 = vpop.f32.mrb[0].mxu0
    %6734 = vmatprep.mubr.bf16.mxu0 0
    %6735 = vmatmul.mubr.bf16.gmra.mrb[0].mxu0 %v6630
    %v6736 = vpop.f32.mrb[0].mxu0
    %v6737 = vadd.f32 %v1175, %v6736
    %v6738 = vpop.f32.mrb[0].mxu0
    %v6739 = vpop.f32.mrb[0].mxu0
    %v6740 = vadd.f32 %v1176, %v6739
    %v6741 = vpop.f32.mrb[0].mxu0
    %6742 = vmatprep.mubr.bf16.mxu0 0
    %6743 = vmatmul.mubr.bf16.gmra.mrb[0].mxu0 %v6633
    %v6744 = vpop.f32.mrb[0].mxu0
    %v6745 = vadd.f32 %v1177, %v6744
    %v6746 = vpop.f32.mrb[0].mxu0
    %v6747 = vpop.f32.mrb[0].mxu0
    %v6748 = vadd.f32 %v1178, %v6747
    %v6749 = vpop.f32.mrb[0].mxu0
    %6750 = vmatprep.mubr.bf16.mxu0 0
    %6751 = vmatmul.mubr.bf16.gmra.mrb[0].mxu0 %v6636
    %v6752 = vpop.f32.mrb[0].mxu0
    %v6753 = vadd.f32 %v1179, %v6752
    %v6754 = vpop.f32.mrb[0].mxu0
    %v6755 = vpop.f32.mrb[0].mxu0
    %v6756 = vadd.f32 %v1180, %v6755
    %v6757 = vpop.f32.mrb[0].mxu0
    %6758 = vdwg.mxu0
    %v6760 = vsel %vm2015, %v6431, 0
    %v6763 = vsel %vm2015, %v6433, 0
    %v6766 = vsel %vm2015, %v6435, 0
    %v6769 = vsel %vm2015, %v6437, 0
    %v6772 = vsel %vm2015, %v6439, 0
    %v6775 = vsel %vm2015, %v6441, 0
    %v6778 = vsel %vm2015, %v6443, 0
    %v6781 = vsel %vm2015, %v6445, 0
    %v6784 = vsel %vm2015, %v6487, 0
    %v6787 = vsel %vm2015, %v6489, 0
    %v6790 = vsel %vm2015, %v6491, 0
    %v6793 = vsel %vm2015, %v6493, 0
    %v6796 = vsel %vm2015, %v6495, 0
    %v6799 = vsel %vm2015, %v6497, 0
    %v6802 = vsel %vm2015, %v6499, 0
    %v6805 = vsel %vm2015, %v6501, 0
    %6807 = vmatprep.subr.bf16.mxu0 0
    %6808 = vmatpush1.bf16.xpose.msra.mxu0 %v6784
    %6809 = vmatprep.subr.bf16.mxu0 0
    %6810 = vmatpush1.bf16.xpose.msra.mxu0 %v6787
    %6811 = vmatprep.subr.bf16.mxu0 0
    %6812 = vmatpush1.bf16.xpose.msra.mxu0 %v6790
    %6813 = vmatprep.subr.bf16.mxu0 0
    %6814 = vmatpush1.bf16.xpose.msra.mxu0 %v6793
    %6815 = vmatprep.subr.bf16.mxu0 0
    %6816 = vmatpush1.bf16.xpose.msra.mxu0 %v6796
    %6817 = vmatprep.subr.bf16.mxu0 0
    %6818 = vmatpush1.bf16.xpose.msra.mxu0 %v6799
    %6819 = vmatprep.subr.bf16.mxu0 0
    %6820 = vmatpush1.bf16.xpose.msra.mxu0 %v6802
    %6821 = vmatprep.subr.bf16.mxu0 0
    %6822 = vmatpush1.bf16.xpose.msra.mxu0 %v6805
    %6823 = vmatprep.subr.bf16.mxu0 0
    %6824 = vmatpush1.bf16.xpose.msra.mxu0 0
    %6825 = vmatprep.subr.bf16.mxu0 0
    %6826 = vmatpush1.bf16.xpose.msra.mxu0 0
    %6827 = vmatprep.subr.bf16.mxu0 0
    %6828 = vmatpush1.bf16.xpose.msra.mxu0 0
    %6829 = vmatprep.subr.bf16.mxu0 0
    %6830 = vmatpush1.bf16.xpose.msra.mxu0 0
    %6831 = vmatprep.subr.bf16.mxu0 0
    %6832 = vmatpush1.bf16.xpose.msra.mxu0 0
    %6833 = vmatprep.subr.bf16.mxu0 0
    %6834 = vmatpush1.bf16.xpose.msra.mxu0 0
    %6835 = vmatprep.subr.bf16.mxu0 0
    %6836 = vmatpush1.bf16.xpose.msra.mxu0 0
    %6837 = vmatprep.subr.bf16.mxu0 0
    %6838 = vmatpush1.bf16.xpose.msra.mxu0 0
    %6839 = vmatprep.mubr.bf16.mxu0 0
    %6840 = vmatmul.mubr.bf16.gmra.mrb[0].mxu0 %v6760
    %v6841 = vpop.f32.mrb[0].mxu0
    %v6842 = vadd.f32 %v1165, %v6841
    %v6843 = vpop.f32.mrb[0].mxu0
    %v6844 = vpop.f32.mrb[0].mxu0
    %v6845 = vadd.f32 %v1166, %v6844
    %v6846 = vpop.f32.mrb[0].mxu0
    %6847 = vmatprep.mubr.bf16.mxu0 0
    %6848 = vmatmul.mubr.bf16.gmra.mrb[0].mxu0 %v6763
    %v6849 = vpop.f32.mrb[0].mxu0
    %v6850 = vadd.f32 %v1167, %v6849
    %v6851 = vpop.f32.mrb[0].mxu0
    %v6852 = vpop.f32.mrb[0].mxu0
    %v6853 = vadd.f32 %v1168, %v6852
    %v6854 = vpop.f32.mrb[0].mxu0
    %6855 = vmatprep.mubr.bf16.mxu0 0
    %6856 = vmatmul.mubr.bf16.gmra.mrb[0].mxu0 %v6766
    %v6857 = vpop.f32.mrb[0].mxu0
    %v6858 = vadd.f32 %v1169, %v6857
    %v6859 = vpop.f32.mrb[0].mxu0
    %v6860 = vpop.f32.mrb[0].mxu0
    %v6861 = vadd.f32 %v1170, %v6860
    %v6862 = vpop.f32.mrb[0].mxu0
    %6863 = vmatprep.mubr.bf16.mxu0 0
    %6864 = vmatmul.mubr.bf16.gmra.mrb[0].mxu0 %v6769
    %v6865 = vpop.f32.mrb[0].mxu0
    %v6866 = vadd.f32 %v1171, %v6865
    %v6867 = vpop.f32.mrb[0].mxu0
    %v6868 = vpop.f32.mrb[0].mxu0
    %v6869 = vadd.f32 %v1172, %v6868
    %v6870 = vpop.f32.mrb[0].mxu0
    %6871 = vmatprep.mubr.bf16.mxu0 0
    %6872 = vmatmul.mubr.bf16.gmra.mrb[0].mxu0 %v6772
    %v6873 = vpop.f32.mrb[0].mxu0
    %v6874 = vadd.f32 %v1173, %v6873
    %v6875 = vpop.f32.mrb[0].mxu0
    %v6876 = vpop.f32.mrb[0].mxu0
    %v6877 = vadd.f32 %v1174, %v6876
    %v6878 = vpop.f32.mrb[0].mxu0
    %6879 = vmatprep.mubr.bf16.mxu0 0
    %6880 = vmatmul.mubr.bf16.gmra.mrb[0].mxu0 %v6775
    %v6881 = vpop.f32.mrb[0].mxu0
    %v6882 = vadd.f32 %v1175, %v6881
    %v6883 = vpop.f32.mrb[0].mxu0
    %v6884 = vpop.f32.mrb[0].mxu0
    %v6885 = vadd.f32 %v1176, %v6884
    %v6886 = vpop.f32.mrb[0].mxu0
    %6887 = vmatprep.mubr.bf16.mxu0 0
    %6888 = vmatmul.mubr.bf16.gmra.mrb[0].mxu0 %v6778
    %v6889 = vpop.f32.mrb[0].mxu0
    %v6890 = vadd.f32 %v1177, %v6889
    %v6891 = vpop.f32.mrb[0].mxu0
    %v6892 = vpop.f32.mrb[0].mxu0
    %v6893 = vadd.f32 %v1178, %v6892
    %v6894 = vpop.f32.mrb[0].mxu0
    %6895 = vmatprep.mubr.bf16.mxu0 0
    %6896 = vmatmul.mubr.bf16.gmra.mrb[0].mxu0 %v6781
    %v6897 = vpop.f32.mrb[0].mxu0
    %v6898 = vadd.f32 %v1179, %v6897
    %v6899 = vpop.f32.mrb[0].mxu0
    %v6900 = vpop.f32.mrb[0].mxu0
    %v6901 = vadd.f32 %v1180, %v6900
    %v6902 = vpop.f32.mrb[0].mxu0
    %6903 = vdwg.mxu0
    %v6905 = vsel %vm2015, %v6447, 0
    %v6908 = vsel %vm2015, %v6449, 0
    %v6911 = vsel %vm2015, %v6451, 0
    %v6914 = vsel %vm2015, %v6453, 0
    %v6917 = vsel %vm2015, %v6455, 0
    %v6920 = vsel %vm2015, %v6457, 0
    %v6923 = vsel %vm2015, %v6459, 0
    %v6926 = vsel %vm2015, %v6461, 0
    %v6929 = vsel %vm2015, %v6503, 0
    %v6932 = vsel %vm2015, %v6505, 0
    %v6935 = vsel %vm2015, %v6507, 0
    %v6938 = vsel %vm2015, %v6509, 0
    %v6941 = vsel %vm2015, %v6511, 0
    %v6944 = vsel %vm2015, %v6513, 0
    %v6947 = vsel %vm2015, %v6515, 0
    %v6950 = vsel %vm2015, %v6517, 0
    %6952 = vmatprep.subr.bf16.mxu0 0
    %6953 = vmatpush1.bf16.xpose.msra.mxu0 %v6929
    %6954 = vmatprep.subr.bf16.mxu0 0
    %6955 = vmatpush1.bf16.xpose.msra.mxu0 %v6932
    %6956 = vmatprep.subr.bf16.mxu0 0
    %6957 = vmatpush1.bf16.xpose.msra.mxu0 %v6935
    %6958 = vmatprep.subr.bf16.mxu0 0
    %6959 = vmatpush1.bf16.xpose.msra.mxu0 %v6938
    %6960 = vmatprep.subr.bf16.mxu0 0
    %6961 = vmatpush1.bf16.xpose.msra.mxu0 %v6941
    %6962 = vmatprep.subr.bf16.mxu0 0
    %6963 = vmatpush1.bf16.xpose.msra.mxu0 %v6944
    %6964 = vmatprep.subr.bf16.mxu0 0
    %6965 = vmatpush1.bf16.xpose.msra.mxu0 %v6947
    %6966 = vmatprep.subr.bf16.mxu0 0
    %6967 = vmatpush1.bf16.xpose.msra.mxu0 %v6950
    %6968 = vmatprep.subr.bf16.mxu0 0
    %6969 = vmatpush1.bf16.xpose.msra.mxu0 0
    %6970 = vmatprep.subr.bf16.mxu0 0
    %6971 = vmatpush1.bf16.xpose.msra.mxu0 0
    %6972 = vmatprep.subr.bf16.mxu0 0
    %6973 = vmatpush1.bf16.xpose.msra.mxu0 0
    %6974 = vmatprep.subr.bf16.mxu0 0
    %6975 = vmatpush1.bf16.xpose.msra.mxu0 0
    %6976 = vmatprep.subr.bf16.mxu0 0
    %6977 = vmatpush1.bf16.xpose.msra.mxu0 0
    %6978 = vmatprep.subr.bf16.mxu0 0
    %6979 = vmatpush1.bf16.xpose.msra.mxu0 0
    %6980 = vmatprep.subr.bf16.mxu0 0
    %6981 = vmatpush1.bf16.xpose.msra.mxu0 0
    %6982 = vmatprep.subr.bf16.mxu0 0
    %6983 = vmatpush1.bf16.xpose.msra.mxu0 0
    %6984 = vmatprep.mubr.bf16.mxu0 0
    %6985 = vmatmul.mubr.bf16.gmra.mrb[0].mxu0 %v6905
    %v6986 = vpop.f32.mrb[0].mxu0
    %v6987 = vadd.f32 %v1165, %v6986
    %v6988 = vpop.f32.mrb[0].mxu0
    %v6989 = vpop.f32.mrb[0].mxu0
    %v6990 = vadd.f32 %v1166, %v6989
    %v6991 = vpop.f32.mrb[0].mxu0
    %6992 = vmatprep.mubr.bf16.mxu0 0
    %6993 = vmatmul.mubr.bf16.gmra.mrb[0].mxu0 %v6908
    %v6994 = vpop.f32.mrb[0].mxu0
    %v6995 = vadd.f32 %v1167, %v6994
    %v6996 = vpop.f32.mrb[0].mxu0
    %v6997 = vpop.f32.mrb[0].mxu0
    %v6998 = vadd.f32 %v1168, %v6997
    %v6999 = vpop.f32.mrb[0].mxu0
    %7000 = vmatprep.mubr.bf16.mxu0 0
    %7001 = vmatmul.mubr.bf16.gmra.mrb[0].mxu0 %v6911
    %v7002 = vpop.f32.mrb[0].mxu0
    %v7003 = vadd.f32 %v1169, %v7002
    %v7004 = vpop.f32.mrb[0].mxu0
    %v7005 = vpop.f32.mrb[0].mxu0
    %v7006 = vadd.f32 %v1170, %v7005
    %v7007 = vpop.f32.mrb[0].mxu0
    %7008 = vmatprep.mubr.bf16.mxu0 0
    %7009 = vmatmul.mubr.bf16.gmra.mrb[0].mxu0 %v6914
    %v7010 = vpop.f32.mrb[0].mxu0
    %v7011 = vadd.f32 %v1171, %v7010
    %v7012 = vpop.f32.mrb[0].mxu0
    %v7013 = vpop.f32.mrb[0].mxu0
    %v7014 = vadd.f32 %v1172, %v7013
    %v7015 = vpop.f32.mrb[0].mxu0
    %7016 = vmatprep.mubr.bf16.mxu0 0
    %7017 = vmatmul.mubr.bf16.gmra.mrb[0].mxu0 %v6917
    %v7018 = vpop.f32.mrb[0].mxu0
    %v7019 = vadd.f32 %v1173, %v7018
    %v7020 = vpop.f32.mrb[0].mxu0
    %v7021 = vpop.f32.mrb[0].mxu0
    %v7022 = vadd.f32 %v1174, %v7021
    %v7023 = vpop.f32.mrb[0].mxu0
    %7024 = vmatprep.mubr.bf16.mxu0 0
    %7025 = vmatmul.mubr.bf16.gmra.mrb[0].mxu0 %v6920
    %v7026 = vpop.f32.mrb[0].mxu0
    %v7027 = vadd.f32 %v1175, %v7026
    %v7028 = vpop.f32.mrb[0].mxu0
    %v7029 = vpop.f32.mrb[0].mxu0
    %v7030 = vadd.f32 %v1176, %v7029
    %v7031 = vpop.f32.mrb[0].mxu0
    %7032 = vmatprep.mubr.bf16.mxu0 0
    %7033 = vmatmul.mubr.bf16.gmra.mrb[0].mxu0 %v6923
    %v7034 = vpop.f32.mrb[0].mxu0
    %v7035 = vadd.f32 %v1177, %v7034
    %v7036 = vpop.f32.mrb[0].mxu0
    %v7037 = vpop.f32.mrb[0].mxu0
    %v7038 = vadd.f32 %v1178, %v7037
    %v7039 = vpop.f32.mrb[0].mxu0
    %7040 = vmatprep.mubr.bf16.mxu0 0
    %7041 = vmatmul.mubr.bf16.gmra.mrb[0].mxu0 %v6926
    %v7042 = vpop.f32.mrb[0].mxu0
    %v7043 = vadd.f32 %v1179, %v7042
    %v7044 = vpop.f32.mrb[0].mxu0
    %v7045 = vpop.f32.mrb[0].mxu0
    %v7046 = vadd.f32 %v1180, %v7045
    %v7047 = vpop.f32.mrb[0].mxu0
    %7048 = vdwg.mxu0
    %v7050 = vsel %vm2015, %v6463, 0
    %v7053 = vsel %vm2015, %v6465, 0
    %v7056 = vsel %vm2015, %v6467, 0
    %v7059 = vsel %vm2015, %v6469, 0
    %v7062 = vsel %vm2015, %v6471, 0
    %v7065 = vsel %vm2015, %v6473, 0
    %v7068 = vsel %vm2015, %v6475, 0
    %v7071 = vsel %vm2015, %v6477, 0
    %v7074 = vsel %vm2015, %v6519, 0
    %v7077 = vsel %vm2015, %v6521, 0
    %v7080 = vsel %vm2015, %v6523, 0
    %v7083 = vsel %vm2015, %v6525, 0
    %v7086 = vsel %vm2015, %v6527, 0
    %v7089 = vsel %vm2015, %v6529, 0
    %v7092 = vsel %vm2015, %v6531, 0
    %v7095 = vsel %vm2015, %v6533, 0
    %7097 = vmatprep.subr.bf16.mxu0 0
    %7098 = vmatpush1.bf16.xpose.msra.mxu0 %v7074
    %7099 = vmatprep.subr.bf16.mxu0 0
    %7100 = vmatpush1.bf16.xpose.msra.mxu0 %v7077
    %7101 = vmatprep.subr.bf16.mxu0 0
    %7102 = vmatpush1.bf16.xpose.msra.mxu0 %v7080
    %7103 = vmatprep.subr.bf16.mxu0 0
    %7104 = vmatpush1.bf16.xpose.msra.mxu0 %v7083
    %7105 = vmatprep.subr.bf16.mxu0 0
    %7106 = vmatpush1.bf16.xpose.msra.mxu0 %v7086
    %7107 = vmatprep.subr.bf16.mxu0 0
    %7108 = vmatpush1.bf16.xpose.msra.mxu0 %v7089
    %7109 = vmatprep.subr.bf16.mxu0 0
    %7110 = vmatpush1.bf16.xpose.msra.mxu0 %v7092
    %7111 = vmatprep.subr.bf16.mxu0 0
    %7112 = vmatpush1.bf16.xpose.msra.mxu0 %v7095
    %7113 = vmatprep.subr.bf16.mxu0 0
    %7114 = vmatpush1.bf16.xpose.msra.mxu0 0
    %7115 = vmatprep.subr.bf16.mxu0 0
    %7116 = vmatpush1.bf16.xpose.msra.mxu0 0
    %7117 = vmatprep.subr.bf16.mxu0 0
    %7118 = vmatpush1.bf16.xpose.msra.mxu0 0
    %7119 = vmatprep.subr.bf16.mxu0 0
    %7120 = vmatpush1.bf16.xpose.msra.mxu0 0
    %7121 = vmatprep.subr.bf16.mxu0 0
    %7122 = vmatpush1.bf16.xpose.msra.mxu0 0
    %7123 = vmatprep.subr.bf16.mxu0 0
    %7124 = vmatpush1.bf16.xpose.msra.mxu0 0
    %7125 = vmatprep.subr.bf16.mxu0 0
    %7126 = vmatpush1.bf16.xpose.msra.mxu0 0
    %7127 = vmatprep.subr.bf16.mxu0 0
    %7128 = vmatpush1.bf16.xpose.msra.mxu0 0
    %7129 = vmatprep.mubr.bf16.mxu0 0
    %7130 = vmatmul.mubr.bf16.gmra.mrb[0].mxu0 %v7050
    %v7131 = vpop.f32.mrb[0].mxu0
    %v7132 = vadd.f32 %v1165, %v7131
    %v7133 = vpop.f32.mrb[0].mxu0
    %v7134 = vpop.f32.mrb[0].mxu0
    %v7135 = vadd.f32 %v1166, %v7134
    %v7136 = vpop.f32.mrb[0].mxu0
    %7137 = vmatprep.mubr.bf16.mxu0 0
    %7138 = vmatmul.mubr.bf16.gmra.mrb[0].mxu0 %v7053
    %v7139 = vpop.f32.mrb[0].mxu0
    %v7140 = vadd.f32 %v1167, %v7139
    %v7141 = vpop.f32.mrb[0].mxu0
    %v7142 = vpop.f32.mrb[0].mxu0
    %v7143 = vadd.f32 %v1168, %v7142
    %v7144 = vpop.f32.mrb[0].mxu0
    %7145 = vmatprep.mubr.bf16.mxu0 0
    %7146 = vmatmul.mubr.bf16.gmra.mrb[0].mxu0 %v7056
    %v7147 = vpop.f32.mrb[0].mxu0
    %v7148 = vadd.f32 %v1169, %v7147
    %v7149 = vpop.f32.mrb[0].mxu0
    %v7150 = vpop.f32.mrb[0].mxu0
    %v7151 = vadd.f32 %v1170, %v7150
    %v7152 = vpop.f32.mrb[0].mxu0
    %7153 = vmatprep.mubr.bf16.mxu0 0
    %7154 = vmatmul.mubr.bf16.gmra.mrb[0].mxu0 %v7059
    %v7155 = vpop.f32.mrb[0].mxu0
    %v7156 = vadd.f32 %v1171, %v7155
    %v7157 = vpop.f32.mrb[0].mxu0
    %v7158 = vpop.f32.mrb[0].mxu0
    %v7159 = vadd.f32 %v1172, %v7158
    %v7160 = vpop.f32.mrb[0].mxu0
    %7161 = vmatprep.mubr.bf16.mxu0 0
    %7162 = vmatmul.mubr.bf16.gmra.mrb[0].mxu0 %v7062
    %v7163 = vpop.f32.mrb[0].mxu0
    %v7164 = vadd.f32 %v1173, %v7163
    %v7165 = vpop.f32.mrb[0].mxu0
    %v7166 = vpop.f32.mrb[0].mxu0
    %v7167 = vadd.f32 %v1174, %v7166
    %v7168 = vpop.f32.mrb[0].mxu0
    %7169 = vmatprep.mubr.bf16.mxu0 0
    %7170 = vmatmul.mubr.bf16.gmra.mrb[0].mxu0 %v7065
    %v7171 = vpop.f32.mrb[0].mxu0
    %v7172 = vadd.f32 %v1175, %v7171
    %v7173 = vpop.f32.mrb[0].mxu0
    %v7174 = vpop.f32.mrb[0].mxu0
    %v7175 = vadd.f32 %v1176, %v7174
    %v7176 = vpop.f32.mrb[0].mxu0
    %7177 = vmatprep.mubr.bf16.mxu0 0
    %7178 = vmatmul.mubr.bf16.gmra.mrb[0].mxu0 %v7068
    %v7179 = vpop.f32.mrb[0].mxu0
    %v7180 = vadd.f32 %v1177, %v7179
    %v7181 = vpop.f32.mrb[0].mxu0
    %v7182 = vpop.f32.mrb[0].mxu0
    %v7183 = vadd.f32 %v1178, %v7182
    %v7184 = vpop.f32.mrb[0].mxu0
    %7185 = vmatprep.mubr.bf16.mxu0 0
    %7186 = vmatmul.mubr.bf16.gmra.mrb[0].mxu0 %v7071
    %v7187 = vpop.f32.mrb[0].mxu0
    %v7188 = vadd.f32 %v1179, %v7187
    %v7189 = vpop.f32.mrb[0].mxu0
    %v7190 = vpop.f32.mrb[0].mxu0
    %v7191 = vadd.f32 %v1180, %v7190
    %v7192 = vpop.f32.mrb[0].mxu0
    %7193 = vdwg.mxu0
    %7194 = vmax.xlane.f32.xlu0 %v6697
    %v7195 = vpop.xlane.xlu0 %7194
    %7196 = vmax.xlane.f32.xlu0 %v6700
    %v7197 = vpop.xlane.xlu0 %7196
    %7198 = vmax.xlane.f32.xlu0 %v6705
    %v7199 = vpop.xlane.xlu0 %7198
    %7200 = vmax.xlane.f32.xlu0 %v6708
    %v7201 = vpop.xlane.xlu0 %7200
    %7202 = vmax.xlane.f32.xlu0 %v6713
    %v7203 = vpop.xlane.xlu0 %7202
    %7204 = vmax.xlane.f32.xlu0 %v6716
    %v7205 = vpop.xlane.xlu0 %7204
    %7206 = vmax.xlane.f32.xlu0 %v6721
    %v7207 = vpop.xlane.xlu0 %7206
    %7208 = vmax.xlane.f32.xlu0 %v6724
    %v7209 = vpop.xlane.xlu0 %7208
    %7210 = vmax.xlane.f32.xlu0 %v6729
    %v7211 = vpop.xlane.xlu0 %7210
    %7212 = vmax.xlane.f32.xlu0 %v6732
    %v7213 = vpop.xlane.xlu0 %7212
    %7214 = vmax.xlane.f32.xlu0 %v6737
    %v7215 = vpop.xlane.xlu0 %7214
    %7216 = vmax.xlane.f32.xlu0 %v6740
    %v7217 = vpop.xlane.xlu0 %7216
    %7218 = vmax.xlane.f32.xlu0 %v6745
    %v7219 = vpop.xlane.xlu0 %7218
    %7220 = vmax.xlane.f32.xlu0 %v6748
    %v7221 = vpop.xlane.xlu0 %7220
    %7222 = vmax.xlane.f32.xlu0 %v6753
    %v7223 = vpop.xlane.xlu0 %7222
    %7224 = vmax.xlane.f32.xlu0 %v6756
    %v7225 = vpop.xlane.xlu0 %7224
    %7226 = vmax.xlane.f32.xlu0 %v6842
    %v7227 = vpop.xlane.xlu0 %7226
    %7228 = vmax.xlane.f32.xlu0 %v6845
    %v7229 = vpop.xlane.xlu0 %7228
    %7230 = vmax.xlane.f32.xlu0 %v6850
    %v7231 = vpop.xlane.xlu0 %7230
    %7232 = vmax.xlane.f32.xlu0 %v6853
    %v7233 = vpop.xlane.xlu0 %7232
    %7234 = vmax.xlane.f32.xlu0 %v6858
    %v7235 = vpop.xlane.xlu0 %7234
    %7236 = vmax.xlane.f32.xlu0 %v6861
    %v7237 = vpop.xlane.xlu0 %7236
    %7238 = vmax.xlane.f32.xlu0 %v6866
    %v7239 = vpop.xlane.xlu0 %7238
    %7240 = vmax.xlane.f32.xlu0 %v6869
    %v7241 = vpop.xlane.xlu0 %7240
    %7242 = vmax.xlane.f32.xlu0 %v6874
    %v7243 = vpop.xlane.xlu0 %7242
    %7244 = vmax.xlane.f32.xlu0 %v6877
    %v7245 = vpop.xlane.xlu0 %7244
    %7246 = vmax.xlane.f32.xlu0 %v6882
    %v7247 = vpop.xlane.xlu0 %7246
    %7248 = vmax.xlane.f32.xlu0 %v6885
    %v7249 = vpop.xlane.xlu0 %7248
    %7250 = vmax.xlane.f32.xlu0 %v6890
    %v7251 = vpop.xlane.xlu0 %7250
    %7252 = vmax.xlane.f32.xlu0 %v6893
    %v7253 = vpop.xlane.xlu0 %7252
    %7254 = vmax.xlane.f32.xlu0 %v6898
    %v7255 = vpop.xlane.xlu0 %7254
    %7256 = vmax.xlane.f32.xlu0 %v6901
    %v7257 = vpop.xlane.xlu0 %7256
    %7258 = vmax.xlane.f32.xlu0 %v6987
    %v7259 = vpop.xlane.xlu0 %7258
    %7260 = vmax.xlane.f32.xlu0 %v6990
    %v7261 = vpop.xlane.xlu0 %7260
    %7262 = vmax.xlane.f32.xlu0 %v6995
    %v7263 = vpop.xlane.xlu0 %7262
    %7264 = vmax.xlane.f32.xlu0 %v6998
    %v7265 = vpop.xlane.xlu0 %7264
    %7266 = vmax.xlane.f32.xlu0 %v7003
    %v7267 = vpop.xlane.xlu0 %7266
    %7268 = vmax.xlane.f32.xlu0 %v7006
    %v7269 = vpop.xlane.xlu0 %7268
    %7270 = vmax.xlane.f32.xlu0 %v7011
    %v7271 = vpop.xlane.xlu0 %7270
    %7272 = vmax.xlane.f32.xlu0 %v7014
    %v7273 = vpop.xlane.xlu0 %7272
    %7274 = vmax.xlane.f32.xlu0 %v7019
    %v7275 = vpop.xlane.xlu0 %7274
    %7276 = vmax.xlane.f32.xlu0 %v7022
    %v7277 = vpop.xlane.xlu0 %7276
    %7278 = vmax.xlane.f32.xlu0 %v7027
    %v7279 = vpop.xlane.xlu0 %7278
    %7280 = vmax.xlane.f32.xlu0 %v7030
    %v7281 = vpop.xlane.xlu0 %7280
    %7282 = vmax.xlane.f32.xlu0 %v7035
    %v7283 = vpop.xlane.xlu0 %7282
    %7284 = vmax.xlane.f32.xlu0 %v7038
    %v7285 = vpop.xlane.xlu0 %7284
    %7286 = vmax.xlane.f32.xlu0 %v7043
    %v7287 = vpop.xlane.xlu0 %7286
    %7288 = vmax.xlane.f32.xlu0 %v7046
    %v7289 = vpop.xlane.xlu0 %7288
    %7290 = vmax.xlane.f32.xlu0 %v7132
    %v7291 = vpop.xlane.xlu0 %7290
    %7292 = vmax.xlane.f32.xlu0 %v7135
    %v7293 = vpop.xlane.xlu0 %7292
    %7294 = vmax.xlane.f32.xlu0 %v7140
    %v7295 = vpop.xlane.xlu0 %7294
    %7296 = vmax.xlane.f32.xlu0 %v7143
    %v7297 = vpop.xlane.xlu0 %7296
    %7298 = vmax.xlane.f32.xlu0 %v7148
    %v7299 = vpop.xlane.xlu0 %7298
    %7300 = vmax.xlane.f32.xlu0 %v7151
    %v7301 = vpop.xlane.xlu0 %7300
    %7302 = vmax.xlane.f32.xlu0 %v7156
    %v7303 = vpop.xlane.xlu0 %7302
    %7304 = vmax.xlane.f32.xlu0 %v7159
    %v7305 = vpop.xlane.xlu0 %7304
    %7306 = vmax.xlane.f32.xlu0 %v7164
    %v7307 = vpop.xlane.xlu0 %7306
    %7308 = vmax.xlane.f32.xlu0 %v7167
    %v7309 = vpop.xlane.xlu0 %7308
    %7310 = vmax.xlane.f32.xlu0 %v7172
    %v7311 = vpop.xlane.xlu0 %7310
    %7312 = vmax.xlane.f32.xlu0 %v7175
    %v7313 = vpop.xlane.xlu0 %7312
    %7314 = vmax.xlane.f32.xlu0 %v7180
    %v7315 = vpop.xlane.xlu0 %7314
    %7316 = vmax.xlane.f32.xlu0 %v7183
    %v7317 = vpop.xlane.xlu0 %7316
    %7318 = vmax.xlane.f32.xlu0 %v7188
    %v7319 = vpop.xlane.xlu0 %7318
    %7320 = vmax.xlane.f32.xlu0 %v7191
    %v7321 = vpop.xlane.xlu0 %7320
    %v7322 = vsub.f32 %v6697, %v7195
    %v7323 = vsub.f32 %v6700, %v7197
    %v7324 = vsub.f32 %v6705, %v7199
    %v7325 = vsub.f32 %v6708, %v7201
    %v7326 = vsub.f32 %v6713, %v7203
    %v7327 = vsub.f32 %v6716, %v7205
    %v7328 = vsub.f32 %v6721, %v7207
    %v7329 = vsub.f32 %v6724, %v7209
    %v7330 = vsub.f32 %v6729, %v7211
    %v7331 = vsub.f32 %v6732, %v7213
    %v7332 = vsub.f32 %v6737, %v7215
    %v7333 = vsub.f32 %v6740, %v7217
    %v7334 = vsub.f32 %v6745, %v7219
    %v7335 = vsub.f32 %v6748, %v7221
    %v7336 = vsub.f32 %v6753, %v7223
    %v7337 = vsub.f32 %v6756, %v7225
    %v7338 = vsub.f32 %v6842, %v7227
    %v7339 = vsub.f32 %v6845, %v7229
    %v7340 = vsub.f32 %v6850, %v7231
    %v7341 = vsub.f32 %v6853, %v7233
    %v7342 = vsub.f32 %v6858, %v7235
    %v7343 = vsub.f32 %v6861, %v7237
    %v7344 = vsub.f32 %v6866, %v7239
    %v7345 = vsub.f32 %v6869, %v7241
    %v7346 = vsub.f32 %v6874, %v7243
    %v7347 = vsub.f32 %v6877, %v7245
    %v7348 = vsub.f32 %v6882, %v7247
    %v7349 = vsub.f32 %v6885, %v7249
    %v7350 = vsub.f32 %v6890, %v7251
    %v7351 = vsub.f32 %v6893, %v7253
    %v7352 = vsub.f32 %v6898, %v7255
    %v7353 = vsub.f32 %v6901, %v7257
    %v7354 = vsub.f32 %v6987, %v7259
    %v7355 = vsub.f32 %v6990, %v7261
    %v7356 = vsub.f32 %v6995, %v7263
    %v7357 = vsub.f32 %v6998, %v7265
    %v7358 = vsub.f32 %v7003, %v7267
    %v7359 = vsub.f32 %v7006, %v7269
    %v7360 = vsub.f32 %v7011, %v7271
    %v7361 = vsub.f32 %v7014, %v7273
    %v7362 = vsub.f32 %v7019, %v7275
    %v7363 = vsub.f32 %v7022, %v7277
    %v7364 = vsub.f32 %v7027, %v7279
    %v7365 = vsub.f32 %v7030, %v7281
    %v7366 = vsub.f32 %v7035, %v7283
    %v7367 = vsub.f32 %v7038, %v7285
    %v7368 = vsub.f32 %v7043, %v7287
    %v7369 = vsub.f32 %v7046, %v7289
    %v7370 = vsub.f32 %v7132, %v7291
    %v7371 = vsub.f32 %v7135, %v7293
    %v7372 = vsub.f32 %v7140, %v7295
    %v7373 = vsub.f32 %v7143, %v7297
    %v7374 = vsub.f32 %v7148, %v7299
    %v7375 = vsub.f32 %v7151, %v7301
    %v7376 = vsub.f32 %v7156, %v7303
    %v7377 = vsub.f32 %v7159, %v7305
    %v7378 = vsub.f32 %v7164, %v7307
    %v7379 = vsub.f32 %v7167, %v7309
    %v7380 = vsub.f32 %v7172, %v7311
    %v7381 = vsub.f32 %v7175, %v7313
    %v7382 = vsub.f32 %v7180, %v7315
    %v7383 = vsub.f32 %v7183, %v7317
    %v7384 = vsub.f32 %v7188, %v7319
    %v7385 = vsub.f32 %v7191, %v7321
    %v7386 = vmul.f32 %v7322, 1.442695
    %v7387 = vpow.pop %v7386
    %v7388 = vmul.f32 %v7323, 1.442695
    %v7389 = vpow.pop %v7388
    %v7390 = vmul.f32 %v7324, 1.442695
    %v7391 = vpow.pop %v7390
    %v7392 = vmul.f32 %v7325, 1.442695
    %v7393 = vpow.pop %v7392
    %v7394 = vmul.f32 %v7326, 1.442695
    %v7395 = vpow.pop %v7394
    %v7396 = vmul.f32 %v7327, 1.442695
    %v7397 = vpow.pop %v7396
    %v7398 = vmul.f32 %v7328, 1.442695
    %v7399 = vpow.pop %v7398
    %v7400 = vmul.f32 %v7329, 1.442695
    %v7401 = vpow.pop %v7400
    %v7402 = vmul.f32 %v7330, 1.442695
    %v7403 = vpow.pop %v7402
    %v7404 = vmul.f32 %v7331, 1.442695
    %v7405 = vpow.pop %v7404
    %v7406 = vmul.f32 %v7332, 1.442695
    %v7407 = vpow.pop %v7406
    %v7408 = vmul.f32 %v7333, 1.442695
    %v7409 = vpow.pop %v7408
    %v7410 = vmul.f32 %v7334, 1.442695
    %v7411 = vpow.pop %v7410
    %v7412 = vmul.f32 %v7335, 1.442695
    %v7413 = vpow.pop %v7412
    %v7414 = vmul.f32 %v7336, 1.442695
    %v7415 = vpow.pop %v7414
    %v7416 = vmul.f32 %v7337, 1.442695
    %v7417 = vpow.pop %v7416
    %v7418 = vmul.f32 %v7338, 1.442695
    %v7419 = vpow.pop %v7418
    %v7420 = vmul.f32 %v7339, 1.442695
    %v7421 = vpow.pop %v7420
    %v7422 = vmul.f32 %v7340, 1.442695
    %v7423 = vpow.pop %v7422
    %v7424 = vmul.f32 %v7341, 1.442695
    %v7425 = vpow.pop %v7424
    %v7426 = vmul.f32 %v7342, 1.442695
    %v7427 = vpow.pop %v7426
    %v7428 = vmul.f32 %v7343, 1.442695
    %v7429 = vpow.pop %v7428
    %v7430 = vmul.f32 %v7344, 1.442695
    %v7431 = vpow.pop %v7430
    %v7432 = vmul.f32 %v7345, 1.442695
    %v7433 = vpow.pop %v7432
    %v7434 = vmul.f32 %v7346, 1.442695
    %v7435 = vpow.pop %v7434
    %v7436 = vmul.f32 %v7347, 1.442695
    %v7437 = vpow.pop %v7436
    %v7438 = vmul.f32 %v7348, 1.442695
    %v7439 = vpow.pop %v7438
    %v7440 = vmul.f32 %v7349, 1.442695
    %v7441 = vpow.pop %v7440
    %v7442 = vmul.f32 %v7350, 1.442695
    %v7443 = vpow.pop %v7442
    %v7444 = vmul.f32 %v7351, 1.442695
    %v7445 = vpow.pop %v7444
    %v7446 = vmul.f32 %v7352, 1.442695
    %v7447 = vpow.pop %v7446
    %v7448 = vmul.f32 %v7353, 1.442695
    %v7449 = vpow.pop %v7448
    %v7450 = vmul.f32 %v7354, 1.442695
    %v7451 = vpow.pop %v7450
    %v7452 = vmul.f32 %v7355, 1.442695
    %v7453 = vpow.pop %v7452
    %v7454 = vmul.f32 %v7356, 1.442695
    %v7455 = vpow.pop %v7454
    %v7456 = vmul.f32 %v7357, 1.442695
    %v7457 = vpow.pop %v7456
    %v7458 = vmul.f32 %v7358, 1.442695
    %v7459 = vpow.pop %v7458
    %v7460 = vmul.f32 %v7359, 1.442695
    %v7461 = vpow.pop %v7460
    %v7462 = vmul.f32 %v7360, 1.442695
    %v7463 = vpow.pop %v7462
    %v7464 = vmul.f32 %v7361, 1.442695
    %v7465 = vpow.pop %v7464
    %v7466 = vmul.f32 %v7362, 1.442695
    %v7467 = vpow.pop %v7466
    %v7468 = vmul.f32 %v7363, 1.442695
    %v7469 = vpow.pop %v7468
    %v7470 = vmul.f32 %v7364, 1.442695
    %v7471 = vpow.pop %v7470
    %v7472 = vmul.f32 %v7365, 1.442695
    %v7473 = vpow.pop %v7472
    %v7474 = vmul.f32 %v7366, 1.442695
    %v7475 = vpow.pop %v7474
    %v7476 = vmul.f32 %v7367, 1.442695
    %v7477 = vpow.pop %v7476
    %v7478 = vmul.f32 %v7368, 1.442695
    %v7479 = vpow.pop %v7478
    %v7480 = vmul.f32 %v7369, 1.442695
    %v7481 = vpow.pop %v7480
    %v7482 = vmul.f32 %v7370, 1.442695
    %v7483 = vpow.pop %v7482
    %v7484 = vmul.f32 %v7371, 1.442695
    %v7485 = vpow.pop %v7484
    %v7486 = vmul.f32 %v7372, 1.442695
    %v7487 = vpow.pop %v7486
    %v7488 = vmul.f32 %v7373, 1.442695
    %v7489 = vpow.pop %v7488
    %v7490 = vmul.f32 %v7374, 1.442695
    %v7491 = vpow.pop %v7490
    %v7492 = vmul.f32 %v7375, 1.442695
    %v7493 = vpow.pop %v7492
    %v7494 = vmul.f32 %v7376, 1.442695
    %v7495 = vpow.pop %v7494
    %v7496 = vmul.f32 %v7377, 1.442695
    %v7497 = vpow.pop %v7496
    %v7498 = vmul.f32 %v7378, 1.442695
    %v7499 = vpow.pop %v7498
    %v7500 = vmul.f32 %v7379, 1.442695
    %v7501 = vpow.pop %v7500
    %v7502 = vmul.f32 %v7380, 1.442695
    %v7503 = vpow.pop %v7502
    %v7504 = vmul.f32 %v7381, 1.442695
    %v7505 = vpow.pop %v7504
    %v7506 = vmul.f32 %v7382, 1.442695
    %v7507 = vpow.pop %v7506
    %v7508 = vmul.f32 %v7383, 1.442695
    %v7509 = vpow.pop %v7508
    %v7510 = vmul.f32 %v7384, 1.442695
    %v7511 = vpow.pop %v7510
    %v7512 = vmul.f32 %v7385, 1.442695
    %v7513 = vpow.pop %v7512
    %7514 = vadd.xlane.f32.xlu0 %v7387
    %v7515 = vpop.xlane.xlu0 %7514
    %7516 = vadd.xlane.f32.xlu0 %v7389
    %v7517 = vpop.xlane.xlu0 %7516
    %7518 = vadd.xlane.f32.xlu0 %v7391
    %v7519 = vpop.xlane.xlu0 %7518
    %7520 = vadd.xlane.f32.xlu0 %v7393
    %v7521 = vpop.xlane.xlu0 %7520
    %7522 = vadd.xlane.f32.xlu0 %v7395
    %v7523 = vpop.xlane.xlu0 %7522
    %7524 = vadd.xlane.f32.xlu0 %v7397
    %v7525 = vpop.xlane.xlu0 %7524
    %7526 = vadd.xlane.f32.xlu0 %v7399
    %v7527 = vpop.xlane.xlu0 %7526
    %7528 = vadd.xlane.f32.xlu0 %v7401
    %v7529 = vpop.xlane.xlu0 %7528
    %7530 = vadd.xlane.f32.xlu0 %v7403
    %v7531 = vpop.xlane.xlu0 %7530
    %7532 = vadd.xlane.f32.xlu0 %v7405
    %v7533 = vpop.xlane.xlu0 %7532
    %7534 = vadd.xlane.f32.xlu0 %v7407
    %v7535 = vpop.xlane.xlu0 %7534
    %7536 = vadd.xlane.f32.xlu0 %v7409
    %v7537 = vpop.xlane.xlu0 %7536
    %7538 = vadd.xlane.f32.xlu0 %v7411
    %v7539 = vpop.xlane.xlu0 %7538
    %7540 = vadd.xlane.f32.xlu0 %v7413
    %v7541 = vpop.xlane.xlu0 %7540
    %7542 = vadd.xlane.f32.xlu0 %v7415
    %v7543 = vpop.xlane.xlu0 %7542
    %7544 = vadd.xlane.f32.xlu0 %v7417
    %v7545 = vpop.xlane.xlu0 %7544
    %7546 = vadd.xlane.f32.xlu0 %v7419
    %v7547 = vpop.xlane.xlu0 %7546
    %7548 = vadd.xlane.f32.xlu0 %v7421
    %v7549 = vpop.xlane.xlu0 %7548
    %7550 = vadd.xlane.f32.xlu0 %v7423
    %v7551 = vpop.xlane.xlu0 %7550
    %7552 = vadd.xlane.f32.xlu0 %v7425
    %v7553 = vpop.xlane.xlu0 %7552
    %7554 = vadd.xlane.f32.xlu0 %v7427
    %v7555 = vpop.xlane.xlu0 %7554
    %7556 = vadd.xlane.f32.xlu0 %v7429
    %v7557 = vpop.xlane.xlu0 %7556
    %7558 = vadd.xlane.f32.xlu0 %v7431
    %v7559 = vpop.xlane.xlu0 %7558
    %7560 = vadd.xlane.f32.xlu0 %v7433
    %v7561 = vpop.xlane.xlu0 %7560
    %7562 = vadd.xlane.f32.xlu0 %v7435
    %v7563 = vpop.xlane.xlu0 %7562
    %7564 = vadd.xlane.f32.xlu0 %v7437
    %v7565 = vpop.xlane.xlu0 %7564
    %7566 = vadd.xlane.f32.xlu0 %v7439
    %v7567 = vpop.xlane.xlu0 %7566
    %7568 = vadd.xlane.f32.xlu0 %v7441
    %v7569 = vpop.xlane.xlu0 %7568
    %7570 = vadd.xlane.f32.xlu0 %v7443
    %v7571 = vpop.xlane.xlu0 %7570
    %7572 = vadd.xlane.f32.xlu0 %v7445
    %v7573 = vpop.xlane.xlu0 %7572
    %7574 = vadd.xlane.f32.xlu0 %v7447
    %v7575 = vpop.xlane.xlu0 %7574
    %7576 = vadd.xlane.f32.xlu0 %v7449
    %v7577 = vpop.xlane.xlu0 %7576
    %7578 = vadd.xlane.f32.xlu0 %v7451
    %v7579 = vpop.xlane.xlu0 %7578
    %7580 = vadd.xlane.f32.xlu0 %v7453
    %v7581 = vpop.xlane.xlu0 %7580
    %7582 = vadd.xlane.f32.xlu0 %v7455
    %v7583 = vpop.xlane.xlu0 %7582
    %7584 = vadd.xlane.f32.xlu0 %v7457
    %v7585 = vpop.xlane.xlu0 %7584
    %7586 = vadd.xlane.f32.xlu0 %v7459
    %v7587 = vpop.xlane.xlu0 %7586
    %7588 = vadd.xlane.f32.xlu0 %v7461
    %v7589 = vpop.xlane.xlu0 %7588
    %7590 = vadd.xlane.f32.xlu0 %v7463
    %v7591 = vpop.xlane.xlu0 %7590
    %7592 = vadd.xlane.f32.xlu0 %v7465
    %v7593 = vpop.xlane.xlu0 %7592
    %7594 = vadd.xlane.f32.xlu0 %v7467
    %v7595 = vpop.xlane.xlu0 %7594
    %7596 = vadd.xlane.f32.xlu0 %v7469
    %v7597 = vpop.xlane.xlu0 %7596
    %7598 = vadd.xlane.f32.xlu0 %v7471
    %v7599 = vpop.xlane.xlu0 %7598
    %7600 = vadd.xlane.f32.xlu0 %v7473
    %v7601 = vpop.xlane.xlu0 %7600
    %7602 = vadd.xlane.f32.xlu0 %v7475
    %v7603 = vpop.xlane.xlu0 %7602
    %7604 = vadd.xlane.f32.xlu0 %v7477
    %v7605 = vpop.xlane.xlu0 %7604
    %7606 = vadd.xlane.f32.xlu0 %v7479
    %v7607 = vpop.xlane.xlu0 %7606
    %7608 = vadd.xlane.f32.xlu0 %v7481
    %v7609 = vpop.xlane.xlu0 %7608
    %7610 = vadd.xlane.f32.xlu0 %v7483
    %v7611 = vpop.xlane.xlu0 %7610
    %7612 = vadd.xlane.f32.xlu0 %v7485
    %v7613 = vpop.xlane.xlu0 %7612
    %7614 = vadd.xlane.f32.xlu0 %v7487
    %v7615 = vpop.xlane.xlu0 %7614
    %7616 = vadd.xlane.f32.xlu0 %v7489
    %v7617 = vpop.xlane.xlu0 %7616
    %7618 = vadd.xlane.f32.xlu0 %v7491
    %v7619 = vpop.xlane.xlu0 %7618
    %7620 = vadd.xlane.f32.xlu0 %v7493
    %v7621 = vpop.xlane.xlu0 %7620
    %7622 = vadd.xlane.f32.xlu0 %v7495
    %v7623 = vpop.xlane.xlu0 %7622
    %7624 = vadd.xlane.f32.xlu0 %v7497
    %v7625 = vpop.xlane.xlu0 %7624
    %7626 = vadd.xlane.f32.xlu0 %v7499
    %v7627 = vpop.xlane.xlu0 %7626
    %7628 = vadd.xlane.f32.xlu0 %v7501
    %v7629 = vpop.xlane.xlu0 %7628
    %7630 = vadd.xlane.f32.xlu0 %v7503
    %v7631 = vpop.xlane.xlu0 %7630
    %7632 = vadd.xlane.f32.xlu0 %v7505
    %v7633 = vpop.xlane.xlu0 %7632
    %7634 = vadd.xlane.f32.xlu0 %v7507
    %v7635 = vpop.xlane.xlu0 %7634
    %7636 = vadd.xlane.f32.xlu0 %v7509
    %v7637 = vpop.xlane.xlu0 %7636
    %7638 = vadd.xlane.f32.xlu0 %v7511
    %v7639 = vpop.xlane.xlu0 %7638
    %7640 = vadd.xlane.f32.xlu0 %v7513
    %v7641 = vpop.xlane.xlu0 %7640
    %v7642 = vrcp.pop %v7515
    %v7643 = vrcp.pop %v7517
    %v7644 = vrcp.pop %v7519
    %v7645 = vrcp.pop %v7521
    %v7646 = vrcp.pop %v7523
    %v7647 = vrcp.pop %v7525
    %v7648 = vrcp.pop %v7527
    %v7649 = vrcp.pop %v7529
    %v7650 = vrcp.pop %v7531
    %v7651 = vrcp.pop %v7533
    %v7652 = vrcp.pop %v7535
    %v7653 = vrcp.pop %v7537
    %v7654 = vrcp.pop %v7539
    %v7655 = vrcp.pop %v7541
    %v7656 = vrcp.pop %v7543
    %v7657 = vrcp.pop %v7545
    %v7658 = vrcp.pop %v7547
    %v7659 = vrcp.pop %v7549
    %v7660 = vrcp.pop %v7551
    %v7661 = vrcp.pop %v7553
    %v7662 = vrcp.pop %v7555
    %v7663 = vrcp.pop %v7557
    %v7664 = vrcp.pop %v7559
    %v7665 = vrcp.pop %v7561
    %v7666 = vrcp.pop %v7563
    %v7667 = vrcp.pop %v7565
    %v7668 = vrcp.pop %v7567
    %v7669 = vrcp.pop %v7569
    %v7670 = vrcp.pop %v7571
    %v7671 = vrcp.pop %v7573
    %v7672 = vrcp.pop %v7575
    %v7673 = vrcp.pop %v7577
    %v7674 = vrcp.pop %v7579
    %v7675 = vrcp.pop %v7581
    %v7676 = vrcp.pop %v7583
    %v7677 = vrcp.pop %v7585
    %v7678 = vrcp.pop %v7587
    %v7679 = vrcp.pop %v7589
    %v7680 = vrcp.pop %v7591
    %v7681 = vrcp.pop %v7593
    %v7682 = vrcp.pop %v7595
    %v7683 = vrcp.pop %v7597
    %v7684 = vrcp.pop %v7599
    %v7685 = vrcp.pop %v7601
    %v7686 = vrcp.pop %v7603
    %v7687 = vrcp.pop %v7605
    %v7688 = vrcp.pop %v7607
    %v7689 = vrcp.pop %v7609
    %v7690 = vrcp.pop %v7611
    %v7691 = vrcp.pop %v7613
    %v7692 = vrcp.pop %v7615
    %v7693 = vrcp.pop %v7617
    %v7694 = vrcp.pop %v7619
    %v7695 = vrcp.pop %v7621
    %v7696 = vrcp.pop %v7623
    %v7697 = vrcp.pop %v7625
    %v7698 = vrcp.pop %v7627
    %v7699 = vrcp.pop %v7629
    %v7700 = vrcp.pop %v7631
    %v7701 = vrcp.pop %v7633
    %v7702 = vrcp.pop %v7635
    %v7703 = vrcp.pop %v7637
    %v7704 = vrcp.pop %v7639
    %v7705 = vrcp.pop %v7641
    %v7706 = vmul.f32 %v7387, %v7642
    %v7707 = vmul.f32 %v7389, %v7643
    %v7708 = vmul.f32 %v7391, %v7644
    %v7709 = vmul.f32 %v7393, %v7645
    %v7710 = vmul.f32 %v7395, %v7646
    %v7711 = vmul.f32 %v7397, %v7647
    %v7712 = vmul.f32 %v7399, %v7648
    %v7713 = vmul.f32 %v7401, %v7649
    %v7714 = vmul.f32 %v7403, %v7650
    %v7715 = vmul.f32 %v7405, %v7651
    %v7716 = vmul.f32 %v7407, %v7652
    %v7717 = vmul.f32 %v7409, %v7653
    %v7718 = vmul.f32 %v7411, %v7654
    %v7719 = vmul.f32 %v7413, %v7655
    %v7720 = vmul.f32 %v7415, %v7656
    %v7721 = vmul.f32 %v7417, %v7657
    %v7722 = vmul.f32 %v7419, %v7658
    %v7723 = vmul.f32 %v7421, %v7659
    %v7724 = vmul.f32 %v7423, %v7660
    %v7725 = vmul.f32 %v7425, %v7661
    %v7726 = vmul.f32 %v7427, %v7662
    %v7727 = vmul.f32 %v7429, %v7663
    %v7728 = vmul.f32 %v7431, %v7664
    %v7729 = vmul.f32 %v7433, %v7665
    %v7730 = vmul.f32 %v7435, %v7666
    %v7731 = vmul.f32 %v7437, %v7667
    %v7732 = vmul.f32 %v7439, %v7668
    %v7733 = vmul.f32 %v7441, %v7669
    %v7734 = vmul.f32 %v7443, %v7670
    %v7735 = vmul.f32 %v7445, %v7671
    %v7736 = vmul.f32 %v7447, %v7672
    %v7737 = vmul.f32 %v7449, %v7673
    %v7738 = vmul.f32 %v7451, %v7674
    %v7739 = vmul.f32 %v7453, %v7675
    %v7740 = vmul.f32 %v7455, %v7676
    %v7741 = vmul.f32 %v7457, %v7677
    %v7742 = vmul.f32 %v7459, %v7678
    %v7743 = vmul.f32 %v7461, %v7679
    %v7744 = vmul.f32 %v7463, %v7680
    %v7745 = vmul.f32 %v7465, %v7681
    %v7746 = vmul.f32 %v7467, %v7682
    %v7747 = vmul.f32 %v7469, %v7683
    %v7748 = vmul.f32 %v7471, %v7684
    %v7749 = vmul.f32 %v7473, %v7685
    %v7750 = vmul.f32 %v7475, %v7686
    %v7751 = vmul.f32 %v7477, %v7687
    %v7752 = vmul.f32 %v7479, %v7688
    %v7753 = vmul.f32 %v7481, %v7689
    %v7754 = vmul.f32 %v7483, %v7690
    %v7755 = vmul.f32 %v7485, %v7691
    %v7756 = vmul.f32 %v7487, %v7692
    %v7757 = vmul.f32 %v7489, %v7693
    %v7758 = vmul.f32 %v7491, %v7694
    %v7759 = vmul.f32 %v7493, %v7695
    %v7760 = vmul.f32 %v7495, %v7696
    %v7761 = vmul.f32 %v7497, %v7697
    %v7762 = vmul.f32 %v7499, %v7698
    %v7763 = vmul.f32 %v7501, %v7699
    %v7764 = vmul.f32 %v7503, %v7700
    %v7765 = vmul.f32 %v7505, %v7701
    %v7766 = vmul.f32 %v7507, %v7702
    %v7767 = vmul.f32 %v7509, %v7703
    %v7768 = vmul.f32 %v7511, %v7704
    %v7769 = vmul.f32 %v7513, %v7705
    %v7770 = vpack.c.bf16 %v7707, %v7706
    %v7771 = vpack.c.bf16 %v7709, %v7708
    %v7772 = vpack.c.bf16 %v7711, %v7710
    %v7773 = vpack.c.bf16 %v7713, %v7712
    %v7774 = vpack.c.bf16 %v7715, %v7714
    %v7775 = vpack.c.bf16 %v7717, %v7716
    %v7776 = vpack.c.bf16 %v7719, %v7718
    %v7777 = vpack.c.bf16 %v7721, %v7720
    %v7778 = vpack.c.bf16 %v7723, %v7722
    %v7779 = vpack.c.bf16 %v7725, %v7724
    %v7780 = vpack.c.bf16 %v7727, %v7726
    %v7781 = vpack.c.bf16 %v7729, %v7728
    %v7782 = vpack.c.bf16 %v7731, %v7730
    %v7783 = vpack.c.bf16 %v7733, %v7732
    %v7784 = vpack.c.bf16 %v7735, %v7734
    %v7785 = vpack.c.bf16 %v7737, %v7736
    %v7786 = vpack.c.bf16 %v7739, %v7738
    %v7787 = vpack.c.bf16 %v7741, %v7740
    %v7788 = vpack.c.bf16 %v7743, %v7742
    %v7789 = vpack.c.bf16 %v7745, %v7744
    %v7790 = vpack.c.bf16 %v7747, %v7746
    %v7791 = vpack.c.bf16 %v7749, %v7748
    %v7792 = vpack.c.bf16 %v7751, %v7750
    %v7793 = vpack.c.bf16 %v7753, %v7752
    %v7794 = vpack.c.bf16 %v7755, %v7754
    %v7795 = vpack.c.bf16 %v7757, %v7756
    %v7796 = vpack.c.bf16 %v7759, %v7758
    %v7797 = vpack.c.bf16 %v7761, %v7760
    %v7798 = vpack.c.bf16 %v7763, %v7762
    %v7799 = vpack.c.bf16 %v7765, %v7764
    %v7800 = vpack.c.bf16 %v7767, %v7766
    %v7801 = vpack.c.bf16 %v7769, %v7768
    %7802 = vmatprep.subr.bf16.mxu0 0
    %7803 = vmatpush1.bf16.msra.mxu0 %v6400
    %7804 = vmatprep.subr.bf16.mxu0 0
    %7805 = vmatpush1.bf16.msra.mxu0 %v6403
    %7806 = vmatprep.subr.bf16.mxu0 0
    %7807 = vmatpush1.bf16.msra.mxu0 %v6406
    %7808 = vmatprep.subr.bf16.mxu0 0
    %7809 = vmatpush1.bf16.msra.mxu0 %v6409
    %7810 = vmatprep.subr.bf16.mxu0 0
    %7811 = vmatpush1.bf16.msra.mxu0 %v6412
    %7812 = vmatprep.subr.bf16.mxu0 0
    %7813 = vmatpush1.bf16.msra.mxu0 %v6415
    %7814 = vmatprep.subr.bf16.mxu0 0
    %7815 = vmatpush1.bf16.msra.mxu0 %v6418
    %7816 = vmatprep.subr.bf16.mxu0 0
    %7817 = vmatpush1.bf16.msra.mxu0 %v6421
    %7818 = vmatprep.subr.bf16.mxu0 0
    %7819 = vmatpush1.bf16.msra.mxu0 0
    %7820 = vmatprep.subr.bf16.mxu0 0
    %7821 = vmatpush1.bf16.msra.mxu0 0
    %7822 = vmatprep.subr.bf16.mxu0 0
    %7823 = vmatpush1.bf16.msra.mxu0 0
    %7824 = vmatprep.subr.bf16.mxu0 0
    %7825 = vmatpush1.bf16.msra.mxu0 0
    %7826 = vmatprep.subr.bf16.mxu0 0
    %7827 = vmatpush1.bf16.msra.mxu0 0
    %7828 = vmatprep.subr.bf16.mxu0 0
    %7829 = vmatpush1.bf16.msra.mxu0 0
    %7830 = vmatprep.subr.bf16.mxu0 0
    %7831 = vmatpush1.bf16.msra.mxu0 0
    %7832 = vmatprep.subr.bf16.mxu0 0
    %7833 = vmatpush1.bf16.msra.mxu0 0
    %7834 = vmatprep.mubr.bf16.mxu0 0
    %7835 = vmatmul.mubr.bf16.gmra.mrb[0].mxu0 %v7770
    %v7836 = vpop.f32.mrb[0].mxu0
    %v7837 = vadd.f32 0.0, %v7836
    %v7838 = vpop.f32.mrb[0].mxu0
    %v7839 = vpop.f32.mrb[0].mxu0
    %v7840 = vadd.f32 0.0, %v7839
    %v7841 = vpop.f32.mrb[0].mxu0
    %7842 = vmatprep.mubr.bf16.mxu0 0
    %7843 = vmatmul.mubr.bf16.gmra.mrb[0].mxu0 %v7771
    %v7844 = vpop.f32.mrb[0].mxu0
    %v7845 = vadd.f32 0.0, %v7844
    %v7846 = vpop.f32.mrb[0].mxu0
    %v7847 = vpop.f32.mrb[0].mxu0
    %v7848 = vadd.f32 0.0, %v7847
    %v7849 = vpop.f32.mrb[0].mxu0
    %7850 = vmatprep.mubr.bf16.mxu0 0
    %7851 = vmatmul.mubr.bf16.gmra.mrb[0].mxu0 %v7772
    %v7852 = vpop.f32.mrb[0].mxu0
    %v7853 = vadd.f32 0.0, %v7852
    %v7854 = vpop.f32.mrb[0].mxu0
    %v7855 = vpop.f32.mrb[0].mxu0
    %v7856 = vadd.f32 0.0, %v7855
    %v7857 = vpop.f32.mrb[0].mxu0
    %7858 = vmatprep.mubr.bf16.mxu0 0
    %7859 = vmatmul.mubr.bf16.gmra.mrb[0].mxu0 %v7773
    %v7860 = vpop.f32.mrb[0].mxu0
    %v7861 = vadd.f32 0.0, %v7860
    %v7862 = vpop.f32.mrb[0].mxu0
    %v7863 = vpop.f32.mrb[0].mxu0
    %v7864 = vadd.f32 0.0, %v7863
    %v7865 = vpop.f32.mrb[0].mxu0
    %7866 = vmatprep.mubr.bf16.mxu0 0
    %7867 = vmatmul.mubr.bf16.gmra.mrb[0].mxu0 %v7774
    %v7868 = vpop.f32.mrb[0].mxu0
    %v7869 = vadd.f32 0.0, %v7868
    %v7870 = vpop.f32.mrb[0].mxu0
    %v7871 = vpop.f32.mrb[0].mxu0
    %v7872 = vadd.f32 0.0, %v7871
    %v7873 = vpop.f32.mrb[0].mxu0
    %7874 = vmatprep.mubr.bf16.mxu0 0
    %7875 = vmatmul.mubr.bf16.gmra.mrb[0].mxu0 %v7775
    %v7876 = vpop.f32.mrb[0].mxu0
    %v7877 = vadd.f32 0.0, %v7876
    %v7878 = vpop.f32.mrb[0].mxu0
    %v7879 = vpop.f32.mrb[0].mxu0
    %v7880 = vadd.f32 0.0, %v7879
    %v7881 = vpop.f32.mrb[0].mxu0
    %7882 = vmatprep.mubr.bf16.mxu0 0
    %7883 = vmatmul.mubr.bf16.gmra.mrb[0].mxu0 %v7776
    %v7884 = vpop.f32.mrb[0].mxu0
    %v7885 = vadd.f32 0.0, %v7884
    %v7886 = vpop.f32.mrb[0].mxu0
    %v7887 = vpop.f32.mrb[0].mxu0
    %v7888 = vadd.f32 0.0, %v7887
    %v7889 = vpop.f32.mrb[0].mxu0
    %7890 = vmatprep.mubr.bf16.mxu0 0
    %7891 = vmatmul.mubr.bf16.gmra.mrb[0].mxu0 %v7777
    %v7892 = vpop.f32.mrb[0].mxu0
    %v7893 = vadd.f32 0.0, %v7892
    %v7894 = vpop.f32.mrb[0].mxu0
    %v7895 = vpop.f32.mrb[0].mxu0
    %v7896 = vadd.f32 0.0, %v7895
    %v7897 = vpop.f32.mrb[0].mxu0
    %7898 = vdwg.mxu0
    %7899 = vmatprep.subr.bf16.mxu0 0
    %7900 = vmatpush1.bf16.msra.mxu0 %v6543
    %7901 = vmatprep.subr.bf16.mxu0 0
    %7902 = vmatpush1.bf16.msra.mxu0 %v6545
    %7903 = vmatprep.subr.bf16.mxu0 0
    %7904 = vmatpush1.bf16.msra.mxu0 %v6547
    %7905 = vmatprep.subr.bf16.mxu0 0
    %7906 = vmatpush1.bf16.msra.mxu0 %v6549
    %7907 = vmatprep.subr.bf16.mxu0 0
    %7908 = vmatpush1.bf16.msra.mxu0 %v6551
    %7909 = vmatprep.subr.bf16.mxu0 0
    %7910 = vmatpush1.bf16.msra.mxu0 %v6553
    %7911 = vmatprep.subr.bf16.mxu0 0
    %7912 = vmatpush1.bf16.msra.mxu0 %v6555
    %7913 = vmatprep.subr.bf16.mxu0 0
    %7914 = vmatpush1.bf16.msra.mxu0 %v6557
    %7915 = vmatprep.subr.bf16.mxu0 0
    %7916 = vmatpush1.bf16.msra.mxu0 0
    %7917 = vmatprep.subr.bf16.mxu0 0
    %7918 = vmatpush1.bf16.msra.mxu0 0
    %7919 = vmatprep.subr.bf16.mxu0 0
    %7920 = vmatpush1.bf16.msra.mxu0 0
    %7921 = vmatprep.subr.bf16.mxu0 0
    %7922 = vmatpush1.bf16.msra.mxu0 0
    %7923 = vmatprep.subr.bf16.mxu0 0
    %7924 = vmatpush1.bf16.msra.mxu0 0
    %7925 = vmatprep.subr.bf16.mxu0 0
    %7926 = vmatpush1.bf16.msra.mxu0 0
    %7927 = vmatprep.subr.bf16.mxu0 0
    %7928 = vmatpush1.bf16.msra.mxu0 0
    %7929 = vmatprep.subr.bf16.mxu0 0
    %7930 = vmatpush1.bf16.msra.mxu0 0
    %7931 = vmatprep.mubr.bf16.mxu0 0
    %7932 = vmatmul.mubr.bf16.gmra.mrb[0].mxu0 %v7778
    %v7933 = vpop.f32.mrb[0].mxu0
    %v7934 = vadd.f32 0.0, %v7933
    %v7935 = vpop.f32.mrb[0].mxu0
    %v7936 = vpop.f32.mrb[0].mxu0
    %v7937 = vadd.f32 0.0, %v7936
    %v7938 = vpop.f32.mrb[0].mxu0
    %7939 = vmatprep.mubr.bf16.mxu0 0
    %7940 = vmatmul.mubr.bf16.gmra.mrb[0].mxu0 %v7779
    %v7941 = vpop.f32.mrb[0].mxu0
    %v7942 = vadd.f32 0.0, %v7941
    %v7943 = vpop.f32.mrb[0].mxu0
    %v7944 = vpop.f32.mrb[0].mxu0
    %v7945 = vadd.f32 0.0, %v7944
    %v7946 = vpop.f32.mrb[0].mxu0
    %7947 = vmatprep.mubr.bf16.mxu0 0
    %7948 = vmatmul.mubr.bf16.gmra.mrb[0].mxu0 %v7780
    %v7949 = vpop.f32.mrb[0].mxu0
    %v7950 = vadd.f32 0.0, %v7949
    %v7951 = vpop.f32.mrb[0].mxu0
    %v7952 = vpop.f32.mrb[0].mxu0
    %v7953 = vadd.f32 0.0, %v7952
    %v7954 = vpop.f32.mrb[0].mxu0
    %7955 = vmatprep.mubr.bf16.mxu0 0
    %7956 = vmatmul.mubr.bf16.gmra.mrb[0].mxu0 %v7781
    %v7957 = vpop.f32.mrb[0].mxu0
    %v7958 = vadd.f32 0.0, %v7957
    %v7959 = vpop.f32.mrb[0].mxu0
    %v7960 = vpop.f32.mrb[0].mxu0
    %v7961 = vadd.f32 0.0, %v7960
    %v7962 = vpop.f32.mrb[0].mxu0
    %7963 = vmatprep.mubr.bf16.mxu0 0
    %7964 = vmatmul.mubr.bf16.gmra.mrb[0].mxu0 %v7782
    %v7965 = vpop.f32.mrb[0].mxu0
    %v7966 = vadd.f32 0.0, %v7965
    %v7967 = vpop.f32.mrb[0].mxu0
    %v7968 = vpop.f32.mrb[0].mxu0
    %v7969 = vadd.f32 0.0, %v7968
    %v7970 = vpop.f32.mrb[0].mxu0
    %7971 = vmatprep.mubr.bf16.mxu0 0
    %7972 = vmatmul.mubr.bf16.gmra.mrb[0].mxu0 %v7783
    %v7973 = vpop.f32.mrb[0].mxu0
    %v7974 = vadd.f32 0.0, %v7973
    %v7975 = vpop.f32.mrb[0].mxu0
    %v7976 = vpop.f32.mrb[0].mxu0
    %v7977 = vadd.f32 0.0, %v7976
    %v7978 = vpop.f32.mrb[0].mxu0
    %7979 = vmatprep.mubr.bf16.mxu0 0
    %7980 = vmatmul.mubr.bf16.gmra.mrb[0].mxu0 %v7784
    %v7981 = vpop.f32.mrb[0].mxu0
    %v7982 = vadd.f32 0.0, %v7981
    %v7983 = vpop.f32.mrb[0].mxu0
    %v7984 = vpop.f32.mrb[0].mxu0
    %v7985 = vadd.f32 0.0, %v7984
    %v7986 = vpop.f32.mrb[0].mxu0
    %7987 = vmatprep.mubr.bf16.mxu0 0
    %7988 = vmatmul.mubr.bf16.gmra.mrb[0].mxu0 %v7785
    %v7989 = vpop.f32.mrb[0].mxu0
    %v7990 = vadd.f32 0.0, %v7989
    %v7991 = vpop.f32.mrb[0].mxu0
    %v7992 = vpop.f32.mrb[0].mxu0
    %v7993 = vadd.f32 0.0, %v7992
    %v7994 = vpop.f32.mrb[0].mxu0
    %7995 = vdwg.mxu0
    %7996 = vmatprep.subr.bf16.mxu0 0
    %7997 = vmatpush1.bf16.msra.mxu0 %v6567
    %7998 = vmatprep.subr.bf16.mxu0 0
    %7999 = vmatpush1.bf16.msra.mxu0 %v6569
    %8000 = vmatprep.subr.bf16.mxu0 0
    %8001 = vmatpush1.bf16.msra.mxu0 %v6571
    %8002 = vmatprep.subr.bf16.mxu0 0
    %8003 = vmatpush1.bf16.msra.mxu0 %v6573
    %8004 = vmatprep.subr.bf16.mxu0 0
    %8005 = vmatpush1.bf16.msra.mxu0 %v6575
    %8006 = vmatprep.subr.bf16.mxu0 0
    %8007 = vmatpush1.bf16.msra.mxu0 %v6577
    %8008 = vmatprep.subr.bf16.mxu0 0
    %8009 = vmatpush1.bf16.msra.mxu0 %v6579
    %8010 = vmatprep.subr.bf16.mxu0 0
    %8011 = vmatpush1.bf16.msra.mxu0 %v6581
    %8012 = vmatprep.subr.bf16.mxu0 0
    %8013 = vmatpush1.bf16.msra.mxu0 0
    %8014 = vmatprep.subr.bf16.mxu0 0
    %8015 = vmatpush1.bf16.msra.mxu0 0
    %8016 = vmatprep.subr.bf16.mxu0 0
    %8017 = vmatpush1.bf16.msra.mxu0 0
    %8018 = vmatprep.subr.bf16.mxu0 0
    %8019 = vmatpush1.bf16.msra.mxu0 0
    %8020 = vmatprep.subr.bf16.mxu0 0
    %8021 = vmatpush1.bf16.msra.mxu0 0
    %8022 = vmatprep.subr.bf16.mxu0 0
    %8023 = vmatpush1.bf16.msra.mxu0 0
    %8024 = vmatprep.subr.bf16.mxu0 0
    %8025 = vmatpush1.bf16.msra.mxu0 0
    %8026 = vmatprep.subr.bf16.mxu0 0
    %8027 = vmatpush1.bf16.msra.mxu0 0
    %8028 = vmatprep.mubr.bf16.mxu0 0
    %8029 = vmatmul.mubr.bf16.gmra.mrb[0].mxu0 %v7786
    %v8030 = vpop.f32.mrb[0].mxu0
    %v8031 = vadd.f32 0.0, %v8030
    %v8032 = vpop.f32.mrb[0].mxu0
    %v8033 = vpop.f32.mrb[0].mxu0
    %v8034 = vadd.f32 0.0, %v8033
    %v8035 = vpop.f32.mrb[0].mxu0
    %8036 = vmatprep.mubr.bf16.mxu0 0
    %8037 = vmatmul.mubr.bf16.gmra.mrb[0].mxu0 %v7787
    %v8038 = vpop.f32.mrb[0].mxu0
    %v8039 = vadd.f32 0.0, %v8038
    %v8040 = vpop.f32.mrb[0].mxu0
    %v8041 = vpop.f32.mrb[0].mxu0
    %v8042 = vadd.f32 0.0, %v8041
    %v8043 = vpop.f32.mrb[0].mxu0
    %8044 = vmatprep.mubr.bf16.mxu0 0
    %8045 = vmatmul.mubr.bf16.gmra.mrb[0].mxu0 %v7788
    %v8046 = vpop.f32.mrb[0].mxu0
    %v8047 = vadd.f32 0.0, %v8046
    %v8048 = vpop.f32.mrb[0].mxu0
    %v8049 = vpop.f32.mrb[0].mxu0
    %v8050 = vadd.f32 0.0, %v8049
    %v8051 = vpop.f32.mrb[0].mxu0
    %8052 = vmatprep.mubr.bf16.mxu0 0
    %8053 = vmatmul.mubr.bf16.gmra.mrb[0].mxu0 %v7789
    %v8054 = vpop.f32.mrb[0].mxu0
    %v8055 = vadd.f32 0.0, %v8054
    %v8056 = vpop.f32.mrb[0].mxu0
    %v8057 = vpop.f32.mrb[0].mxu0
    %v8058 = vadd.f32 0.0, %v8057
    %v8059 = vpop.f32.mrb[0].mxu0
    %8060 = vmatprep.mubr.bf16.mxu0 0
    %8061 = vmatmul.mubr.bf16.gmra.mrb[0].mxu0 %v7790
    %v8062 = vpop.f32.mrb[0].mxu0
    %v8063 = vadd.f32 0.0, %v8062
    %v8064 = vpop.f32.mrb[0].mxu0
    %v8065 = vpop.f32.mrb[0].mxu0
    %v8066 = vadd.f32 0.0, %v8065
    %v8067 = vpop.f32.mrb[0].mxu0
    %8068 = vmatprep.mubr.bf16.mxu0 0
    %8069 = vmatmul.mubr.bf16.gmra.mrb[0].mxu0 %v7791
    %v8070 = vpop.f32.mrb[0].mxu0
    %v8071 = vadd.f32 0.0, %v8070
    %v8072 = vpop.f32.mrb[0].mxu0
    %v8073 = vpop.f32.mrb[0].mxu0
    %v8074 = vadd.f32 0.0, %v8073
    %v8075 = vpop.f32.mrb[0].mxu0
    %8076 = vmatprep.mubr.bf16.mxu0 0
    %8077 = vmatmul.mubr.bf16.gmra.mrb[0].mxu0 %v7792
    %v8078 = vpop.f32.mrb[0].mxu0
    %v8079 = vadd.f32 0.0, %v8078
    %v8080 = vpop.f32.mrb[0].mxu0
    %v8081 = vpop.f32.mrb[0].mxu0
    %v8082 = vadd.f32 0.0, %v8081
    %v8083 = vpop.f32.mrb[0].mxu0
    %8084 = vmatprep.mubr.bf16.mxu0 0
    %8085 = vmatmul.mubr.bf16.gmra.mrb[0].mxu0 %v7793
    %v8086 = vpop.f32.mrb[0].mxu0
    %v8087 = vadd.f32 0.0, %v8086
    %v8088 = vpop.f32.mrb[0].mxu0
    %v8089 = vpop.f32.mrb[0].mxu0
    %v8090 = vadd.f32 0.0, %v8089
    %v8091 = vpop.f32.mrb[0].mxu0
    %8092 = vdwg.mxu0
    %8093 = vmatprep.subr.bf16.mxu0 0
    %8094 = vmatpush1.bf16.msra.mxu0 %v6591
    %8095 = vmatprep.subr.bf16.mxu0 0
    %8096 = vmatpush1.bf16.msra.mxu0 %v6593
    %8097 = vmatprep.subr.bf16.mxu0 0
    %8098 = vmatpush1.bf16.msra.mxu0 %v6595
    %8099 = vmatprep.subr.bf16.mxu0 0
    %8100 = vmatpush1.bf16.msra.mxu0 %v6597
    %8101 = vmatprep.subr.bf16.mxu0 0
    %8102 = vmatpush1.bf16.msra.mxu0 %v6599
    %8103 = vmatprep.subr.bf16.mxu0 0
    %8104 = vmatpush1.bf16.msra.mxu0 %v6601
    %8105 = vmatprep.subr.bf16.mxu0 0
    %8106 = vmatpush1.bf16.msra.mxu0 %v6603
    %8107 = vmatprep.subr.bf16.mxu0 0
    %8108 = vmatpush1.bf16.msra.mxu0 %v6605
    %8109 = vmatprep.subr.bf16.mxu0 0
    %8110 = vmatpush1.bf16.msra.mxu0 0
    %8111 = vmatprep.subr.bf16.mxu0 0
    %8112 = vmatpush1.bf16.msra.mxu0 0
    %8113 = vmatprep.subr.bf16.mxu0 0
    %8114 = vmatpush1.bf16.msra.mxu0 0
    %8115 = vmatprep.subr.bf16.mxu0 0
    %8116 = vmatpush1.bf16.msra.mxu0 0
    %8117 = vmatprep.subr.bf16.mxu0 0
    %8118 = vmatpush1.bf16.msra.mxu0 0
    %8119 = vmatprep.subr.bf16.mxu0 0
    %8120 = vmatpush1.bf16.msra.mxu0 0
    %8121 = vmatprep.subr.bf16.mxu0 0
    %8122 = vmatpush1.bf16.msra.mxu0 0
    %8123 = vmatprep.subr.bf16.mxu0 0
    %8124 = vmatpush1.bf16.msra.mxu0 0
    %8125 = vmatprep.mubr.bf16.mxu0 0
    %8126 = vmatmul.mubr.bf16.gmra.mrb[0].mxu0 %v7794
    %v8127 = vpop.f32.mrb[0].mxu0
    %v8128 = vadd.f32 0.0, %v8127
    %v8129 = vpop.f32.mrb[0].mxu0
    %v8130 = vpop.f32.mrb[0].mxu0
    %v8131 = vadd.f32 0.0, %v8130
    %v8132 = vpop.f32.mrb[0].mxu0
    %8133 = vmatprep.mubr.bf16.mxu0 0
    %8134 = vmatmul.mubr.bf16.gmra.mrb[0].mxu0 %v7795
    %v8135 = vpop.f32.mrb[0].mxu0
    %v8136 = vadd.f32 0.0, %v8135
    %v8137 = vpop.f32.mrb[0].mxu0
    %v8138 = vpop.f32.mrb[0].mxu0
    %v8139 = vadd.f32 0.0, %v8138
    %v8140 = vpop.f32.mrb[0].mxu0
    %8141 = vmatprep.mubr.bf16.mxu0 0
    %8142 = vmatmul.mubr.bf16.gmra.mrb[0].mxu0 %v7796
    %v8143 = vpop.f32.mrb[0].mxu0
    %v8144 = vadd.f32 0.0, %v8143
    %v8145 = vpop.f32.mrb[0].mxu0
    %v8146 = vpop.f32.mrb[0].mxu0
    %v8147 = vadd.f32 0.0, %v8146
    %v8148 = vpop.f32.mrb[0].mxu0
    %8149 = vmatprep.mubr.bf16.mxu0 0
    %8150 = vmatmul.mubr.bf16.gmra.mrb[0].mxu0 %v7797
    %v8151 = vpop.f32.mrb[0].mxu0
    %v8152 = vadd.f32 0.0, %v8151
    %v8153 = vpop.f32.mrb[0].mxu0
    %v8154 = vpop.f32.mrb[0].mxu0
    %v8155 = vadd.f32 0.0, %v8154
    %v8156 = vpop.f32.mrb[0].mxu0
    %8157 = vmatprep.mubr.bf16.mxu0 0
    %8158 = vmatmul.mubr.bf16.gmra.mrb[0].mxu0 %v7798
    %v8159 = vpop.f32.mrb[0].mxu0
    %v8160 = vadd.f32 0.0, %v8159
    %v8161 = vpop.f32.mrb[0].mxu0
    %v8162 = vpop.f32.mrb[0].mxu0
    %v8163 = vadd.f32 0.0, %v8162
    %v8164 = vpop.f32.mrb[0].mxu0
    %8165 = vmatprep.mubr.bf16.mxu0 0
    %8166 = vmatmul.mubr.bf16.gmra.mrb[0].mxu0 %v7799
    %v8167 = vpop.f32.mrb[0].mxu0
    %v8168 = vadd.f32 0.0, %v8167
    %v8169 = vpop.f32.mrb[0].mxu0
    %v8170 = vpop.f32.mrb[0].mxu0
    %v8171 = vadd.f32 0.0, %v8170
    %v8172 = vpop.f32.mrb[0].mxu0
    %8173 = vmatprep.mubr.bf16.mxu0 0
    %8174 = vmatmul.mubr.bf16.gmra.mrb[0].mxu0 %v7800
    %v8175 = vpop.f32.mrb[0].mxu0
    %v8176 = vadd.f32 0.0, %v8175
    %v8177 = vpop.f32.mrb[0].mxu0
    %v8178 = vpop.f32.mrb[0].mxu0
    %v8179 = vadd.f32 0.0, %v8178
    %v8180 = vpop.f32.mrb[0].mxu0
    %8181 = vmatprep.mubr.bf16.mxu0 0
    %8182 = vmatmul.mubr.bf16.gmra.mrb[0].mxu0 %v7801
    %v8183 = vpop.f32.mrb[0].mxu0
    %v8184 = vadd.f32 0.0, %v8183
    %v8185 = vpop.f32.mrb[0].mxu0
    %v8186 = vpop.f32.mrb[0].mxu0
    %v8187 = vadd.f32 0.0, %v8186
    %v8188 = vpop.f32.mrb[0].mxu0
    %8189 = vdwg.mxu0
    %8206 = vrot.lane.b32.xlu0 %v7934, 32
    %v8207 = vpop.permute.xlu0 %8206
    %8208 = vrot.lane.b32.xlu0 %v7937, 32
    %v8209 = vpop.permute.xlu0 %8208
    %8210 = vrot.lane.b32.xlu0 %v7942, 32
    %v8211 = vpop.permute.xlu0 %8210
    %8212 = vrot.lane.b32.xlu0 %v7945, 32
    %v8213 = vpop.permute.xlu0 %8212
    %8214 = vrot.lane.b32.xlu0 %v7950, 32
    %v8215 = vpop.permute.xlu0 %8214
    %8216 = vrot.lane.b32.xlu0 %v7953, 32
    %v8217 = vpop.permute.xlu0 %8216
    %8218 = vrot.lane.b32.xlu0 %v7958, 32
    %v8219 = vpop.permute.xlu0 %8218
    %8220 = vrot.lane.b32.xlu0 %v7961, 32
    %v8221 = vpop.permute.xlu0 %8220
    %8222 = vrot.lane.b32.xlu0 %v7966, 32
    %v8223 = vpop.permute.xlu0 %8222
    %8224 = vrot.lane.b32.xlu0 %v7969, 32
    %v8225 = vpop.permute.xlu0 %8224
    %8226 = vrot.lane.b32.xlu0 %v7974, 32
    %v8227 = vpop.permute.xlu0 %8226
    %8228 = vrot.lane.b32.xlu0 %v7977, 32
    %v8229 = vpop.permute.xlu0 %8228
    %8230 = vrot.lane.b32.xlu0 %v7982, 32
    %v8231 = vpop.permute.xlu0 %8230
    %8232 = vrot.lane.b32.xlu0 %v7985, 32
    %v8233 = vpop.permute.xlu0 %8232
    %8234 = vrot.lane.b32.xlu0 %v7990, 32
    %v8235 = vpop.permute.xlu0 %8234
    %8236 = vrot.lane.b32.xlu0 %v7993, 32
    %v8237 = vpop.permute.xlu0 %8236
    %8270 = vrot.lane.b32.xlu0 %v8031, 64
    %v8271 = vpop.permute.xlu0 %8270
    %8272 = vrot.lane.b32.xlu0 %v8034, 64
    %v8273 = vpop.permute.xlu0 %8272
    %8274 = vrot.lane.b32.xlu0 %v8039, 64
    %v8275 = vpop.permute.xlu0 %8274
    %8276 = vrot.lane.b32.xlu0 %v8042, 64
    %v8277 = vpop.permute.xlu0 %8276
    %8278 = vrot.lane.b32.xlu0 %v8047, 64
    %v8279 = vpop.permute.xlu0 %8278
    %8280 = vrot.lane.b32.xlu0 %v8050, 64
    %v8281 = vpop.permute.xlu0 %8280
    %8282 = vrot.lane.b32.xlu0 %v8055, 64
    %v8283 = vpop.permute.xlu0 %8282
    %8284 = vrot.lane.b32.xlu0 %v8058, 64
    %v8285 = vpop.permute.xlu0 %8284
    %8286 = vrot.lane.b32.xlu0 %v8063, 64
    %v8287 = vpop.permute.xlu0 %8286
    %8288 = vrot.lane.b32.xlu0 %v8066, 64
    %v8289 = vpop.permute.xlu0 %8288
    %8290 = vrot.lane.b32.xlu0 %v8071, 64
    %v8291 = vpop.permute.xlu0 %8290
    %8292 = vrot.lane.b32.xlu0 %v8074, 64
    %v8293 = vpop.permute.xlu0 %8292
    %8294 = vrot.lane.b32.xlu0 %v8079, 64
    %v8295 = vpop.permute.xlu0 %8294
    %8296 = vrot.lane.b32.xlu0 %v8082, 64
    %v8297 = vpop.permute.xlu0 %8296
    %8298 = vrot.lane.b32.xlu0 %v8087, 64
    %v8299 = vpop.permute.xlu0 %8298
    %8300 = vrot.lane.b32.xlu0 %v8090, 64
    %v8301 = vpop.permute.xlu0 %8300
    %8334 = vrot.lane.b32.xlu0 %v8128, 96
    %v8335 = vpop.permute.xlu0 %8334
    %8336 = vrot.lane.b32.xlu0 %v8131, 96
    %v8337 = vpop.permute.xlu0 %8336
    %8338 = vrot.lane.b32.xlu0 %v8136, 96
    %v8339 = vpop.permute.xlu0 %8338
    %8340 = vrot.lane.b32.xlu0 %v8139, 96
    %v8341 = vpop.permute.xlu0 %8340
    %8342 = vrot.lane.b32.xlu0 %v8144, 96
    %v8343 = vpop.permute.xlu0 %8342
    %8344 = vrot.lane.b32.xlu0 %v8147, 96
    %v8345 = vpop.permute.xlu0 %8344
    %8346 = vrot.lane.b32.xlu0 %v8152, 96
    %v8347 = vpop.permute.xlu0 %8346
    %8348 = vrot.lane.b32.xlu0 %v8155, 96
    %v8349 = vpop.permute.xlu0 %8348
    %8350 = vrot.lane.b32.xlu0 %v8160, 96
    %v8351 = vpop.permute.xlu0 %8350
    %8352 = vrot.lane.b32.xlu0 %v8163, 96
    %v8353 = vpop.permute.xlu0 %8352
    %8354 = vrot.lane.b32.xlu0 %v8168, 96
    %v8355 = vpop.permute.xlu0 %8354
    %8356 = vrot.lane.b32.xlu0 %v8171, 96
    %v8357 = vpop.permute.xlu0 %8356
    %8358 = vrot.lane.b32.xlu0 %v8176, 96
    %v8359 = vpop.permute.xlu0 %8358
    %8360 = vrot.lane.b32.xlu0 %v8179, 96
    %v8361 = vpop.permute.xlu0 %8360
    %8362 = vrot.lane.b32.xlu0 %v8184, 96
    %v8363 = vpop.permute.xlu0 %8362
    %8364 = vrot.lane.b32.xlu0 %v8187, 96
    %v8365 = vpop.permute.xlu0 %8364
    %v8382 = vsel %vm2015, %v7837, %v8207
    %v8383 = vsel %vm2015, %v7840, %v8209
    %v8384 = vsel %vm2015, %v7845, %v8211
    %v8385 = vsel %vm2015, %v7848, %v8213
    %v8386 = vsel %vm2015, %v7853, %v8215
    %v8387 = vsel %vm2015, %v7856, %v8217
    %v8388 = vsel %vm2015, %v7861, %v8219
    %v8389 = vsel %vm2015, %v7864, %v8221
    %v8390 = vsel %vm2015, %v7869, %v8223
    %v8391 = vsel %vm2015, %v7872, %v8225
    %v8392 = vsel %vm2015, %v7877, %v8227
    %v8393 = vsel %vm2015, %v7880, %v8229
    %v8394 = vsel %vm2015, %v7885, %v8231
    %v8395 = vsel %vm2015, %v7888, %v8233
    %v8396 = vsel %vm2015, %v7893, %v8235
    %v8397 = vsel %vm2015, %v7896, %v8237
    %v8398 = vsel %vm3800, %v8382, %v8271
    %v8399 = vsel %vm3800, %v8383, %v8273
    %v8400 = vsel %vm3800, %v8384, %v8275
    %v8401 = vsel %vm3800, %v8385, %v8277
    %v8402 = vsel %vm3800, %v8386, %v8279
    %v8403 = vsel %vm3800, %v8387, %v8281
    %v8404 = vsel %vm3800, %v8388, %v8283
    %v8405 = vsel %vm3800, %v8389, %v8285
    %v8406 = vsel %vm3800, %v8390, %v8287
    %v8407 = vsel %vm3800, %v8391, %v8289
    %v8408 = vsel %vm3800, %v8392, %v8291
    %v8409 = vsel %vm3800, %v8393, %v8293
    %v8410 = vsel %vm3800, %v8394, %v8295
    %v8411 = vsel %vm3800, %v8395, %v8297
    %v8412 = vsel %vm3800, %v8396, %v8299
    %v8413 = vsel %vm3800, %v8397, %v8301
    %v8414 = vsel %vm3817, %v8398, %v8335
    %v8415 = vsel %vm3817, %v8399, %v8337
    %v8416 = vsel %vm3817, %v8400, %v8339
    %v8417 = vsel %vm3817, %v8401, %v8341
    %v8418 = vsel %vm3817, %v8402, %v8343
    %v8419 = vsel %vm3817, %v8403, %v8345
    %v8420 = vsel %vm3817, %v8404, %v8347
    %v8421 = vsel %vm3817, %v8405, %v8349
    %v8422 = vsel %vm3817, %v8406, %v8351
    %v8423 = vsel %vm3817, %v8407, %v8353
    %v8424 = vsel %vm3817, %v8408, %v8355
    %v8425 = vsel %vm3817, %v8409, %v8357
    %v8426 = vsel %vm3817, %v8410, %v8359
    %v8427 = vsel %vm3817, %v8411, %v8361
    %v8428 = vsel %vm3817, %v8412, %v8363
    %v8429 = vsel %vm3817, %v8413, %v8365
    %v8430 = vpack.c.bf16 %v8415, %v8414
    %v8431 = vpack.c.bf16 %v8417, %v8416
    %v8432 = vpack.c.bf16 %v8419, %v8418
    %v8433 = vpack.c.bf16 %v8421, %v8420
    %v8434 = vpack.c.bf16 %v8423, %v8422
    %v8435 = vpack.c.bf16 %v8425, %v8424
    %v8436 = vpack.c.bf16 %v8427, %v8426
    %v8437 = vpack.c.bf16 %v8429, %v8428
    %s8438 = scalar_lea.vmem [#allocation9], 64
    %v8439 = vld [vmem:[%s8438] sm:$0xf]
    %v8440 = vld [vmem:[%s8438 + $0x4] sm:$0xf]
    %v8441 = vld [vmem:[%s8438 + $0x8] sm:$0xf]
    %v8442 = vld [vmem:[%s8438 + $0xc] sm:$0xf]
    %v8443 = vld [vmem:[%s8438 + $0x10] sm:$0xf]
    %v8444 = vld [vmem:[%s8438 + $0x14] sm:$0xf]
    %v8445 = vld [vmem:[%s8438 + $0x18] sm:$0xf]
    %v8446 = vld [vmem:[%s8438 + $0x1c] sm:$0xf]
    %v8447 = vld [vmem:[%s8438 + $0x20] sm:$0xf]
    %v8448 = vld [vmem:[%s8438 + $0x24] sm:$0xf]
    %v8449 = vld [vmem:[%s8438 + $0x28] sm:$0xf]
    %v8450 = vld [vmem:[%s8438 + $0x2c] sm:$0xf]
    %v8451 = vld [vmem:[%s8438 + $0x30] sm:$0xf]
    %v8452 = vld [vmem:[%s8438 + $0x34] sm:$0xf]
    %v8453 = vld [vmem:[%s8438 + $0x38] sm:$0xf]
    %v8454 = vld [vmem:[%s8438 + $0x3c] sm:$0xf]
    %s8455 = scalar_lea.vmem [#allocation10], 1
    %v8456 = vld [vmem:[%s8455] sm:$0x1]
    %v8458 = vlaneseq
    %v8459 = vshrl.u32 %v8458, 7
    %v8460 = vsub.s32 0, %v8459
    %v8461 = vrot.slane %v8456, %v8460
    %v8479 = vunpack.c.l.b16 %v8439
    %v8480 = vunpack.c.l.b16 %v8440
    %v8481 = vunpack.c.l.b16 %v8441
    %v8482 = vunpack.c.l.b16 %v8442
    %v8483 = vunpack.c.l.b16 %v8443
    %v8484 = vunpack.c.l.b16 %v8444
    %v8485 = vunpack.c.l.b16 %v8445
    %v8486 = vunpack.c.l.b16 %v8446
    %v8487 = vunpack.c.l.b16 %v8447
    %v8488 = vunpack.c.l.b16 %v8448
    %v8489 = vunpack.c.l.b16 %v8449
    %v8490 = vunpack.c.l.b16 %v8450
    %v8491 = vunpack.c.l.b16 %v8451
    %v8492 = vunpack.c.l.b16 %v8452
    %v8493 = vunpack.c.l.b16 %v8453
    %v8494 = vunpack.c.l.b16 %v8454
    %v8495 = vpack.c.b16 %v8480, %v8479
    %v8496 = vpack.c.b16 %v8482, %v8481
    %v8497 = vpack.c.b16 %v8484, %v8483
    %v8498 = vpack.c.b16 %v8486, %v8485
    %v8499 = vpack.c.b16 %v8488, %v8487
    %v8500 = vpack.c.b16 %v8490, %v8489
    %v8501 = vpack.c.b16 %v8492, %v8491
    %v8502 = vpack.c.b16 %v8494, %v8493
    %8511 = vmatprep.subr.bf16.mxu0 0
    %8512 = vmatpush1.bf16.msra.mxu0 %v8495
    %8513 = vmatprep.subr.bf16.mxu0 0
    %8514 = vmatpush1.bf16.msra.mxu0 %v8496
    %8515 = vmatprep.subr.bf16.mxu0 0
    %8516 = vmatpush1.bf16.msra.mxu0 %v8497
    %8517 = vmatprep.subr.bf16.mxu0 0
    %8518 = vmatpush1.bf16.msra.mxu0 %v8498
    %8519 = vmatprep.subr.bf16.mxu0 0
    %8520 = vmatpush1.bf16.msra.mxu0 %v8499
    %8521 = vmatprep.subr.bf16.mxu0 0
    %8522 = vmatpush1.bf16.msra.mxu0 %v8500
    %8523 = vmatprep.subr.bf16.mxu0 0
    %8524 = vmatpush1.bf16.msra.mxu0 %v8501
    %8525 = vmatprep.subr.bf16.mxu0 0
    %8526 = vmatpush1.bf16.msra.mxu0 %v8502
    %8527 = vmatprep.subr.bf16.mxu0 0
    %8528 = vmatpush1.bf16.msra.mxu0 0
    %8529 = vmatprep.subr.bf16.mxu0 0
    %8530 = vmatpush1.bf16.msra.mxu0 0
    %8531 = vmatprep.subr.bf16.mxu0 0
    %8532 = vmatpush1.bf16.msra.mxu0 0
    %8533 = vmatprep.subr.bf16.mxu0 0
    %8534 = vmatpush1.bf16.msra.mxu0 0
    %8535 = vmatprep.subr.bf16.mxu0 0
    %8536 = vmatpush1.bf16.msra.mxu0 0
    %8537 = vmatprep.subr.bf16.mxu0 0
    %8538 = vmatpush1.bf16.msra.mxu0 0
    %8539 = vmatprep.subr.bf16.mxu0 0
    %8540 = vmatpush1.bf16.msra.mxu0 0
    %8541 = vmatprep.subr.bf16.mxu0 0
    %8542 = vmatpush1.bf16.msra.mxu0 0
    %8543 = vmatprep.mubr.bf16.mxu0 0
    %8544 = vmatmul.mubr.bf16.gmra.mrb[0].mxu0 %v8430
    %v8545 = vpop.f32.mrb[0].mxu0
    %v8546 = vadd.f32 %v8461, %v8545
    %v8547 = vpop.f32.mrb[0].mxu0
    %v8548 = vpop.f32.mrb[0].mxu0
    %v8549 = vadd.f32 %v8461, %v8548
    %v8550 = vpop.f32.mrb[0].mxu0
    %8551 = vmatprep.mubr.bf16.mxu0 0
    %8552 = vmatmul.mubr.bf16.gmra.mrb[0].mxu0 %v8431
    %v8553 = vpop.f32.mrb[0].mxu0
    %v8554 = vadd.f32 %v8461, %v8553
    %v8555 = vpop.f32.mrb[0].mxu0
    %v8556 = vpop.f32.mrb[0].mxu0
    %v8557 = vadd.f32 %v8461, %v8556
    %v8558 = vpop.f32.mrb[0].mxu0
    %8559 = vmatprep.mubr.bf16.mxu0 0
    %8560 = vmatmul.mubr.bf16.gmra.mrb[0].mxu0 %v8432
    %v8561 = vpop.f32.mrb[0].mxu0
    %v8562 = vadd.f32 %v8461, %v8561
    %v8563 = vpop.f32.mrb[0].mxu0
    %v8564 = vpop.f32.mrb[0].mxu0
    %v8565 = vadd.f32 %v8461, %v8564
    %v8566 = vpop.f32.mrb[0].mxu0
    %8567 = vmatprep.mubr.bf16.mxu0 0
    %8568 = vmatmul.mubr.bf16.gmra.mrb[0].mxu0 %v8433
    %v8569 = vpop.f32.mrb[0].mxu0
    %v8570 = vadd.f32 %v8461, %v8569
    %v8571 = vpop.f32.mrb[0].mxu0
    %v8572 = vpop.f32.mrb[0].mxu0
    %v8573 = vadd.f32 %v8461, %v8572
    %v8574 = vpop.f32.mrb[0].mxu0
    %8575 = vmatprep.mubr.bf16.mxu0 0
    %8576 = vmatmul.mubr.bf16.gmra.mrb[0].mxu0 %v8434
    %v8577 = vpop.f32.mrb[0].mxu0
    %v8578 = vadd.f32 %v8461, %v8577
    %v8579 = vpop.f32.mrb[0].mxu0
    %v8580 = vpop.f32.mrb[0].mxu0
    %v8581 = vadd.f32 %v8461, %v8580
    %v8582 = vpop.f32.mrb[0].mxu0
    %8583 = vmatprep.mubr.bf16.mxu0 0
    %8584 = vmatmul.mubr.bf16.gmra.mrb[0].mxu0 %v8435
    %v8585 = vpop.f32.mrb[0].mxu0
    %v8586 = vadd.f32 %v8461, %v8585
    %v8587 = vpop.f32.mrb[0].mxu0
    %v8588 = vpop.f32.mrb[0].mxu0
    %v8589 = vadd.f32 %v8461, %v8588
    %v8590 = vpop.f32.mrb[0].mxu0
    %8591 = vmatprep.mubr.bf16.mxu0 0
    %8592 = vmatmul.mubr.bf16.gmra.mrb[0].mxu0 %v8436
    %v8593 = vpop.f32.mrb[0].mxu0
    %v8594 = vadd.f32 %v8461, %v8593
    %v8595 = vpop.f32.mrb[0].mxu0
    %v8596 = vpop.f32.mrb[0].mxu0
    %v8597 = vadd.f32 %v8461, %v8596
    %v8598 = vpop.f32.mrb[0].mxu0
    %8599 = vmatprep.mubr.bf16.mxu0 0
    %8600 = vmatmul.mubr.bf16.gmra.mrb[0].mxu0 %v8437
    %v8601 = vpop.f32.mrb[0].mxu0
    %v8602 = vadd.f32 %v8461, %v8601
    %v8603 = vpop.f32.mrb[0].mxu0
    %v8604 = vpop.f32.mrb[0].mxu0
    %v8605 = vadd.f32 %v8461, %v8604
    %v8606 = vpop.f32.mrb[0].mxu0
    %8607 = vdwg.mxu0
    %v8608 = vadd.f32 %v5761, %v8546
    %v8609 = vadd.f32 %v5762, %v8549
    %v8610 = vadd.f32 %v5763, %v8554
    %v8611 = vadd.f32 %v5764, %v8557
    %v8612 = vadd.f32 %v5765, %v8562
    %v8613 = vadd.f32 %v5766, %v8565
    %v8614 = vadd.f32 %v5767, %v8570
    %v8615 = vadd.f32 %v5768, %v8573
    %v8616 = vadd.f32 %v5769, %v8578
    %v8617 = vadd.f32 %v5770, %v8581
    %v8618 = vadd.f32 %v5771, %v8586
    %v8619 = vadd.f32 %v5772, %v8589
    %v8620 = vadd.f32 %v5773, %v8594
    %v8621 = vadd.f32 %v5774, %v8597
    %v8622 = vadd.f32 %v5775, %v8602
    %v8623 = vadd.f32 %v5776, %v8605
    %s8624 = scalar_lea.vmem %s10, 1
    %v8625 = vld [vmem:[%s8624] sm:$0x1]
    %s8626 = scalar_lea.vmem %s11, 1
    %v8627 = vld [vmem:[%s8626] sm:$0x1]
    %8628 = vadd.xlane.f32.xlu0 %v8608
    %v8629 = vpop.xlane.xlu0 %8628
    %8630 = vadd.xlane.f32.xlu0 %v8609
    %v8631 = vpop.xlane.xlu0 %8630
    %8632 = vadd.xlane.f32.xlu0 %v8610
    %v8633 = vpop.xlane.xlu0 %8632
    %8634 = vadd.xlane.f32.xlu0 %v8611
    %v8635 = vpop.xlane.xlu0 %8634
    %8636 = vadd.xlane.f32.xlu0 %v8612
    %v8637 = vpop.xlane.xlu0 %8636
    %8638 = vadd.xlane.f32.xlu0 %v8613
    %v8639 = vpop.xlane.xlu0 %8638
    %8640 = vadd.xlane.f32.xlu0 %v8614
    %v8641 = vpop.xlane.xlu0 %8640
    %8642 = vadd.xlane.f32.xlu0 %v8615
    %v8643 = vpop.xlane.xlu0 %8642
    %8644 = vadd.xlane.f32.xlu0 %v8616
    %v8645 = vpop.xlane.xlu0 %8644
    %8646 = vadd.xlane.f32.xlu0 %v8617
    %v8647 = vpop.xlane.xlu0 %8646
    %8648 = vadd.xlane.f32.xlu0 %v8618
    %v8649 = vpop.xlane.xlu0 %8648
    %8650 = vadd.xlane.f32.xlu0 %v8619
    %v8651 = vpop.xlane.xlu0 %8650
    %8652 = vadd.xlane.f32.xlu0 %v8620
    %v8653 = vpop.xlane.xlu0 %8652
    %8654 = vadd.xlane.f32.xlu0 %v8621
    %v8655 = vpop.xlane.xlu0 %8654
    %8656 = vadd.xlane.f32.xlu0 %v8622
    %v8657 = vpop.xlane.xlu0 %8656
    %8658 = vadd.xlane.f32.xlu0 %v8623
    %v8659 = vpop.xlane.xlu0 %8658
    %v8660 = vmul.f32 %v8629, %v1215
    %v8661 = vmul.f32 %v8631, %v1215
    %v8662 = vmul.f32 %v8633, %v1215
    %v8663 = vmul.f32 %v8635, %v1215
    %v8664 = vmul.f32 %v8637, %v1215
    %v8665 = vmul.f32 %v8639, %v1215
    %v8666 = vmul.f32 %v8641, %v1215
    %v8667 = vmul.f32 %v8643, %v1215
    %v8668 = vmul.f32 %v8645, %v1215
    %v8669 = vmul.f32 %v8647, %v1215
    %v8670 = vmul.f32 %v8649, %v1215
    %v8671 = vmul.f32 %v8651, %v1215
    %v8672 = vmul.f32 %v8653, %v1215
    %v8673 = vmul.f32 %v8655, %v1215
    %v8674 = vmul.f32 %v8657, %v1215
    %v8675 = vmul.f32 %v8659, %v1215
    %v8676 = vsub.f32 %v8608, %v8660
    %v8677 = vsub.f32 %v8609, %v8661
    %v8678 = vsub.f32 %v8610, %v8662
    %v8679 = vsub.f32 %v8611, %v8663
    %v8680 = vsub.f32 %v8612, %v8664
    %v8681 = vsub.f32 %v8613, %v8665
    %v8682 = vsub.f32 %v8614, %v8666
    %v8683 = vsub.f32 %v8615, %v8667
    %v8684 = vsub.f32 %v8616, %v8668
    %v8685 = vsub.f32 %v8617, %v8669
    %v8686 = vsub.f32 %v8618, %v8670
    %v8687 = vsub.f32 %v8619, %v8671
    %v8688 = vsub.f32 %v8620, %v8672
    %v8689 = vsub.f32 %v8621, %v8673
    %v8690 = vsub.f32 %v8622, %v8674
    %v8691 = vsub.f32 %v8623, %v8675
    %v8692 = vmul.f32 %v8676, %v8676
    %v8693 = vmul.f32 %v8677, %v8677
    %v8694 = vmul.f32 %v8678, %v8678
    %v8695 = vmul.f32 %v8679, %v8679
    %v8696 = vmul.f32 %v8680, %v8680
    %v8697 = vmul.f32 %v8681, %v8681
    %v8698 = vmul.f32 %v8682, %v8682
    %v8699 = vmul.f32 %v8683, %v8683
    %v8700 = vmul.f32 %v8684, %v8684
    %v8701 = vmul.f32 %v8685, %v8685
    %v8702 = vmul.f32 %v8686, %v8686
    %v8703 = vmul.f32 %v8687, %v8687
    %v8704 = vmul.f32 %v8688, %v8688
    %v8705 = vmul.f32 %v8689, %v8689
    %v8706 = vmul.f32 %v8690, %v8690
    %v8707 = vmul.f32 %v8691, %v8691
    %8708 = vadd.xlane.f32.xlu0 %v8692
    %v8709 = vpop.xlane.xlu0 %8708
    %8710 = vadd.xlane.f32.xlu0 %v8693
    %v8711 = vpop.xlane.xlu0 %8710
    %8712 = vadd.xlane.f32.xlu0 %v8694
    %v8713 = vpop.xlane.xlu0 %8712
    %8714 = vadd.xlane.f32.xlu0 %v8695
    %v8715 = vpop.xlane.xlu0 %8714
    %8716 = vadd.xlane.f32.xlu0 %v8696
    %v8717 = vpop.xlane.xlu0 %8716
    %8718 = vadd.xlane.f32.xlu0 %v8697
    %v8719 = vpop.xlane.xlu0 %8718
    %8720 = vadd.xlane.f32.xlu0 %v8698
    %v8721 = vpop.xlane.xlu0 %8720
    %8722 = vadd.xlane.f32.xlu0 %v8699
    %v8723 = vpop.xlane.xlu0 %8722
    %8724 = vadd.xlane.f32.xlu0 %v8700
    %v8725 = vpop.xlane.xlu0 %8724
    %8726 = vadd.xlane.f32.xlu0 %v8701
    %v8727 = vpop.xlane.xlu0 %8726
    %8728 = vadd.xlane.f32.xlu0 %v8702
    %v8729 = vpop.xlane.xlu0 %8728
    %8730 = vadd.xlane.f32.xlu0 %v8703
    %v8731 = vpop.xlane.xlu0 %8730
    %8732 = vadd.xlane.f32.xlu0 %v8704
    %v8733 = vpop.xlane.xlu0 %8732
    %8734 = vadd.xlane.f32.xlu0 %v8705
    %v8735 = vpop.xlane.xlu0 %8734
    %8736 = vadd.xlane.f32.xlu0 %v8706
    %v8737 = vpop.xlane.xlu0 %8736
    %8738 = vadd.xlane.f32.xlu0 %v8707
    %v8739 = vpop.xlane.xlu0 %8738
    %v8740 = vmul.f32 %v8709, %v1215
    %v8741 = vmul.f32 %v8711, %v1215
    %v8742 = vmul.f32 %v8713, %v1215
    %v8743 = vmul.f32 %v8715, %v1215
    %v8744 = vmul.f32 %v8717, %v1215
    %v8745 = vmul.f32 %v8719, %v1215
    %v8746 = vmul.f32 %v8721, %v1215
    %v8747 = vmul.f32 %v8723, %v1215
    %v8748 = vmul.f32 %v8725, %v1215
    %v8749 = vmul.f32 %v8727, %v1215
    %v8750 = vmul.f32 %v8729, %v1215
    %v8751 = vmul.f32 %v8731, %v1215
    %v8752 = vmul.f32 %v8733, %v1215
    %v8753 = vmul.f32 %v8735, %v1215
    %v8754 = vmul.f32 %v8737, %v1215
    %v8755 = vmul.f32 %v8739, %v1215
    %v8756 = vadd.f32 %v8740, 1e-12
    %v8757 = vadd.f32 %v8741, 1e-12
    %v8758 = vadd.f32 %v8742, 1e-12
    %v8759 = vadd.f32 %v8743, 1e-12
    %v8760 = vadd.f32 %v8744, 1e-12
    %v8761 = vadd.f32 %v8745, 1e-12
    %v8762 = vadd.f32 %v8746, 1e-12
    %v8763 = vadd.f32 %v8747, 1e-12
    %v8764 = vadd.f32 %v8748, 1e-12
    %v8765 = vadd.f32 %v8749, 1e-12
    %v8766 = vadd.f32 %v8750, 1e-12
    %v8767 = vadd.f32 %v8751, 1e-12
    %v8768 = vadd.f32 %v8752, 1e-12
    %v8769 = vadd.f32 %v8753, 1e-12
    %v8770 = vadd.f32 %v8754, 1e-12
    %v8771 = vadd.f32 %v8755, 1e-12
    %v8772 = vrsqrt.pop %v8756
    %v8773 = vrsqrt.pop %v8757
    %v8774 = vrsqrt.pop %v8758
    %v8775 = vrsqrt.pop %v8759
    %v8776 = vrsqrt.pop %v8760
    %v8777 = vrsqrt.pop %v8761
    %v8778 = vrsqrt.pop %v8762
    %v8779 = vrsqrt.pop %v8763
    %v8780 = vrsqrt.pop %v8764
    %v8781 = vrsqrt.pop %v8765
    %v8782 = vrsqrt.pop %v8766
    %v8783 = vrsqrt.pop %v8767
    %v8784 = vrsqrt.pop %v8768
    %v8785 = vrsqrt.pop %v8769
    %v8786 = vrsqrt.pop %v8770
    %v8787 = vrsqrt.pop %v8771
    %v8788 = vmul.f32 %v8676, %v8772
    %v8789 = vmul.f32 %v8677, %v8773
    %v8790 = vmul.f32 %v8678, %v8774
    %v8791 = vmul.f32 %v8679, %v8775
    %v8792 = vmul.f32 %v8680, %v8776
    %v8793 = vmul.f32 %v8681, %v8777
    %v8794 = vmul.f32 %v8682, %v8778
    %v8795 = vmul.f32 %v8683, %v8779
    %v8796 = vmul.f32 %v8684, %v8780
    %v8797 = vmul.f32 %v8685, %v8781
    %v8798 = vmul.f32 %v8686, %v8782
    %v8799 = vmul.f32 %v8687, %v8783
    %v8800 = vmul.f32 %v8688, %v8784
    %v8801 = vmul.f32 %v8689, %v8785
    %v8802 = vmul.f32 %v8690, %v8786
    %v8803 = vmul.f32 %v8691, %v8787
    %v8805 = vlaneseq
    %v8806 = vshrl.u32 %v8805, 7
    %v8807 = vsub.s32 0, %v8806
    %v8808 = vrot.slane %v8625, %v8807
    %v8810 = vmul.f32 %v8788, %v8808
    %v8811 = vmul.f32 %v8789, %v8808
    %v8812 = vmul.f32 %v8790, %v8808
    %v8813 = vmul.f32 %v8791, %v8808
    %v8814 = vmul.f32 %v8792, %v8808
    %v8815 = vmul.f32 %v8793, %v8808
    %v8816 = vmul.f32 %v8794, %v8808
    %v8817 = vmul.f32 %v8795, %v8808
    %v8818 = vmul.f32 %v8796, %v8808
    %v8819 = vmul.f32 %v8797, %v8808
    %v8820 = vmul.f32 %v8798, %v8808
    %v8821 = vmul.f32 %v8799, %v8808
    %v8822 = vmul.f32 %v8800, %v8808
    %v8823 = vmul.f32 %v8801, %v8808
    %v8824 = vmul.f32 %v8802, %v8808
    %v8825 = vmul.f32 %v8803, %v8808
    %v8827 = vlaneseq
    %v8828 = vshrl.u32 %v8827, 7
    %v8829 = vsub.s32 0, %v8828
    %v8830 = vrot.slane %v8627, %v8829
    %v8832 = vadd.f32 %v8810, %v8830
    %v8833 = vadd.f32 %v8811, %v8830
    %v8834 = vadd.f32 %v8812, %v8830
    %v8835 = vadd.f32 %v8813, %v8830
    %v8836 = vadd.f32 %v8814, %v8830
    %v8837 = vadd.f32 %v8815, %v8830
    %v8838 = vadd.f32 %v8816, %v8830
    %v8839 = vadd.f32 %v8817, %v8830
    %v8840 = vadd.f32 %v8818, %v8830
    %v8841 = vadd.f32 %v8819, %v8830
    %v8842 = vadd.f32 %v8820, %v8830
    %v8843 = vadd.f32 %v8821, %v8830
    %v8844 = vadd.f32 %v8822, %v8830
    %v8845 = vadd.f32 %v8823, %v8830
    %v8846 = vadd.f32 %v8824, %v8830
    %v8847 = vadd.f32 %v8825, %v8830
    %v8848 = vpack.c.bf16 %v8833, %v8832
    %v8849 = vpack.c.bf16 %v8835, %v8834
    %v8850 = vpack.c.bf16 %v8837, %v8836
    %v8851 = vpack.c.bf16 %v8839, %v8838
    %v8852 = vpack.c.bf16 %v8841, %v8840
    %v8853 = vpack.c.bf16 %v8843, %v8842
    %v8854 = vpack.c.bf16 %v8845, %v8844
    %v8855 = vpack.c.bf16 %v8847, %v8846
    %s8856 = scalar_lea.vmem %s12, 256
    %v8857 = vld [vmem:[%s8856] sm:$0xff]
    %v8858 = vld [vmem:[%s8856 + $0x8] sm:$0xff]
    %v8859 = vld [vmem:[%s8856 + $0x10] sm:$0xff]
    %v8860 = vld [vmem:[%s8856 + $0x18] sm:$0xff]
    %v8861 = vld [vmem:[%s8856 + $0x20] sm:$0xff]
    %v8862 = vld [vmem:[%s8856 + $0x28] sm:$0xff]
    %v8863 = vld [vmem:[%s8856 + $0x30] sm:$0xff]
    %v8864 = vld [vmem:[%s8856 + $0x38] sm:$0xff]
    %v8865 = vld [vmem:[%s8856 + $0x40] sm:$0xff]
    %v8866 = vld [vmem:[%s8856 + $0x48] sm:$0xff]
    %v8867 = vld [vmem:[%s8856 + $0x50] sm:$0xff]
    %v8868 = vld [vmem:[%s8856 + $0x58] sm:$0xff]
    %v8869 = vld [vmem:[%s8856 + $0x60] sm:$0xff]
    %v8870 = vld [vmem:[%s8856 + $0x68] sm:$0xff]
    %v8871 = vld [vmem:[%s8856 + $0x70] sm:$0xff]
    %v8872 = vld [vmem:[%s8856 + $0x78] sm:$0xff]
    %v8873 = vld [vmem:[%s8856 + $0x80] sm:$0xff]
    %v8874 = vld [vmem:[%s8856 + $0x88] sm:$0xff]
    %v8875 = vld [vmem:[%s8856 + $0x90] sm:$0xff]
    %v8876 = vld [vmem:[%s8856 + $0x98] sm:$0xff]
    %v8877 = vld [vmem:[%s8856 + $0xa0] sm:$0xff]
    %v8878 = vld [vmem:[%s8856 + $0xa8] sm:$0xff]
    %v8879 = vld [vmem:[%s8856 + $0xb0] sm:$0xff]
    %v8880 = vld [vmem:[%s8856 + $0xb8] sm:$0xff]
    %v8881 = vld [vmem:[%s8856 + $0xc0] sm:$0xff]
    %v8882 = vld [vmem:[%s8856 + $0xc8] sm:$0xff]
    %v8883 = vld [vmem:[%s8856 + $0xd0] sm:$0xff]
    %v8884 = vld [vmem:[%s8856 + $0xd8] sm:$0xff]
    %v8885 = vld [vmem:[%s8856 + $0xe0] sm:$0xff]
    %v8886 = vld [vmem:[%s8856 + $0xe8] sm:$0xff]
    %v8887 = vld [vmem:[%s8856 + $0xf0] sm:$0xff]
    %v8888 = vld [vmem:[%s8856 + $0xf8] sm:$0xff]
    %s8889 = scalar_lea.vmem [#allocation12], 4
    %v8890 = vld [vmem:[%s8889] sm:$0xf]
    %v8892 = vlaneseq
    %v8893 = vshrl.u32 %v8892, 7
    %v8894 = vsub.s32 0, %v8893
    %v8895 = vrot.slane %v8890, %v8894
    %v8896 = vlaneseq
    %v8897 = vshrl.u32 %v8896, 7
    %v8898 = vsub.s32 1, %v8897
    %v8899 = vrot.slane %v8890, %v8898
    %v8900 = vlaneseq
    %v8901 = vshrl.u32 %v8900, 7
    %v8902 = vsub.s32 2, %v8901
    %v8903 = vrot.slane %v8890, %v8902
    %v8904 = vlaneseq
    %v8905 = vshrl.u32 %v8904, 7
    %v8906 = vsub.s32 3, %v8905
    %v8907 = vrot.slane %v8890, %v8906
    %v8944 = vunpack.c.l.b16 %v8857
    %v8945 = vunpack.c.h.b16 %v8857
    %v8946 = vunpack.c.l.b16 %v8858
    %v8947 = vunpack.c.h.b16 %v8858
    %v8948 = vunpack.c.l.b16 %v8859
    %v8949 = vunpack.c.h.b16 %v8859
    %v8950 = vunpack.c.l.b16 %v8860
    %v8951 = vunpack.c.h.b16 %v8860
    %v8952 = vunpack.c.l.b16 %v8861
    %v8953 = vunpack.c.h.b16 %v8861
    %v8954 = vunpack.c.l.b16 %v8862
    %v8955 = vunpack.c.h.b16 %v8862
    %v8956 = vunpack.c.l.b16 %v8863
    %v8957 = vunpack.c.h.b16 %v8863
    %v8958 = vunpack.c.l.b16 %v8864
    %v8959 = vunpack.c.h.b16 %v8864
    %v8960 = vunpack.c.l.b16 %v8865
    %v8961 = vunpack.c.h.b16 %v8865
    %v8962 = vunpack.c.l.b16 %v8866
    %v8963 = vunpack.c.h.b16 %v8866
    %v8964 = vunpack.c.l.b16 %v8867
    %v8965 = vunpack.c.h.b16 %v8867
    %v8966 = vunpack.c.l.b16 %v8868
    %v8967 = vunpack.c.h.b16 %v8868
    %v8968 = vunpack.c.l.b16 %v8869
    %v8969 = vunpack.c.h.b16 %v8869
    %v8970 = vunpack.c.l.b16 %v8870
    %v8971 = vunpack.c.h.b16 %v8870
    %v8972 = vunpack.c.l.b16 %v8871
    %v8973 = vunpack.c.h.b16 %v8871
    %v8974 = vunpack.c.l.b16 %v8872
    %v8975 = vunpack.c.h.b16 %v8872
    %v8976 = vunpack.c.l.b16 %v8873
    %v8977 = vunpack.c.h.b16 %v8873
    %v8978 = vunpack.c.l.b16 %v8874
    %v8979 = vunpack.c.h.b16 %v8874
    %v8980 = vunpack.c.l.b16 %v8875
    %v8981 = vunpack.c.h.b16 %v8875
    %v8982 = vunpack.c.l.b16 %v8876
    %v8983 = vunpack.c.h.b16 %v8876
    %v8984 = vunpack.c.l.b16 %v8877
    %v8985 = vunpack.c.h.b16 %v8877
    %v8986 = vunpack.c.l.b16 %v8878
    %v8987 = vunpack.c.h.b16 %v8878
    %v8988 = vunpack.c.l.b16 %v8879
    %v8989 = vunpack.c.h.b16 %v8879
    %v8990 = vunpack.c.l.b16 %v8880
    %v8991 = vunpack.c.h.b16 %v8880
    %v8992 = vunpack.c.l.b16 %v8881
    %v8993 = vunpack.c.h.b16 %v8881
    %v8994 = vunpack.c.l.b16 %v8882
    %v8995 = vunpack.c.h.b16 %v8882
    %v8996 = vunpack.c.l.b16 %v8883
    %v8997 = vunpack.c.h.b16 %v8883
    %v8998 = vunpack.c.l.b16 %v8884
    %v8999 = vunpack.c.h.b16 %v8884
    %v9000 = vunpack.c.l.b16 %v8885
    %v9001 = vunpack.c.h.b16 %v8885
    %v9002 = vunpack.c.l.b16 %v8886
    %v9003 = vunpack.c.h.b16 %v8886
    %v9004 = vunpack.c.l.b16 %v8887
    %v9005 = vunpack.c.h.b16 %v8887
    %v9006 = vunpack.c.l.b16 %v8888
    %v9007 = vunpack.c.h.b16 %v8888
    %v9008 = vpack.c.b16 %v8948, %v8944
    %v9009 = vpack.c.b16 %v8949, %v8945
    %v9010 = vpack.c.b16 %v8950, %v8946
    %v9011 = vpack.c.b16 %v8951, %v8947
    %v9012 = vpack.c.b16 %v8956, %v8952
    %v9013 = vpack.c.b16 %v8957, %v8953
    %v9014 = vpack.c.b16 %v8958, %v8954
    %v9015 = vpack.c.b16 %v8959, %v8955
    %v9016 = vpack.c.b16 %v8964, %v8960
    %v9017 = vpack.c.b16 %v8965, %v8961
    %v9018 = vpack.c.b16 %v8966, %v8962
    %v9019 = vpack.c.b16 %v8967, %v8963
    %v9020 = vpack.c.b16 %v8972, %v8968
    %v9021 = vpack.c.b16 %v8973, %v8969
    %v9022 = vpack.c.b16 %v8974, %v8970
    %v9023 = vpack.c.b16 %v8975, %v8971
    %v9024 = vpack.c.b16 %v8980, %v8976
    %v9025 = vpack.c.b16 %v8981, %v8977
    %v9026 = vpack.c.b16 %v8982, %v8978
    %v9027 = vpack.c.b16 %v8983, %v8979
    %v9028 = vpack.c.b16 %v8988, %v8984
    %v9029 = vpack.c.b16 %v8989, %v8985
    %v9030 = vpack.c.b16 %v8990, %v8986
    %v9031 = vpack.c.b16 %v8991, %v8987
    %v9032 = vpack.c.b16 %v8996, %v8992
    %v9033 = vpack.c.b16 %v8997, %v8993
    %v9034 = vpack.c.b16 %v8998, %v8994
    %v9035 = vpack.c.b16 %v8999, %v8995
    %v9036 = vpack.c.b16 %v9004, %v9000
    %v9037 = vpack.c.b16 %v9005, %v9001
    %v9038 = vpack.c.b16 %v9006, %v9002
    %v9039 = vpack.c.b16 %v9007, %v9003
    %9072 = vmatprep.subr.bf16.mxu0 %v9009
    %9073 = vmatpush1.bf16.msra.mxu0 %v9008
    %9074 = vmatprep.subr.bf16.mxu0 %v9013
    %9075 = vmatpush1.bf16.msra.mxu0 %v9012
    %9076 = vmatprep.subr.bf16.mxu0 %v9017
    %9077 = vmatpush1.bf16.msra.mxu0 %v9016
    %9078 = vmatprep.subr.bf16.mxu0 %v9021
    %9079 = vmatpush1.bf16.msra.mxu0 %v9020
    %9080 = vmatprep.subr.bf16.mxu0 %v9025
    %9081 = vmatpush1.bf16.msra.mxu0 %v9024
    %9082 = vmatprep.subr.bf16.mxu0 %v9029
    %9083 = vmatpush1.bf16.msra.mxu0 %v9028
    %9084 = vmatprep.subr.bf16.mxu0 %v9033
    %9085 = vmatpush1.bf16.msra.mxu0 %v9032
    %9086 = vmatprep.subr.bf16.mxu0 %v9037
    %9087 = vmatpush1.bf16.msra.mxu0 %v9036
    %9088 = vmatprep.subr.bf16.mxu0 0
    %9089 = vmatpush1.bf16.msra.mxu0 0
    %9090 = vmatprep.subr.bf16.mxu0 0
    %9091 = vmatpush1.bf16.msra.mxu0 0
    %9092 = vmatprep.subr.bf16.mxu0 0
    %9093 = vmatpush1.bf16.msra.mxu0 0
    %9094 = vmatprep.subr.bf16.mxu0 0
    %9095 = vmatpush1.bf16.msra.mxu0 0
    %9096 = vmatprep.subr.bf16.mxu0 0
    %9097 = vmatpush1.bf16.msra.mxu0 0
    %9098 = vmatprep.subr.bf16.mxu0 0
    %9099 = vmatpush1.bf16.msra.mxu0 0
    %9100 = vmatprep.subr.bf16.mxu0 0
    %9101 = vmatpush1.bf16.msra.mxu0 0
    %9102 = vmatprep.subr.bf16.mxu0 0
    %9103 = vmatpush1.bf16.msra.mxu0 0
    %9104 = vmatprep.mubr.bf16.mxu0 0
    %9105 = vmatmul.mubr.bf16.gmra.mrb[0].mxu0 %v8848
    %v9106 = vpop.f32.mrb[0].mxu0
    %v9107 = vadd.f32 %v8895, %v9106
    %v9108 = vpop.f32.mrb[0].mxu0
    %v9109 = vadd.f32 %v8899, %v9108
    %v9110 = vpop.f32.mrb[0].mxu0
    %v9111 = vadd.f32 %v8895, %v9110
    %v9112 = vpop.f32.mrb[0].mxu0
    %v9113 = vadd.f32 %v8899, %v9112
    %9114 = vmatprep.mubr.bf16.mxu0 0
    %9115 = vmatmul.mubr.bf16.gmra.mrb[0].mxu0 %v8849
    %v9116 = vpop.f32.mrb[0].mxu0
    %v9117 = vadd.f32 %v8895, %v9116
    %v9118 = vpop.f32.mrb[0].mxu0
    %v9119 = vadd.f32 %v8899, %v9118
    %v9120 = vpop.f32.mrb[0].mxu0
    %v9121 = vadd.f32 %v8895, %v9120
    %v9122 = vpop.f32.mrb[0].mxu0
    %v9123 = vadd.f32 %v8899, %v9122
    %9124 = vmatprep.mubr.bf16.mxu0 0
    %9125 = vmatmul.mubr.bf16.gmra.mrb[0].mxu0 %v8850
    %v9126 = vpop.f32.mrb[0].mxu0
    %v9127 = vadd.f32 %v8895, %v9126
    %v9128 = vpop.f32.mrb[0].mxu0
    %v9129 = vadd.f32 %v8899, %v9128
    %v9130 = vpop.f32.mrb[0].mxu0
    %v9131 = vadd.f32 %v8895, %v9130
    %v9132 = vpop.f32.mrb[0].mxu0
    %v9133 = vadd.f32 %v8899, %v9132
    %9134 = vmatprep.mubr.bf16.mxu0 0
    %9135 = vmatmul.mubr.bf16.gmra.mrb[0].mxu0 %v8851
    %v9136 = vpop.f32.mrb[0].mxu0
    %v9137 = vadd.f32 %v8895, %v9136
    %v9138 = vpop.f32.mrb[0].mxu0
    %v9139 = vadd.f32 %v8899, %v9138
    %v9140 = vpop.f32.mrb[0].mxu0
    %v9141 = vadd.f32 %v8895, %v9140
    %v9142 = vpop.f32.mrb[0].mxu0
    %v9143 = vadd.f32 %v8899, %v9142
    %9144 = vmatprep.mubr.bf16.mxu0 0
    %9145 = vmatmul.mubr.bf16.gmra.mrb[0].mxu0 %v8852
    %v9146 = vpop.f32.mrb[0].mxu0
    %v9147 = vadd.f32 %v8895, %v9146
    %v9148 = vpop.f32.mrb[0].mxu0
    %v9149 = vadd.f32 %v8899, %v9148
    %v9150 = vpop.f32.mrb[0].mxu0
    %v9151 = vadd.f32 %v8895, %v9150
    %v9152 = vpop.f32.mrb[0].mxu0
    %v9153 = vadd.f32 %v8899, %v9152
    %9154 = vmatprep.mubr.bf16.mxu0 0
    %9155 = vmatmul.mubr.bf16.gmra.mrb[0].mxu0 %v8853
    %v9156 = vpop.f32.mrb[0].mxu0
    %v9157 = vadd.f32 %v8895, %v9156
    %v9158 = vpop.f32.mrb[0].mxu0
    %v9159 = vadd.f32 %v8899, %v9158
    %v9160 = vpop.f32.mrb[0].mxu0
    %v9161 = vadd.f32 %v8895, %v9160
    %v9162 = vpop.f32.mrb[0].mxu0
    %v9163 = vadd.f32 %v8899, %v9162
    %9164 = vmatprep.mubr.bf16.mxu0 0
    %9165 = vmatmul.mubr.bf16.gmra.mrb[0].mxu0 %v8854
    %v9166 = vpop.f32.mrb[0].mxu0
    %v9167 = vadd.f32 %v8895, %v9166
    %v9168 = vpop.f32.mrb[0].mxu0
    %v9169 = vadd.f32 %v8899, %v9168
    %v9170 = vpop.f32.mrb[0].mxu0
    %v9171 = vadd.f32 %v8895, %v9170
    %v9172 = vpop.f32.mrb[0].mxu0
    %v9173 = vadd.f32 %v8899, %v9172
    %9174 = vmatprep.mubr.bf16.mxu0 0
    %9175 = vmatmul.mubr.bf16.gmra.mrb[0].mxu0 %v8855
    %v9176 = vpop.f32.mrb[0].mxu0
    %v9177 = vadd.f32 %v8895, %v9176
    %v9178 = vpop.f32.mrb[0].mxu0
    %v9179 = vadd.f32 %v8899, %v9178
    %v9180 = vpop.f32.mrb[0].mxu0
    %v9181 = vadd.f32 %v8895, %v9180
    %v9182 = vpop.f32.mrb[0].mxu0
    %v9183 = vadd.f32 %v8899, %v9182
    %9184 = vdwg.mxu0
    %9185 = vmatprep.subr.bf16.mxu0 %v9011
    %9186 = vmatpush1.bf16.msra.mxu0 %v9010
    %9187 = vmatprep.subr.bf16.mxu0 %v9015
    %9188 = vmatpush1.bf16.msra.mxu0 %v9014
    %9189 = vmatprep.subr.bf16.mxu0 %v9019
    %9190 = vmatpush1.bf16.msra.mxu0 %v9018
    %9191 = vmatprep.subr.bf16.mxu0 %v9023
    %9192 = vmatpush1.bf16.msra.mxu0 %v9022
    %9193 = vmatprep.subr.bf16.mxu0 %v9027
    %9194 = vmatpush1.bf16.msra.mxu0 %v9026
    %9195 = vmatprep.subr.bf16.mxu0 %v9031
    %9196 = vmatpush1.bf16.msra.mxu0 %v9030
    %9197 = vmatprep.subr.bf16.mxu0 %v9035
    %9198 = vmatpush1.bf16.msra.mxu0 %v9034
    %9199 = vmatprep.subr.bf16.mxu0 %v9039
    %9200 = vmatpush1.bf16.msra.mxu0 %v9038
    %9201 = vmatprep.subr.bf16.mxu0 0
    %9202 = vmatpush1.bf16.msra.mxu0 0
    %9203 = vmatprep.subr.bf16.mxu0 0
    %9204 = vmatpush1.bf16.msra.mxu0 0
    %9205 = vmatprep.subr.bf16.mxu0 0
    %9206 = vmatpush1.bf16.msra.mxu0 0
    %9207 = vmatprep.subr.bf16.mxu0 0
    %9208 = vmatpush1.bf16.msra.mxu0 0
    %9209 = vmatprep.subr.bf16.mxu0 0
    %9210 = vmatpush1.bf16.msra.mxu0 0
    %9211 = vmatprep.subr.bf16.mxu0 0
    %9212 = vmatpush1.bf16.msra.mxu0 0
    %9213 = vmatprep.subr.bf16.mxu0 0
    %9214 = vmatpush1.bf16.msra.mxu0 0
    %9215 = vmatprep.subr.bf16.mxu0 0
    %9216 = vmatpush1.bf16.msra.mxu0 0
    %9217 = vmatprep.mubr.bf16.mxu0 0
    %9218 = vmatmul.mubr.bf16.gmra.mrb[0].mxu0 %v8848
    %v9219 = vpop.f32.mrb[0].mxu0
    %v9220 = vadd.f32 %v8903, %v9219
    %v9221 = vpop.f32.mrb[0].mxu0
    %v9222 = vadd.f32 %v8907, %v9221
    %v9223 = vpop.f32.mrb[0].mxu0
    %v9224 = vadd.f32 %v8903, %v9223
    %v9225 = vpop.f32.mrb[0].mxu0
    %v9226 = vadd.f32 %v8907, %v9225
    %9227 = vmatprep.mubr.bf16.mxu0 0
    %9228 = vmatmul.mubr.bf16.gmra.mrb[0].mxu0 %v8849
    %v9229 = vpop.f32.mrb[0].mxu0
    %v9230 = vadd.f32 %v8903, %v9229
    %v9231 = vpop.f32.mrb[0].mxu0
    %v9232 = vadd.f32 %v8907, %v9231
    %v9233 = vpop.f32.mrb[0].mxu0
    %v9234 = vadd.f32 %v8903, %v9233
    %v9235 = vpop.f32.mrb[0].mxu0
    %v9236 = vadd.f32 %v8907, %v9235
    %9237 = vmatprep.mubr.bf16.mxu0 0
    %9238 = vmatmul.mubr.bf16.gmra.mrb[0].mxu0 %v8850
    %v9239 = vpop.f32.mrb[0].mxu0
    %v9240 = vadd.f32 %v8903, %v9239
    %v9241 = vpop.f32.mrb[0].mxu0
    %v9242 = vadd.f32 %v8907, %v9241
    %v9243 = vpop.f32.mrb[0].mxu0
    %v9244 = vadd.f32 %v8903, %v9243
    %v9245 = vpop.f32.mrb[0].mxu0
    %v9246 = vadd.f32 %v8907, %v9245
    %9247 = vmatprep.mubr.bf16.mxu0 0
    %9248 = vmatmul.mubr.bf16.gmra.mrb[0].mxu0 %v8851
    %v9249 = vpop.f32.mrb[0].mxu0
    %v9250 = vadd.f32 %v8903, %v9249
    %v9251 = vpop.f32.mrb[0].mxu0
    %v9252 = vadd.f32 %v8907, %v9251
    %v9253 = vpop.f32.mrb[0].mxu0
    %v9254 = vadd.f32 %v8903, %v9253
    %v9255 = vpop.f32.mrb[0].mxu0
    %v9256 = vadd.f32 %v8907, %v9255
    %9257 = vmatprep.mubr.bf16.mxu0 0
    %9258 = vmatmul.mubr.bf16.gmra.mrb[0].mxu0 %v8852
    %v9259 = vpop.f32.mrb[0].mxu0
    %v9260 = vadd.f32 %v8903, %v9259
    %v9261 = vpop.f32.mrb[0].mxu0
    %v9262 = vadd.f32 %v8907, %v9261
    %v9263 = vpop.f32.mrb[0].mxu0
    %v9264 = vadd.f32 %v8903, %v9263
    %v9265 = vpop.f32.mrb[0].mxu0
    %v9266 = vadd.f32 %v8907, %v9265
    %9267 = vmatprep.mubr.bf16.mxu0 0
    %9268 = vmatmul.mubr.bf16.gmra.mrb[0].mxu0 %v8853
    %v9269 = vpop.f32.mrb[0].mxu0
    %v9270 = vadd.f32 %v8903, %v9269
    %v9271 = vpop.f32.mrb[0].mxu0
    %v9272 = vadd.f32 %v8907, %v9271
    %v9273 = vpop.f32.mrb[0].mxu0
    %v9274 = vadd.f32 %v8903, %v9273
    %v9275 = vpop.f32.mrb[0].mxu0
    %v9276 = vadd.f32 %v8907, %v9275
    %9277 = vmatprep.mubr.bf16.mxu0 0
    %9278 = vmatmul.mubr.bf16.gmra.mrb[0].mxu0 %v8854
    %v9279 = vpop.f32.mrb[0].mxu0
    %v9280 = vadd.f32 %v8903, %v9279
    %v9281 = vpop.f32.mrb[0].mxu0
    %v9282 = vadd.f32 %v8907, %v9281
    %v9283 = vpop.f32.mrb[0].mxu0
    %v9284 = vadd.f32 %v8903, %v9283
    %v9285 = vpop.f32.mrb[0].mxu0
    %v9286 = vadd.f32 %v8907, %v9285
    %9287 = vmatprep.mubr.bf16.mxu0 0
    %9288 = vmatmul.mubr.bf16.gmra.mrb[0].mxu0 %v8855
    %v9289 = vpop.f32.mrb[0].mxu0
    %v9290 = vadd.f32 %v8903, %v9289
    %v9291 = vpop.f32.mrb[0].mxu0
    %v9292 = vadd.f32 %v8907, %v9291
    %v9293 = vpop.f32.mrb[0].mxu0
    %v9294 = vadd.f32 %v8903, %v9293
    %v9295 = vpop.f32.mrb[0].mxu0
    %v9296 = vadd.f32 %v8907, %v9295
    %9297 = vdwg.mxu0
    %v9298 = vmul.f32 %v9107, %v9107
    %v9299 = vmul.f32 %v9109, %v9109
    %v9300 = vmul.f32 %v9220, %v9220
    %v9301 = vmul.f32 %v9222, %v9222
    %v9302 = vmul.f32 %v9111, %v9111
    %v9303 = vmul.f32 %v9113, %v9113
    %v9304 = vmul.f32 %v9224, %v9224
    %v9305 = vmul.f32 %v9226, %v9226
    %v9306 = vmul.f32 %v9117, %v9117
    %v9307 = vmul.f32 %v9119, %v9119
    %v9308 = vmul.f32 %v9230, %v9230
    %v9309 = vmul.f32 %v9232, %v9232
    %v9310 = vmul.f32 %v9121, %v9121
    %v9311 = vmul.f32 %v9123, %v9123
    %v9312 = vmul.f32 %v9234, %v9234
    %v9313 = vmul.f32 %v9236, %v9236
    %v9314 = vmul.f32 %v9127, %v9127
    %v9315 = vmul.f32 %v9129, %v9129
    %v9316 = vmul.f32 %v9240, %v9240
    %v9317 = vmul.f32 %v9242, %v9242
    %v9318 = vmul.f32 %v9131, %v9131
    %v9319 = vmul.f32 %v9133, %v9133
    %v9320 = vmul.f32 %v9244, %v9244
    %v9321 = vmul.f32 %v9246, %v9246
    %v9322 = vmul.f32 %v9137, %v9137
    %v9323 = vmul.f32 %v9139, %v9139
    %v9324 = vmul.f32 %v9250, %v9250
    %v9325 = vmul.f32 %v9252, %v9252
    %v9326 = vmul.f32 %v9141, %v9141
    %v9327 = vmul.f32 %v9143, %v9143
    %v9328 = vmul.f32 %v9254, %v9254
    %v9329 = vmul.f32 %v9256, %v9256
    %v9330 = vmul.f32 %v9147, %v9147
    %v9331 = vmul.f32 %v9149, %v9149
    %v9332 = vmul.f32 %v9260, %v9260
    %v9333 = vmul.f32 %v9262, %v9262
    %v9334 = vmul.f32 %v9151, %v9151
    %v9335 = vmul.f32 %v9153, %v9153
    %v9336 = vmul.f32 %v9264, %v9264
    %v9337 = vmul.f32 %v9266, %v9266
    %v9338 = vmul.f32 %v9157, %v9157
    %v9339 = vmul.f32 %v9159, %v9159
    %v9340 = vmul.f32 %v9270, %v9270
    %v9341 = vmul.f32 %v9272, %v9272
    %v9342 = vmul.f32 %v9161, %v9161
    %v9343 = vmul.f32 %v9163, %v9163
    %v9344 = vmul.f32 %v9274, %v9274
    %v9345 = vmul.f32 %v9276, %v9276
    %v9346 = vmul.f32 %v9167, %v9167
    %v9347 = vmul.f32 %v9169, %v9169
    %v9348 = vmul.f32 %v9280, %v9280
    %v9349 = vmul.f32 %v9282, %v9282
    %v9350 = vmul.f32 %v9171, %v9171
    %v9351 = vmul.f32 %v9173, %v9173
    %v9352 = vmul.f32 %v9284, %v9284
    %v9353 = vmul.f32 %v9286, %v9286
    %v9354 = vmul.f32 %v9177, %v9177
    %v9355 = vmul.f32 %v9179, %v9179
    %v9356 = vmul.f32 %v9290, %v9290
    %v9357 = vmul.f32 %v9292, %v9292
    %v9358 = vmul.f32 %v9181, %v9181
    %v9359 = vmul.f32 %v9183, %v9183
    %v9360 = vmul.f32 %v9294, %v9294
    %v9361 = vmul.f32 %v9296, %v9296
    %v9362 = vmul.f32 %v9107, %v9298
    %v9363 = vmul.f32 %v9109, %v9299
    %v9364 = vmul.f32 %v9220, %v9300
    %v9365 = vmul.f32 %v9222, %v9301
    %v9366 = vmul.f32 %v9111, %v9302
    %v9367 = vmul.f32 %v9113, %v9303
    %v9368 = vmul.f32 %v9224, %v9304
    %v9369 = vmul.f32 %v9226, %v9305
    %v9370 = vmul.f32 %v9117, %v9306
    %v9371 = vmul.f32 %v9119, %v9307
    %v9372 = vmul.f32 %v9230, %v9308
    %v9373 = vmul.f32 %v9232, %v9309
    %v9374 = vmul.f32 %v9121, %v9310
    %v9375 = vmul.f32 %v9123, %v9311
    %v9376 = vmul.f32 %v9234, %v9312
    %v9377 = vmul.f32 %v9236, %v9313
    %v9378 = vmul.f32 %v9127, %v9314
    %v9379 = vmul.f32 %v9129, %v9315
    %v9380 = vmul.f32 %v9240, %v9316
    %v9381 = vmul.f32 %v9242, %v9317
    %v9382 = vmul.f32 %v9131, %v9318
    %v9383 = vmul.f32 %v9133, %v9319
    %v9384 = vmul.f32 %v9244, %v9320
    %v9385 = vmul.f32 %v9246, %v9321
    %v9386 = vmul.f32 %v9137, %v9322
    %v9387 = vmul.f32 %v9139, %v9323
    %v9388 = vmul.f32 %v9250, %v9324
    %v9389 = vmul.f32 %v9252, %v9325
    %v9390 = vmul.f32 %v9141, %v9326
    %v9391 = vmul.f32 %v9143, %v9327
    %v9392 = vmul.f32 %v9254, %v9328
    %v9393 = vmul.f32 %v9256, %v9329
    %v9394 = vmul.f32 %v9147, %v9330
    %v9395 = vmul.f32 %v9149, %v9331
    %v9396 = vmul.f32 %v9260, %v9332
    %v9397 = vmul.f32 %v9262, %v9333
    %v9398 = vmul.f32 %v9151, %v9334
    %v9399 = vmul.f32 %v9153, %v9335
    %v9400 = vmul.f32 %v9264, %v9336
    %v9401 = vmul.f32 %v9266, %v9337
    %v9402 = vmul.f32 %v9157, %v9338
    %v9403 = vmul.f32 %v9159, %v9339
    %v9404 = vmul.f32 %v9270, %v9340
    %v9405 = vmul.f32 %v9272, %v9341
    %v9406 = vmul.f32 %v9161, %v9342
    %v9407 = vmul.f32 %v9163, %v9343
    %v9408 = vmul.f32 %v9274, %v9344
    %v9409 = vmul.f32 %v9276, %v9345
    %v9410 = vmul.f32 %v9167, %v9346
    %v9411 = vmul.f32 %v9169, %v9347
    %v9412 = vmul.f32 %v9280, %v9348
    %v9413 = vmul.f32 %v9282, %v9349
    %v9414 = vmul.f32 %v9171, %v9350
    %v9415 = vmul.f32 %v9173, %v9351
    %v9416 = vmul.f32 %v9284, %v9352
    %v9417 = vmul.f32 %v9286, %v9353
    %v9418 = vmul.f32 %v9177, %v9354
    %v9419 = vmul.f32 %v9179, %v9355
    %v9420 = vmul.f32 %v9290, %v9356
    %v9421 = vmul.f32 %v9292, %v9357
    %v9422 = vmul.f32 %v9181, %v9358
    %v9423 = vmul.f32 %v9183, %v9359
    %v9424 = vmul.f32 %v9294, %v9360
    %v9425 = vmul.f32 %v9296, %v9361
    %v9426 = vmul.f32 %v9362, 0.044715
    %v9427 = vmul.f32 %v9363, 0.044715
    %v9428 = vmul.f32 %v9364, 0.044715
    %v9429 = vmul.f32 %v9365, 0.044715
    %v9430 = vmul.f32 %v9366, 0.044715
    %v9431 = vmul.f32 %v9367, 0.044715
    %v9432 = vmul.f32 %v9368, 0.044715
    %v9433 = vmul.f32 %v9369, 0.044715
    %v9434 = vmul.f32 %v9370, 0.044715
    %v9435 = vmul.f32 %v9371, 0.044715
    %v9436 = vmul.f32 %v9372, 0.044715
    %v9437 = vmul.f32 %v9373, 0.044715
    %v9438 = vmul.f32 %v9374, 0.044715
    %v9439 = vmul.f32 %v9375, 0.044715
    %v9440 = vmul.f32 %v9376, 0.044715
    %v9441 = vmul.f32 %v9377, 0.044715
    %v9442 = vmul.f32 %v9378, 0.044715
    %v9443 = vmul.f32 %v9379, 0.044715
    %v9444 = vmul.f32 %v9380, 0.044715
    %v9445 = vmul.f32 %v9381, 0.044715
    %v9446 = vmul.f32 %v9382, 0.044715
    %v9447 = vmul.f32 %v9383, 0.044715
    %v9448 = vmul.f32 %v9384, 0.044715
    %v9449 = vmul.f32 %v9385, 0.044715
    %v9450 = vmul.f32 %v9386, 0.044715
    %v9451 = vmul.f32 %v9387, 0.044715
    %v9452 = vmul.f32 %v9388, 0.044715
    %v9453 = vmul.f32 %v9389, 0.044715
    %v9454 = vmul.f32 %v9390, 0.044715
    %v9455 = vmul.f32 %v9391, 0.044715
    %v9456 = vmul.f32 %v9392, 0.044715
    %v9457 = vmul.f32 %v9393, 0.044715
    %v9458 = vmul.f32 %v9394, 0.044715
    %v9459 = vmul.f32 %v9395, 0.044715
    %v9460 = vmul.f32 %v9396, 0.044715
    %v9461 = vmul.f32 %v9397, 0.044715
    %v9462 = vmul.f32 %v9398, 0.044715
    %v9463 = vmul.f32 %v9399, 0.044715
    %v9464 = vmul.f32 %v9400, 0.044715
    %v9465 = vmul.f32 %v9401, 0.044715
    %v9466 = vmul.f32 %v9402, 0.044715
    %v9467 = vmul.f32 %v9403, 0.044715
    %v9468 = vmul.f32 %v9404, 0.044715
    %v9469 = vmul.f32 %v9405, 0.044715
    %v9470 = vmul.f32 %v9406, 0.044715
    %v9471 = vmul.f32 %v9407, 0.044715
    %v9472 = vmul.f32 %v9408, 0.044715
    %v9473 = vmul.f32 %v9409, 0.044715
    %v9474 = vmul.f32 %v9410, 0.044715
    %v9475 = vmul.f32 %v9411, 0.044715
    %v9476 = vmul.f32 %v9412, 0.044715
    %v9477 = vmul.f32 %v9413, 0.044715
    %v9478 = vmul.f32 %v9414, 0.044715
    %v9479 = vmul.f32 %v9415, 0.044715
    %v9480 = vmul.f32 %v9416, 0.044715
    %v9481 = vmul.f32 %v9417, 0.044715
    %v9482 = vmul.f32 %v9418, 0.044715
    %v9483 = vmul.f32 %v9419, 0.044715
    %v9484 = vmul.f32 %v9420, 0.044715
    %v9485 = vmul.f32 %v9421, 0.044715
    %v9486 = vmul.f32 %v9422, 0.044715
    %v9487 = vmul.f32 %v9423, 0.044715
    %v9488 = vmul.f32 %v9424, 0.044715
    %v9489 = vmul.f32 %v9425, 0.044715
    %v9490 = vadd.f32 %v9107, %v9426
    %v9491 = vadd.f32 %v9109, %v9427
    %v9492 = vadd.f32 %v9220, %v9428
    %v9493 = vadd.f32 %v9222, %v9429
    %v9494 = vadd.f32 %v9111, %v9430
    %v9495 = vadd.f32 %v9113, %v9431
    %v9496 = vadd.f32 %v9224, %v9432
    %v9497 = vadd.f32 %v9226, %v9433
    %v9498 = vadd.f32 %v9117, %v9434
    %v9499 = vadd.f32 %v9119, %v9435
    %v9500 = vadd.f32 %v9230, %v9436
    %v9501 = vadd.f32 %v9232, %v9437
    %v9502 = vadd.f32 %v9121, %v9438
    %v9503 = vadd.f32 %v9123, %v9439
    %v9504 = vadd.f32 %v9234, %v9440
    %v9505 = vadd.f32 %v9236, %v9441
    %v9506 = vadd.f32 %v9127, %v9442
    %v9507 = vadd.f32 %v9129, %v9443
    %v9508 = vadd.f32 %v9240, %v9444
    %v9509 = vadd.f32 %v9242, %v9445
    %v9510 = vadd.f32 %v9131, %v9446
    %v9511 = vadd.f32 %v9133, %v9447
    %v9512 = vadd.f32 %v9244, %v9448
    %v9513 = vadd.f32 %v9246, %v9449
    %v9514 = vadd.f32 %v9137, %v9450
    %v9515 = vadd.f32 %v9139, %v9451
    %v9516 = vadd.f32 %v9250, %v9452
    %v9517 = vadd.f32 %v9252, %v9453
    %v9518 = vadd.f32 %v9141, %v9454
    %v9519 = vadd.f32 %v9143, %v9455
    %v9520 = vadd.f32 %v9254, %v9456
    %v9521 = vadd.f32 %v9256, %v9457
    %v9522 = vadd.f32 %v9147, %v9458
    %v9523 = vadd.f32 %v9149, %v9459
    %v9524 = vadd.f32 %v9260, %v9460
    %v9525 = vadd.f32 %v9262, %v9461
    %v9526 = vadd.f32 %v9151, %v9462
    %v9527 = vadd.f32 %v9153, %v9463
    %v9528 = vadd.f32 %v9264, %v9464
    %v9529 = vadd.f32 %v9266, %v9465
    %v9530 = vadd.f32 %v9157, %v9466
    %v9531 = vadd.f32 %v9159, %v9467
    %v9532 = vadd.f32 %v9270, %v9468
    %v9533 = vadd.f32 %v9272, %v9469
    %v9534 = vadd.f32 %v9161, %v9470
    %v9535 = vadd.f32 %v9163, %v9471
    %v9536 = vadd.f32 %v9274, %v9472
    %v9537 = vadd.f32 %v9276, %v9473
    %v9538 = vadd.f32 %v9167, %v9474
    %v9539 = vadd.f32 %v9169, %v9475
    %v9540 = vadd.f32 %v9280, %v9476
    %v9541 = vadd.f32 %v9282, %v9477
    %v9542 = vadd.f32 %v9171, %v9478
    %v9543 = vadd.f32 %v9173, %v9479
    %v9544 = vadd.f32 %v9284, %v9480
    %v9545 = vadd.f32 %v9286, %v9481
    %v9546 = vadd.f32 %v9177, %v9482
    %v9547 = vadd.f32 %v9179, %v9483
    %v9548 = vadd.f32 %v9290, %v9484
    %v9549 = vadd.f32 %v9292, %v9485
    %v9550 = vadd.f32 %v9181, %v9486
    %v9551 = vadd.f32 %v9183, %v9487
    %v9552 = vadd.f32 %v9294, %v9488
    %v9553 = vadd.f32 %v9296, %v9489
    %v9554 = vmul.f32 %v9490, 0.7978846
    %v9555 = vmul.f32 %v9491, 0.7978846
    %v9556 = vmul.f32 %v9492, 0.7978846
    %v9557 = vmul.f32 %v9493, 0.7978846
    %v9558 = vmul.f32 %v9494, 0.7978846
    %v9559 = vmul.f32 %v9495, 0.7978846
    %v9560 = vmul.f32 %v9496, 0.7978846
    %v9561 = vmul.f32 %v9497, 0.7978846
    %v9562 = vmul.f32 %v9498, 0.7978846
    %v9563 = vmul.f32 %v9499, 0.7978846
    %v9564 = vmul.f32 %v9500, 0.7978846
    %v9565 = vmul.f32 %v9501, 0.7978846
    %v9566 = vmul.f32 %v9502, 0.7978846
    %v9567 = vmul.f32 %v9503, 0.7978846
    %v9568 = vmul.f32 %v9504, 0.7978846
    %v9569 = vmul.f32 %v9505, 0.7978846
    %v9570 = vmul.f32 %v9506, 0.7978846
    %v9571 = vmul.f32 %v9507, 0.7978846
    %v9572 = vmul.f32 %v9508, 0.7978846
    %v9573 = vmul.f32 %v9509, 0.7978846
    %v9574 = vmul.f32 %v9510, 0.7978846
    %v9575 = vmul.f32 %v9511, 0.7978846
    %v9576 = vmul.f32 %v9512, 0.7978846
    %v9577 = vmul.f32 %v9513, 0.7978846
    %v9578 = vmul.f32 %v9514, 0.7978846
    %v9579 = vmul.f32 %v9515, 0.7978846
    %v9580 = vmul.f32 %v9516, 0.7978846
    %v9581 = vmul.f32 %v9517, 0.7978846
    %v9582 = vmul.f32 %v9518, 0.7978846
    %v9583 = vmul.f32 %v9519, 0.7978846
    %v9584 = vmul.f32 %v9520, 0.7978846
    %v9585 = vmul.f32 %v9521, 0.7978846
    %v9586 = vmul.f32 %v9522, 0.7978846
    %v9587 = vmul.f32 %v9523, 0.7978846
    %v9588 = vmul.f32 %v9524, 0.7978846
    %v9589 = vmul.f32 %v9525, 0.7978846
    %v9590 = vmul.f32 %v9526, 0.7978846
    %v9591 = vmul.f32 %v9527, 0.7978846
    %v9592 = vmul.f32 %v9528, 0.7978846
    %v9593 = vmul.f32 %v9529, 0.7978846
    %v9594 = vmul.f32 %v9530, 0.7978846
    %v9595 = vmul.f32 %v9531, 0.7978846
    %v9596 = vmul.f32 %v9532, 0.7978846
    %v9597 = vmul.f32 %v9533, 0.7978846
    %v9598 = vmul.f32 %v9534, 0.7978846
    %v9599 = vmul.f32 %v9535, 0.7978846
    %v9600 = vmul.f32 %v9536, 0.7978846
    %v9601 = vmul.f32 %v9537, 0.7978846
    %v9602 = vmul.f32 %v9538, 0.7978846
    %v9603 = vmul.f32 %v9539, 0.7978846
    %v9604 = vmul.f32 %v9540, 0.7978846
    %v9605 = vmul.f32 %v9541, 0.7978846
    %v9606 = vmul.f32 %v9542, 0.7978846
    %v9607 = vmul.f32 %v9543, 0.7978846
    %v9608 = vmul.f32 %v9544, 0.7978846
    %v9609 = vmul.f32 %v9545, 0.7978846
    %v9610 = vmul.f32 %v9546, 0.7978846
    %v9611 = vmul.f32 %v9547, 0.7978846
    %v9612 = vmul.f32 %v9548, 0.7978846
    %v9613 = vmul.f32 %v9549, 0.7978846
    %v9614 = vmul.f32 %v9550, 0.7978846
    %v9615 = vmul.f32 %v9551, 0.7978846
    %v9616 = vmul.f32 %v9552, 0.7978846
    %v9617 = vmul.f32 %v9553, 0.7978846
    %v9618 = vtanh.pop %v9554
    %v9619 = vtanh.pop %v9555
    %v9620 = vtanh.pop %v9556
    %v9621 = vtanh.pop %v9557
    %v9622 = vtanh.pop %v9558
    %v9623 = vtanh.pop %v9559
    %v9624 = vtanh.pop %v9560
    %v9625 = vtanh.pop %v9561
    %v9626 = vtanh.pop %v9562
    %v9627 = vtanh.pop %v9563
    %v9628 = vtanh.pop %v9564
    %v9629 = vtanh.pop %v9565
    %v9630 = vtanh.pop %v9566
    %v9631 = vtanh.pop %v9567
    %v9632 = vtanh.pop %v9568
    %v9633 = vtanh.pop %v9569
    %v9634 = vtanh.pop %v9570
    %v9635 = vtanh.pop %v9571
    %v9636 = vtanh.pop %v9572
    %v9637 = vtanh.pop %v9573
    %v9638 = vtanh.pop %v9574
    %v9639 = vtanh.pop %v9575
    %v9640 = vtanh.pop %v9576
    %v9641 = vtanh.pop %v9577
    %v9642 = vtanh.pop %v9578
    %v9643 = vtanh.pop %v9579
    %v9644 = vtanh.pop %v9580
    %v9645 = vtanh.pop %v9581
    %v9646 = vtanh.pop %v9582
    %v9647 = vtanh.pop %v9583
    %v9648 = vtanh.pop %v9584
    %v9649 = vtanh.pop %v9585
    %v9650 = vtanh.pop %v9586
    %v9651 = vtanh.pop %v9587
    %v9652 = vtanh.pop %v9588
    %v9653 = vtanh.pop %v9589
    %v9654 = vtanh.pop %v9590
    %v9655 = vtanh.pop %v9591
    %v9656 = vtanh.pop %v9592
    %v9657 = vtanh.pop %v9593
    %v9658 = vtanh.pop %v9594
    %v9659 = vtanh.pop %v9595
    %v9660 = vtanh.pop %v9596
    %v9661 = vtanh.pop %v9597
    %v9662 = vtanh.pop %v9598
    %v9663 = vtanh.pop %v9599
    %v9664 = vtanh.pop %v9600
    %v9665 = vtanh.pop %v9601
    %v9666 = vtanh.pop %v9602
    %v9667 = vtanh.pop %v9603
    %v9668 = vtanh.pop %v9604
    %v9669 = vtanh.pop %v9605
    %v9670 = vtanh.pop %v9606
    %v9671 = vtanh.pop %v9607
    %v9672 = vtanh.pop %v9608
    %v9673 = vtanh.pop %v9609
    %v9674 = vtanh.pop %v9610
    %v9675 = vtanh.pop %v9611
    %v9676 = vtanh.pop %v9612
    %v9677 = vtanh.pop %v9613
    %v9678 = vtanh.pop %v9614
    %v9679 = vtanh.pop %v9615
    %v9680 = vtanh.pop %v9616
    %v9681 = vtanh.pop %v9617
    %v9682 = vadd.f32 %v9618, 1.0
    %v9683 = vadd.f32 %v9619, 1.0
    %v9684 = vadd.f32 %v9620, 1.0
    %v9685 = vadd.f32 %v9621, 1.0
    %v9686 = vadd.f32 %v9622, 1.0
    %v9687 = vadd.f32 %v9623, 1.0
    %v9688 = vadd.f32 %v9624, 1.0
    %v9689 = vadd.f32 %v9625, 1.0
    %v9690 = vadd.f32 %v9626, 1.0
    %v9691 = vadd.f32 %v9627, 1.0
    %v9692 = vadd.f32 %v9628, 1.0
    %v9693 = vadd.f32 %v9629, 1.0
    %v9694 = vadd.f32 %v9630, 1.0
    %v9695 = vadd.f32 %v9631, 1.0
    %v9696 = vadd.f32 %v9632, 1.0
    %v9697 = vadd.f32 %v9633, 1.0
    %v9698 = vadd.f32 %v9634, 1.0
    %v9699 = vadd.f32 %v9635, 1.0
    %v9700 = vadd.f32 %v9636, 1.0
    %v9701 = vadd.f32 %v9637, 1.0
    %v9702 = vadd.f32 %v9638, 1.0
    %v9703 = vadd.f32 %v9639, 1.0
    %v9704 = vadd.f32 %v9640, 1.0
    %v9705 = vadd.f32 %v9641, 1.0
    %v9706 = vadd.f32 %v9642, 1.0
    %v9707 = vadd.f32 %v9643, 1.0
    %v9708 = vadd.f32 %v9644, 1.0
    %v9709 = vadd.f32 %v9645, 1.0
    %v9710 = vadd.f32 %v9646, 1.0
    %v9711 = vadd.f32 %v9647, 1.0
    %v9712 = vadd.f32 %v9648, 1.0
    %v9713 = vadd.f32 %v9649, 1.0
    %v9714 = vadd.f32 %v9650, 1.0
    %v9715 = vadd.f32 %v9651, 1.0
    %v9716 = vadd.f32 %v9652, 1.0
    %v9717 = vadd.f32 %v9653, 1.0
    %v9718 = vadd.f32 %v9654, 1.0
    %v9719 = vadd.f32 %v9655, 1.0
    %v9720 = vadd.f32 %v9656, 1.0
    %v9721 = vadd.f32 %v9657, 1.0
    %v9722 = vadd.f32 %v9658, 1.0
    %v9723 = vadd.f32 %v9659, 1.0
    %v9724 = vadd.f32 %v9660, 1.0
    %v9725 = vadd.f32 %v9661, 1.0
    %v9726 = vadd.f32 %v9662, 1.0
    %v9727 = vadd.f32 %v9663, 1.0
    %v9728 = vadd.f32 %v9664, 1.0
    %v9729 = vadd.f32 %v9665, 1.0
    %v9730 = vadd.f32 %v9666, 1.0
    %v9731 = vadd.f32 %v9667, 1.0
    %v9732 = vadd.f32 %v9668, 1.0
    %v9733 = vadd.f32 %v9669, 1.0
    %v9734 = vadd.f32 %v9670, 1.0
    %v9735 = vadd.f32 %v9671, 1.0
    %v9736 = vadd.f32 %v9672, 1.0
    %v9737 = vadd.f32 %v9673, 1.0
    %v9738 = vadd.f32 %v9674, 1.0
    %v9739 = vadd.f32 %v9675, 1.0
    %v9740 = vadd.f32 %v9676, 1.0
    %v9741 = vadd.f32 %v9677, 1.0
    %v9742 = vadd.f32 %v9678, 1.0
    %v9743 = vadd.f32 %v9679, 1.0
    %v9744 = vadd.f32 %v9680, 1.0
    %v9745 = vadd.f32 %v9681, 1.0
    %v9746 = vmul.f32 %v9682, 0.5
    %v9747 = vmul.f32 %v9683, 0.5
    %v9748 = vmul.f32 %v9684, 0.5
    %v9749 = vmul.f32 %v9685, 0.5
    %v9750 = vmul.f32 %v9686, 0.5
    %v9751 = vmul.f32 %v9687, 0.5
    %v9752 = vmul.f32 %v9688, 0.5
    %v9753 = vmul.f32 %v9689, 0.5
    %v9754 = vmul.f32 %v9690, 0.5
    %v9755 = vmul.f32 %v9691, 0.5
    %v9756 = vmul.f32 %v9692, 0.5
    %v9757 = vmul.f32 %v9693, 0.5
    %v9758 = vmul.f32 %v9694, 0.5
    %v9759 = vmul.f32 %v9695, 0.5
    %v9760 = vmul.f32 %v9696, 0.5
    %v9761 = vmul.f32 %v9697, 0.5
    %v9762 = vmul.f32 %v9698, 0.5
    %v9763 = vmul.f32 %v9699, 0.5
    %v9764 = vmul.f32 %v9700, 0.5
    %v9765 = vmul.f32 %v9701, 0.5
    %v9766 = vmul.f32 %v9702, 0.5
    %v9767 = vmul.f32 %v9703, 0.5
    %v9768 = vmul.f32 %v9704, 0.5
    %v9769 = vmul.f32 %v9705, 0.5
    %v9770 = vmul.f32 %v9706, 0.5
    %v9771 = vmul.f32 %v9707, 0.5
    %v9772 = vmul.f32 %v9708, 0.5
    %v9773 = vmul.f32 %v9709, 0.5
    %v9774 = vmul.f32 %v9710, 0.5
    %v9775 = vmul.f32 %v9711, 0.5
    %v9776 = vmul.f32 %v9712, 0.5
    %v9777 = vmul.f32 %v9713, 0.5
    %v9778 = vmul.f32 %v9714, 0.5
    %v9779 = vmul.f32 %v9715, 0.5
    %v9780 = vmul.f32 %v9716, 0.5
    %v9781 = vmul.f32 %v9717, 0.5
    %v9782 = vmul.f32 %v9718, 0.5
    %v9783 = vmul.f32 %v9719, 0.5
    %v9784 = vmul.f32 %v9720, 0.5
    %v9785 = vmul.f32 %v9721, 0.5
    %v9786 = vmul.f32 %v9722, 0.5
    %v9787 = vmul.f32 %v9723, 0.5
    %v9788 = vmul.f32 %v9724, 0.5
    %v9789 = vmul.f32 %v9725, 0.5
    %v9790 = vmul.f32 %v9726, 0.5
    %v9791 = vmul.f32 %v9727, 0.5
    %v9792 = vmul.f32 %v9728, 0.5
    %v9793 = vmul.f32 %v9729, 0.5
    %v9794 = vmul.f32 %v9730, 0.5
    %v9795 = vmul.f32 %v9731, 0.5
    %v9796 = vmul.f32 %v9732, 0.5
    %v9797 = vmul.f32 %v9733, 0.5
    %v9798 = vmul.f32 %v9734, 0.5
    %v9799 = vmul.f32 %v9735, 0.5
    %v9800 = vmul.f32 %v9736, 0.5
    %v9801 = vmul.f32 %v9737, 0.5
    %v9802 = vmul.f32 %v9738, 0.5
    %v9803 = vmul.f32 %v9739, 0.5
    %v9804 = vmul.f32 %v9740, 0.5
    %v9805 = vmul.f32 %v9741, 0.5
    %v9806 = vmul.f32 %v9742, 0.5
    %v9807 = vmul.f32 %v9743, 0.5
    %v9808 = vmul.f32 %v9744, 0.5
    %v9809 = vmul.f32 %v9745, 0.5
    %v9810 = vmul.f32 %v9107, %v9746
    %v9811 = vmul.f32 %v9109, %v9747
    %v9812 = vmul.f32 %v9220, %v9748
    %v9813 = vmul.f32 %v9222, %v9749
    %v9814 = vmul.f32 %v9111, %v9750
    %v9815 = vmul.f32 %v9113, %v9751
    %v9816 = vmul.f32 %v9224, %v9752
    %v9817 = vmul.f32 %v9226, %v9753
    %v9818 = vmul.f32 %v9117, %v9754
    %v9819 = vmul.f32 %v9119, %v9755
    %v9820 = vmul.f32 %v9230, %v9756
    %v9821 = vmul.f32 %v9232, %v9757
    %v9822 = vmul.f32 %v9121, %v9758
    %v9823 = vmul.f32 %v9123, %v9759
    %v9824 = vmul.f32 %v9234, %v9760
    %v9825 = vmul.f32 %v9236, %v9761
    %v9826 = vmul.f32 %v9127, %v9762
    %v9827 = vmul.f32 %v9129, %v9763
    %v9828 = vmul.f32 %v9240, %v9764
    %v9829 = vmul.f32 %v9242, %v9765
    %v9830 = vmul.f32 %v9131, %v9766
    %v9831 = vmul.f32 %v9133, %v9767
    %v9832 = vmul.f32 %v9244, %v9768
    %v9833 = vmul.f32 %v9246, %v9769
    %v9834 = vmul.f32 %v9137, %v9770
    %v9835 = vmul.f32 %v9139, %v9771
    %v9836 = vmul.f32 %v9250, %v9772
    %v9837 = vmul.f32 %v9252, %v9773
    %v9838 = vmul.f32 %v9141, %v9774
    %v9839 = vmul.f32 %v9143, %v9775
    %v9840 = vmul.f32 %v9254, %v9776
    %v9841 = vmul.f32 %v9256, %v9777
    %v9842 = vmul.f32 %v9147, %v9778
    %v9843 = vmul.f32 %v9149, %v9779
    %v9844 = vmul.f32 %v9260, %v9780
    %v9845 = vmul.f32 %v9262, %v9781
    %v9846 = vmul.f32 %v9151, %v9782
    %v9847 = vmul.f32 %v9153, %v9783
    %v9848 = vmul.f32 %v9264, %v9784
    %v9849 = vmul.f32 %v9266, %v9785
    %v9850 = vmul.f32 %v9157, %v9786
    %v9851 = vmul.f32 %v9159, %v9787
    %v9852 = vmul.f32 %v9270, %v9788
    %v9853 = vmul.f32 %v9272, %v9789
    %v9854 = vmul.f32 %v9161, %v9790
    %v9855 = vmul.f32 %v9163, %v9791
    %v9856 = vmul.f32 %v9274, %v9792
    %v9857 = vmul.f32 %v9276, %v9793
    %v9858 = vmul.f32 %v9167, %v9794
    %v9859 = vmul.f32 %v9169, %v9795
    %v9860 = vmul.f32 %v9280, %v9796
    %v9861 = vmul.f32 %v9282, %v9797
    %v9862 = vmul.f32 %v9171, %v9798
    %v9863 = vmul.f32 %v9173, %v9799
    %v9864 = vmul.f32 %v9284, %v9800
    %v9865 = vmul.f32 %v9286, %v9801
    %v9866 = vmul.f32 %v9177, %v9802
    %v9867 = vmul.f32 %v9179, %v9803
    %v9868 = vmul.f32 %v9290, %v9804
    %v9869 = vmul.f32 %v9292, %v9805
    %v9870 = vmul.f32 %v9181, %v9806
    %v9871 = vmul.f32 %v9183, %v9807
    %v9872 = vmul.f32 %v9294, %v9808
    %v9873 = vmul.f32 %v9296, %v9809
    %v9874 = vpack.c.bf16 %v9814, %v9810
    %v9875 = vpack.c.bf16 %v9815, %v9811
    %v9876 = vpack.c.bf16 %v9816, %v9812
    %v9877 = vpack.c.bf16 %v9817, %v9813
    %v9878 = vpack.c.bf16 %v9822, %v9818
    %v9879 = vpack.c.bf16 %v9823, %v9819
    %v9880 = vpack.c.bf16 %v9824, %v9820
    %v9881 = vpack.c.bf16 %v9825, %v9821
    %v9882 = vpack.c.bf16 %v9830, %v9826
    %v9883 = vpack.c.bf16 %v9831, %v9827
    %v9884 = vpack.c.bf16 %v9832, %v9828
    %v9885 = vpack.c.bf16 %v9833, %v9829
    %v9886 = vpack.c.bf16 %v9838, %v9834
    %v9887 = vpack.c.bf16 %v9839, %v9835
    %v9888 = vpack.c.bf16 %v9840, %v9836
    %v9889 = vpack.c.bf16 %v9841, %v9837
    %v9890 = vpack.c.bf16 %v9846, %v9842
    %v9891 = vpack.c.bf16 %v9847, %v9843
    %v9892 = vpack.c.bf16 %v9848, %v9844
    %v9893 = vpack.c.bf16 %v9849, %v9845
    %v9894 = vpack.c.bf16 %v9854, %v9850
    %v9895 = vpack.c.bf16 %v9855, %v9851
    %v9896 = vpack.c.bf16 %v9856, %v9852
    %v9897 = vpack.c.bf16 %v9857, %v9853
    %v9898 = vpack.c.bf16 %v9862, %v9858
    %v9899 = vpack.c.bf16 %v9863, %v9859
    %v9900 = vpack.c.bf16 %v9864, %v9860
    %v9901 = vpack.c.bf16 %v9865, %v9861
    %v9902 = vpack.c.bf16 %v9870, %v9866
    %v9903 = vpack.c.bf16 %v9871, %v9867
    %v9904 = vpack.c.bf16 %v9872, %v9868
    %v9905 = vpack.c.bf16 %v9873, %v9869
    %s9906 = scalar_lea.vmem %s14, 256
    %v9907 = vld [vmem:[%s9906] sm:$0xf]
    %v9908 = vld [vmem:[%s9906 + $0x4] sm:$0xf]
    %v9909 = vld [vmem:[%s9906 + $0x8] sm:$0xf]
    %v9910 = vld [vmem:[%s9906 + $0xc] sm:$0xf]
    %v9911 = vld [vmem:[%s9906 + $0x10] sm:$0xf]
    %v9912 = vld [vmem:[%s9906 + $0x14] sm:$0xf]
    %v9913 = vld [vmem:[%s9906 + $0x18] sm:$0xf]
    %v9914 = vld [vmem:[%s9906 + $0x1c] sm:$0xf]
    %v9915 = vld [vmem:[%s9906 + $0x20] sm:$0xf]
    %v9916 = vld [vmem:[%s9906 + $0x24] sm:$0xf]
    %v9917 = vld [vmem:[%s9906 + $0x28] sm:$0xf]
    %v9918 = vld [vmem:[%s9906 + $0x2c] sm:$0xf]
    %v9919 = vld [vmem:[%s9906 + $0x30] sm:$0xf]
    %v9920 = vld [vmem:[%s9906 + $0x34] sm:$0xf]
    %v9921 = vld [vmem:[%s9906 + $0x38] sm:$0xf]
    %v9922 = vld [vmem:[%s9906 + $0x3c] sm:$0xf]
    %v9923 = vld [vmem:[%s9906 + $0x40] sm:$0xf]
    %v9924 = vld [vmem:[%s9906 + $0x44] sm:$0xf]
    %v9925 = vld [vmem:[%s9906 + $0x48] sm:$0xf]
    %v9926 = vld [vmem:[%s9906 + $0x4c] sm:$0xf]
    %v9927 = vld [vmem:[%s9906 + $0x50] sm:$0xf]
    %v9928 = vld [vmem:[%s9906 + $0x54] sm:$0xf]
    %v9929 = vld [vmem:[%s9906 + $0x58] sm:$0xf]
    %v9930 = vld [vmem:[%s9906 + $0x5c] sm:$0xf]
    %v9931 = vld [vmem:[%s9906 + $0x60] sm:$0xf]
    %v9932 = vld [vmem:[%s9906 + $0x64] sm:$0xf]
    %v9933 = vld [vmem:[%s9906 + $0x68] sm:$0xf]
    %v9934 = vld [vmem:[%s9906 + $0x6c] sm:$0xf]
    %v9935 = vld [vmem:[%s9906 + $0x70] sm:$0xf]
    %v9936 = vld [vmem:[%s9906 + $0x74] sm:$0xf]
    %v9937 = vld [vmem:[%s9906 + $0x78] sm:$0xf]
    %v9938 = vld [vmem:[%s9906 + $0x7c] sm:$0xf]
    %v9939 = vld [vmem:[%s9906 + $0x80] sm:$0xf]
    %v9940 = vld [vmem:[%s9906 + $0x84] sm:$0xf]
    %v9941 = vld [vmem:[%s9906 + $0x88] sm:$0xf]
    %v9942 = vld [vmem:[%s9906 + $0x8c] sm:$0xf]
    %v9943 = vld [vmem:[%s9906 + $0x90] sm:$0xf]
    %v9944 = vld [vmem:[%s9906 + $0x94] sm:$0xf]
    %v9945 = vld [vmem:[%s9906 + $0x98] sm:$0xf]
    %v9946 = vld [vmem:[%s9906 + $0x9c] sm:$0xf]
    %v9947 = vld [vmem:[%s9906 + $0xa0] sm:$0xf]
    %v9948 = vld [vmem:[%s9906 + $0xa4] sm:$0xf]
    %v9949 = vld [vmem:[%s9906 + $0xa8] sm:$0xf]
    %v9950 = vld [vmem:[%s9906 + $0xac] sm:$0xf]
    %v9951 = vld [vmem:[%s9906 + $0xb0] sm:$0xf]
    %v9952 = vld [vmem:[%s9906 + $0xb4] sm:$0xf]
    %v9953 = vld [vmem:[%s9906 + $0xb8] sm:$0xf]
    %v9954 = vld [vmem:[%s9906 + $0xbc] sm:$0xf]
    %v9955 = vld [vmem:[%s9906 + $0xc0] sm:$0xf]
    %v9956 = vld [vmem:[%s9906 + $0xc4] sm:$0xf]
    %v9957 = vld [vmem:[%s9906 + $0xc8] sm:$0xf]
    %v9958 = vld [vmem:[%s9906 + $0xcc] sm:$0xf]
    %v9959 = vld [vmem:[%s9906 + $0xd0] sm:$0xf]
    %v9960 = vld [vmem:[%s9906 + $0xd4] sm:$0xf]
    %v9961 = vld [vmem:[%s9906 + $0xd8] sm:$0xf]
    %v9962 = vld [vmem:[%s9906 + $0xdc] sm:$0xf]
    %v9963 = vld [vmem:[%s9906 + $0xe0] sm:$0xf]
    %v9964 = vld [vmem:[%s9906 + $0xe4] sm:$0xf]
    %v9965 = vld [vmem:[%s9906 + $0xe8] sm:$0xf]
    %v9966 = vld [vmem:[%s9906 + $0xec] sm:$0xf]
    %v9967 = vld [vmem:[%s9906 + $0xf0] sm:$0xf]
    %v9968 = vld [vmem:[%s9906 + $0xf4] sm:$0xf]
    %v9969 = vld [vmem:[%s9906 + $0xf8] sm:$0xf]
    %v9970 = vld [vmem:[%s9906 + $0xfc] sm:$0xf]
    %s9971 = scalar_lea.vmem [#allocation13], 1
    %v9972 = vld [vmem:[%s9971] sm:$0x1]
    %v9974 = vlaneseq
    %v9975 = vshrl.u32 %v9974, 7
    %v9976 = vsub.s32 0, %v9975
    %v9977 = vrot.slane %v9972, %v9976
    %v10043 = vunpack.c.l.b16 %v9907
    %v10044 = vunpack.c.l.b16 %v9908
    %v10045 = vunpack.c.l.b16 %v9909
    %v10046 = vunpack.c.l.b16 %v9910
    %v10047 = vunpack.c.l.b16 %v9911
    %v10048 = vunpack.c.l.b16 %v9912
    %v10049 = vunpack.c.l.b16 %v9913
    %v10050 = vunpack.c.l.b16 %v9914
    %v10051 = vunpack.c.l.b16 %v9915
    %v10052 = vunpack.c.l.b16 %v9916
    %v10053 = vunpack.c.l.b16 %v9917
    %v10054 = vunpack.c.l.b16 %v9918
    %v10055 = vunpack.c.l.b16 %v9919
    %v10056 = vunpack.c.l.b16 %v9920
    %v10057 = vunpack.c.l.b16 %v9921
    %v10058 = vunpack.c.l.b16 %v9922
    %v10059 = vunpack.c.l.b16 %v9923
    %v10060 = vunpack.c.l.b16 %v9924
    %v10061 = vunpack.c.l.b16 %v9925
    %v10062 = vunpack.c.l.b16 %v9926
    %v10063 = vunpack.c.l.b16 %v9927
    %v10064 = vunpack.c.l.b16 %v9928
    %v10065 = vunpack.c.l.b16 %v9929
    %v10066 = vunpack.c.l.b16 %v9930
    %v10067 = vunpack.c.l.b16 %v9931
    %v10068 = vunpack.c.l.b16 %v9932
    %v10069 = vunpack.c.l.b16 %v9933
    %v10070 = vunpack.c.l.b16 %v9934
    %v10071 = vunpack.c.l.b16 %v9935
    %v10072 = vunpack.c.l.b16 %v9936
    %v10073 = vunpack.c.l.b16 %v9937
    %v10074 = vunpack.c.l.b16 %v9938
    %v10075 = vunpack.c.l.b16 %v9939
    %v10076 = vunpack.c.l.b16 %v9940
    %v10077 = vunpack.c.l.b16 %v9941
    %v10078 = vunpack.c.l.b16 %v9942
    %v10079 = vunpack.c.l.b16 %v9943
    %v10080 = vunpack.c.l.b16 %v9944
    %v10081 = vunpack.c.l.b16 %v9945
    %v10082 = vunpack.c.l.b16 %v9946
    %v10083 = vunpack.c.l.b16 %v9947
    %v10084 = vunpack.c.l.b16 %v9948
    %v10085 = vunpack.c.l.b16 %v9949
    %v10086 = vunpack.c.l.b16 %v9950
    %v10087 = vunpack.c.l.b16 %v9951
    %v10088 = vunpack.c.l.b16 %v9952
    %v10089 = vunpack.c.l.b16 %v9953
    %v10090 = vunpack.c.l.b16 %v9954
    %v10091 = vunpack.c.l.b16 %v9955
    %v10092 = vunpack.c.l.b16 %v9956
    %v10093 = vunpack.c.l.b16 %v9957
    %v10094 = vunpack.c.l.b16 %v9958
    %v10095 = vunpack.c.l.b16 %v9959
    %v10096 = vunpack.c.l.b16 %v9960
    %v10097 = vunpack.c.l.b16 %v9961
    %v10098 = vunpack.c.l.b16 %v9962
    %v10099 = vunpack.c.l.b16 %v9963
    %v10100 = vunpack.c.l.b16 %v9964
    %v10101 = vunpack.c.l.b16 %v9965
    %v10102 = vunpack.c.l.b16 %v9966
    %v10103 = vunpack.c.l.b16 %v9967
    %v10104 = vunpack.c.l.b16 %v9968
    %v10105 = vunpack.c.l.b16 %v9969
    %v10106 = vunpack.c.l.b16 %v9970
    %v10107 = vpack.c.b16 %v10044, %v10043
    %v10108 = vpack.c.b16 %v10046, %v10045
    %v10109 = vpack.c.b16 %v10048, %v10047
    %v10110 = vpack.c.b16 %v10050, %v10049
    %v10111 = vpack.c.b16 %v10052, %v10051
    %v10112 = vpack.c.b16 %v10054, %v10053
    %v10113 = vpack.c.b16 %v10056, %v10055
    %v10114 = vpack.c.b16 %v10058, %v10057
    %v10115 = vpack.c.b16 %v10060, %v10059
    %v10116 = vpack.c.b16 %v10062, %v10061
    %v10117 = vpack.c.b16 %v10064, %v10063
    %v10118 = vpack.c.b16 %v10066, %v10065
    %v10119 = vpack.c.b16 %v10068, %v10067
    %v10120 = vpack.c.b16 %v10070, %v10069
    %v10121 = vpack.c.b16 %v10072, %v10071
    %v10122 = vpack.c.b16 %v10074, %v10073
    %v10123 = vpack.c.b16 %v10076, %v10075
    %v10124 = vpack.c.b16 %v10078, %v10077
    %v10125 = vpack.c.b16 %v10080, %v10079
    %v10126 = vpack.c.b16 %v10082, %v10081
    %v10127 = vpack.c.b16 %v10084, %v10083
    %v10128 = vpack.c.b16 %v10086, %v10085
    %v10129 = vpack.c.b16 %v10088, %v10087
    %v10130 = vpack.c.b16 %v10090, %v10089
    %v10131 = vpack.c.b16 %v10092, %v10091
    %v10132 = vpack.c.b16 %v10094, %v10093
    %v10133 = vpack.c.b16 %v10096, %v10095
    %v10134 = vpack.c.b16 %v10098, %v10097
    %v10135 = vpack.c.b16 %v10100, %v10099
    %v10136 = vpack.c.b16 %v10102, %v10101
    %v10137 = vpack.c.b16 %v10104, %v10103
    %v10138 = vpack.c.b16 %v10106, %v10105
    %10171 = vmatprep.subr.bf16.mxu0 0
    %10172 = vmatpush1.bf16.msra.mxu0 %v10107
    %10173 = vmatprep.subr.bf16.mxu0 0
    %10174 = vmatpush1.bf16.msra.mxu0 %v10108
    %10175 = vmatprep.subr.bf16.mxu0 0
    %10176 = vmatpush1.bf16.msra.mxu0 %v10109
    %10177 = vmatprep.subr.bf16.mxu0 0
    %10178 = vmatpush1.bf16.msra.mxu0 %v10110
    %10179 = vmatprep.subr.bf16.mxu0 0
    %10180 = vmatpush1.bf16.msra.mxu0 %v10111
    %10181 = vmatprep.subr.bf16.mxu0 0
    %10182 = vmatpush1.bf16.msra.mxu0 %v10112
    %10183 = vmatprep.subr.bf16.mxu0 0
    %10184 = vmatpush1.bf16.msra.mxu0 %v10113
    %10185 = vmatprep.subr.bf16.mxu0 0
    %10186 = vmatpush1.bf16.msra.mxu0 %v10114
    %10187 = vmatprep.subr.bf16.mxu0 0
    %10188 = vmatpush1.bf16.msra.mxu0 %v10115
    %10189 = vmatprep.subr.bf16.mxu0 0
    %10190 = vmatpush1.bf16.msra.mxu0 %v10116
    %10191 = vmatprep.subr.bf16.mxu0 0
    %10192 = vmatpush1.bf16.msra.mxu0 %v10117
    %10193 = vmatprep.subr.bf16.mxu0 0
    %10194 = vmatpush1.bf16.msra.mxu0 %v10118
    %10195 = vmatprep.subr.bf16.mxu0 0
    %10196 = vmatpush1.bf16.msra.mxu0 %v10119
    %10197 = vmatprep.subr.bf16.mxu0 0
    %10198 = vmatpush1.bf16.msra.mxu0 %v10120
    %10199 = vmatprep.subr.bf16.mxu0 0
    %10200 = vmatpush1.bf16.msra.mxu0 %v10121
    %10201 = vmatprep.subr.bf16.mxu0 0
    %10202 = vmatpush1.bf16.msra.mxu0 %v10122
    %10203 = vmatprep.mubr.bf16.mxu0 %v9875
    %10204 = vmatmul.mubr.bf16.gmra.mrb[0].mxu0 %v9874
    %v10205 = vpop.f32.mrb[0].mxu0
    %v10206 = vadd.f32 %v9977, %v10205
    %v10207 = vpop.f32.mrb[0].mxu0
    %v10208 = vpop.f32.mrb[0].mxu0
    %v10209 = vadd.f32 %v9977, %v10208
    %v10210 = vpop.f32.mrb[0].mxu0
    %10211 = vmatprep.mubr.bf16.mxu0 %v9879
    %10212 = vmatmul.mubr.bf16.gmra.mrb[0].mxu0 %v9878
    %v10213 = vpop.f32.mrb[0].mxu0
    %v10214 = vadd.f32 %v9977, %v10213
    %v10215 = vpop.f32.mrb[0].mxu0
    %v10216 = vpop.f32.mrb[0].mxu0
    %v10217 = vadd.f32 %v9977, %v10216
    %v10218 = vpop.f32.mrb[0].mxu0
    %10219 = vmatprep.mubr.bf16.mxu0 %v9883
    %10220 = vmatmul.mubr.bf16.gmra.mrb[0].mxu0 %v9882
    %v10221 = vpop.f32.mrb[0].mxu0
    %v10222 = vadd.f32 %v9977, %v10221
    %v10223 = vpop.f32.mrb[0].mxu0
    %v10224 = vpop.f32.mrb[0].mxu0
    %v10225 = vadd.f32 %v9977, %v10224
    %v10226 = vpop.f32.mrb[0].mxu0
    %10227 = vmatprep.mubr.bf16.mxu0 %v9887
    %10228 = vmatmul.mubr.bf16.gmra.mrb[0].mxu0 %v9886
    %v10229 = vpop.f32.mrb[0].mxu0
    %v10230 = vadd.f32 %v9977, %v10229
    %v10231 = vpop.f32.mrb[0].mxu0
    %v10232 = vpop.f32.mrb[0].mxu0
    %v10233 = vadd.f32 %v9977, %v10232
    %v10234 = vpop.f32.mrb[0].mxu0
    %10235 = vmatprep.mubr.bf16.mxu0 %v9891
    %10236 = vmatmul.mubr.bf16.gmra.mrb[0].mxu0 %v9890
    %v10237 = vpop.f32.mrb[0].mxu0
    %v10238 = vadd.f32 %v9977, %v10237
    %v10239 = vpop.f32.mrb[0].mxu0
    %v10240 = vpop.f32.mrb[0].mxu0
    %v10241 = vadd.f32 %v9977, %v10240
    %v10242 = vpop.f32.mrb[0].mxu0
    %10243 = vmatprep.mubr.bf16.mxu0 %v9895
    %10244 = vmatmul.mubr.bf16.gmra.mrb[0].mxu0 %v9894
    %v10245 = vpop.f32.mrb[0].mxu0
    %v10246 = vadd.f32 %v9977, %v10245
    %v10247 = vpop.f32.mrb[0].mxu0
    %v10248 = vpop.f32.mrb[0].mxu0
    %v10249 = vadd.f32 %v9977, %v10248
    %v10250 = vpop.f32.mrb[0].mxu0
    %10251 = vmatprep.mubr.bf16.mxu0 %v9899
    %10252 = vmatmul.mubr.bf16.gmra.mrb[0].mxu0 %v9898
    %v10253 = vpop.f32.mrb[0].mxu0
    %v10254 = vadd.f32 %v9977, %v10253
    %v10255 = vpop.f32.mrb[0].mxu0
    %v10256 = vpop.f32.mrb[0].mxu0
    %v10257 = vadd.f32 %v9977, %v10256
    %v10258 = vpop.f32.mrb[0].mxu0
    %10259 = vmatprep.mubr.bf16.mxu0 %v9903
    %10260 = vmatmul.mubr.bf16.gmra.mrb[0].mxu0 %v9902
    %v10261 = vpop.f32.mrb[0].mxu0
    %v10262 = vadd.f32 %v9977, %v10261
    %v10263 = vpop.f32.mrb[0].mxu0
    %v10264 = vpop.f32.mrb[0].mxu0
    %v10265 = vadd.f32 %v9977, %v10264
    %v10266 = vpop.f32.mrb[0].mxu0
    %10267 = vdwg.mxu0
    %10268 = vmatprep.subr.bf16.mxu0 0
    %10269 = vmatpush1.bf16.msra.mxu0 %v10123
    %10270 = vmatprep.subr.bf16.mxu0 0
    %10271 = vmatpush1.bf16.msra.mxu0 %v10124
    %10272 = vmatprep.subr.bf16.mxu0 0
    %10273 = vmatpush1.bf16.msra.mxu0 %v10125
    %10274 = vmatprep.subr.bf16.mxu0 0
    %10275 = vmatpush1.bf16.msra.mxu0 %v10126
    %10276 = vmatprep.subr.bf16.mxu0 0
    %10277 = vmatpush1.bf16.msra.mxu0 %v10127
    %10278 = vmatprep.subr.bf16.mxu0 0
    %10279 = vmatpush1.bf16.msra.mxu0 %v10128
    %10280 = vmatprep.subr.bf16.mxu0 0
    %10281 = vmatpush1.bf16.msra.mxu0 %v10129
    %10282 = vmatprep.subr.bf16.mxu0 0
    %10283 = vmatpush1.bf16.msra.mxu0 %v10130
    %10284 = vmatprep.subr.bf16.mxu0 0
    %10285 = vmatpush1.bf16.msra.mxu0 %v10131
    %10286 = vmatprep.subr.bf16.mxu0 0
    %10287 = vmatpush1.bf16.msra.mxu0 %v10132
    %10288 = vmatprep.subr.bf16.mxu0 0
    %10289 = vmatpush1.bf16.msra.mxu0 %v10133
    %10290 = vmatprep.subr.bf16.mxu0 0
    %10291 = vmatpush1.bf16.msra.mxu0 %v10134
    %10292 = vmatprep.subr.bf16.mxu0 0
    %10293 = vmatpush1.bf16.msra.mxu0 %v10135
    %10294 = vmatprep.subr.bf16.mxu0 0
    %10295 = vmatpush1.bf16.msra.mxu0 %v10136
    %10296 = vmatprep.subr.bf16.mxu0 0
    %10297 = vmatpush1.bf16.msra.mxu0 %v10137
    %10298 = vmatprep.subr.bf16.mxu0 0
    %10299 = vmatpush1.bf16.msra.mxu0 %v10138
    %10300 = vmatprep.mubr.bf16.mxu0 %v9877
    %10301 = vmatmul.mubr.bf16.gmra.mrb[0].mxu0 %v9876
    %v10302 = vpop.f32.mrb[0].mxu0
    %v10303 = vadd.f32 %v10206, %v10302
    %v10304 = vpop.f32.mrb[0].mxu0
    %v10305 = vpop.f32.mrb[0].mxu0
    %v10306 = vadd.f32 %v10209, %v10305
    %v10307 = vpop.f32.mrb[0].mxu0
    %10308 = vmatprep.mubr.bf16.mxu0 %v9881
    %10309 = vmatmul.mubr.bf16.gmra.mrb[0].mxu0 %v9880
    %v10310 = vpop.f32.mrb[0].mxu0
    %v10311 = vadd.f32 %v10214, %v10310
    %v10312 = vpop.f32.mrb[0].mxu0
    %v10313 = vpop.f32.mrb[0].mxu0
    %v10314 = vadd.f32 %v10217, %v10313
    %v10315 = vpop.f32.mrb[0].mxu0
    %10316 = vmatprep.mubr.bf16.mxu0 %v9885
    %10317 = vmatmul.mubr.bf16.gmra.mrb[0].mxu0 %v9884
    %v10318 = vpop.f32.mrb[0].mxu0
    %v10319 = vadd.f32 %v10222, %v10318
    %v10320 = vpop.f32.mrb[0].mxu0
    %v10321 = vpop.f32.mrb[0].mxu0
    %v10322 = vadd.f32 %v10225, %v10321
    %v10323 = vpop.f32.mrb[0].mxu0
    %10324 = vmatprep.mubr.bf16.mxu0 %v9889
    %10325 = vmatmul.mubr.bf16.gmra.mrb[0].mxu0 %v9888
    %v10326 = vpop.f32.mrb[0].mxu0
    %v10327 = vadd.f32 %v10230, %v10326
    %v10328 = vpop.f32.mrb[0].mxu0
    %v10329 = vpop.f32.mrb[0].mxu0
    %v10330 = vadd.f32 %v10233, %v10329
    %v10331 = vpop.f32.mrb[0].mxu0
    %10332 = vmatprep.mubr.bf16.mxu0 %v9893
    %10333 = vmatmul.mubr.bf16.gmra.mrb[0].mxu0 %v9892
    %v10334 = vpop.f32.mrb[0].mxu0
    %v10335 = vadd.f32 %v10238, %v10334
    %v10336 = vpop.f32.mrb[0].mxu0
    %v10337 = vpop.f32.mrb[0].mxu0
    %v10338 = vadd.f32 %v10241, %v10337
    %v10339 = vpop.f32.mrb[0].mxu0
    %10340 = vmatprep.mubr.bf16.mxu0 %v9897
    %10341 = vmatmul.mubr.bf16.gmra.mrb[0].mxu0 %v9896
    %v10342 = vpop.f32.mrb[0].mxu0
    %v10343 = vadd.f32 %v10246, %v10342
    %v10344 = vpop.f32.mrb[0].mxu0
    %v10345 = vpop.f32.mrb[0].mxu0
    %v10346 = vadd.f32 %v10249, %v10345
    %v10347 = vpop.f32.mrb[0].mxu0
    %10348 = vmatprep.mubr.bf16.mxu0 %v9901
    %10349 = vmatmul.mubr.bf16.gmra.mrb[0].mxu0 %v9900
    %v10350 = vpop.f32.mrb[0].mxu0
    %v10351 = vadd.f32 %v10254, %v10350
    %v10352 = vpop.f32.mrb[0].mxu0
    %v10353 = vpop.f32.mrb[0].mxu0
    %v10354 = vadd.f32 %v10257, %v10353
    %v10355 = vpop.f32.mrb[0].mxu0
    %10356 = vmatprep.mubr.bf16.mxu0 %v9905
    %10357 = vmatmul.mubr.bf16.gmra.mrb[0].mxu0 %v9904
    %v10358 = vpop.f32.mrb[0].mxu0
    %v10359 = vadd.f32 %v10262, %v10358
    %v10360 = vpop.f32.mrb[0].mxu0
    %v10361 = vpop.f32.mrb[0].mxu0
    %v10362 = vadd.f32 %v10265, %v10361
    %v10363 = vpop.f32.mrb[0].mxu0
    %10364 = vdwg.mxu0
    %v10365 = vadd.f32 %v8608, %v10303
    %v10366 = vadd.f32 %v8609, %v10306
    %v10367 = vadd.f32 %v8610, %v10311
    %v10368 = vadd.f32 %v8611, %v10314
    %v10369 = vadd.f32 %v8612, %v10319
    %v10370 = vadd.f32 %v8613, %v10322
    %v10371 = vadd.f32 %v8614, %v10327
    %v10372 = vadd.f32 %v8615, %v10330
    %v10373 = vadd.f32 %v8616, %v10335
    %v10374 = vadd.f32 %v8617, %v10338
    %v10375 = vadd.f32 %v8618, %v10343
    %v10376 = vadd.f32 %v8619, %v10346
    %v10377 = vadd.f32 %v8620, %v10351
    %v10378 = vadd.f32 %v8621, %v10354
    %v10379 = vadd.f32 %v8622, %v10359
    %v10380 = vadd.f32 %v8623, %v10362
    %v10381 = vld [vmem:[%s16] sm:$0x1]
    %v10382 = vld [vmem:[%s17] sm:$0x1]
    %10383 = vadd.xlane.f32.xlu0 %v10365
    %v10384 = vpop.xlane.xlu0 %10383
    %10385 = vadd.xlane.f32.xlu0 %v10366
    %v10386 = vpop.xlane.xlu0 %10385
    %10387 = vadd.xlane.f32.xlu0 %v10367
    %v10388 = vpop.xlane.xlu0 %10387
    %10389 = vadd.xlane.f32.xlu0 %v10368
    %v10390 = vpop.xlane.xlu0 %10389
    %10391 = vadd.xlane.f32.xlu0 %v10369
    %v10392 = vpop.xlane.xlu0 %10391
    %10393 = vadd.xlane.f32.xlu0 %v10370
    %v10394 = vpop.xlane.xlu0 %10393
    %10395 = vadd.xlane.f32.xlu0 %v10371
    %v10396 = vpop.xlane.xlu0 %10395
    %10397 = vadd.xlane.f32.xlu0 %v10372
    %v10398 = vpop.xlane.xlu0 %10397
    %10399 = vadd.xlane.f32.xlu0 %v10373
    %v10400 = vpop.xlane.xlu0 %10399
    %10401 = vadd.xlane.f32.xlu0 %v10374
    %v10402 = vpop.xlane.xlu0 %10401
    %10403 = vadd.xlane.f32.xlu0 %v10375
    %v10404 = vpop.xlane.xlu0 %10403
    %10405 = vadd.xlane.f32.xlu0 %v10376
    %v10406 = vpop.xlane.xlu0 %10405
    %10407 = vadd.xlane.f32.xlu0 %v10377
    %v10408 = vpop.xlane.xlu0 %10407
    %10409 = vadd.xlane.f32.xlu0 %v10378
    %v10410 = vpop.xlane.xlu0 %10409
    %10411 = vadd.xlane.f32.xlu0 %v10379
    %v10412 = vpop.xlane.xlu0 %10411
    %10413 = vadd.xlane.f32.xlu0 %v10380
    %v10414 = vpop.xlane.xlu0 %10413
    %v10415 = vmul.f32 %v10384, %v1215
    %v10416 = vmul.f32 %v10386, %v1215
    %v10417 = vmul.f32 %v10388, %v1215
    %v10418 = vmul.f32 %v10390, %v1215
    %v10419 = vmul.f32 %v10392, %v1215
    %v10420 = vmul.f32 %v10394, %v1215
    %v10421 = vmul.f32 %v10396, %v1215
    %v10422 = vmul.f32 %v10398, %v1215
    %v10423 = vmul.f32 %v10400, %v1215
    %v10424 = vmul.f32 %v10402, %v1215
    %v10425 = vmul.f32 %v10404, %v1215
    %v10426 = vmul.f32 %v10406, %v1215
    %v10427 = vmul.f32 %v10408, %v1215
    %v10428 = vmul.f32 %v10410, %v1215
    %v10429 = vmul.f32 %v10412, %v1215
    %v10430 = vmul.f32 %v10414, %v1215
    %v10431 = vsub.f32 %v10365, %v10415
    %v10432 = vsub.f32 %v10366, %v10416
    %v10433 = vsub.f32 %v10367, %v10417
    %v10434 = vsub.f32 %v10368, %v10418
    %v10435 = vsub.f32 %v10369, %v10419
    %v10436 = vsub.f32 %v10370, %v10420
    %v10437 = vsub.f32 %v10371, %v10421
    %v10438 = vsub.f32 %v10372, %v10422
    %v10439 = vsub.f32 %v10373, %v10423
    %v10440 = vsub.f32 %v10374, %v10424
    %v10441 = vsub.f32 %v10375, %v10425
    %v10442 = vsub.f32 %v10376, %v10426
    %v10443 = vsub.f32 %v10377, %v10427
    %v10444 = vsub.f32 %v10378, %v10428
    %v10445 = vsub.f32 %v10379, %v10429
    %v10446 = vsub.f32 %v10380, %v10430
    %v10447 = vmul.f32 %v10431, %v10431
    %v10448 = vmul.f32 %v10432, %v10432
    %v10449 = vmul.f32 %v10433, %v10433
    %v10450 = vmul.f32 %v10434, %v10434
    %v10451 = vmul.f32 %v10435, %v10435
    %v10452 = vmul.f32 %v10436, %v10436
    %v10453 = vmul.f32 %v10437, %v10437
    %v10454 = vmul.f32 %v10438, %v10438
    %v10455 = vmul.f32 %v10439, %v10439
    %v10456 = vmul.f32 %v10440, %v10440
    %v10457 = vmul.f32 %v10441, %v10441
    %v10458 = vmul.f32 %v10442, %v10442
    %v10459 = vmul.f32 %v10443, %v10443
    %v10460 = vmul.f32 %v10444, %v10444
    %v10461 = vmul.f32 %v10445, %v10445
    %v10462 = vmul.f32 %v10446, %v10446
    %10463 = vadd.xlane.f32.xlu0 %v10447
    %v10464 = vpop.xlane.xlu0 %10463
    %10465 = vadd.xlane.f32.xlu0 %v10448
    %v10466 = vpop.xlane.xlu0 %10465
    %10467 = vadd.xlane.f32.xlu0 %v10449
    %v10468 = vpop.xlane.xlu0 %10467
    %10469 = vadd.xlane.f32.xlu0 %v10450
    %v10470 = vpop.xlane.xlu0 %10469
    %10471 = vadd.xlane.f32.xlu0 %v10451
    %v10472 = vpop.xlane.xlu0 %10471
    %10473 = vadd.xlane.f32.xlu0 %v10452
    %v10474 = vpop.xlane.xlu0 %10473
    %10475 = vadd.xlane.f32.xlu0 %v10453
    %v10476 = vpop.xlane.xlu0 %10475
    %10477 = vadd.xlane.f32.xlu0 %v10454
    %v10478 = vpop.xlane.xlu0 %10477
    %10479 = vadd.xlane.f32.xlu0 %v10455
    %v10480 = vpop.xlane.xlu0 %10479
    %10481 = vadd.xlane.f32.xlu0 %v10456
    %v10482 = vpop.xlane.xlu0 %10481
    %10483 = vadd.xlane.f32.xlu0 %v10457
    %v10484 = vpop.xlane.xlu0 %10483
    %10485 = vadd.xlane.f32.xlu0 %v10458
    %v10486 = vpop.xlane.xlu0 %10485
    %10487 = vadd.xlane.f32.xlu0 %v10459
    %v10488 = vpop.xlane.xlu0 %10487
    %10489 = vadd.xlane.f32.xlu0 %v10460
    %v10490 = vpop.xlane.xlu0 %10489
    %10491 = vadd.xlane.f32.xlu0 %v10461
    %v10492 = vpop.xlane.xlu0 %10491
    %10493 = vadd.xlane.f32.xlu0 %v10462
    %v10494 = vpop.xlane.xlu0 %10493
    %v10495 = vmul.f32 %v10464, %v1215
    %v10496 = vmul.f32 %v10466, %v1215
    %v10497 = vmul.f32 %v10468, %v1215
    %v10498 = vmul.f32 %v10470, %v1215
    %v10499 = vmul.f32 %v10472, %v1215
    %v10500 = vmul.f32 %v10474, %v1215
    %v10501 = vmul.f32 %v10476, %v1215
    %v10502 = vmul.f32 %v10478, %v1215
    %v10503 = vmul.f32 %v10480, %v1215
    %v10504 = vmul.f32 %v10482, %v1215
    %v10505 = vmul.f32 %v10484, %v1215
    %v10506 = vmul.f32 %v10486, %v1215
    %v10507 = vmul.f32 %v10488, %v1215
    %v10508 = vmul.f32 %v10490, %v1215
    %v10509 = vmul.f32 %v10492, %v1215
    %v10510 = vmul.f32 %v10494, %v1215
    %v10511 = vadd.f32 %v10495, 1e-12
    %v10512 = vadd.f32 %v10496, 1e-12
    %v10513 = vadd.f32 %v10497, 1e-12
    %v10514 = vadd.f32 %v10498, 1e-12
    %v10515 = vadd.f32 %v10499, 1e-12
    %v10516 = vadd.f32 %v10500, 1e-12
    %v10517 = vadd.f32 %v10501, 1e-12
    %v10518 = vadd.f32 %v10502, 1e-12
    %v10519 = vadd.f32 %v10503, 1e-12
    %v10520 = vadd.f32 %v10504, 1e-12
    %v10521 = vadd.f32 %v10505, 1e-12
    %v10522 = vadd.f32 %v10506, 1e-12
    %v10523 = vadd.f32 %v10507, 1e-12
    %v10524 = vadd.f32 %v10508, 1e-12
    %v10525 = vadd.f32 %v10509, 1e-12
    %v10526 = vadd.f32 %v10510, 1e-12
    %v10527 = vrsqrt.pop %v10511
    %v10528 = vrsqrt.pop %v10512
    %v10529 = vrsqrt.pop %v10513
    %v10530 = vrsqrt.pop %v10514
    %v10531 = vrsqrt.pop %v10515
    %v10532 = vrsqrt.pop %v10516
    %v10533 = vrsqrt.pop %v10517
    %v10534 = vrsqrt.pop %v10518
    %v10535 = vrsqrt.pop %v10519
    %v10536 = vrsqrt.pop %v10520
    %v10537 = vrsqrt.pop %v10521
    %v10538 = vrsqrt.pop %v10522
    %v10539 = vrsqrt.pop %v10523
    %v10540 = vrsqrt.pop %v10524
    %v10541 = vrsqrt.pop %v10525
    %v10542 = vrsqrt.pop %v10526
    %v10543 = vmul.f32 %v10431, %v10527
    %v10544 = vmul.f32 %v10432, %v10528
    %v10545 = vmul.f32 %v10433, %v10529
    %v10546 = vmul.f32 %v10434, %v10530
    %v10547 = vmul.f32 %v10435, %v10531
    %v10548 = vmul.f32 %v10436, %v10532
    %v10549 = vmul.f32 %v10437, %v10533
    %v10550 = vmul.f32 %v10438, %v10534
    %v10551 = vmul.f32 %v10439, %v10535
    %v10552 = vmul.f32 %v10440, %v10536
    %v10553 = vmul.f32 %v10441, %v10537
    %v10554 = vmul.f32 %v10442, %v10538
    %v10555 = vmul.f32 %v10443, %v10539
    %v10556 = vmul.f32 %v10444, %v10540
    %v10557 = vmul.f32 %v10445, %v10541
    %v10558 = vmul.f32 %v10446, %v10542
    %v10560 = vlaneseq
    %v10561 = vshrl.u32 %v10560, 7
    %v10562 = vsub.s32 0, %v10561
    %v10563 = vrot.slane %v10381, %v10562
    %v10565 = vmul.f32 %v10543, %v10563
    %v10566 = vmul.f32 %v10544, %v10563
    %v10567 = vmul.f32 %v10545, %v10563
    %v10568 = vmul.f32 %v10546, %v10563
    %v10569 = vmul.f32 %v10547, %v10563
    %v10570 = vmul.f32 %v10548, %v10563
    %v10571 = vmul.f32 %v10549, %v10563
    %v10572 = vmul.f32 %v10550, %v10563
    %v10573 = vmul.f32 %v10551, %v10563
    %v10574 = vmul.f32 %v10552, %v10563
    %v10575 = vmul.f32 %v10553, %v10563
    %v10576 = vmul.f32 %v10554, %v10563
    %v10577 = vmul.f32 %v10555, %v10563
    %v10578 = vmul.f32 %v10556, %v10563
    %v10579 = vmul.f32 %v10557, %v10563
    %v10580 = vmul.f32 %v10558, %v10563
    %v10582 = vlaneseq
    %v10583 = vshrl.u32 %v10582, 7
    %v10584 = vsub.s32 0, %v10583
    %v10585 = vrot.slane %v10382, %v10584
    %v10587 = vadd.f32 %v10565, %v10585
    %v10588 = vadd.f32 %v10566, %v10585
    %v10589 = vadd.f32 %v10567, %v10585
    %v10590 = vadd.f32 %v10568, %v10585
    %v10591 = vadd.f32 %v10569, %v10585
    %v10592 = vadd.f32 %v10570, %v10585
    %v10593 = vadd.f32 %v10571, %v10585
    %v10594 = vadd.f32 %v10572, %v10585
    %v10595 = vadd.f32 %v10573, %v10585
    %v10596 = vadd.f32 %v10574, %v10585
    %v10597 = vadd.f32 %v10575, %v10585
    %v10598 = vadd.f32 %v10576, %v10585
    %v10599 = vadd.f32 %v10577, %v10585
    %v10600 = vadd.f32 %v10578, %v10585
    %v10601 = vadd.f32 %v10579, %v10585
    %v10602 = vadd.f32 %v10580, %v10585
    %v10603 = vpack.c.bf16 %v10588, %v10587
    %v10604 = vpack.c.bf16 %v10590, %v10589
    %v10605 = vpack.c.bf16 %v10592, %v10591
    %v10606 = vpack.c.bf16 %v10594, %v10593
    %v10607 = vpack.c.bf16 %v10596, %v10595
    %v10608 = vpack.c.bf16 %v10598, %v10597
    %v10609 = vpack.c.bf16 %v10600, %v10599
    %v10610 = vpack.c.bf16 %v10602, %v10601
    %v10611 = vld [vmem:[%s18] sm:$0xf]
    %v10612 = vld [vmem:[%s18 + $0x4] sm:$0xf]
    %v10613 = vld [vmem:[%s18 + $0x8] sm:$0xf]
    %v10614 = vld [vmem:[%s18 + $0xc] sm:$0xf]
    %v10615 = vld [vmem:[%s18 + $0x10] sm:$0xf]
    %v10616 = vld [vmem:[%s18 + $0x14] sm:$0xf]
    %v10617 = vld [vmem:[%s18 + $0x18] sm:$0xf]
    %v10618 = vld [vmem:[%s18 + $0x1c] sm:$0xf]
    %v10619 = vld [vmem:[%s18 + $0x20] sm:$0xf]
    %v10620 = vld [vmem:[%s18 + $0x24] sm:$0xf]
    %v10621 = vld [vmem:[%s18 + $0x28] sm:$0xf]
    %v10622 = vld [vmem:[%s18 + $0x2c] sm:$0xf]
    %v10623 = vld [vmem:[%s18 + $0x30] sm:$0xf]
    %v10624 = vld [vmem:[%s18 + $0x34] sm:$0xf]
    %v10625 = vld [vmem:[%s18 + $0x38] sm:$0xf]
    %v10626 = vld [vmem:[%s18 + $0x3c] sm:$0xf]
    %v10627 = vld [vmem:[#allocation15] sm:$0x1]
    %v10629 = vlaneseq
    %v10630 = vshrl.u32 %v10629, 7
    %v10631 = vsub.s32 0, %v10630
    %v10632 = vrot.slane %v10627, %v10631
    %v10650 = vunpack.c.l.b16 %v10611
    %v10651 = vunpack.c.l.b16 %v10612
    %v10652 = vunpack.c.l.b16 %v10613
    %v10653 = vunpack.c.l.b16 %v10614
    %v10654 = vunpack.c.l.b16 %v10615
    %v10655 = vunpack.c.l.b16 %v10616
    %v10656 = vunpack.c.l.b16 %v10617
    %v10657 = vunpack.c.l.b16 %v10618
    %v10658 = vunpack.c.l.b16 %v10619
    %v10659 = vunpack.c.l.b16 %v10620
    %v10660 = vunpack.c.l.b16 %v10621
    %v10661 = vunpack.c.l.b16 %v10622
    %v10662 = vunpack.c.l.b16 %v10623
    %v10663 = vunpack.c.l.b16 %v10624
    %v10664 = vunpack.c.l.b16 %v10625
    %v10665 = vunpack.c.l.b16 %v10626
    %v10666 = vpack.c.b16 %v10651, %v10650
    %v10667 = vpack.c.b16 %v10653, %v10652
    %v10668 = vpack.c.b16 %v10655, %v10654
    %v10669 = vpack.c.b16 %v10657, %v10656
    %v10670 = vpack.c.b16 %v10659, %v10658
    %v10671 = vpack.c.b16 %v10661, %v10660
    %v10672 = vpack.c.b16 %v10663, %v10662
    %v10673 = vpack.c.b16 %v10665, %v10664
    %10682 = vmatprep.subr.bf16.mxu0 0
    %10683 = vmatpush1.bf16.msra.mxu0 %v10666
    %10684 = vmatprep.subr.bf16.mxu0 0
    %10685 = vmatpush1.bf16.msra.mxu0 %v10667
    %10686 = vmatprep.subr.bf16.mxu0 0
    %10687 = vmatpush1.bf16.msra.mxu0 %v10668
    %10688 = vmatprep.subr.bf16.mxu0 0
    %10689 = vmatpush1.bf16.msra.mxu0 %v10669
    %10690 = vmatprep.subr.bf16.mxu0 0
    %10691 = vmatpush1.bf16.msra.mxu0 %v10670
    %10692 = vmatprep.subr.bf16.mxu0 0
    %10693 = vmatpush1.bf16.msra.mxu0 %v10671
    %10694 = vmatprep.subr.bf16.mxu0 0
    %10695 = vmatpush1.bf16.msra.mxu0 %v10672
    %10696 = vmatprep.subr.bf16.mxu0 0
    %10697 = vmatpush1.bf16.msra.mxu0 %v10673
    %10698 = vmatprep.subr.bf16.mxu0 0
    %10699 = vmatpush1.bf16.msra.mxu0 0
    %10700 = vmatprep.subr.bf16.mxu0 0
    %10701 = vmatpush1.bf16.msra.mxu0 0
    %10702 = vmatprep.subr.bf16.mxu0 0
    %10703 = vmatpush1.bf16.msra.mxu0 0
    %10704 = vmatprep.subr.bf16.mxu0 0
    %10705 = vmatpush1.bf16.msra.mxu0 0
    %10706 = vmatprep.subr.bf16.mxu0 0
    %10707 = vmatpush1.bf16.msra.mxu0 0
    %10708 = vmatprep.subr.bf16.mxu0 0
    %10709 = vmatpush1.bf16.msra.mxu0 0
    %10710 = vmatprep.subr.bf16.mxu0 0
    %10711 = vmatpush1.bf16.msra.mxu0 0
    %10712 = vmatprep.subr.bf16.mxu0 0
    %10713 = vmatpush1.bf16.msra.mxu0 0
    %10714 = vmatprep.mubr.bf16.mxu0 0
    %10715 = vmatmul.mubr.bf16.gmra.mrb[0].mxu0 %v10603
    %v10716 = vpop.f32.mrb[0].mxu0
    %v10717 = vadd.f32 %v10632, %v10716
    %v10718 = vpop.f32.mrb[0].mxu0
    %v10719 = vpop.f32.mrb[0].mxu0
    %v10720 = vadd.f32 %v10632, %v10719
    %v10721 = vpop.f32.mrb[0].mxu0
    %10722 = vmatprep.mubr.bf16.mxu0 0
    %10723 = vmatmul.mubr.bf16.gmra.mrb[0].mxu0 %v10604
    %v10724 = vpop.f32.mrb[0].mxu0
    %v10725 = vadd.f32 %v10632, %v10724
    %v10726 = vpop.f32.mrb[0].mxu0
    %v10727 = vpop.f32.mrb[0].mxu0
    %v10728 = vadd.f32 %v10632, %v10727
    %v10729 = vpop.f32.mrb[0].mxu0
    %10730 = vmatprep.mubr.bf16.mxu0 0
    %10731 = vmatmul.mubr.bf16.gmra.mrb[0].mxu0 %v10605
    %v10732 = vpop.f32.mrb[0].mxu0
    %v10733 = vadd.f32 %v10632, %v10732
    %v10734 = vpop.f32.mrb[0].mxu0
    %v10735 = vpop.f32.mrb[0].mxu0
    %v10736 = vadd.f32 %v10632, %v10735
    %v10737 = vpop.f32.mrb[0].mxu0
    %10738 = vmatprep.mubr.bf16.mxu0 0
    %10739 = vmatmul.mubr.bf16.gmra.mrb[0].mxu0 %v10606
    %v10740 = vpop.f32.mrb[0].mxu0
    %v10741 = vadd.f32 %v10632, %v10740
    %v10742 = vpop.f32.mrb[0].mxu0
    %v10743 = vpop.f32.mrb[0].mxu0
    %v10744 = vadd.f32 %v10632, %v10743
    %v10745 = vpop.f32.mrb[0].mxu0
    %10746 = vmatprep.mubr.bf16.mxu0 0
    %10747 = vmatmul.mubr.bf16.gmra.mrb[0].mxu0 %v10607
    %v10748 = vpop.f32.mrb[0].mxu0
    %v10749 = vadd.f32 %v10632, %v10748
    %v10750 = vpop.f32.mrb[0].mxu0
    %v10751 = vpop.f32.mrb[0].mxu0
    %v10752 = vadd.f32 %v10632, %v10751
    %v10753 = vpop.f32.mrb[0].mxu0
    %10754 = vmatprep.mubr.bf16.mxu0 0
    %10755 = vmatmul.mubr.bf16.gmra.mrb[0].mxu0 %v10608
    %v10756 = vpop.f32.mrb[0].mxu0
    %v10757 = vadd.f32 %v10632, %v10756
    %v10758 = vpop.f32.mrb[0].mxu0
    %v10759 = vpop.f32.mrb[0].mxu0
    %v10760 = vadd.f32 %v10632, %v10759
    %v10761 = vpop.f32.mrb[0].mxu0
    %10762 = vmatprep.mubr.bf16.mxu0 0
    %10763 = vmatmul.mubr.bf16.gmra.mrb[0].mxu0 %v10609
    %v10764 = vpop.f32.mrb[0].mxu0
    %v10765 = vadd.f32 %v10632, %v10764
    %v10766 = vpop.f32.mrb[0].mxu0
    %v10767 = vpop.f32.mrb[0].mxu0
    %v10768 = vadd.f32 %v10632, %v10767
    %v10769 = vpop.f32.mrb[0].mxu0
    %10770 = vmatprep.mubr.bf16.mxu0 0
    %10771 = vmatmul.mubr.bf16.gmra.mrb[0].mxu0 %v10610
    %v10772 = vpop.f32.mrb[0].mxu0
    %v10773 = vadd.f32 %v10632, %v10772
    %v10774 = vpop.f32.mrb[0].mxu0
    %v10775 = vpop.f32.mrb[0].mxu0
    %v10776 = vadd.f32 %v10632, %v10775
    %v10777 = vpop.f32.mrb[0].mxu0
    %10778 = vdwg.mxu0
    %10779 = vst [vmem:[%s20] sm:$0xff] %v10717
    %10780 = vst [vmem:[%s20 + $0x8] sm:$0xff] %v10720
    %10781 = vst [vmem:[%s20 + $0x10] sm:$0xff] %v10725
    %10782 = vst [vmem:[%s20 + $0x18] sm:$0xff] %v10728
    %10783 = vst [vmem:[%s20 + $0x20] sm:$0xff] %v10733
    %10784 = vst [vmem:[%s20 + $0x28] sm:$0xff] %v10736
    %10785 = vst [vmem:[%s20 + $0x30] sm:$0xff] %v10741
    %10786 = vst [vmem:[%s20 + $0x38] sm:$0xff] %v10744
    %10787 = vst [vmem:[%s20 + $0x40] sm:$0xff] %v10749
    %10788 = vst [vmem:[%s20 + $0x48] sm:$0xff] %v10752
    %10789 = vst [vmem:[%s20 + $0x50] sm:$0xff] %v10757
    %10790 = vst [vmem:[%s20 + $0x58] sm:$0xff] %v10760
    %10791 = vst [vmem:[%s20 + $0x60] sm:$0xff] %v10765
    %10792 = vst [vmem:[%s20 + $0x68] sm:$0xff] %v10768
    %10793 = vst [vmem:[%s20 + $0x70] sm:$0xff] %v10773
    %10794 = vst [vmem:[%s20 + $0x78] sm:$0xff] %v10776
    // Predicated region
    $region118: #{grasp_vit_forward.1} parent=1 // pred_check
      _
    $region119: #{grasp_vit_forward.1} parent=1 // pred_check_branch
      %10796 = sbr.rel (0) target = $region121
    $region120: #{grasp_vit_forward.1} parent=1 // pred_region
      _
    $region121: #{grasp_vit_forward.1} parent=1 // pred_fallthru
      _
    // Predicated region
    $region122: #{grasp_vit_forward.1} parent=1 // pred_check
      _
    $region123: #{grasp_vit_forward.1} parent=1 // pred_check_branch
      %10798 = sbr.rel (0) target = $region125
    $region124: #{grasp_vit_forward.1} parent=1 // pred_region
      _
    $region125: #{grasp_vit_forward.1} parent=1 // pred_fallthru
      _
    %10799 = vsyncpa [#allocation3], 1
    %10800 = vsyncpa [#allocation5], 1
    %10801 = vsyncpa [#allocation8], 1
    %10802 = vsyncpa [#allocation11], 1
    %10803 = vsyncpa [#allocation14], 1

</llo_original>
